<compile_context>
chip_gen: v6e
topology: v6e:2x2x1
jax: 0.10.0
libtpu: 0.0.40
codegen_flags: <defaults>
</compile_context>

<pallas_src>
import functools

import jax
import jax.numpy as jnp
from jax.experimental import pallas as pl
from jax.experimental.pallas import tpu as pltpu

NEG_SLOPE = 0.01  # torch nn.LeakyReLU() default negative_slope
LANE = 128
SUB = 8


def _round_up(x, m):
    return (x + m - 1) // m * m


# --------------------------- Pallas kernel -----------------------------------

def _gin_fused_kernel(alpha_ref, x_ref, w_ref, b_ref, mask_ref,
                      out_ref, stats_ref, act_a, act_b, *,
                      num_layers, layer_k, tap_offsets, margin,
                      p_frame_round, conv_chunk, blend_chunk, b_tile):
    """GIN conv stack + blend for B_tile images (one grid step).

    x_ref    : (B_tile, C_max, P_buf)  padded, flattened images (pixels on lanes)
    w_ref    : (L, 9, C_max, C_max)    per-layer per-tap weights, (cout, cin)
    b_ref    : (L, C_max, 1)           per-layer bias
    mask_ref : (1, P_buf)              1.0 at interior (real) pixels
    out_ref  : (B_tile, C_max, P_buf)  alpha*x + (1-alpha)*conv_stack(x)
    stats_ref: (2, LANE)               row0 = sum(x^2), row1 = sum(blend^2)
    act_a/b  : (C_max, P_buf)          VMEM ping-pong activation scratch
    """
    alpha = alpha_ref[0, 0]
    c_max = act_a.shape[0]
    p_buf = act_a.shape[-1]
    center = len(tap_offsets) // 2

    # Halo margins of the ping-pong buffers must hold zeros; the conv never
    # writes them, so zero just the two strips once per grid step.
    tail = p_buf - margin - p_frame_round
    for buf in (act_a, act_b):
        buf[:, :margin] = jnp.zeros((c_max, margin), jnp.float32)
        if tail > 0:
            buf[:, margin + p_frame_round:] = jnp.zeros((c_max, tail),
                                                        jnp.float32)

    ssq_in = jnp.zeros((1, 1), jnp.float32)
    ssq_bl = jnp.zeros((1, 1), jnp.float32)

    bufs = (act_a, act_b)
    for b in range(b_tile):

        def load_src(layer, start, size, _b=b):
            # Layer 0 reads straight from the input block (no full-buffer copy
            # into scratch); later layers read from the ping-pong scratch.
            if layer == 0:
                return x_ref[_b, :, pl.ds(start, size)]
            return bufs[(layer - 1) % 2][:, pl.ds(start, size)]

        # ---- conv stack, all layers VMEM-resident ---------------------------
        for l in range(num_layers):
            dst = bufs[l % 2]
            b_l = b_ref[l]                                   # (C_max, 1)
            for cs in range(0, p_frame_round, conv_chunk):
                cl = min(conv_chunk, p_frame_round - cs)     # multiple of 128
                base = margin + cs                           # 128-aligned
                if layer_k[l] == 1:
                    # 1x1 conv: single aligned center-tap dot.
                    y = jnp.dot(w_ref[l, center], load_src(l, base, cl),
                                preferred_element_type=jnp.float32)
                else:
                    # 3x3 conv: accumulate nine small dots; no xcol concat, so
                    # only a few vregs are live per chunk.
                    y = None
                    for t, off in enumerate(tap_offsets):
                        d = jnp.dot(w_ref[l, t],
                                    load_src(l, base + off, cl),
                                    preferred_element_type=jnp.float32)
                        y = d if y is None else y + d
                y = y + b_l
                y = jnp.where(y >= 0.0, y, NEG_SLOPE * y)    # LeakyReLU
                # Zero the SAME-padding ring / rounded-overrun lanes so the
                # next layer's taps see correct halos.
                y = y * mask_ref[:, pl.ds(base, cl)]
                dst[:, pl.ds(base, cl)] = y                  # lane-dense store

        final = bufs[(num_layers - 1) % 2]

        # ---- blend + Frobenius partial sums (interior lanes only) ----------
        for cs in range(0, p_frame_round, blend_chunk):
            cl = min(blend_chunk, p_frame_round - cs)
            base = margin + cs
            xin = x_ref[b, :, pl.ds(base, cl)]
            act = final[:, pl.ds(base, cl)]
            bl = alpha * xin + (1.0 - alpha) * act
            out_ref[b, :, pl.ds(base, cl)] = bl
            ssq_in = ssq_in + jnp.sum(
                jnp.sum(xin * xin, axis=1, keepdims=True), axis=0, keepdims=True)
            ssq_bl = ssq_bl + jnp.sum(
                jnp.sum(bl * bl, axis=1, keepdims=True), axis=0, keepdims=True)

    row = jax.lax.broadcasted_iota(jnp.int32, (2, LANE), 0)
    stats_ref[...] = jnp.where(row == 0, ssq_in, ssq_bl)


# --------------------------- wrapper -----------------------------------------

def gin_net_forward(x_nchw, params, alpha, *, conv_chunk=1024, blend_chunk=2048,
                    max_batch_tile=8):
    """GinNet forward.  x_nchw: (N, C, H, W) float32."""
    x_nchw = x_nchw.astype(jnp.float32)
    N, C, H, W = x_nchw.shape
    L = len(params)
    T = 9

    c_hid = max(max(w.shape[2] for (w, _) in params),
                max(w.shape[3] for (w, _) in params))
    C_max = _round_up(max(C, c_hid), SUB)
    Hp, Wp = H + 2, W + 2
    Ppad = Hp * Wp
    margin = _round_up(Wp + 1, LANE)              # 128-aligned halo on lanes
    p_frame_round = _round_up(Ppad, LANE)         # interior rounded to lanes
    P_buf = 2 * margin + p_frame_round

    # Chunk sizes: force multiples of 128 and scale with C_max so vreg
    # pressure stays bounded even if hidden_channels > 8.
    conv_chunk = _round_up(max(conv_chunk * SUB // C_max, LANE), LANE)
    blend_chunk = _round_up(max(blend_chunk * SUB // C_max, LANE), LANE)

    # Batch tile: largest divisor of N (padded zero-images would corrupt the
    # global Frobenius sums, so only exact divisors are used).
    b_tile = max(d for d in range(1, min(N, max_batch_tile) + 1) if N % d == 0)
    G = N // b_tile

    # ---- host-side layout prep (single pass; no im2col in HBM) -------------
    xp = jnp.pad(x_nchw, ((0, 0), (0, C_max - C), (1, 1), (1, 1)))
    xp = xp.reshape(N, C_max, Ppad)
    xp = jnp.pad(xp, ((0, 0), (0, 0), (margin, P_buf - Ppad - margin)))

    m2 = jnp.zeros((Hp, Wp), jnp.float32).at[1:H + 1, 1:W + 1].set(1.0)
    mask = jnp.zeros((1, P_buf), jnp.float32)
    mask = mask.at[0, margin:margin + Ppad].set(m2.reshape(-1))

    # Per-tap folded weights (cout, cin); K=1 layers occupy only tap 4.
    w_all = jnp.zeros((L, T, C_max, C_max), jnp.float32)
    b_all = jnp.zeros((L, C_max, 1), jnp.float32)
    layer_k = []
    for l, (w, b) in enumerate(params):
        K, _, cin, cout = w.shape
        layer_k.append(int(K))
        off = (3 - K) // 2
        w3 = jnp.zeros((3, 3, C_max, C_max), jnp.float32)
        w3 = w3.at[off:off + K, off:off + K, :cin, :cout].set(w)
        # (3,3,cin,cout) -> (9, cout, cin)
        w_all = w_all.at[l].set(
            jnp.transpose(w3, (0, 1, 3, 2)).reshape(T, C_max, C_max))
        b_all = b_all.at[l, :cout, 0].set(b)
    layer_k = tuple(layer_k)

    tap_offsets = tuple((dy - 1) * Wp + (dx - 1)
                        for dy in range(3) for dx in range(3))
    alpha_arr = jnp.asarray(alpha, jnp.float32).reshape(1, 1)

    kernel = functools.partial(
        _gin_fused_kernel, num_layers=L, layer_k=layer_k,
        tap_offsets=tap_offsets, margin=margin,
        p_frame_round=p_frame_round, conv_chunk=conv_chunk,
        blend_chunk=blend_chunk, b_tile=b_tile)

    blended, stats = pl.pallas_call(
        kernel,
        out_shape=(jax.ShapeDtypeStruct((N, C_max, P_buf), jnp.float32),
                   jax.ShapeDtypeStruct((G, 2, LANE), jnp.float32)),
        grid=(G,),
        in_specs=[
            pl.BlockSpec((1, 1), lambda g: (0, 0),
                         memory_space=pltpu.MemorySpace.SMEM),        # alpha
            pl.BlockSpec((b_tile, C_max, P_buf), lambda g: (g, 0, 0)),  # x
            pl.BlockSpec((L, T, C_max, C_max), lambda g: (0, 0, 0, 0)),  # w
            pl.BlockSpec((L, C_max, 1), lambda g: (0, 0, 0)),            # b
            pl.BlockSpec((1, P_buf), lambda g: (0, 0)),                  # mask
        ],
        out_specs=[
            pl.BlockSpec((b_tile, C_max, P_buf), lambda g: (g, 0, 0)),
            pl.BlockSpec((None, 2, LANE), lambda g: (g, 0, 0)),
        ],
        scratch_shapes=[pltpu.VMEM((C_max, P_buf), jnp.float32),
                        pltpu.VMEM((C_max, P_buf), jnp.float32)],
        compiler_params=pltpu.CompilerParams(
            dimension_semantics=("parallel",)),
    )(alpha_arr, xp, w_all, b_all, mask)

    # ---- pass 2: global Frobenius rescale (fused crop+scale in XLA) --------
    ssq_in = jnp.sum(stats[:, 0, 0])
    ssq_bl = jnp.sum(stats[:, 1, 0])
    scale = jnp.sqrt(ssq_in) * jax.lax.rsqrt(ssq_bl)

    core = blended[:, :C, margin:margin + Ppad].reshape(N, C, Hp, Wp)
    out = core[:, :, 1:H + 1, 1:W + 1] * scale
    return out


# --------------------------- GinNet parameterisation -------------------------

def make_gin_params(key, dim, input_channels, hidden_layers, hidden_channels,
                    p_kernel_size_1=0.5):
    """Deterministically sample what GinNet.forward() samples at random:
    per-layer kernel-size choice, kaiming-uniform weights, uniform biases,
    and the blend coefficient alpha."""
    assert dim == 2  # TODO(synk): dim==3 (nn.Conv3d) variant not implemented
    layer_dims = ([input_channels] + [hidden_channels] * (hidden_layers - 1)
                  + [input_channels])
    params = []
    for i in range(len(layer_dims) - 1):
        cin, cout = layer_dims[i], layer_dims[i + 1]
        key, k_choice, k_w, k_b = jax.random.split(key, 4)
        use_k1 = bool(jax.random.uniform(k_choice) < p_kernel_size_1)
        K = 1 if use_k1 else 3
        fan_in = cin * K * K
        bound = (6.0 / fan_in) ** 0.5  # kaiming_uniform_ (gain=sqrt(2), a=0)
        w = jax.random.uniform(k_w, (K, K, cin, cout), jnp.float32,
                               -bound, bound)
        b = jax.random.uniform(k_b, (cout,), jnp.float32, 0.0, 1.0)
        params.append((w, b))
    key, k_alpha = jax.random.split(key)
    alpha = jax.random.uniform(k_alpha, (), jnp.float32)
    return params, alpha


# --------------------------- pure-JAX reference ------------------------------

def gin_net_reference(x_nchw, params, alpha):
    inp = jnp.transpose(x_nchw, (0, 2, 3, 1)).astype(jnp.float32)
    x = inp
    for (w, b) in params:
        y = jax.lax.conv_general_dilated(
            x, w, window_strides=(1, 1), padding="SAME",
            dimension_numbers=("NHWC", "HWIO", "NHWC"))
        y = y + b
        x = jnp.where(y >= 0, y, NEG_SLOPE * y)
    out = alpha * inp + (1.0 - alpha) * x
    out = out * (jnp.linalg.norm(inp) / jnp.linalg.norm(out))
    return jnp.transpose(out, (0, 3, 1, 2))


# --------------------------- main --------------------------------------------

if __name__ == "__main__":
    key = jax.random.PRNGKey(0)
    N, C, H, W = 2, 4, 16, 16
    hidden_layers, hidden_channels = 3, 8

    key, kx, kp = jax.random.split(key, 3)
    x_nchw = jax.random.normal(kx, (N, C, H, W), jnp.float32)

    params, alpha = make_gin_params(
        kp, dim=2, input_channels=C, hidden_layers=hidden_layers,
        hidden_channels=hidden_channels, p_kernel_size_1=0.5)

    out = gin_net_forward(x_nchw, params, alpha)
    out = jax.block_until_ready(out)

    ref = jax.block_until_ready(gin_net_reference(x_nchw, params, alpha))
    assert out.shape == x_nchw.shape and out.dtype == jnp.float32
    max_err = float(jnp.max(jnp.abs(out - ref)))
    if max_err > 2e-2:
        raise AssertionError(f"Pallas result mismatch, max abs err {max_err}")

    print("KERNEL_OK")
</pallas_src>

<mosaic_0001>
module attributes {stable_mosaic.version = 11 : i64} {
  func.func @_gin_fused_kernel(%arg0: i32, %arg1: memref<1x1xf32, #tpu.memory_space<smem>>, %arg2: memref<2x8x640xf32, #tpu.memory_space<vmem>>, %arg3: memref<3x9x8x8xf32, #tpu.memory_space<vmem>>, %arg4: memref<3x8x1xf32, #tpu.memory_space<vmem>>, %arg5: memref<1x640xf32, #tpu.memory_space<vmem>>, %arg6: memref<2x8x640xf32, #tpu.memory_space<vmem>>, %arg7: memref<1x2x128xf32, #tpu.memory_space<vmem>>, %arg8: memref<8x640xf32, #tpu.memory_space<vmem>>, %arg9: memref<8x640xf32, #tpu.memory_space<vmem>>) attributes {dimension_semantics = [#tpu.dimension_semantics<parallel>], iteration_bounds = array<i64: 1>, scalar_prefetch = 0 : i64, scratch_operands = 2 : i64, tpu.core_type = #tpu.core_type<tc>, window_params = [{transform_indices = @transform_0, window_bounds = array<i64: 1, 1>}, {transform_indices = @transform_1, window_bounds = array<i64: 2, 8, 640>}, {pipeline_mode = #tpu.pipeline_mode<synchronous>, transform_indices = @transform_2, window_bounds = array<i64: 3, 9, 8, 8>}, {pipeline_mode = #tpu.pipeline_mode<synchronous>, transform_indices = @transform_3, window_bounds = array<i64: 3, 8, 1>}, {pipeline_mode = #tpu.pipeline_mode<synchronous>, transform_indices = @transform_4, window_bounds = array<i64: 1, 640>}, {transform_indices = @transform_5, window_bounds = array<i64: 2, 8, 640>}, {transform_indices = @transform_6, window_bounds = array<i64: 1, 2, 128>}]} {
    %c0 = arith.constant 0 : index
    %c0_0 = arith.constant 0 : index
    %0 = memref.load %arg1[%c0, %c0_0] : memref<1x1xf32, #tpu.memory_space<smem>>
    %cst = arith.constant 0.000000e+00 : f32
    %1 = vector.broadcast %cst : f32 to vector<8x128xf32>
    %c0_1 = arith.constant 0 : index
    %c0_2 = arith.constant 0 : index
    %2 = vector.load %arg8[%c0_1, %c0_2] : memref<8x640xf32, #tpu.memory_space<vmem>>, vector<8x128xf32>
    tpu.vector_store %arg8[%c0_1, %c0_2], %1 {strides = array<i32>} : memref<8x640xf32, #tpu.memory_space<vmem>>, vector<8x128xf32>,
    %cst_3 = arith.constant 0.000000e+00 : f32
    %3 = vector.broadcast %cst_3 : f32 to vector<8x128xf32>
    %c0_4 = arith.constant 0 : index
    %c512 = arith.constant 512 : index
    %4 = vector.load %arg8[%c0_4, %c512] : memref<8x640xf32, #tpu.memory_space<vmem>>, vector<8x128xf32>
    tpu.vector_store %arg8[%c0_4, %c512], %3 {strides = array<i32>} : memref<8x640xf32, #tpu.memory_space<vmem>>, vector<8x128xf32>,
    %cst_5 = arith.constant 0.000000e+00 : f32
    %5 = vector.broadcast %cst_5 : f32 to vector<8x128xf32>
    %c0_6 = arith.constant 0 : index
    %c0_7 = arith.constant 0 : index
    %6 = vector.load %arg9[%c0_6, %c0_7] : memref<8x640xf32, #tpu.memory_space<vmem>>, vector<8x128xf32>
    tpu.vector_store %arg9[%c0_6, %c0_7], %5 {strides = array<i32>} : memref<8x640xf32, #tpu.memory_space<vmem>>, vector<8x128xf32>,
    %cst_8 = arith.constant 0.000000e+00 : f32
    %7 = vector.broadcast %cst_8 : f32 to vector<8x128xf32>
    %c0_9 = arith.constant 0 : index
    %c512_10 = arith.constant 512 : index
    %8 = vector.load %arg9[%c0_9, %c512_10] : memref<8x640xf32, #tpu.memory_space<vmem>>, vector<8x128xf32>
    tpu.vector_store %arg9[%c0_9, %c512_10], %7 {strides = array<i32>} : memref<8x640xf32, #tpu.memory_space<vmem>>, vector<8x128xf32>,
    %cst_11 = arith.constant 0.000000e+00 : f32
    %9 = vector.broadcast %cst_11 : f32 to vector<1x1xf32>
    %cst_12 = arith.constant 0.000000e+00 : f32
    %10 = vector.broadcast %cst_12 : f32 to vector<1x1xf32>
    %c0_13 = arith.constant 0 : index
    %c0_14 = arith.constant 0 : index
    %c0_15 = arith.constant 0 : index
    %11 = vector.load %arg4[%c0_13, %c0_14, %c0_15] : memref<3x8x1xf32, #tpu.memory_space<vmem>>, vector<1x8x1xf32>
    %12 = vector.shape_cast %11 : vector<1x8x1xf32> to vector<8x1xf32>
    %c0_16 = arith.constant 0 : index
    %c0_17 = arith.constant 0 : index
    %c0_18 = arith.constant 0 : index
    %c0_19 = arith.constant 0 : index
    %13 = vector.load %arg3[%c0_16, %c0_17, %c0_18, %c0_19] : memref<3x9x8x8xf32, #tpu.memory_space<vmem>>, vector<1x1x8x8xf32>
    %14 = vector.shape_cast %13 : vector<1x1x8x8xf32> to vector<8x8xf32>
    %c0_20 = arith.constant 0 : index
    %c0_21 = arith.constant 0 : index
    %c109 = arith.constant 109 : index
    %15 = vector.load %arg2[%c0_20, %c0_21, %c109] : memref<2x8x640xf32, #tpu.memory_space<vmem>>, vector<1x8x384xf32>
    %16 = vector.shape_cast %15 : vector<1x8x384xf32> to vector<8x384xf32>
    %cst_22 = arith.constant dense<0.000000e+00> : vector<8x384xf32>
    %17 = tpu.matmul %14, %16, %cst_22 {dimension_numbers = #tpu.dot_dimension_numbers<[1], [0], [0], [1], [0, 0, 1, 1], [], []>} : vector<8x8xf32>, vector<8x384xf32>, vector<8x384xf32> -> vector<8x384xf32>
    %c0_23 = arith.constant 0 : index
    %c1 = arith.constant 1 : index
    %c0_24 = arith.constant 0 : index
    %c0_25 = arith.constant 0 : index
    %18 = vector.load %arg3[%c0_23, %c1, %c0_24, %c0_25] : memref<3x9x8x8xf32, #tpu.memory_space<vmem>>, vector<1x1x8x8xf32>
    %19 = vector.shape_cast %18 : vector<1x1x8x8xf32> to vector<8x8xf32>
    %c0_26 = arith.constant 0 : index
    %c0_27 = arith.constant 0 : index
    %c110 = arith.constant 110 : index
    %20 = vector.load %arg2[%c0_26, %c0_27, %c110] : memref<2x8x640xf32, #tpu.memory_space<vmem>>, vector<1x8x384xf32>
    %21 = vector.shape_cast %20 : vector<1x8x384xf32> to vector<8x384xf32>
    %cst_28 = arith.constant dense<0.000000e+00> : vector<8x384xf32>
    %22 = tpu.matmul %19, %21, %cst_28 {dimension_numbers = #tpu.dot_dimension_numbers<[1], [0], [0], [1], [0, 0, 1, 1], [], []>} : vector<8x8xf32>, vector<8x384xf32>, vector<8x384xf32> -> vector<8x384xf32>
    %23 = arith.addf %17, %22 : vector<8x384xf32>
    %c0_29 = arith.constant 0 : index
    %c2 = arith.constant 2 : index
    %c0_30 = arith.constant 0 : index
    %c0_31 = arith.constant 0 : index
    %24 = vector.load %arg3[%c0_29, %c2, %c0_30, %c0_31] : memref<3x9x8x8xf32, #tpu.memory_space<vmem>>, vector<1x1x8x8xf32>
    %25 = vector.shape_cast %24 : vector<1x1x8x8xf32> to vector<8x8xf32>
    %c0_32 = arith.constant 0 : index
    %c0_33 = arith.constant 0 : index
    %c111 = arith.constant 111 : index
    %26 = vector.load %arg2[%c0_32, %c0_33, %c111] : memref<2x8x640xf32, #tpu.memory_space<vmem>>, vector<1x8x384xf32>
    %27 = vector.shape_cast %26 : vector<1x8x384xf32> to vector<8x384xf32>
    %cst_34 = arith.constant dense<0.000000e+00> : vector<8x384xf32>
    %28 = tpu.matmul %25, %27, %cst_34 {dimension_numbers = #tpu.dot_dimension_numbers<[1], [0], [0], [1], [0, 0, 1, 1], [], []>} : vector<8x8xf32>, vector<8x384xf32>, vector<8x384xf32> -> vector<8x384xf32>
    %29 = arith.addf %23, %28 : vector<8x384xf32>
    %c0_35 = arith.constant 0 : index
    %c3 = arith.constant 3 : index
    %c0_36 = arith.constant 0 : index
    %c0_37 = arith.constant 0 : index
    %30 = vector.load %arg3[%c0_35, %c3, %c0_36, %c0_37] : memref<3x9x8x8xf32, #tpu.memory_space<vmem>>, vector<1x1x8x8xf32>
    %31 = vector.shape_cast %30 : vector<1x1x8x8xf32> to vector<8x8xf32>
    %c0_38 = arith.constant 0 : index
    %c0_39 = arith.constant 0 : index
    %c127 = arith.constant 127 : index
    %32 = vector.load %arg2[%c0_38, %c0_39, %c127] : memref<2x8x640xf32, #tpu.memory_space<vmem>>, vector<1x8x384xf32>
    %33 = vector.shape_cast %32 : vector<1x8x384xf32> to vector<8x384xf32>
    %cst_40 = arith.constant dense<0.000000e+00> : vector<8x384xf32>
    %34 = tpu.matmul %31, %33, %cst_40 {dimension_numbers = #tpu.dot_dimension_numbers<[1], [0], [0], [1], [0, 0, 1, 1], [], []>} : vector<8x8xf32>, vector<8x384xf32>, vector<8x384xf32> -> vector<8x384xf32>
    %35 = arith.addf %29, %34 : vector<8x384xf32>
    %c0_41 = arith.constant 0 : index
    %c4 = arith.constant 4 : index
    %c0_42 = arith.constant 0 : index
    %c0_43 = arith.constant 0 : index
    %36 = vector.load %arg3[%c0_41, %c4, %c0_42, %c0_43] : memref<3x9x8x8xf32, #tpu.memory_space<vmem>>, vector<1x1x8x8xf32>
    %37 = vector.shape_cast %36 : vector<1x1x8x8xf32> to vector<8x8xf32>
    %c0_44 = arith.constant 0 : index
    %c0_45 = arith.constant 0 : index
    %c128 = arith.constant 128 : index
    %38 = vector.load %arg2[%c0_44, %c0_45, %c128] : memref<2x8x640xf32, #tpu.memory_space<vmem>>, vector<1x8x384xf32>
    %39 = vector.shape_cast %38 : vector<1x8x384xf32> to vector<8x384xf32>
    %cst_46 = arith.constant dense<0.000000e+00> : vector<8x384xf32>
    %40 = tpu.matmul %37, %39, %cst_46 {dimension_numbers = #tpu.dot_dimension_numbers<[1], [0], [0], [1], [0, 0, 1, 1], [], []>} : vector<8x8xf32>, vector<8x384xf32>, vector<8x384xf32> -> vector<8x384xf32>
    %41 = arith.addf %35, %40 : vector<8x384xf32>
    %c0_47 = arith.constant 0 : index
    %c5 = arith.constant 5 : index
    %c0_48 = arith.constant 0 : index
    %c0_49 = arith.constant 0 : index
    %42 = vector.load %arg3[%c0_47, %c5, %c0_48, %c0_49] : memref<3x9x8x8xf32, #tpu.memory_space<vmem>>, vector<1x1x8x8xf32>
    %43 = vector.shape_cast %42 : vector<1x1x8x8xf32> to vector<8x8xf32>
    %c0_50 = arith.constant 0 : index
    %c0_51 = arith.constant 0 : index
    %c129 = arith.constant 129 : index
    %44 = vector.load %arg2[%c0_50, %c0_51, %c129] : memref<2x8x640xf32, #tpu.memory_space<vmem>>, vector<1x8x384xf32>
    %45 = vector.shape_cast %44 : vector<1x8x384xf32> to vector<8x384xf32>
    %cst_52 = arith.constant dense<0.000000e+00> : vector<8x384xf32>
    %46 = tpu.matmul %43, %45, %cst_52 {dimension_numbers = #tpu.dot_dimension_numbers<[1], [0], [0], [1], [0, 0, 1, 1], [], []>} : vector<8x8xf32>, vector<8x384xf32>, vector<8x384xf32> -> vector<8x384xf32>
    %47 = arith.addf %41, %46 : vector<8x384xf32>
    %c0_53 = arith.constant 0 : index
    %c6 = arith.constant 6 : index
    %c0_54 = arith.constant 0 : index
    %c0_55 = arith.constant 0 : index
    %48 = vector.load %arg3[%c0_53, %c6, %c0_54, %c0_55] : memref<3x9x8x8xf32, #tpu.memory_space<vmem>>, vector<1x1x8x8xf32>
    %49 = vector.shape_cast %48 : vector<1x1x8x8xf32> to vector<8x8xf32>
    %c0_56 = arith.constant 0 : index
    %c0_57 = arith.constant 0 : index
    %c145 = arith.constant 145 : index
    %50 = vector.load %arg2[%c0_56, %c0_57, %c145] : memref<2x8x640xf32, #tpu.memory_space<vmem>>, vector<1x8x384xf32>
    %51 = vector.shape_cast %50 : vector<1x8x384xf32> to vector<8x384xf32>
    %cst_58 = arith.constant dense<0.000000e+00> : vector<8x384xf32>
    %52 = tpu.matmul %49, %51, %cst_58 {dimension_numbers = #tpu.dot_dimension_numbers<[1], [0], [0], [1], [0, 0, 1, 1], [], []>} : vector<8x8xf32>, vector<8x384xf32>, vector<8x384xf32> -> vector<8x384xf32>
    %53 = arith.addf %47, %52 : vector<8x384xf32>
    %c0_59 = arith.constant 0 : index
    %c7 = arith.constant 7 : index
    %c0_60 = arith.constant 0 : index
    %c0_61 = arith.constant 0 : index
    %54 = vector.load %arg3[%c0_59, %c7, %c0_60, %c0_61] : memref<3x9x8x8xf32, #tpu.memory_space<vmem>>, vector<1x1x8x8xf32>
    %55 = vector.shape_cast %54 : vector<1x1x8x8xf32> to vector<8x8xf32>
    %c0_62 = arith.constant 0 : index
    %c0_63 = arith.constant 0 : index
    %c146 = arith.constant 146 : index
    %56 = vector.load %arg2[%c0_62, %c0_63, %c146] : memref<2x8x640xf32, #tpu.memory_space<vmem>>, vector<1x8x384xf32>
    %57 = vector.shape_cast %56 : vector<1x8x384xf32> to vector<8x384xf32>
    %cst_64 = arith.constant dense<0.000000e+00> : vector<8x384xf32>
    %58 = tpu.matmul %55, %57, %cst_64 {dimension_numbers = #tpu.dot_dimension_numbers<[1], [0], [0], [1], [0, 0, 1, 1], [], []>} : vector<8x8xf32>, vector<8x384xf32>, vector<8x384xf32> -> vector<8x384xf32>
    %59 = arith.addf %53, %58 : vector<8x384xf32>
    %c0_65 = arith.constant 0 : index
    %c8 = arith.constant 8 : index
    %c0_66 = arith.constant 0 : index
    %c0_67 = arith.constant 0 : index
    %60 = vector.load %arg3[%c0_65, %c8, %c0_66, %c0_67] : memref<3x9x8x8xf32, #tpu.memory_space<vmem>>, vector<1x1x8x8xf32>
    %61 = vector.shape_cast %60 : vector<1x1x8x8xf32> to vector<8x8xf32>
    %c0_68 = arith.constant 0 : index
    %c0_69 = arith.constant 0 : index
    %c147 = arith.constant 147 : index
    %62 = vector.load %arg2[%c0_68, %c0_69, %c147] : memref<2x8x640xf32, #tpu.memory_space<vmem>>, vector<1x8x384xf32>
    %63 = vector.shape_cast %62 : vector<1x8x384xf32> to vector<8x384xf32>
    %cst_70 = arith.constant dense<0.000000e+00> : vector<8x384xf32>
    %64 = tpu.matmul %61, %63, %cst_70 {dimension_numbers = #tpu.dot_dimension_numbers<[1], [0], [0], [1], [0, 0, 1, 1], [], []>} : vector<8x8xf32>, vector<8x384xf32>, vector<8x384xf32> -> vector<8x384xf32>
    %65 = arith.addf %59, %64 : vector<8x384xf32>
    %66 = vector.broadcast %12 : vector<8x1xf32> to vector<8x384xf32>
    %67 = arith.addf %65, %66 : vector<8x384xf32>
    %cst_71 = arith.constant 0.000000e+00 : f32
    %68 = vector.broadcast %cst_71 : f32 to vector<8x384xf32>
    %69 = arith.cmpf oge, %67, %68 : vector<8x384xf32>
    %cst_72 = arith.constant 0.00999999977 : f32
    %70 = vector.broadcast %cst_72 : f32 to vector<8x384xf32>
    %71 = arith.mulf %70, %67 : vector<8x384xf32>
    %72 = arith.select %69, %67, %71 : vector<8x384xi1>, vector<8x384xf32>
    %c0_73 = arith.constant 0 : index
    %c128_74 = arith.constant 128 : index
    %73 = vector.load %arg5[%c0_73, %c128_74] : memref<1x640xf32, #tpu.memory_space<vmem>>, vector<1x384xf32>
    %74 = vector.broadcast %73 : vector<1x384xf32> to vector<8x384xf32>
    %75 = arith.mulf %72, %74 : vector<8x384xf32>
    %c0_75 = arith.constant 0 : index
    %c128_76 = arith.constant 128 : index
    %76 = vector.load %arg8[%c0_75, %c128_76] : memref<8x640xf32, #tpu.memory_space<vmem>>, vector<8x384xf32>
    tpu.vector_store %arg8[%c0_75, %c128_76], %75 {strides = array<i32>} : memref<8x640xf32, #tpu.memory_space<vmem>>, vector<8x384xf32>,
    %c1_77 = arith.constant 1 : index
    %c0_78 = arith.constant 0 : index
    %c0_79 = arith.constant 0 : index
    %77 = vector.load %arg4[%c1_77, %c0_78, %c0_79] : memref<3x8x1xf32, #tpu.memory_space<vmem>>, vector<1x8x1xf32>
    %78 = vector.shape_cast %77 : vector<1x8x1xf32> to vector<8x1xf32>
    %c1_80 = arith.constant 1 : index
    %c0_81 = arith.constant 0 : index
    %c0_82 = arith.constant 0 : index
    %c0_83 = arith.constant 0 : index
    %79 = vector.load %arg3[%c1_80, %c0_81, %c0_82, %c0_83] : memref<3x9x8x8xf32, #tpu.memory_space<vmem>>, vector<1x1x8x8xf32>
    %80 = vector.shape_cast %79 : vector<1x1x8x8xf32> to vector<8x8xf32>
    %c0_84 = arith.constant 0 : index
    %c109_85 = arith.constant 109 : index
    %81 = vector.load %arg8[%c0_84, %c109_85] : memref<8x640xf32, #tpu.memory_space<vmem>>, vector<8x384xf32>
    %cst_86 = arith.constant dense<0.000000e+00> : vector<8x384xf32>
    %82 = tpu.matmul %80, %81, %cst_86 {dimension_numbers = #tpu.dot_dimension_numbers<[1], [0], [0], [1], [0, 0, 1, 1], [], []>} : vector<8x8xf32>, vector<8x384xf32>, vector<8x384xf32> -> vector<8x384xf32>
    %c1_87 = arith.constant 1 : index
    %c1_88 = arith.constant 1 : index
    %c0_89 = arith.constant 0 : index
    %c0_90 = arith.constant 0 : index
    %83 = vector.load %arg3[%c1_87, %c1_88, %c0_89, %c0_90] : memref<3x9x8x8xf32, #tpu.memory_space<vmem>>, vector<1x1x8x8xf32>
    %84 = vector.shape_cast %83 : vector<1x1x8x8xf32> to vector<8x8xf32>
    %c0_91 = arith.constant 0 : index
    %c110_92 = arith.constant 110 : index
    %85 = vector.load %arg8[%c0_91, %c110_92] : memref<8x640xf32, #tpu.memory_space<vmem>>, vector<8x384xf32>
    %cst_93 = arith.constant dense<0.000000e+00> : vector<8x384xf32>
    %86 = tpu.matmul %84, %85, %cst_93 {dimension_numbers = #tpu.dot_dimension_numbers<[1], [0], [0], [1], [0, 0, 1, 1], [], []>} : vector<8x8xf32>, vector<8x384xf32>, vector<8x384xf32> -> vector<8x384xf32>
    %87 = arith.addf %82, %86 : vector<8x384xf32>
    %c1_94 = arith.constant 1 : index
    %c2_95 = arith.constant 2 : index
    %c0_96 = arith.constant 0 : index
    %c0_97 = arith.constant 0 : index
    %88 = vector.load %arg3[%c1_94, %c2_95, %c0_96, %c0_97] : memref<3x9x8x8xf32, #tpu.memory_space<vmem>>, vector<1x1x8x8xf32>
    %89 = vector.shape_cast %88 : vector<1x1x8x8xf32> to vector<8x8xf32>
    %c0_98 = arith.constant 0 : index
    %c111_99 = arith.constant 111 : index
    %90 = vector.load %arg8[%c0_98, %c111_99] : memref<8x640xf32, #tpu.memory_space<vmem>>, vector<8x384xf32>
    %cst_100 = arith.constant dense<0.000000e+00> : vector<8x384xf32>
    %91 = tpu.matmul %89, %90, %cst_100 {dimension_numbers = #tpu.dot_dimension_numbers<[1], [0], [0], [1], [0, 0, 1, 1], [], []>} : vector<8x8xf32>, vector<8x384xf32>, vector<8x384xf32> -> vector<8x384xf32>
    %92 = arith.addf %87, %91 : vector<8x384xf32>
    %c1_101 = arith.constant 1 : index
    %c3_102 = arith.constant 3 : index
    %c0_103 = arith.constant 0 : index
    %c0_104 = arith.constant 0 : index
    %93 = vector.load %arg3[%c1_101, %c3_102, %c0_103, %c0_104] : memref<3x9x8x8xf32, #tpu.memory_space<vmem>>, vector<1x1x8x8xf32>
    %94 = vector.shape_cast %93 : vector<1x1x8x8xf32> to vector<8x8xf32>
    %c0_105 = arith.constant 0 : index
    %c127_106 = arith.constant 127 : index
    %95 = vector.load %arg8[%c0_105, %c127_106] : memref<8x640xf32, #tpu.memory_space<vmem>>, vector<8x384xf32>
    %cst_107 = arith.constant dense<0.000000e+00> : vector<8x384xf32>
    %96 = tpu.matmul %94, %95, %cst_107 {dimension_numbers = #tpu.dot_dimension_numbers<[1], [0], [0], [1], [0, 0, 1, 1], [], []>} : vector<8x8xf32>, vector<8x384xf32>, vector<8x384xf32> -> vector<8x384xf32>
    %97 = arith.addf %92, %96 : vector<8x384xf32>
    %c1_108 = arith.constant 1 : index
    %c4_109 = arith.constant 4 : index
    %c0_110 = arith.constant 0 : index
    %c0_111 = arith.constant 0 : index
    %98 = vector.load %arg3[%c1_108, %c4_109, %c0_110, %c0_111] : memref<3x9x8x8xf32, #tpu.memory_space<vmem>>, vector<1x1x8x8xf32>
    %99 = vector.shape_cast %98 : vector<1x1x8x8xf32> to vector<8x8xf32>
    %c0_112 = arith.constant 0 : index
    %c128_113 = arith.constant 128 : index
    %100 = vector.load %arg8[%c0_112, %c128_113] : memref<8x640xf32, #tpu.memory_space<vmem>>, vector<8x384xf32>
    %cst_114 = arith.constant dense<0.000000e+00> : vector<8x384xf32>
    %101 = tpu.matmul %99, %100, %cst_114 {dimension_numbers = #tpu.dot_dimension_numbers<[1], [0], [0], [1], [0, 0, 1, 1], [], []>} : vector<8x8xf32>, vector<8x384xf32>, vector<8x384xf32> -> vector<8x384xf32>
    %102 = arith.addf %97, %101 : vector<8x384xf32>
    %c1_115 = arith.constant 1 : index
    %c5_116 = arith.constant 5 : index
    %c0_117 = arith.constant 0 : index
    %c0_118 = arith.constant 0 : index
    %103 = vector.load %arg3[%c1_115, %c5_116, %c0_117, %c0_118] : memref<3x9x8x8xf32, #tpu.memory_space<vmem>>, vector<1x1x8x8xf32>
    %104 = vector.shape_cast %103 : vector<1x1x8x8xf32> to vector<8x8xf32>
    %c0_119 = arith.constant 0 : index
    %c129_120 = arith.constant 129 : index
    %105 = vector.load %arg8[%c0_119, %c129_120] : memref<8x640xf32, #tpu.memory_space<vmem>>, vector<8x384xf32>
    %cst_121 = arith.constant dense<0.000000e+00> : vector<8x384xf32>
    %106 = tpu.matmul %104, %105, %cst_121 {dimension_numbers = #tpu.dot_dimension_numbers<[1], [0], [0], [1], [0, 0, 1, 1], [], []>} : vector<8x8xf32>, vector<8x384xf32>, vector<8x384xf32> -> vector<8x384xf32>
    %107 = arith.addf %102, %106 : vector<8x384xf32>
    %c1_122 = arith.constant 1 : index
    %c6_123 = arith.constant 6 : index
    %c0_124 = arith.constant 0 : index
    %c0_125 = arith.constant 0 : index
    %108 = vector.load %arg3[%c1_122, %c6_123, %c0_124, %c0_125] : memref<3x9x8x8xf32, #tpu.memory_space<vmem>>, vector<1x1x8x8xf32>
    %109 = vector.shape_cast %108 : vector<1x1x8x8xf32> to vector<8x8xf32>
    %c0_126 = arith.constant 0 : index
    %c145_127 = arith.constant 145 : index
    %110 = vector.load %arg8[%c0_126, %c145_127] : memref<8x640xf32, #tpu.memory_space<vmem>>, vector<8x384xf32>
    %cst_128 = arith.constant dense<0.000000e+00> : vector<8x384xf32>
    %111 = tpu.matmul %109, %110, %cst_128 {dimension_numbers = #tpu.dot_dimension_numbers<[1], [0], [0], [1], [0, 0, 1, 1], [], []>} : vector<8x8xf32>, vector<8x384xf32>, vector<8x384xf32> -> vector<8x384xf32>
    %112 = arith.addf %107, %111 : vector<8x384xf32>
    %c1_129 = arith.constant 1 : index
    %c7_130 = arith.constant 7 : index
    %c0_131 = arith.constant 0 : index
    %c0_132 = arith.constant 0 : index
    %113 = vector.load %arg3[%c1_129, %c7_130, %c0_131, %c0_132] : memref<3x9x8x8xf32, #tpu.memory_space<vmem>>, vector<1x1x8x8xf32>
    %114 = vector.shape_cast %113 : vector<1x1x8x8xf32> to vector<8x8xf32>
    %c0_133 = arith.constant 0 : index
    %c146_134 = arith.constant 146 : index
    %115 = vector.load %arg8[%c0_133, %c146_134] : memref<8x640xf32, #tpu.memory_space<vmem>>, vector<8x384xf32>
    %cst_135 = arith.constant dense<0.000000e+00> : vector<8x384xf32>
    %116 = tpu.matmul %114, %115, %cst_135 {dimension_numbers = #tpu.dot_dimension_numbers<[1], [0], [0], [1], [0, 0, 1, 1], [], []>} : vector<8x8xf32>, vector<8x384xf32>, vector<8x384xf32> -> vector<8x384xf32>
    %117 = arith.addf %112, %116 : vector<8x384xf32>
    %c1_136 = arith.constant 1 : index
    %c8_137 = arith.constant 8 : index
    %c0_138 = arith.constant 0 : index
    %c0_139 = arith.constant 0 : index
    %118 = vector.load %arg3[%c1_136, %c8_137, %c0_138, %c0_139] : memref<3x9x8x8xf32, #tpu.memory_space<vmem>>, vector<1x1x8x8xf32>
    %119 = vector.shape_cast %118 : vector<1x1x8x8xf32> to vector<8x8xf32>
    %c0_140 = arith.constant 0 : index
    %c147_141 = arith.constant 147 : index
    %120 = vector.load %arg8[%c0_140, %c147_141] : memref<8x640xf32, #tpu.memory_space<vmem>>, vector<8x384xf32>
    %cst_142 = arith.constant dense<0.000000e+00> : vector<8x384xf32>
    %121 = tpu.matmul %119, %120, %cst_142 {dimension_numbers = #tpu.dot_dimension_numbers<[1], [0], [0], [1], [0, 0, 1, 1], [], []>} : vector<8x8xf32>, vector<8x384xf32>, vector<8x384xf32> -> vector<8x384xf32>
    %122 = arith.addf %117, %121 : vector<8x384xf32>
    %123 = vector.broadcast %78 : vector<8x1xf32> to vector<8x384xf32>
    %124 = arith.addf %122, %123 : vector<8x384xf32>
    %cst_143 = arith.constant 0.000000e+00 : f32
    %125 = vector.broadcast %cst_143 : f32 to vector<8x384xf32>
    %126 = arith.cmpf oge, %124, %125 : vector<8x384xf32>
    %cst_144 = arith.constant 0.00999999977 : f32
    %127 = vector.broadcast %cst_144 : f32 to vector<8x384xf32>
    %128 = arith.mulf %127, %124 : vector<8x384xf32>
    %129 = arith.select %126, %124, %128 : vector<8x384xi1>, vector<8x384xf32>
    %c0_145 = arith.constant 0 : index
    %c128_146 = arith.constant 128 : index
    %130 = vector.load %arg5[%c0_145, %c128_146] : memref<1x640xf32, #tpu.memory_space<vmem>>, vector<1x384xf32>
    %131 = vector.broadcast %130 : vector<1x384xf32> to vector<8x384xf32>
    %132 = arith.mulf %129, %131 : vector<8x384xf32>
    %c0_147 = arith.constant 0 : index
    %c128_148 = arith.constant 128 : index
    %133 = vector.load %arg9[%c0_147, %c128_148] : memref<8x640xf32, #tpu.memory_space<vmem>>, vector<8x384xf32>
    tpu.vector_store %arg9[%c0_147, %c128_148], %132 {strides = array<i32>} : memref<8x640xf32, #tpu.memory_space<vmem>>, vector<8x384xf32>,
    %c2_149 = arith.constant 2 : index
    %c0_150 = arith.constant 0 : index
    %c0_151 = arith.constant 0 : index
    %134 = vector.load %arg4[%c2_149, %c0_150, %c0_151] : memref<3x8x1xf32, #tpu.memory_space<vmem>>, vector<1x8x1xf32>
    %135 = vector.shape_cast %134 : vector<1x8x1xf32> to vector<8x1xf32>
    %c2_152 = arith.constant 2 : index
    %c0_153 = arith.constant 0 : index
    %c0_154 = arith.constant 0 : index
    %c0_155 = arith.constant 0 : index
    %136 = vector.load %arg3[%c2_152, %c0_153, %c0_154, %c0_155] : memref<3x9x8x8xf32, #tpu.memory_space<vmem>>, vector<1x1x8x8xf32>
    %137 = vector.shape_cast %136 : vector<1x1x8x8xf32> to vector<8x8xf32>
    %c0_156 = arith.constant 0 : index
    %c109_157 = arith.constant 109 : index
    %138 = vector.load %arg9[%c0_156, %c109_157] : memref<8x640xf32, #tpu.memory_space<vmem>>, vector<8x384xf32>
    %cst_158 = arith.constant dense<0.000000e+00> : vector<8x384xf32>
    %139 = tpu.matmul %137, %138, %cst_158 {dimension_numbers = #tpu.dot_dimension_numbers<[1], [0], [0], [1], [0, 0, 1, 1], [], []>} : vector<8x8xf32>, vector<8x384xf32>, vector<8x384xf32> -> vector<8x384xf32>
    %c2_159 = arith.constant 2 : index
    %c1_160 = arith.constant 1 : index
    %c0_161 = arith.constant 0 : index
    %c0_162 = arith.constant 0 : index
    %140 = vector.load %arg3[%c2_159, %c1_160, %c0_161, %c0_162] : memref<3x9x8x8xf32, #tpu.memory_space<vmem>>, vector<1x1x8x8xf32>
    %141 = vector.shape_cast %140 : vector<1x1x8x8xf32> to vector<8x8xf32>
    %c0_163 = arith.constant 0 : index
    %c110_164 = arith.constant 110 : index
    %142 = vector.load %arg9[%c0_163, %c110_164] : memref<8x640xf32, #tpu.memory_space<vmem>>, vector<8x384xf32>
    %cst_165 = arith.constant dense<0.000000e+00> : vector<8x384xf32>
    %143 = tpu.matmul %141, %142, %cst_165 {dimension_numbers = #tpu.dot_dimension_numbers<[1], [0], [0], [1], [0, 0, 1, 1], [], []>} : vector<8x8xf32>, vector<8x384xf32>, vector<8x384xf32> -> vector<8x384xf32>
    %144 = arith.addf %139, %143 : vector<8x384xf32>
    %c2_166 = arith.constant 2 : index
    %c2_167 = arith.constant 2 : index
    %c0_168 = arith.constant 0 : index
    %c0_169 = arith.constant 0 : index
    %145 = vector.load %arg3[%c2_166, %c2_167, %c0_168, %c0_169] : memref<3x9x8x8xf32, #tpu.memory_space<vmem>>, vector<1x1x8x8xf32>
    %146 = vector.shape_cast %145 : vector<1x1x8x8xf32> to vector<8x8xf32>
    %c0_170 = arith.constant 0 : index
    %c111_171 = arith.constant 111 : index
    %147 = vector.load %arg9[%c0_170, %c111_171] : memref<8x640xf32, #tpu.memory_space<vmem>>, vector<8x384xf32>
    %cst_172 = arith.constant dense<0.000000e+00> : vector<8x384xf32>
    %148 = tpu.matmul %146, %147, %cst_172 {dimension_numbers = #tpu.dot_dimension_numbers<[1], [0], [0], [1], [0, 0, 1, 1], [], []>} : vector<8x8xf32>, vector<8x384xf32>, vector<8x384xf32> -> vector<8x384xf32>
    %149 = arith.addf %144, %148 : vector<8x384xf32>
    %c2_173 = arith.constant 2 : index
    %c3_174 = arith.constant 3 : index
    %c0_175 = arith.constant 0 : index
    %c0_176 = arith.constant 0 : index
    %150 = vector.load %arg3[%c2_173, %c3_174, %c0_175, %c0_176] : memref<3x9x8x8xf32, #tpu.memory_space<vmem>>, vector<1x1x8x8xf32>
    %151 = vector.shape_cast %150 : vector<1x1x8x8xf32> to vector<8x8xf32>
    %c0_177 = arith.constant 0 : index
    %c127_178 = arith.constant 127 : index
    %152 = vector.load %arg9[%c0_177, %c127_178] : memref<8x640xf32, #tpu.memory_space<vmem>>, vector<8x384xf32>
    %cst_179 = arith.constant dense<0.000000e+00> : vector<8x384xf32>
    %153 = tpu.matmul %151, %152, %cst_179 {dimension_numbers = #tpu.dot_dimension_numbers<[1], [0], [0], [1], [0, 0, 1, 1], [], []>} : vector<8x8xf32>, vector<8x384xf32>, vector<8x384xf32> -> vector<8x384xf32>
    %154 = arith.addf %149, %153 : vector<8x384xf32>
    %c2_180 = arith.constant 2 : index
    %c4_181 = arith.constant 4 : index
    %c0_182 = arith.constant 0 : index
    %c0_183 = arith.constant 0 : index
    %155 = vector.load %arg3[%c2_180, %c4_181, %c0_182, %c0_183] : memref<3x9x8x8xf32, #tpu.memory_space<vmem>>, vector<1x1x8x8xf32>
    %156 = vector.shape_cast %155 : vector<1x1x8x8xf32> to vector<8x8xf32>
    %c0_184 = arith.constant 0 : index
    %c128_185 = arith.constant 128 : index
    %157 = vector.load %arg9[%c0_184, %c128_185] : memref<8x640xf32, #tpu.memory_space<vmem>>, vector<8x384xf32>
    %cst_186 = arith.constant dense<0.000000e+00> : vector<8x384xf32>
    %158 = tpu.matmul %156, %157, %cst_186 {dimension_numbers = #tpu.dot_dimension_numbers<[1], [0], [0], [1], [0, 0, 1, 1], [], []>} : vector<8x8xf32>, vector<8x384xf32>, vector<8x384xf32> -> vector<8x384xf32>
    %159 = arith.addf %154, %158 : vector<8x384xf32>
    %c2_187 = arith.constant 2 : index
    %c5_188 = arith.constant 5 : index
    %c0_189 = arith.constant 0 : index
    %c0_190 = arith.constant 0 : index
    %160 = vector.load %arg3[%c2_187, %c5_188, %c0_189, %c0_190] : memref<3x9x8x8xf32, #tpu.memory_space<vmem>>, vector<1x1x8x8xf32>
    %161 = vector.shape_cast %160 : vector<1x1x8x8xf32> to vector<8x8xf32>
    %c0_191 = arith.constant 0 : index
    %c129_192 = arith.constant 129 : index
    %162 = vector.load %arg9[%c0_191, %c129_192] : memref<8x640xf32, #tpu.memory_space<vmem>>, vector<8x384xf32>
    %cst_193 = arith.constant dense<0.000000e+00> : vector<8x384xf32>
    %163 = tpu.matmul %161, %162, %cst_193 {dimension_numbers = #tpu.dot_dimension_numbers<[1], [0], [0], [1], [0, 0, 1, 1], [], []>} : vector<8x8xf32>, vector<8x384xf32>, vector<8x384xf32> -> vector<8x384xf32>
    %164 = arith.addf %159, %163 : vector<8x384xf32>
    %c2_194 = arith.constant 2 : index
    %c6_195 = arith.constant 6 : index
    %c0_196 = arith.constant 0 : index
    %c0_197 = arith.constant 0 : index
    %165 = vector.load %arg3[%c2_194, %c6_195, %c0_196, %c0_197] : memref<3x9x8x8xf32, #tpu.memory_space<vmem>>, vector<1x1x8x8xf32>
    %166 = vector.shape_cast %165 : vector<1x1x8x8xf32> to vector<8x8xf32>
    %c0_198 = arith.constant 0 : index
    %c145_199 = arith.constant 145 : index
    %167 = vector.load %arg9[%c0_198, %c145_199] : memref<8x640xf32, #tpu.memory_space<vmem>>, vector<8x384xf32>
    %cst_200 = arith.constant dense<0.000000e+00> : vector<8x384xf32>
    %168 = tpu.matmul %166, %167, %cst_200 {dimension_numbers = #tpu.dot_dimension_numbers<[1], [0], [0], [1], [0, 0, 1, 1], [], []>} : vector<8x8xf32>, vector<8x384xf32>, vector<8x384xf32> -> vector<8x384xf32>
    %169 = arith.addf %164, %168 : vector<8x384xf32>
    %c2_201 = arith.constant 2 : index
    %c7_202 = arith.constant 7 : index
    %c0_203 = arith.constant 0 : index
    %c0_204 = arith.constant 0 : index
    %170 = vector.load %arg3[%c2_201, %c7_202, %c0_203, %c0_204] : memref<3x9x8x8xf32, #tpu.memory_space<vmem>>, vector<1x1x8x8xf32>
    %171 = vector.shape_cast %170 : vector<1x1x8x8xf32> to vector<8x8xf32>
    %c0_205 = arith.constant 0 : index
    %c146_206 = arith.constant 146 : index
    %172 = vector.load %arg9[%c0_205, %c146_206] : memref<8x640xf32, #tpu.memory_space<vmem>>, vector<8x384xf32>
    %cst_207 = arith.constant dense<0.000000e+00> : vector<8x384xf32>
    %173 = tpu.matmul %171, %172, %cst_207 {dimension_numbers = #tpu.dot_dimension_numbers<[1], [0], [0], [1], [0, 0, 1, 1], [], []>} : vector<8x8xf32>, vector<8x384xf32>, vector<8x384xf32> -> vector<8x384xf32>
    %174 = arith.addf %169, %173 : vector<8x384xf32>
    %c2_208 = arith.constant 2 : index
    %c8_209 = arith.constant 8 : index
    %c0_210 = arith.constant 0 : index
    %c0_211 = arith.constant 0 : index
    %175 = vector.load %arg3[%c2_208, %c8_209, %c0_210, %c0_211] : memref<3x9x8x8xf32, #tpu.memory_space<vmem>>, vector<1x1x8x8xf32>
    %176 = vector.shape_cast %175 : vector<1x1x8x8xf32> to vector<8x8xf32>
    %c0_212 = arith.constant 0 : index
    %c147_213 = arith.constant 147 : index
    %177 = vector.load %arg9[%c0_212, %c147_213] : memref<8x640xf32, #tpu.memory_space<vmem>>, vector<8x384xf32>
    %cst_214 = arith.constant dense<0.000000e+00> : vector<8x384xf32>
    %178 = tpu.matmul %176, %177, %cst_214 {dimension_numbers = #tpu.dot_dimension_numbers<[1], [0], [0], [1], [0, 0, 1, 1], [], []>} : vector<8x8xf32>, vector<8x384xf32>, vector<8x384xf32> -> vector<8x384xf32>
    %179 = arith.addf %174, %178 : vector<8x384xf32>
    %180 = vector.broadcast %135 : vector<8x1xf32> to vector<8x384xf32>
    %181 = arith.addf %179, %180 : vector<8x384xf32>
    %cst_215 = arith.constant 0.000000e+00 : f32
    %182 = vector.broadcast %cst_215 : f32 to vector<8x384xf32>
    %183 = arith.cmpf oge, %181, %182 : vector<8x384xf32>
    %cst_216 = arith.constant 0.00999999977 : f32
    %184 = vector.broadcast %cst_216 : f32 to vector<8x384xf32>
    %185 = arith.mulf %184, %181 : vector<8x384xf32>
    %186 = arith.select %183, %181, %185 : vector<8x384xi1>, vector<8x384xf32>
    %c0_217 = arith.constant 0 : index
    %c128_218 = arith.constant 128 : index
    %187 = vector.load %arg5[%c0_217, %c128_218] : memref<1x640xf32, #tpu.memory_space<vmem>>, vector<1x384xf32>
    %188 = vector.broadcast %187 : vector<1x384xf32> to vector<8x384xf32>
    %189 = arith.mulf %186, %188 : vector<8x384xf32>
    %c0_219 = arith.constant 0 : index
    %c128_220 = arith.constant 128 : index
    %190 = vector.load %arg8[%c0_219, %c128_220] : memref<8x640xf32, #tpu.memory_space<vmem>>, vector<8x384xf32>
    tpu.vector_store %arg8[%c0_219, %c128_220], %189 {strides = array<i32>} : memref<8x640xf32, #tpu.memory_space<vmem>>, vector<8x384xf32>,
    %c0_221 = arith.constant 0 : index
    %c0_222 = arith.constant 0 : index
    %c128_223 = arith.constant 128 : index
    %191 = vector.load %arg2[%c0_221, %c0_222, %c128_223] : memref<2x8x640xf32, #tpu.memory_space<vmem>>, vector<1x8x384xf32>
    %192 = vector.shape_cast %191 : vector<1x8x384xf32> to vector<8x384xf32>
    %c0_224 = arith.constant 0 : index
    %c128_225 = arith.constant 128 : index
    %193 = vector.load %arg8[%c0_224, %c128_225] : memref<8x640xf32, #tpu.memory_space<vmem>>, vector<8x384xf32>
    %194 = vector.broadcast %0 : f32 to vector<8x384xf32>
    %195 = arith.mulf %194, %192 : vector<8x384xf32>
    %cst_226 = arith.constant 1.000000e+00 : f32
    %196 = arith.subf %cst_226, %0 : f32
    %197 = vector.broadcast %196 : f32 to vector<8x384xf32>
    %198 = arith.mulf %197, %193 : vector<8x384xf32>
    %199 = arith.addf %195, %198 : vector<8x384xf32>
    %c0_227 = arith.constant 0 : index
    %c0_228 = arith.constant 0 : index
    %c128_229 = arith.constant 128 : index
    %200 = vector.load %arg6[%c0_227, %c0_228, %c128_229] : memref<2x8x640xf32, #tpu.memory_space<vmem>>, vector<1x8x384xf32>
    %201 = vector.shape_cast %200 : vector<1x8x384xf32> to vector<8x384xf32>
    %202 = vector.shape_cast %199 : vector<8x384xf32> to vector<1x8x384xf32>
    tpu.vector_store %arg6[%c0_227, %c0_228, %c128_229], %202 {strides = array<i32>} : memref<2x8x640xf32, #tpu.memory_space<vmem>>, vector<1x8x384xf32>,
    %203 = arith.mulf %192, %192 : vector<8x384xf32>
    %cst_230 = arith.constant dense<0.000000e+00> : vector<8xf32>
    %204 = vector.multi_reduction <add>, %203, %cst_230 [1] : vector<8x384xf32> to vector<8xf32>
    %205 = vector.shape_cast %204 : vector<8xf32> to vector<8x1xf32>
    %cst_231 = arith.constant dense<0.000000e+00> : vector<1xf32>
    %206 = vector.multi_reduction <add>, %205, %cst_231 [0] : vector<8x1xf32> to vector<1xf32>
    %207 = vector.shape_cast %206 : vector<1xf32> to vector<1x1xf32>
    %208 = arith.addf %9, %207 : vector<1x1xf32>
    %209 = arith.mulf %199, %199 : vector<8x384xf32>
    %cst_232 = arith.constant dense<0.000000e+00> : vector<8xf32>
    %210 = vector.multi_reduction <add>, %209, %cst_232 [1] : vector<8x384xf32> to vector<8xf32>
    %211 = vector.shape_cast %210 : vector<8xf32> to vector<8x1xf32>
    %cst_233 = arith.constant dense<0.000000e+00> : vector<1xf32>
    %212 = vector.multi_reduction <add>, %211, %cst_233 [0] : vector<8x1xf32> to vector<1xf32>
    %213 = vector.shape_cast %212 : vector<1xf32> to vector<1x1xf32>
    %214 = arith.addf %10, %213 : vector<1x1xf32>
    %c0_234 = arith.constant 0 : index
    %c0_235 = arith.constant 0 : index
    %c0_236 = arith.constant 0 : index
    %215 = vector.load %arg4[%c0_234, %c0_235, %c0_236] : memref<3x8x1xf32, #tpu.memory_space<vmem>>, vector<1x8x1xf32>
    %216 = vector.shape_cast %215 : vector<1x8x1xf32> to vector<8x1xf32>
    %c0_237 = arith.constant 0 : index
    %c0_238 = arith.constant 0 : index
    %c0_239 = arith.constant 0 : index
    %c0_240 = arith.constant 0 : index
    %217 = vector.load %arg3[%c0_237, %c0_238, %c0_239, %c0_240] : memref<3x9x8x8xf32, #tpu.memory_space<vmem>>, vector<1x1x8x8xf32>
    %218 = vector.shape_cast %217 : vector<1x1x8x8xf32> to vector<8x8xf32>
    %c1_241 = arith.constant 1 : index
    %c0_242 = arith.constant 0 : index
    %c109_243 = arith.constant 109 : index
    %219 = vector.load %arg2[%c1_241, %c0_242, %c109_243] : memref<2x8x640xf32, #tpu.memory_space<vmem>>, vector<1x8x384xf32>
    %220 = vector.shape_cast %219 : vector<1x8x384xf32> to vector<8x384xf32>
    %cst_244 = arith.constant dense<0.000000e+00> : vector<8x384xf32>
    %221 = tpu.matmul %218, %220, %cst_244 {dimension_numbers = #tpu.dot_dimension_numbers<[1], [0], [0], [1], [0, 0, 1, 1], [], []>} : vector<8x8xf32>, vector<8x384xf32>, vector<8x384xf32> -> vector<8x384xf32>
    %c0_245 = arith.constant 0 : index
    %c1_246 = arith.constant 1 : index
    %c0_247 = arith.constant 0 : index
    %c0_248 = arith.constant 0 : index
    %222 = vector.load %arg3[%c0_245, %c1_246, %c0_247, %c0_248] : memref<3x9x8x8xf32, #tpu.memory_space<vmem>>, vector<1x1x8x8xf32>
    %223 = vector.shape_cast %222 : vector<1x1x8x8xf32> to vector<8x8xf32>
    %c1_249 = arith.constant 1 : index
    %c0_250 = arith.constant 0 : index
    %c110_251 = arith.constant 110 : index
    %224 = vector.load %arg2[%c1_249, %c0_250, %c110_251] : memref<2x8x640xf32, #tpu.memory_space<vmem>>, vector<1x8x384xf32>
    %225 = vector.shape_cast %224 : vector<1x8x384xf32> to vector<8x384xf32>
    %cst_252 = arith.constant dense<0.000000e+00> : vector<8x384xf32>
    %226 = tpu.matmul %223, %225, %cst_252 {dimension_numbers = #tpu.dot_dimension_numbers<[1], [0], [0], [1], [0, 0, 1, 1], [], []>} : vector<8x8xf32>, vector<8x384xf32>, vector<8x384xf32> -> vector<8x384xf32>
    %227 = arith.addf %221, %226 : vector<8x384xf32>
    %c0_253 = arith.constant 0 : index
    %c2_254 = arith.constant 2 : index
    %c0_255 = arith.constant 0 : index
    %c0_256 = arith.constant 0 : index
    %228 = vector.load %arg3[%c0_253, %c2_254, %c0_255, %c0_256] : memref<3x9x8x8xf32, #tpu.memory_space<vmem>>, vector<1x1x8x8xf32>
    %229 = vector.shape_cast %228 : vector<1x1x8x8xf32> to vector<8x8xf32>
    %c1_257 = arith.constant 1 : index
    %c0_258 = arith.constant 0 : index
    %c111_259 = arith.constant 111 : index
    %230 = vector.load %arg2[%c1_257, %c0_258, %c111_259] : memref<2x8x640xf32, #tpu.memory_space<vmem>>, vector<1x8x384xf32>
    %231 = vector.shape_cast %230 : vector<1x8x384xf32> to vector<8x384xf32>
    %cst_260 = arith.constant dense<0.000000e+00> : vector<8x384xf32>
    %232 = tpu.matmul %229, %231, %cst_260 {dimension_numbers = #tpu.dot_dimension_numbers<[1], [0], [0], [1], [0, 0, 1, 1], [], []>} : vector<8x8xf32>, vector<8x384xf32>, vector<8x384xf32> -> vector<8x384xf32>
    %233 = arith.addf %227, %232 : vector<8x384xf32>
    %c0_261 = arith.constant 0 : index
    %c3_262 = arith.constant 3 : index
    %c0_263 = arith.constant 0 : index
    %c0_264 = arith.constant 0 : index
    %234 = vector.load %arg3[%c0_261, %c3_262, %c0_263, %c0_264] : memref<3x9x8x8xf32, #tpu.memory_space<vmem>>, vector<1x1x8x8xf32>
    %235 = vector.shape_cast %234 : vector<1x1x8x8xf32> to vector<8x8xf32>
    %c1_265 = arith.constant 1 : index
    %c0_266 = arith.constant 0 : index
    %c127_267 = arith.constant 127 : index
    %236 = vector.load %arg2[%c1_265, %c0_266, %c127_267] : memref<2x8x640xf32, #tpu.memory_space<vmem>>, vector<1x8x384xf32>
    %237 = vector.shape_cast %236 : vector<1x8x384xf32> to vector<8x384xf32>
    %cst_268 = arith.constant dense<0.000000e+00> : vector<8x384xf32>
    %238 = tpu.matmul %235, %237, %cst_268 {dimension_numbers = #tpu.dot_dimension_numbers<[1], [0], [0], [1], [0, 0, 1, 1], [], []>} : vector<8x8xf32>, vector<8x384xf32>, vector<8x384xf32> -> vector<8x384xf32>
    %239 = arith.addf %233, %238 : vector<8x384xf32>
    %c0_269 = arith.constant 0 : index
    %c4_270 = arith.constant 4 : index
    %c0_271 = arith.constant 0 : index
    %c0_272 = arith.constant 0 : index
    %240 = vector.load %arg3[%c0_269, %c4_270, %c0_271, %c0_272] : memref<3x9x8x8xf32, #tpu.memory_space<vmem>>, vector<1x1x8x8xf32>
    %241 = vector.shape_cast %240 : vector<1x1x8x8xf32> to vector<8x8xf32>
    %c1_273 = arith.constant 1 : index
    %c0_274 = arith.constant 0 : index
    %c128_275 = arith.constant 128 : index
    %242 = vector.load %arg2[%c1_273, %c0_274, %c128_275] : memref<2x8x640xf32, #tpu.memory_space<vmem>>, vector<1x8x384xf32>
    %243 = vector.shape_cast %242 : vector<1x8x384xf32> to vector<8x384xf32>
    %cst_276 = arith.constant dense<0.000000e+00> : vector<8x384xf32>
    %244 = tpu.matmul %241, %243, %cst_276 {dimension_numbers = #tpu.dot_dimension_numbers<[1], [0], [0], [1], [0, 0, 1, 1], [], []>} : vector<8x8xf32>, vector<8x384xf32>, vector<8x384xf32> -> vector<8x384xf32>
    %245 = arith.addf %239, %244 : vector<8x384xf32>
    %c0_277 = arith.constant 0 : index
    %c5_278 = arith.constant 5 : index
    %c0_279 = arith.constant 0 : index
    %c0_280 = arith.constant 0 : index
    %246 = vector.load %arg3[%c0_277, %c5_278, %c0_279, %c0_280] : memref<3x9x8x8xf32, #tpu.memory_space<vmem>>, vector<1x1x8x8xf32>
    %247 = vector.shape_cast %246 : vector<1x1x8x8xf32> to vector<8x8xf32>
    %c1_281 = arith.constant 1 : index
    %c0_282 = arith.constant 0 : index
    %c129_283 = arith.constant 129 : index
    %248 = vector.load %arg2[%c1_281, %c0_282, %c129_283] : memref<2x8x640xf32, #tpu.memory_space<vmem>>, vector<1x8x384xf32>
    %249 = vector.shape_cast %248 : vector<1x8x384xf32> to vector<8x384xf32>
    %cst_284 = arith.constant dense<0.000000e+00> : vector<8x384xf32>
    %250 = tpu.matmul %247, %249, %cst_284 {dimension_numbers = #tpu.dot_dimension_numbers<[1], [0], [0], [1], [0, 0, 1, 1], [], []>} : vector<8x8xf32>, vector<8x384xf32>, vector<8x384xf32> -> vector<8x384xf32>
    %251 = arith.addf %245, %250 : vector<8x384xf32>
    %c0_285 = arith.constant 0 : index
    %c6_286 = arith.constant 6 : index
    %c0_287 = arith.constant 0 : index
    %c0_288 = arith.constant 0 : index
    %252 = vector.load %arg3[%c0_285, %c6_286, %c0_287, %c0_288] : memref<3x9x8x8xf32, #tpu.memory_space<vmem>>, vector<1x1x8x8xf32>
    %253 = vector.shape_cast %252 : vector<1x1x8x8xf32> to vector<8x8xf32>
    %c1_289 = arith.constant 1 : index
    %c0_290 = arith.constant 0 : index
    %c145_291 = arith.constant 145 : index
    %254 = vector.load %arg2[%c1_289, %c0_290, %c145_291] : memref<2x8x640xf32, #tpu.memory_space<vmem>>, vector<1x8x384xf32>
    %255 = vector.shape_cast %254 : vector<1x8x384xf32> to vector<8x384xf32>
    %cst_292 = arith.constant dense<0.000000e+00> : vector<8x384xf32>
    %256 = tpu.matmul %253, %255, %cst_292 {dimension_numbers = #tpu.dot_dimension_numbers<[1], [0], [0], [1], [0, 0, 1, 1], [], []>} : vector<8x8xf32>, vector<8x384xf32>, vector<8x384xf32> -> vector<8x384xf32>
    %257 = arith.addf %251, %256 : vector<8x384xf32>
    %c0_293 = arith.constant 0 : index
    %c7_294 = arith.constant 7 : index
    %c0_295 = arith.constant 0 : index
    %c0_296 = arith.constant 0 : index
    %258 = vector.load %arg3[%c0_293, %c7_294, %c0_295, %c0_296] : memref<3x9x8x8xf32, #tpu.memory_space<vmem>>, vector<1x1x8x8xf32>
    %259 = vector.shape_cast %258 : vector<1x1x8x8xf32> to vector<8x8xf32>
    %c1_297 = arith.constant 1 : index
    %c0_298 = arith.constant 0 : index
    %c146_299 = arith.constant 146 : index
    %260 = vector.load %arg2[%c1_297, %c0_298, %c146_299] : memref<2x8x640xf32, #tpu.memory_space<vmem>>, vector<1x8x384xf32>
    %261 = vector.shape_cast %260 : vector<1x8x384xf32> to vector<8x384xf32>
    %cst_300 = arith.constant dense<0.000000e+00> : vector<8x384xf32>
    %262 = tpu.matmul %259, %261, %cst_300 {dimension_numbers = #tpu.dot_dimension_numbers<[1], [0], [0], [1], [0, 0, 1, 1], [], []>} : vector<8x8xf32>, vector<8x384xf32>, vector<8x384xf32> -> vector<8x384xf32>
    %263 = arith.addf %257, %262 : vector<8x384xf32>
    %c0_301 = arith.constant 0 : index
    %c8_302 = arith.constant 8 : index
    %c0_303 = arith.constant 0 : index
    %c0_304 = arith.constant 0 : index
    %264 = vector.load %arg3[%c0_301, %c8_302, %c0_303, %c0_304] : memref<3x9x8x8xf32, #tpu.memory_space<vmem>>, vector<1x1x8x8xf32>
    %265 = vector.shape_cast %264 : vector<1x1x8x8xf32> to vector<8x8xf32>
    %c1_305 = arith.constant 1 : index
    %c0_306 = arith.constant 0 : index
    %c147_307 = arith.constant 147 : index
    %266 = vector.load %arg2[%c1_305, %c0_306, %c147_307] : memref<2x8x640xf32, #tpu.memory_space<vmem>>, vector<1x8x384xf32>
    %267 = vector.shape_cast %266 : vector<1x8x384xf32> to vector<8x384xf32>
    %cst_308 = arith.constant dense<0.000000e+00> : vector<8x384xf32>
    %268 = tpu.matmul %265, %267, %cst_308 {dimension_numbers = #tpu.dot_dimension_numbers<[1], [0], [0], [1], [0, 0, 1, 1], [], []>} : vector<8x8xf32>, vector<8x384xf32>, vector<8x384xf32> -> vector<8x384xf32>
    %269 = arith.addf %263, %268 : vector<8x384xf32>
    %270 = vector.broadcast %216 : vector<8x1xf32> to vector<8x384xf32>
    %271 = arith.addf %269, %270 : vector<8x384xf32>
    %cst_309 = arith.constant 0.000000e+00 : f32
    %272 = vector.broadcast %cst_309 : f32 to vector<8x384xf32>
    %273 = arith.cmpf oge, %271, %272 : vector<8x384xf32>
    %cst_310 = arith.constant 0.00999999977 : f32
    %274 = vector.broadcast %cst_310 : f32 to vector<8x384xf32>
    %275 = arith.mulf %274, %271 : vector<8x384xf32>
    %276 = arith.select %273, %271, %275 : vector<8x384xi1>, vector<8x384xf32>
    %c0_311 = arith.constant 0 : index
    %c128_312 = arith.constant 128 : index
    %277 = vector.load %arg5[%c0_311, %c128_312] : memref<1x640xf32, #tpu.memory_space<vmem>>, vector<1x384xf32>
    %278 = vector.broadcast %277 : vector<1x384xf32> to vector<8x384xf32>
    %279 = arith.mulf %276, %278 : vector<8x384xf32>
    %c0_313 = arith.constant 0 : index
    %c128_314 = arith.constant 128 : index
    %280 = vector.load %arg8[%c0_313, %c128_314] : memref<8x640xf32, #tpu.memory_space<vmem>>, vector<8x384xf32>
    tpu.vector_store %arg8[%c0_313, %c128_314], %279 {strides = array<i32>} : memref<8x640xf32, #tpu.memory_space<vmem>>, vector<8x384xf32>,
    %c1_315 = arith.constant 1 : index
    %c0_316 = arith.constant 0 : index
    %c0_317 = arith.constant 0 : index
    %281 = vector.load %arg4[%c1_315, %c0_316, %c0_317] : memref<3x8x1xf32, #tpu.memory_space<vmem>>, vector<1x8x1xf32>
    %282 = vector.shape_cast %281 : vector<1x8x1xf32> to vector<8x1xf32>
    %c1_318 = arith.constant 1 : index
    %c0_319 = arith.constant 0 : index
    %c0_320 = arith.constant 0 : index
    %c0_321 = arith.constant 0 : index
    %283 = vector.load %arg3[%c1_318, %c0_319, %c0_320, %c0_321] : memref<3x9x8x8xf32, #tpu.memory_space<vmem>>, vector<1x1x8x8xf32>
    %284 = vector.shape_cast %283 : vector<1x1x8x8xf32> to vector<8x8xf32>
    %c0_322 = arith.constant 0 : index
    %c109_323 = arith.constant 109 : index
    %285 = vector.load %arg8[%c0_322, %c109_323] : memref<8x640xf32, #tpu.memory_space<vmem>>, vector<8x384xf32>
    %cst_324 = arith.constant dense<0.000000e+00> : vector<8x384xf32>
    %286 = tpu.matmul %284, %285, %cst_324 {dimension_numbers = #tpu.dot_dimension_numbers<[1], [0], [0], [1], [0, 0, 1, 1], [], []>} : vector<8x8xf32>, vector<8x384xf32>, vector<8x384xf32> -> vector<8x384xf32>
    %c1_325 = arith.constant 1 : index
    %c1_326 = arith.constant 1 : index
    %c0_327 = arith.constant 0 : index
    %c0_328 = arith.constant 0 : index
    %287 = vector.load %arg3[%c1_325, %c1_326, %c0_327, %c0_328] : memref<3x9x8x8xf32, #tpu.memory_space<vmem>>, vector<1x1x8x8xf32>
    %288 = vector.shape_cast %287 : vector<1x1x8x8xf32> to vector<8x8xf32>
    %c0_329 = arith.constant 0 : index
    %c110_330 = arith.constant 110 : index
    %289 = vector.load %arg8[%c0_329, %c110_330] : memref<8x640xf32, #tpu.memory_space<vmem>>, vector<8x384xf32>
    %cst_331 = arith.constant dense<0.000000e+00> : vector<8x384xf32>
    %290 = tpu.matmul %288, %289, %cst_331 {dimension_numbers = #tpu.dot_dimension_numbers<[1], [0], [0], [1], [0, 0, 1, 1], [], []>} : vector<8x8xf32>, vector<8x384xf32>, vector<8x384xf32> -> vector<8x384xf32>
    %291 = arith.addf %286, %290 : vector<8x384xf32>
    %c1_332 = arith.constant 1 : index
    %c2_333 = arith.constant 2 : index
    %c0_334 = arith.constant 0 : index
    %c0_335 = arith.constant 0 : index
    %292 = vector.load %arg3[%c1_332, %c2_333, %c0_334, %c0_335] : memref<3x9x8x8xf32, #tpu.memory_space<vmem>>, vector<1x1x8x8xf32>
    %293 = vector.shape_cast %292 : vector<1x1x8x8xf32> to vector<8x8xf32>
    %c0_336 = arith.constant 0 : index
    %c111_337 = arith.constant 111 : index
    %294 = vector.load %arg8[%c0_336, %c111_337] : memref<8x640xf32, #tpu.memory_space<vmem>>, vector<8x384xf32>
    %cst_338 = arith.constant dense<0.000000e+00> : vector<8x384xf32>
    %295 = tpu.matmul %293, %294, %cst_338 {dimension_numbers = #tpu.dot_dimension_numbers<[1], [0], [0], [1], [0, 0, 1, 1], [], []>} : vector<8x8xf32>, vector<8x384xf32>, vector<8x384xf32> -> vector<8x384xf32>
    %296 = arith.addf %291, %295 : vector<8x384xf32>
    %c1_339 = arith.constant 1 : index
    %c3_340 = arith.constant 3 : index
    %c0_341 = arith.constant 0 : index
    %c0_342 = arith.constant 0 : index
    %297 = vector.load %arg3[%c1_339, %c3_340, %c0_341, %c0_342] : memref<3x9x8x8xf32, #tpu.memory_space<vmem>>, vector<1x1x8x8xf32>
    %298 = vector.shape_cast %297 : vector<1x1x8x8xf32> to vector<8x8xf32>
    %c0_343 = arith.constant 0 : index
    %c127_344 = arith.constant 127 : index
    %299 = vector.load %arg8[%c0_343, %c127_344] : memref<8x640xf32, #tpu.memory_space<vmem>>, vector<8x384xf32>
    %cst_345 = arith.constant dense<0.000000e+00> : vector<8x384xf32>
    %300 = tpu.matmul %298, %299, %cst_345 {dimension_numbers = #tpu.dot_dimension_numbers<[1], [0], [0], [1], [0, 0, 1, 1], [], []>} : vector<8x8xf32>, vector<8x384xf32>, vector<8x384xf32> -> vector<8x384xf32>
    %301 = arith.addf %296, %300 : vector<8x384xf32>
    %c1_346 = arith.constant 1 : index
    %c4_347 = arith.constant 4 : index
    %c0_348 = arith.constant 0 : index
    %c0_349 = arith.constant 0 : index
    %302 = vector.load %arg3[%c1_346, %c4_347, %c0_348, %c0_349] : memref<3x9x8x8xf32, #tpu.memory_space<vmem>>, vector<1x1x8x8xf32>
    %303 = vector.shape_cast %302 : vector<1x1x8x8xf32> to vector<8x8xf32>
    %c0_350 = arith.constant 0 : index
    %c128_351 = arith.constant 128 : index
    %304 = vector.load %arg8[%c0_350, %c128_351] : memref<8x640xf32, #tpu.memory_space<vmem>>, vector<8x384xf32>
    %cst_352 = arith.constant dense<0.000000e+00> : vector<8x384xf32>
    %305 = tpu.matmul %303, %304, %cst_352 {dimension_numbers = #tpu.dot_dimension_numbers<[1], [0], [0], [1], [0, 0, 1, 1], [], []>} : vector<8x8xf32>, vector<8x384xf32>, vector<8x384xf32> -> vector<8x384xf32>
    %306 = arith.addf %301, %305 : vector<8x384xf32>
    %c1_353 = arith.constant 1 : index
    %c5_354 = arith.constant 5 : index
    %c0_355 = arith.constant 0 : index
    %c0_356 = arith.constant 0 : index
    %307 = vector.load %arg3[%c1_353, %c5_354, %c0_355, %c0_356] : memref<3x9x8x8xf32, #tpu.memory_space<vmem>>, vector<1x1x8x8xf32>
    %308 = vector.shape_cast %307 : vector<1x1x8x8xf32> to vector<8x8xf32>
    %c0_357 = arith.constant 0 : index
    %c129_358 = arith.constant 129 : index
    %309 = vector.load %arg8[%c0_357, %c129_358] : memref<8x640xf32, #tpu.memory_space<vmem>>, vector<8x384xf32>
    %cst_359 = arith.constant dense<0.000000e+00> : vector<8x384xf32>
    %310 = tpu.matmul %308, %309, %cst_359 {dimension_numbers = #tpu.dot_dimension_numbers<[1], [0], [0], [1], [0, 0, 1, 1], [], []>} : vector<8x8xf32>, vector<8x384xf32>, vector<8x384xf32> -> vector<8x384xf32>
    %311 = arith.addf %306, %310 : vector<8x384xf32>
    %c1_360 = arith.constant 1 : index
    %c6_361 = arith.constant 6 : index
    %c0_362 = arith.constant 0 : index
    %c0_363 = arith.constant 0 : index
    %312 = vector.load %arg3[%c1_360, %c6_361, %c0_362, %c0_363] : memref<3x9x8x8xf32, #tpu.memory_space<vmem>>, vector<1x1x8x8xf32>
    %313 = vector.shape_cast %312 : vector<1x1x8x8xf32> to vector<8x8xf32>
    %c0_364 = arith.constant 0 : index
    %c145_365 = arith.constant 145 : index
    %314 = vector.load %arg8[%c0_364, %c145_365] : memref<8x640xf32, #tpu.memory_space<vmem>>, vector<8x384xf32>
    %cst_366 = arith.constant dense<0.000000e+00> : vector<8x384xf32>
    %315 = tpu.matmul %313, %314, %cst_366 {dimension_numbers = #tpu.dot_dimension_numbers<[1], [0], [0], [1], [0, 0, 1, 1], [], []>} : vector<8x8xf32>, vector<8x384xf32>, vector<8x384xf32> -> vector<8x384xf32>
    %316 = arith.addf %311, %315 : vector<8x384xf32>
    %c1_367 = arith.constant 1 : index
    %c7_368 = arith.constant 7 : index
    %c0_369 = arith.constant 0 : index
    %c0_370 = arith.constant 0 : index
    %317 = vector.load %arg3[%c1_367, %c7_368, %c0_369, %c0_370] : memref<3x9x8x8xf32, #tpu.memory_space<vmem>>, vector<1x1x8x8xf32>
    %318 = vector.shape_cast %317 : vector<1x1x8x8xf32> to vector<8x8xf32>
    %c0_371 = arith.constant 0 : index
    %c146_372 = arith.constant 146 : index
    %319 = vector.load %arg8[%c0_371, %c146_372] : memref<8x640xf32, #tpu.memory_space<vmem>>, vector<8x384xf32>
    %cst_373 = arith.constant dense<0.000000e+00> : vector<8x384xf32>
    %320 = tpu.matmul %318, %319, %cst_373 {dimension_numbers = #tpu.dot_dimension_numbers<[1], [0], [0], [1], [0, 0, 1, 1], [], []>} : vector<8x8xf32>, vector<8x384xf32>, vector<8x384xf32> -> vector<8x384xf32>
    %321 = arith.addf %316, %320 : vector<8x384xf32>
    %c1_374 = arith.constant 1 : index
    %c8_375 = arith.constant 8 : index
    %c0_376 = arith.constant 0 : index
    %c0_377 = arith.constant 0 : index
    %322 = vector.load %arg3[%c1_374, %c8_375, %c0_376, %c0_377] : memref<3x9x8x8xf32, #tpu.memory_space<vmem>>, vector<1x1x8x8xf32>
    %323 = vector.shape_cast %322 : vector<1x1x8x8xf32> to vector<8x8xf32>
    %c0_378 = arith.constant 0 : index
    %c147_379 = arith.constant 147 : index
    %324 = vector.load %arg8[%c0_378, %c147_379] : memref<8x640xf32, #tpu.memory_space<vmem>>, vector<8x384xf32>
    %cst_380 = arith.constant dense<0.000000e+00> : vector<8x384xf32>
    %325 = tpu.matmul %323, %324, %cst_380 {dimension_numbers = #tpu.dot_dimension_numbers<[1], [0], [0], [1], [0, 0, 1, 1], [], []>} : vector<8x8xf32>, vector<8x384xf32>, vector<8x384xf32> -> vector<8x384xf32>
    %326 = arith.addf %321, %325 : vector<8x384xf32>
    %327 = vector.broadcast %282 : vector<8x1xf32> to vector<8x384xf32>
    %328 = arith.addf %326, %327 : vector<8x384xf32>
    %cst_381 = arith.constant 0.000000e+00 : f32
    %329 = vector.broadcast %cst_381 : f32 to vector<8x384xf32>
    %330 = arith.cmpf oge, %328, %329 : vector<8x384xf32>
    %cst_382 = arith.constant 0.00999999977 : f32
    %331 = vector.broadcast %cst_382 : f32 to vector<8x384xf32>
    %332 = arith.mulf %331, %328 : vector<8x384xf32>
    %333 = arith.select %330, %328, %332 : vector<8x384xi1>, vector<8x384xf32>
    %c0_383 = arith.constant 0 : index
    %c128_384 = arith.constant 128 : index
    %334 = vector.load %arg5[%c0_383, %c128_384] : memref<1x640xf32, #tpu.memory_space<vmem>>, vector<1x384xf32>
    %335 = vector.broadcast %334 : vector<1x384xf32> to vector<8x384xf32>
    %336 = arith.mulf %333, %335 : vector<8x384xf32>
    %c0_385 = arith.constant 0 : index
    %c128_386 = arith.constant 128 : index
    %337 = vector.load %arg9[%c0_385, %c128_386] : memref<8x640xf32, #tpu.memory_space<vmem>>, vector<8x384xf32>
    tpu.vector_store %arg9[%c0_385, %c128_386], %336 {strides = array<i32>} : memref<8x640xf32, #tpu.memory_space<vmem>>, vector<8x384xf32>,
    %c2_387 = arith.constant 2 : index
    %c0_388 = arith.constant 0 : index
    %c0_389 = arith.constant 0 : index
    %338 = vector.load %arg4[%c2_387, %c0_388, %c0_389] : memref<3x8x1xf32, #tpu.memory_space<vmem>>, vector<1x8x1xf32>
    %339 = vector.shape_cast %338 : vector<1x8x1xf32> to vector<8x1xf32>
    %c2_390 = arith.constant 2 : index
    %c0_391 = arith.constant 0 : index
    %c0_392 = arith.constant 0 : index
    %c0_393 = arith.constant 0 : index
    %340 = vector.load %arg3[%c2_390, %c0_391, %c0_392, %c0_393] : memref<3x9x8x8xf32, #tpu.memory_space<vmem>>, vector<1x1x8x8xf32>
    %341 = vector.shape_cast %340 : vector<1x1x8x8xf32> to vector<8x8xf32>
    %c0_394 = arith.constant 0 : index
    %c109_395 = arith.constant 109 : index
    %342 = vector.load %arg9[%c0_394, %c109_395] : memref<8x640xf32, #tpu.memory_space<vmem>>, vector<8x384xf32>
    %cst_396 = arith.constant dense<0.000000e+00> : vector<8x384xf32>
    %343 = tpu.matmul %341, %342, %cst_396 {dimension_numbers = #tpu.dot_dimension_numbers<[1], [0], [0], [1], [0, 0, 1, 1], [], []>} : vector<8x8xf32>, vector<8x384xf32>, vector<8x384xf32> -> vector<8x384xf32>
    %c2_397 = arith.constant 2 : index
    %c1_398 = arith.constant 1 : index
    %c0_399 = arith.constant 0 : index
    %c0_400 = arith.constant 0 : index
    %344 = vector.load %arg3[%c2_397, %c1_398, %c0_399, %c0_400] : memref<3x9x8x8xf32, #tpu.memory_space<vmem>>, vector<1x1x8x8xf32>
    %345 = vector.shape_cast %344 : vector<1x1x8x8xf32> to vector<8x8xf32>
    %c0_401 = arith.constant 0 : index
    %c110_402 = arith.constant 110 : index
    %346 = vector.load %arg9[%c0_401, %c110_402] : memref<8x640xf32, #tpu.memory_space<vmem>>, vector<8x384xf32>
    %cst_403 = arith.constant dense<0.000000e+00> : vector<8x384xf32>
    %347 = tpu.matmul %345, %346, %cst_403 {dimension_numbers = #tpu.dot_dimension_numbers<[1], [0], [0], [1], [0, 0, 1, 1], [], []>} : vector<8x8xf32>, vector<8x384xf32>, vector<8x384xf32> -> vector<8x384xf32>
    %348 = arith.addf %343, %347 : vector<8x384xf32>
    %c2_404 = arith.constant 2 : index
    %c2_405 = arith.constant 2 : index
    %c0_406 = arith.constant 0 : index
    %c0_407 = arith.constant 0 : index
    %349 = vector.load %arg3[%c2_404, %c2_405, %c0_406, %c0_407] : memref<3x9x8x8xf32, #tpu.memory_space<vmem>>, vector<1x1x8x8xf32>
    %350 = vector.shape_cast %349 : vector<1x1x8x8xf32> to vector<8x8xf32>
    %c0_408 = arith.constant 0 : index
    %c111_409 = arith.constant 111 : index
    %351 = vector.load %arg9[%c0_408, %c111_409] : memref<8x640xf32, #tpu.memory_space<vmem>>, vector<8x384xf32>
    %cst_410 = arith.constant dense<0.000000e+00> : vector<8x384xf32>
    %352 = tpu.matmul %350, %351, %cst_410 {dimension_numbers = #tpu.dot_dimension_numbers<[1], [0], [0], [1], [0, 0, 1, 1], [], []>} : vector<8x8xf32>, vector<8x384xf32>, vector<8x384xf32> -> vector<8x384xf32>
    %353 = arith.addf %348, %352 : vector<8x384xf32>
    %c2_411 = arith.constant 2 : index
    %c3_412 = arith.constant 3 : index
    %c0_413 = arith.constant 0 : index
    %c0_414 = arith.constant 0 : index
    %354 = vector.load %arg3[%c2_411, %c3_412, %c0_413, %c0_414] : memref<3x9x8x8xf32, #tpu.memory_space<vmem>>, vector<1x1x8x8xf32>
    %355 = vector.shape_cast %354 : vector<1x1x8x8xf32> to vector<8x8xf32>
    %c0_415 = arith.constant 0 : index
    %c127_416 = arith.constant 127 : index
    %356 = vector.load %arg9[%c0_415, %c127_416] : memref<8x640xf32, #tpu.memory_space<vmem>>, vector<8x384xf32>
    %cst_417 = arith.constant dense<0.000000e+00> : vector<8x384xf32>
    %357 = tpu.matmul %355, %356, %cst_417 {dimension_numbers = #tpu.dot_dimension_numbers<[1], [0], [0], [1], [0, 0, 1, 1], [], []>} : vector<8x8xf32>, vector<8x384xf32>, vector<8x384xf32> -> vector<8x384xf32>
    %358 = arith.addf %353, %357 : vector<8x384xf32>
    %c2_418 = arith.constant 2 : index
    %c4_419 = arith.constant 4 : index
    %c0_420 = arith.constant 0 : index
    %c0_421 = arith.constant 0 : index
    %359 = vector.load %arg3[%c2_418, %c4_419, %c0_420, %c0_421] : memref<3x9x8x8xf32, #tpu.memory_space<vmem>>, vector<1x1x8x8xf32>
    %360 = vector.shape_cast %359 : vector<1x1x8x8xf32> to vector<8x8xf32>
    %c0_422 = arith.constant 0 : index
    %c128_423 = arith.constant 128 : index
    %361 = vector.load %arg9[%c0_422, %c128_423] : memref<8x640xf32, #tpu.memory_space<vmem>>, vector<8x384xf32>
    %cst_424 = arith.constant dense<0.000000e+00> : vector<8x384xf32>
    %362 = tpu.matmul %360, %361, %cst_424 {dimension_numbers = #tpu.dot_dimension_numbers<[1], [0], [0], [1], [0, 0, 1, 1], [], []>} : vector<8x8xf32>, vector<8x384xf32>, vector<8x384xf32> -> vector<8x384xf32>
    %363 = arith.addf %358, %362 : vector<8x384xf32>
    %c2_425 = arith.constant 2 : index
    %c5_426 = arith.constant 5 : index
    %c0_427 = arith.constant 0 : index
    %c0_428 = arith.constant 0 : index
    %364 = vector.load %arg3[%c2_425, %c5_426, %c0_427, %c0_428] : memref<3x9x8x8xf32, #tpu.memory_space<vmem>>, vector<1x1x8x8xf32>
    %365 = vector.shape_cast %364 : vector<1x1x8x8xf32> to vector<8x8xf32>
    %c0_429 = arith.constant 0 : index
    %c129_430 = arith.constant 129 : index
    %366 = vector.load %arg9[%c0_429, %c129_430] : memref<8x640xf32, #tpu.memory_space<vmem>>, vector<8x384xf32>
    %cst_431 = arith.constant dense<0.000000e+00> : vector<8x384xf32>
    %367 = tpu.matmul %365, %366, %cst_431 {dimension_numbers = #tpu.dot_dimension_numbers<[1], [0], [0], [1], [0, 0, 1, 1], [], []>} : vector<8x8xf32>, vector<8x384xf32>, vector<8x384xf32> -> vector<8x384xf32>
    %368 = arith.addf %363, %367 : vector<8x384xf32>
    %c2_432 = arith.constant 2 : index
    %c6_433 = arith.constant 6 : index
    %c0_434 = arith.constant 0 : index
    %c0_435 = arith.constant 0 : index
    %369 = vector.load %arg3[%c2_432, %c6_433, %c0_434, %c0_435] : memref<3x9x8x8xf32, #tpu.memory_space<vmem>>, vector<1x1x8x8xf32>
    %370 = vector.shape_cast %369 : vector<1x1x8x8xf32> to vector<8x8xf32>
    %c0_436 = arith.constant 0 : index
    %c145_437 = arith.constant 145 : index
    %371 = vector.load %arg9[%c0_436, %c145_437] : memref<8x640xf32, #tpu.memory_space<vmem>>, vector<8x384xf32>
    %cst_438 = arith.constant dense<0.000000e+00> : vector<8x384xf32>
    %372 = tpu.matmul %370, %371, %cst_438 {dimension_numbers = #tpu.dot_dimension_numbers<[1], [0], [0], [1], [0, 0, 1, 1], [], []>} : vector<8x8xf32>, vector<8x384xf32>, vector<8x384xf32> -> vector<8x384xf32>
    %373 = arith.addf %368, %372 : vector<8x384xf32>
    %c2_439 = arith.constant 2 : index
    %c7_440 = arith.constant 7 : index
    %c0_441 = arith.constant 0 : index
    %c0_442 = arith.constant 0 : index
    %374 = vector.load %arg3[%c2_439, %c7_440, %c0_441, %c0_442] : memref<3x9x8x8xf32, #tpu.memory_space<vmem>>, vector<1x1x8x8xf32>
    %375 = vector.shape_cast %374 : vector<1x1x8x8xf32> to vector<8x8xf32>
    %c0_443 = arith.constant 0 : index
    %c146_444 = arith.constant 146 : index
    %376 = vector.load %arg9[%c0_443, %c146_444] : memref<8x640xf32, #tpu.memory_space<vmem>>, vector<8x384xf32>
    %cst_445 = arith.constant dense<0.000000e+00> : vector<8x384xf32>
    %377 = tpu.matmul %375, %376, %cst_445 {dimension_numbers = #tpu.dot_dimension_numbers<[1], [0], [0], [1], [0, 0, 1, 1], [], []>} : vector<8x8xf32>, vector<8x384xf32>, vector<8x384xf32> -> vector<8x384xf32>
    %378 = arith.addf %373, %377 : vector<8x384xf32>
    %c2_446 = arith.constant 2 : index
    %c8_447 = arith.constant 8 : index
    %c0_448 = arith.constant 0 : index
    %c0_449 = arith.constant 0 : index
    %379 = vector.load %arg3[%c2_446, %c8_447, %c0_448, %c0_449] : memref<3x9x8x8xf32, #tpu.memory_space<vmem>>, vector<1x1x8x8xf32>
    %380 = vector.shape_cast %379 : vector<1x1x8x8xf32> to vector<8x8xf32>
    %c0_450 = arith.constant 0 : index
    %c147_451 = arith.constant 147 : index
    %381 = vector.load %arg9[%c0_450, %c147_451] : memref<8x640xf32, #tpu.memory_space<vmem>>, vector<8x384xf32>
    %cst_452 = arith.constant dense<0.000000e+00> : vector<8x384xf32>
    %382 = tpu.matmul %380, %381, %cst_452 {dimension_numbers = #tpu.dot_dimension_numbers<[1], [0], [0], [1], [0, 0, 1, 1], [], []>} : vector<8x8xf32>, vector<8x384xf32>, vector<8x384xf32> -> vector<8x384xf32>
    %383 = arith.addf %378, %382 : vector<8x384xf32>
    %384 = vector.broadcast %339 : vector<8x1xf32> to vector<8x384xf32>
    %385 = arith.addf %383, %384 : vector<8x384xf32>
    %cst_453 = arith.constant 0.000000e+00 : f32
    %386 = vector.broadcast %cst_453 : f32 to vector<8x384xf32>
    %387 = arith.cmpf oge, %385, %386 : vector<8x384xf32>
    %cst_454 = arith.constant 0.00999999977 : f32
    %388 = vector.broadcast %cst_454 : f32 to vector<8x384xf32>
    %389 = arith.mulf %388, %385 : vector<8x384xf32>
    %390 = arith.select %387, %385, %389 : vector<8x384xi1>, vector<8x384xf32>
    %c0_455 = arith.constant 0 : index
    %c128_456 = arith.constant 128 : index
    %391 = vector.load %arg5[%c0_455, %c128_456] : memref<1x640xf32, #tpu.memory_space<vmem>>, vector<1x384xf32>
    %392 = vector.broadcast %391 : vector<1x384xf32> to vector<8x384xf32>
    %393 = arith.mulf %390, %392 : vector<8x384xf32>
    %c0_457 = arith.constant 0 : index
    %c128_458 = arith.constant 128 : index
    %394 = vector.load %arg8[%c0_457, %c128_458] : memref<8x640xf32, #tpu.memory_space<vmem>>, vector<8x384xf32>
    tpu.vector_store %arg8[%c0_457, %c128_458], %393 {strides = array<i32>} : memref<8x640xf32, #tpu.memory_space<vmem>>, vector<8x384xf32>,
    %c1_459 = arith.constant 1 : index
    %c0_460 = arith.constant 0 : index
    %c128_461 = arith.constant 128 : index
    %395 = vector.load %arg2[%c1_459, %c0_460, %c128_461] : memref<2x8x640xf32, #tpu.memory_space<vmem>>, vector<1x8x384xf32>
    %396 = vector.shape_cast %395 : vector<1x8x384xf32> to vector<8x384xf32>
    %c0_462 = arith.constant 0 : index
    %c128_463 = arith.constant 128 : index
    %397 = vector.load %arg8[%c0_462, %c128_463] : memref<8x640xf32, #tpu.memory_space<vmem>>, vector<8x384xf32>
    %398 = vector.broadcast %0 : f32 to vector<8x384xf32>
    %399 = arith.mulf %398, %396 : vector<8x384xf32>
    %cst_464 = arith.constant 1.000000e+00 : f32
    %400 = arith.subf %cst_464, %0 : f32
    %401 = vector.broadcast %400 : f32 to vector<8x384xf32>
    %402 = arith.mulf %401, %397 : vector<8x384xf32>
    %403 = arith.addf %399, %402 : vector<8x384xf32>
    %c1_465 = arith.constant 1 : index
    %c0_466 = arith.constant 0 : index
    %c128_467 = arith.constant 128 : index
    %404 = vector.load %arg6[%c1_465, %c0_466, %c128_467] : memref<2x8x640xf32, #tpu.memory_space<vmem>>, vector<1x8x384xf32>
    %405 = vector.shape_cast %404 : vector<1x8x384xf32> to vector<8x384xf32>
    %406 = vector.shape_cast %403 : vector<8x384xf32> to vector<1x8x384xf32>
    tpu.vector_store %arg6[%c1_465, %c0_466, %c128_467], %406 {strides = array<i32>} : memref<2x8x640xf32, #tpu.memory_space<vmem>>, vector<1x8x384xf32>,
    %407 = arith.mulf %396, %396 : vector<8x384xf32>
    %cst_468 = arith.constant dense<0.000000e+00> : vector<8xf32>
    %408 = vector.multi_reduction <add>, %407, %cst_468 [1] : vector<8x384xf32> to vector<8xf32>
    %409 = vector.shape_cast %408 : vector<8xf32> to vector<8x1xf32>
    %cst_469 = arith.constant dense<0.000000e+00> : vector<1xf32>
    %410 = vector.multi_reduction <add>, %409, %cst_469 [0] : vector<8x1xf32> to vector<1xf32>
    %411 = vector.shape_cast %410 : vector<1xf32> to vector<1x1xf32>
    %412 = arith.addf %208, %411 : vector<1x1xf32>
    %413 = arith.mulf %403, %403 : vector<8x384xf32>
    %cst_470 = arith.constant dense<0.000000e+00> : vector<8xf32>
    %414 = vector.multi_reduction <add>, %413, %cst_470 [1] : vector<8x384xf32> to vector<8xf32>
    %415 = vector.shape_cast %414 : vector<8xf32> to vector<8x1xf32>
    %cst_471 = arith.constant dense<0.000000e+00> : vector<1xf32>
    %416 = vector.multi_reduction <add>, %415, %cst_471 [0] : vector<8x1xf32> to vector<1xf32>
    %417 = vector.shape_cast %416 : vector<1xf32> to vector<1x1xf32>
    %418 = arith.addf %214, %417 : vector<1x1xf32>
    %419 = tpu.iota {dimensions = array<i32: 0>} : vector<2x128xi32>
    %c0_i32 = arith.constant 0 : i32
    %420 = vector.broadcast %c0_i32 : i32 to vector<2x128xi32>
    %421 = arith.cmpi eq, %419, %420 : vector<2x128xi32>
    %422 = vector.shape_cast %412 : vector<1x1xf32> to vector<1x1xf32>
    %423 = vector.broadcast %422 : vector<1x1xf32> to vector<2x128xf32>
    %424 = vector.shape_cast %418 : vector<1x1xf32> to vector<1x1xf32>
    %425 = vector.broadcast %424 : vector<1x1xf32> to vector<2x128xf32>
    %426 = arith.select %421, %423, %425 : vector<2x128xi1>, vector<2x128xf32>
    %c0_472 = arith.constant 0 : index
    %c0_473 = arith.constant 0 : index
    %c0_474 = arith.constant 0 : index
    %427 = vector.load %arg7[%c0_472, %c0_473, %c0_474] : memref<1x2x128xf32, #tpu.memory_space<vmem>>, vector<1x2x128xf32>
    %428 = vector.shape_cast %427 : vector<1x2x128xf32> to vector<2x128xf32>
    %429 = vector.shape_cast %426 : vector<2x128xf32> to vector<1x2x128xf32>
    tpu.vector_store %arg7[%c0_472, %c0_473, %c0_474], %429 {strides = array<i32>} : memref<1x2x128xf32, #tpu.memory_space<vmem>>, vector<1x2x128xf32>,
    return
  }
  func.func @transform_0(%arg0: i32) -> (i32, i32) {
    %c0_i32 = arith.constant 0 : i32
    %c0_i32_0 = arith.constant 0 : i32
    %c0_i32_1 = arith.constant 0 : i32
    return %c0_i32, %c0_i32_0 : i32, i32
  }
  func.func @transform_1(%arg0: i32) -> (i32, i32, i32) {
    %c0_i32 = arith.constant 0 : i32
    %c0_i32_0 = arith.constant 0 : i32
    %c0_i32_1 = arith.constant 0 : i32
    return %arg0, %c0_i32, %c0_i32_0 : i32, i32, i32
  }
  func.func @transform_2(%arg0: i32) -> (i32, i32, i32, i32) {
    %c0_i32 = arith.constant 0 : i32
    %c0_i32_0 = arith.constant 0 : i32
    %c0_i32_1 = arith.constant 0 : i32
    %c0_i32_2 = arith.constant 0 : i32
    %c0_i32_3 = arith.constant 0 : i32
    return %c0_i32, %c0_i32_0, %c0_i32_1, %c0_i32_2 : i32, i32, i32, i32
  }
  func.func @transform_3(%arg0: i32) -> (i32, i32, i32) {
    %c0_i32 = arith.constant 0 : i32
    %c0_i32_0 = arith.constant 0 : i32
    %c0_i32_1 = arith.constant 0 : i32
    %c0_i32_2 = arith.constant 0 : i32
    return %c0_i32, %c0_i32_0, %c0_i32_1 : i32, i32, i32
  }
  func.func @transform_4(%arg0: i32) -> (i32, i32) {
    %c0_i32 = arith.constant 0 : i32
    %c0_i32_0 = arith.constant 0 : i32
    %c0_i32_1 = arith.constant 0 : i32
    return %c0_i32, %c0_i32_0 : i32, i32
  }
  func.func @transform_5(%arg0: i32) -> (i32, i32, i32) {
    %c0_i32 = arith.constant 0 : i32
    %c0_i32_0 = arith.constant 0 : i32
    %c0_i32_1 = arith.constant 0 : i32
    return %arg0, %c0_i32, %c0_i32_0 : i32, i32, i32
  }
  func.func @transform_6(%arg0: i32) -> (i32, i32, i32) {
    %c0_i32 = arith.constant 0 : i32
    %c0_i32_0 = arith.constant 0 : i32
    %c0_i32_1 = arith.constant 0 : i32
    return %arg0, %c0_i32, %c0_i32_0 : i32, i32, i32
  }
}

</mosaic_0001>

<llo_original>
// kernel: tpu_custom_call.1
$region0: #{tpu_custom_call.1}
  #allocation0 [shape = 'u32[]', space=smem, size = 0x4, offset = 0x4, fixed_abs, tag = 'smem constant byte address 0x4 - core index']
  #allocation1 [shape = 'u32[144,128]{1,0:T(1,128)}', space=vmem, size = 0x12000, scoped, tag = 'internal scratch']
  #allocation2 [shape = 'f32[8,640]{1,0:T(8,128)}', space=vmem, size = 0x5000, scoped, tag = 'scratch operand']
  #allocation3 [shape = 'f32[8,640]{1,0:T(8,128)}', space=vmem, size = 0x5000, scoped, tag = 'scratch operand']
  #allocation4 [shape = 'f32[1,1]{1,0:T(1,128)S(6)}', space=smem, size = 0x200, scoped, tag = 'scoped memory for tpu_custom_call.1']
  %s0 = inlined_call_operand.<no memory space> [shape: f32[1,1], index: 0, kind: input, shape index: {}]
  %s1 = inlined_call_operand.vmem [shape: f32[2,8,640], index: 1, kind: input, shape index: {}]
  %s2 = inlined_call_operand.vmem [shape: f32[3,9,8,8], index: 2, kind: input, shape index: {}]
  %s3 = inlined_call_operand.vmem [shape: f32[3,8,1], index: 3, kind: input, shape index: {}]
  %s4 = inlined_call_operand.vmem [shape: f32[1,640], index: 4, kind: input, shape index: {}]
  %s5 = inlined_call_operand.hbm [shape: f32[2,8,640], index: 5, kind: output, shape index: {0}]
  %s6 = inlined_call_operand.hbm [shape: f32[1,2,128], index: 6, kind: output, shape index: {1}]
  %7 = xla_tuple %s5, %s6
  %s8 = sld [smem:[#allocation0]]
  $region38: #{tpu_custom_call.1} parent=0
    _
  %s10 = ssub.s32 1, %s8
  %s11 = scalar_select 0, %s10, %s8
  %12 = sst [smem:[#allocation4]] %s0
  $region1: #{tpu_custom_call.1} parent=0
    #allocation5 [shape = 'u8[40960]{0}', space=vmem, size = 0xa000, scoped, tag = 'output window, operand 0, single buffered']
    #allocation6 [shape = 's32[1]{0}', space=sflag, size = 0x4, scoped, tag = 'scoped memory for tpu_custom_call.1']
    #allocation7 [shape = 'u8[1024]{0}', space=vmem, size = 0x400, scoped, tag = 'output window, operand 1, single buffered']
    #allocation8 [shape = 's32[1]{0}', space=sflag, size = 0x4, scoped, tag = 'scoped memory for tpu_custom_call.1']
    %13 = vsyncpa [#allocation6], 0
    %14 = vsyncpa [#allocation8], 0
    // Predicated region
    $region2: #{tpu_custom_call.1} parent=1 // pred_check
      _
    $region3: #{tpu_custom_call.1} parent=1 // pred_check_branch
      %16 = sbr.rel (0) target = $region5
    $region4: #{tpu_custom_call.1} parent=1 // pred_region
      _
    $region5: #{tpu_custom_call.1} parent=1 // pred_fallthru
      _
    // Predicated region
    $region6: #{tpu_custom_call.1} parent=1 // pred_check
      _
    $region7: #{tpu_custom_call.1} parent=1 // pred_check_branch
      %18 = sbr.rel (0) target = $region9
    $region8: #{tpu_custom_call.1} parent=1 // pred_region
      _
    $region9: #{tpu_custom_call.1} parent=1 // pred_fallthru
      _
    // Predicated region
    $region10: #{tpu_custom_call.1} parent=1 // pred_check
      _
    $region11: #{tpu_custom_call.1} parent=1 // pred_check_branch
      %20 = sbr.rel (0) target = $region13
    $region12: #{tpu_custom_call.1} parent=1 // pred_region
      _
    $region13: #{tpu_custom_call.1} parent=1 // pred_fallthru
      _
    // Predicated region
    $region14: #{tpu_custom_call.1} parent=1 // pred_check
      _
    $region15: #{tpu_custom_call.1} parent=1 // pred_check_branch
      %22 = sbr.rel (0) target = $region17
    $region16: #{tpu_custom_call.1} parent=1 // pred_region
      _
    $region17: #{tpu_custom_call.1} parent=1 // pred_fallthru
      _
    // Predicated region
    $region18: #{tpu_custom_call.1} parent=1 // pred_check
      _
    $region19: #{tpu_custom_call.1} parent=1 // pred_check_branch
      %24 = sbr.rel (0) target = $region21
    $region20: #{tpu_custom_call.1} parent=1 // pred_region
      _
    $region21: #{tpu_custom_call.1} parent=1 // pred_fallthru
      _
    %s25 = sld [smem:[#allocation4]]
    %26 = vst [vmem:[#allocation2] sm:$0xff] 0.0
    %27 = vst [vmem:[#allocation2 + $0x20] sm:$0xff] 0.0
    %28 = vst [vmem:[#allocation3] sm:$0xff] 0.0
    %29 = vst [vmem:[#allocation3 + $0x20] sm:$0xff] 0.0
    %v30 = vld [vmem:[%s3] sm:$0xff]
    %v31 = vld [vmem:[%s2] sm:$0xff]
    %v32 = vld [vmem:[%s1] sm:$0xff]
    %v33 = vld [vmem:[%s1 + $0x8] sm:$0xff]
    %v34 = vld [vmem:[%s1 + $0x10] sm:$0xff]
    %v35 = vld [vmem:[%s1 + $0x18] sm:$0xff]
    %s36 = scalar_lea.vmem %s2, 8
    %v37 = vld [vmem:[%s36] sm:$0xff]
    %42 = vrot.lane.b32.xlu0 %v32, 18
    %v43 = vpop.permute.xlu0 %42
    %44 = vrot.lane.b32.xlu0 %v33, 18
    %v45 = vpop.permute.xlu0 %44
    %46 = vrot.lane.b32.xlu0 %v34, 18
    %v47 = vpop.permute.xlu0 %46
    %48 = vrot.lane.b32.xlu0 %v35, 18
    %v49 = vpop.permute.xlu0 %48
    %vm50 = vcmask 146432
    %v51 = vsel %vm50, %v43, %v45
    %v52 = vsel %vm50, %v45, %v47
    %v53 = vsel %vm50, %v47, %v49
    %vm57 = vcmask 64512
    %v59 = vsel %vm57, %v37, 0
    %61 = vmatprep.subr.mxu0 0.0
    %62 = vmatpush1.msra.mxu0 0.0
    %63 = vmatprep.subr.mxu0 0.0
    %64 = vmatpush1.msra.mxu0 0.0
    %65 = vmatprep.subr.mxu0 0.0
    %66 = vmatpush1.msra.mxu0 0.0
    %67 = vmatprep.subr.mxu0 0.0
    %68 = vmatpush1.msra.mxu0 0.0
    %69 = vmatprep.subr.mxu0 0.0
    %70 = vmatpush1.msra.mxu0 0.0
    %71 = vmatprep.subr.mxu0 0.0
    %72 = vmatpush1.msra.mxu0 0.0
    %73 = vmatprep.subr.mxu0 0.0
    %74 = vmatpush1.msra.mxu0 0.0
    %75 = vmatprep.subr.mxu0 0.0
    %76 = vmatpush1.msra.mxu0 0.0
    %77 = vmatprep.subr.mxu0 0.0
    %78 = vmatpush1.msra.mxu0 0.0
    %79 = vmatprep.subr.mxu0 0.0
    %80 = vmatpush1.msra.mxu0 0.0
    %81 = vmatprep.subr.mxu0 0.0
    %82 = vmatpush1.msra.mxu0 0.0
    %83 = vmatprep.subr.mxu0 0.0
    %84 = vmatpush1.msra.mxu0 0.0
    %85 = vmatprep.subr.mxu0 0.0
    %86 = vmatpush1.msra.mxu0 0.0
    %87 = vmatprep.subr.mxu0 0.0
    %88 = vmatpush1.msra.mxu0 0.0
    %89 = vmatprep.subr.mxu0 0.0
    %90 = vmatpush1.msra.mxu0 0.0
    %91 = vmatprep.subr.mxu0 %v52
    %92 = vmatpush1.msra.mxu0 %v51
    %93 = vmatprep.subr.mxu0 0.0
    %94 = vmatpush2.msra.mxu0 0.0
    %95 = vmatprep.subr.mxu0 0.0
    %96 = vmatpush2.msra.mxu0 0.0
    %97 = vmatprep.subr.mxu0 0.0
    %98 = vmatpush2.msra.mxu0 0.0
    %99 = vmatprep.subr.mxu0 0.0
    %100 = vmatpush2.msra.mxu0 0.0
    %101 = vmatprep.subr.mxu0 0.0
    %102 = vmatpush2.msra.mxu0 0.0
    %103 = vmatprep.subr.mxu0 0.0
    %104 = vmatpush2.msra.mxu0 0.0
    %105 = vmatprep.subr.mxu0 0.0
    %106 = vmatpush2.msra.mxu0 0.0
    %107 = vmatprep.subr.mxu0 0.0
    %108 = vmatpush2.msra.mxu0 0.0
    %109 = vmatprep.subr.mxu0 0.0
    %110 = vmatpush2.msra.mxu0 0.0
    %111 = vmatprep.subr.mxu0 0.0
    %112 = vmatpush2.msra.mxu0 0.0
    %113 = vmatprep.subr.mxu0 0.0
    %114 = vmatpush2.msra.mxu0 0.0
    %115 = vmatprep.subr.mxu0 0.0
    %116 = vmatpush2.msra.mxu0 0.0
    %117 = vmatprep.subr.mxu0 0.0
    %118 = vmatpush2.msra.mxu0 0.0
    %119 = vmatprep.subr.mxu0 0.0
    %120 = vmatpush2.msra.mxu0 0.0
    %121 = vmatprep.subr.mxu0 0.0
    %122 = vmatpush2.msra.mxu0 0.0
    %123 = vmatprep.subr.mxu0 0.0
    %124 = vmatpush2.msra.mxu0 0.0
    %125 = vmatprep.mubr.f32.mxu0 0.0
    %126 = vmatmul.mubr.f32.gmra.mxu0 %v59
    %v127 = vpop.f32.mrf.mxu0
    %v128 = vadd.f32 0.0, %v127
    %v129 = vpop.f32.mrf.mxu0
    %v130 = vadd.f32 0.0, %v129
    %131 = vdwg.mxu0
    %132 = vmatprep.subr.mxu0 0.0
    %133 = vmatpush1.msra.mxu0 0.0
    %134 = vmatprep.subr.mxu0 0.0
    %135 = vmatpush1.msra.mxu0 0.0
    %136 = vmatprep.subr.mxu0 0.0
    %137 = vmatpush1.msra.mxu0 0.0
    %138 = vmatprep.subr.mxu0 0.0
    %139 = vmatpush1.msra.mxu0 0.0
    %140 = vmatprep.subr.mxu0 0.0
    %141 = vmatpush1.msra.mxu0 0.0
    %142 = vmatprep.subr.mxu0 0.0
    %143 = vmatpush1.msra.mxu0 0.0
    %144 = vmatprep.subr.mxu0 0.0
    %145 = vmatpush1.msra.mxu0 0.0
    %146 = vmatprep.subr.mxu0 0.0
    %147 = vmatpush1.msra.mxu0 0.0
    %148 = vmatprep.subr.mxu0 0.0
    %149 = vmatpush1.msra.mxu0 0.0
    %150 = vmatprep.subr.mxu0 0.0
    %151 = vmatpush1.msra.mxu0 0.0
    %152 = vmatprep.subr.mxu0 0.0
    %153 = vmatpush1.msra.mxu0 0.0
    %154 = vmatprep.subr.mxu0 0.0
    %155 = vmatpush1.msra.mxu0 0.0
    %156 = vmatprep.subr.mxu0 0.0
    %157 = vmatpush1.msra.mxu0 0.0
    %158 = vmatprep.subr.mxu0 0.0
    %159 = vmatpush1.msra.mxu0 0.0
    %160 = vmatprep.subr.mxu0 0.0
    %161 = vmatpush1.msra.mxu0 0.0
    %162 = vmatprep.subr.mxu0 0.0
    %163 = vmatpush1.msra.mxu0 %v53
    %164 = vmatprep.subr.mxu0 0.0
    %165 = vmatpush2.msra.mxu0 0.0
    %166 = vmatprep.subr.mxu0 0.0
    %167 = vmatpush2.msra.mxu0 0.0
    %168 = vmatprep.subr.mxu0 0.0
    %169 = vmatpush2.msra.mxu0 0.0
    %170 = vmatprep.subr.mxu0 0.0
    %171 = vmatpush2.msra.mxu0 0.0
    %172 = vmatprep.subr.mxu0 0.0
    %173 = vmatpush2.msra.mxu0 0.0
    %174 = vmatprep.subr.mxu0 0.0
    %175 = vmatpush2.msra.mxu0 0.0
    %176 = vmatprep.subr.mxu0 0.0
    %177 = vmatpush2.msra.mxu0 0.0
    %178 = vmatprep.subr.mxu0 0.0
    %179 = vmatpush2.msra.mxu0 0.0
    %180 = vmatprep.subr.mxu0 0.0
    %181 = vmatpush2.msra.mxu0 0.0
    %182 = vmatprep.subr.mxu0 0.0
    %183 = vmatpush2.msra.mxu0 0.0
    %184 = vmatprep.subr.mxu0 0.0
    %185 = vmatpush2.msra.mxu0 0.0
    %186 = vmatprep.subr.mxu0 0.0
    %187 = vmatpush2.msra.mxu0 0.0
    %188 = vmatprep.subr.mxu0 0.0
    %189 = vmatpush2.msra.mxu0 0.0
    %190 = vmatprep.subr.mxu0 0.0
    %191 = vmatpush2.msra.mxu0 0.0
    %192 = vmatprep.subr.mxu0 0.0
    %193 = vmatpush2.msra.mxu0 0.0
    %194 = vmatprep.subr.mxu0 0.0
    %195 = vmatpush2.msra.mxu0 0.0
    %196 = vmatprep.mubr.f32.mxu0 0.0
    %197 = vmatmul.mubr.f32.gmra.mxu0 %v59
    %v198 = vpop.f32.mrf.mxu0
    %v199 = vadd.f32 0.0, %v198
    %v200 = vpop.f32.mrf.mxu0
    %201 = vdwg.mxu0
    %202 = vrot.lane.b32.xlu0 %v32, 19
    %v203 = vpop.permute.xlu0 %202
    %204 = vrot.lane.b32.xlu0 %v33, 19
    %v205 = vpop.permute.xlu0 %204
    %206 = vrot.lane.b32.xlu0 %v34, 19
    %v207 = vpop.permute.xlu0 %206
    %208 = vrot.lane.b32.xlu0 %v35, 19
    %v209 = vpop.permute.xlu0 %208
    %vm210 = vcmask 154624
    %v211 = vsel %vm210, %v203, %v205
    %v212 = vsel %vm210, %v205, %v207
    %v213 = vsel %vm210, %v207, %v209
    %v218 = vsel %vm57, %v31, 0
    %220 = vmatprep.subr.mxu0 0.0
    %221 = vmatpush1.msra.mxu0 0.0
    %222 = vmatprep.subr.mxu0 0.0
    %223 = vmatpush1.msra.mxu0 0.0
    %224 = vmatprep.subr.mxu0 0.0
    %225 = vmatpush1.msra.mxu0 0.0
    %226 = vmatprep.subr.mxu0 0.0
    %227 = vmatpush1.msra.mxu0 0.0
    %228 = vmatprep.subr.mxu0 0.0
    %229 = vmatpush1.msra.mxu0 0.0
    %230 = vmatprep.subr.mxu0 0.0
    %231 = vmatpush1.msra.mxu0 0.0
    %232 = vmatprep.subr.mxu0 0.0
    %233 = vmatpush1.msra.mxu0 0.0
    %234 = vmatprep.subr.mxu0 0.0
    %235 = vmatpush1.msra.mxu0 0.0
    %236 = vmatprep.subr.mxu0 0.0
    %237 = vmatpush1.msra.mxu0 0.0
    %238 = vmatprep.subr.mxu0 0.0
    %239 = vmatpush1.msra.mxu0 0.0
    %240 = vmatprep.subr.mxu0 0.0
    %241 = vmatpush1.msra.mxu0 0.0
    %242 = vmatprep.subr.mxu0 0.0
    %243 = vmatpush1.msra.mxu0 0.0
    %244 = vmatprep.subr.mxu0 0.0
    %245 = vmatpush1.msra.mxu0 0.0
    %246 = vmatprep.subr.mxu0 0.0
    %247 = vmatpush1.msra.mxu0 0.0
    %248 = vmatprep.subr.mxu0 0.0
    %249 = vmatpush1.msra.mxu0 0.0
    %250 = vmatprep.subr.mxu0 %v212
    %251 = vmatpush1.msra.mxu0 %v211
    %252 = vmatprep.subr.mxu0 0.0
    %253 = vmatpush2.msra.mxu0 0.0
    %254 = vmatprep.subr.mxu0 0.0
    %255 = vmatpush2.msra.mxu0 0.0
    %256 = vmatprep.subr.mxu0 0.0
    %257 = vmatpush2.msra.mxu0 0.0
    %258 = vmatprep.subr.mxu0 0.0
    %259 = vmatpush2.msra.mxu0 0.0
    %260 = vmatprep.subr.mxu0 0.0
    %261 = vmatpush2.msra.mxu0 0.0
    %262 = vmatprep.subr.mxu0 0.0
    %263 = vmatpush2.msra.mxu0 0.0
    %264 = vmatprep.subr.mxu0 0.0
    %265 = vmatpush2.msra.mxu0 0.0
    %266 = vmatprep.subr.mxu0 0.0
    %267 = vmatpush2.msra.mxu0 0.0
    %268 = vmatprep.subr.mxu0 0.0
    %269 = vmatpush2.msra.mxu0 0.0
    %270 = vmatprep.subr.mxu0 0.0
    %271 = vmatpush2.msra.mxu0 0.0
    %272 = vmatprep.subr.mxu0 0.0
    %273 = vmatpush2.msra.mxu0 0.0
    %274 = vmatprep.subr.mxu0 0.0
    %275 = vmatpush2.msra.mxu0 0.0
    %276 = vmatprep.subr.mxu0 0.0
    %277 = vmatpush2.msra.mxu0 0.0
    %278 = vmatprep.subr.mxu0 0.0
    %279 = vmatpush2.msra.mxu0 0.0
    %280 = vmatprep.subr.mxu0 0.0
    %281 = vmatpush2.msra.mxu0 0.0
    %282 = vmatprep.subr.mxu0 0.0
    %283 = vmatpush2.msra.mxu0 0.0
    %284 = vmatprep.mubr.f32.mxu0 0.0
    %285 = vmatmul.mubr.f32.gmra.mxu0 %v218
    %v286 = vpop.f32.mrf.mxu0
    %v287 = vadd.f32 %v128, %v286
    %v288 = vpop.f32.mrf.mxu0
    %v289 = vadd.f32 %v130, %v288
    %290 = vdwg.mxu0
    %291 = vmatprep.subr.mxu0 0.0
    %292 = vmatpush1.msra.mxu0 0.0
    %293 = vmatprep.subr.mxu0 0.0
    %294 = vmatpush1.msra.mxu0 0.0
    %295 = vmatprep.subr.mxu0 0.0
    %296 = vmatpush1.msra.mxu0 0.0
    %297 = vmatprep.subr.mxu0 0.0
    %298 = vmatpush1.msra.mxu0 0.0
    %299 = vmatprep.subr.mxu0 0.0
    %300 = vmatpush1.msra.mxu0 0.0
    %301 = vmatprep.subr.mxu0 0.0
    %302 = vmatpush1.msra.mxu0 0.0
    %303 = vmatprep.subr.mxu0 0.0
    %304 = vmatpush1.msra.mxu0 0.0
    %305 = vmatprep.subr.mxu0 0.0
    %306 = vmatpush1.msra.mxu0 0.0
    %307 = vmatprep.subr.mxu0 0.0
    %308 = vmatpush1.msra.mxu0 0.0
    %309 = vmatprep.subr.mxu0 0.0
    %310 = vmatpush1.msra.mxu0 0.0
    %311 = vmatprep.subr.mxu0 0.0
    %312 = vmatpush1.msra.mxu0 0.0
    %313 = vmatprep.subr.mxu0 0.0
    %314 = vmatpush1.msra.mxu0 0.0
    %315 = vmatprep.subr.mxu0 0.0
    %316 = vmatpush1.msra.mxu0 0.0
    %317 = vmatprep.subr.mxu0 0.0
    %318 = vmatpush1.msra.mxu0 0.0
    %319 = vmatprep.subr.mxu0 0.0
    %320 = vmatpush1.msra.mxu0 0.0
    %321 = vmatprep.subr.mxu0 0.0
    %322 = vmatpush1.msra.mxu0 %v213
    %323 = vmatprep.subr.mxu0 0.0
    %324 = vmatpush2.msra.mxu0 0.0
    %325 = vmatprep.subr.mxu0 0.0
    %326 = vmatpush2.msra.mxu0 0.0
    %327 = vmatprep.subr.mxu0 0.0
    %328 = vmatpush2.msra.mxu0 0.0
    %329 = vmatprep.subr.mxu0 0.0
    %330 = vmatpush2.msra.mxu0 0.0
    %331 = vmatprep.subr.mxu0 0.0
    %332 = vmatpush2.msra.mxu0 0.0
    %333 = vmatprep.subr.mxu0 0.0
    %334 = vmatpush2.msra.mxu0 0.0
    %335 = vmatprep.subr.mxu0 0.0
    %336 = vmatpush2.msra.mxu0 0.0
    %337 = vmatprep.subr.mxu0 0.0
    %338 = vmatpush2.msra.mxu0 0.0
    %339 = vmatprep.subr.mxu0 0.0
    %340 = vmatpush2.msra.mxu0 0.0
    %341 = vmatprep.subr.mxu0 0.0
    %342 = vmatpush2.msra.mxu0 0.0
    %343 = vmatprep.subr.mxu0 0.0
    %344 = vmatpush2.msra.mxu0 0.0
    %345 = vmatprep.subr.mxu0 0.0
    %346 = vmatpush2.msra.mxu0 0.0
    %347 = vmatprep.subr.mxu0 0.0
    %348 = vmatpush2.msra.mxu0 0.0
    %349 = vmatprep.subr.mxu0 0.0
    %350 = vmatpush2.msra.mxu0 0.0
    %351 = vmatprep.subr.mxu0 0.0
    %352 = vmatpush2.msra.mxu0 0.0
    %353 = vmatprep.subr.mxu0 0.0
    %354 = vmatpush2.msra.mxu0 0.0
    %355 = vmatprep.mubr.f32.mxu0 0.0
    %356 = vmatmul.mubr.f32.gmra.mxu0 %v218
    %v357 = vpop.f32.mrf.mxu0
    %v358 = vadd.f32 %v199, %v357
    %v359 = vpop.f32.mrf.mxu0
    %360 = vdwg.mxu0
    %s361 = scalar_lea.vmem %s2, 16
    %v362 = vld [vmem:[%s361] sm:$0xff]
    %363 = vrot.lane.b32.xlu0 %v32, 17
    %v364 = vpop.permute.xlu0 %363
    %365 = vrot.lane.b32.xlu0 %v33, 17
    %v366 = vpop.permute.xlu0 %365
    %367 = vrot.lane.b32.xlu0 %v34, 17
    %v368 = vpop.permute.xlu0 %367
    %369 = vrot.lane.b32.xlu0 %v35, 17
    %v370 = vpop.permute.xlu0 %369
    %vm371 = vcmask 138240
    %v372 = vsel %vm371, %v364, %v366
    %v373 = vsel %vm371, %v366, %v368
    %v374 = vsel %vm371, %v368, %v370
    %v379 = vsel %vm57, %v362, 0
    %381 = vmatprep.subr.mxu0 0.0
    %382 = vmatpush1.msra.mxu0 0.0
    %383 = vmatprep.subr.mxu0 0.0
    %384 = vmatpush1.msra.mxu0 0.0
    %385 = vmatprep.subr.mxu0 0.0
    %386 = vmatpush1.msra.mxu0 0.0
    %387 = vmatprep.subr.mxu0 0.0
    %388 = vmatpush1.msra.mxu0 0.0
    %389 = vmatprep.subr.mxu0 0.0
    %390 = vmatpush1.msra.mxu0 0.0
    %391 = vmatprep.subr.mxu0 0.0
    %392 = vmatpush1.msra.mxu0 0.0
    %393 = vmatprep.subr.mxu0 0.0
    %394 = vmatpush1.msra.mxu0 0.0
    %395 = vmatprep.subr.mxu0 0.0
    %396 = vmatpush1.msra.mxu0 0.0
    %397 = vmatprep.subr.mxu0 0.0
    %398 = vmatpush1.msra.mxu0 0.0
    %399 = vmatprep.subr.mxu0 0.0
    %400 = vmatpush1.msra.mxu0 0.0
    %401 = vmatprep.subr.mxu0 0.0
    %402 = vmatpush1.msra.mxu0 0.0
    %403 = vmatprep.subr.mxu0 0.0
    %404 = vmatpush1.msra.mxu0 0.0
    %405 = vmatprep.subr.mxu0 0.0
    %406 = vmatpush1.msra.mxu0 0.0
    %407 = vmatprep.subr.mxu0 0.0
    %408 = vmatpush1.msra.mxu0 0.0
    %409 = vmatprep.subr.mxu0 0.0
    %410 = vmatpush1.msra.mxu0 0.0
    %411 = vmatprep.subr.mxu0 %v373
    %412 = vmatpush1.msra.mxu0 %v372
    %413 = vmatprep.subr.mxu0 0.0
    %414 = vmatpush2.msra.mxu0 0.0
    %415 = vmatprep.subr.mxu0 0.0
    %416 = vmatpush2.msra.mxu0 0.0
    %417 = vmatprep.subr.mxu0 0.0
    %418 = vmatpush2.msra.mxu0 0.0
    %419 = vmatprep.subr.mxu0 0.0
    %420 = vmatpush2.msra.mxu0 0.0
    %421 = vmatprep.subr.mxu0 0.0
    %422 = vmatpush2.msra.mxu0 0.0
    %423 = vmatprep.subr.mxu0 0.0
    %424 = vmatpush2.msra.mxu0 0.0
    %425 = vmatprep.subr.mxu0 0.0
    %426 = vmatpush2.msra.mxu0 0.0
    %427 = vmatprep.subr.mxu0 0.0
    %428 = vmatpush2.msra.mxu0 0.0
    %429 = vmatprep.subr.mxu0 0.0
    %430 = vmatpush2.msra.mxu0 0.0
    %431 = vmatprep.subr.mxu0 0.0
    %432 = vmatpush2.msra.mxu0 0.0
    %433 = vmatprep.subr.mxu0 0.0
    %434 = vmatpush2.msra.mxu0 0.0
    %435 = vmatprep.subr.mxu0 0.0
    %436 = vmatpush2.msra.mxu0 0.0
    %437 = vmatprep.subr.mxu0 0.0
    %438 = vmatpush2.msra.mxu0 0.0
    %439 = vmatprep.subr.mxu0 0.0
    %440 = vmatpush2.msra.mxu0 0.0
    %441 = vmatprep.subr.mxu0 0.0
    %442 = vmatpush2.msra.mxu0 0.0
    %443 = vmatprep.subr.mxu0 0.0
    %444 = vmatpush2.msra.mxu0 0.0
    %445 = vmatprep.mubr.f32.mxu0 0.0
    %446 = vmatmul.mubr.f32.gmra.mxu0 %v379
    %v447 = vpop.f32.mrf.mxu0
    %v448 = vadd.f32 0.0, %v447
    %v449 = vpop.f32.mrf.mxu0
    %v450 = vadd.f32 0.0, %v449
    %451 = vdwg.mxu0
    %452 = vmatprep.subr.mxu0 0.0
    %453 = vmatpush1.msra.mxu0 0.0
    %454 = vmatprep.subr.mxu0 0.0
    %455 = vmatpush1.msra.mxu0 0.0
    %456 = vmatprep.subr.mxu0 0.0
    %457 = vmatpush1.msra.mxu0 0.0
    %458 = vmatprep.subr.mxu0 0.0
    %459 = vmatpush1.msra.mxu0 0.0
    %460 = vmatprep.subr.mxu0 0.0
    %461 = vmatpush1.msra.mxu0 0.0
    %462 = vmatprep.subr.mxu0 0.0
    %463 = vmatpush1.msra.mxu0 0.0
    %464 = vmatprep.subr.mxu0 0.0
    %465 = vmatpush1.msra.mxu0 0.0
    %466 = vmatprep.subr.mxu0 0.0
    %467 = vmatpush1.msra.mxu0 0.0
    %468 = vmatprep.subr.mxu0 0.0
    %469 = vmatpush1.msra.mxu0 0.0
    %470 = vmatprep.subr.mxu0 0.0
    %471 = vmatpush1.msra.mxu0 0.0
    %472 = vmatprep.subr.mxu0 0.0
    %473 = vmatpush1.msra.mxu0 0.0
    %474 = vmatprep.subr.mxu0 0.0
    %475 = vmatpush1.msra.mxu0 0.0
    %476 = vmatprep.subr.mxu0 0.0
    %477 = vmatpush1.msra.mxu0 0.0
    %478 = vmatprep.subr.mxu0 0.0
    %479 = vmatpush1.msra.mxu0 0.0
    %480 = vmatprep.subr.mxu0 0.0
    %481 = vmatpush1.msra.mxu0 0.0
    %482 = vmatprep.subr.mxu0 0.0
    %483 = vmatpush1.msra.mxu0 %v374
    %484 = vmatprep.subr.mxu0 0.0
    %485 = vmatpush2.msra.mxu0 0.0
    %486 = vmatprep.subr.mxu0 0.0
    %487 = vmatpush2.msra.mxu0 0.0
    %488 = vmatprep.subr.mxu0 0.0
    %489 = vmatpush2.msra.mxu0 0.0
    %490 = vmatprep.subr.mxu0 0.0
    %491 = vmatpush2.msra.mxu0 0.0
    %492 = vmatprep.subr.mxu0 0.0
    %493 = vmatpush2.msra.mxu0 0.0
    %494 = vmatprep.subr.mxu0 0.0
    %495 = vmatpush2.msra.mxu0 0.0
    %496 = vmatprep.subr.mxu0 0.0
    %497 = vmatpush2.msra.mxu0 0.0
    %498 = vmatprep.subr.mxu0 0.0
    %499 = vmatpush2.msra.mxu0 0.0
    %500 = vmatprep.subr.mxu0 0.0
    %501 = vmatpush2.msra.mxu0 0.0
    %502 = vmatprep.subr.mxu0 0.0
    %503 = vmatpush2.msra.mxu0 0.0
    %504 = vmatprep.subr.mxu0 0.0
    %505 = vmatpush2.msra.mxu0 0.0
    %506 = vmatprep.subr.mxu0 0.0
    %507 = vmatpush2.msra.mxu0 0.0
    %508 = vmatprep.subr.mxu0 0.0
    %509 = vmatpush2.msra.mxu0 0.0
    %510 = vmatprep.subr.mxu0 0.0
    %511 = vmatpush2.msra.mxu0 0.0
    %512 = vmatprep.subr.mxu0 0.0
    %513 = vmatpush2.msra.mxu0 0.0
    %514 = vmatprep.subr.mxu0 0.0
    %515 = vmatpush2.msra.mxu0 0.0
    %516 = vmatprep.mubr.f32.mxu0 0.0
    %517 = vmatmul.mubr.f32.gmra.mxu0 %v379
    %v518 = vpop.f32.mrf.mxu0
    %v519 = vadd.f32 0.0, %v518
    %v520 = vpop.f32.mrf.mxu0
    %521 = vdwg.mxu0
    %v522 = vadd.f32 %v287, %v448
    %v523 = vadd.f32 %v289, %v450
    %v524 = vadd.f32 %v358, %v519
    %s525 = scalar_lea.vmem %s2, 24
    %v526 = vld [vmem:[%s525] sm:$0xff]
    %527 = vrot.lane.b32.xlu0 %v32, 1
    %v528 = vpop.permute.xlu0 %527
    %529 = vrot.lane.b32.xlu0 %v33, 1
    %v530 = vpop.permute.xlu0 %529
    %531 = vrot.lane.b32.xlu0 %v34, 1
    %v532 = vpop.permute.xlu0 %531
    %533 = vrot.lane.b32.xlu0 %v35, 1
    %v534 = vpop.permute.xlu0 %533
    %vm535 = vcmask 7168
    %v536 = vsel %vm535, %v528, %v530
    %v537 = vsel %vm535, %v530, %v532
    %v538 = vsel %vm535, %v532, %v534
    %v543 = vsel %vm57, %v526, 0
    %545 = vmatprep.subr.mxu0 0.0
    %546 = vmatpush1.msra.mxu0 0.0
    %547 = vmatprep.subr.mxu0 0.0
    %548 = vmatpush1.msra.mxu0 0.0
    %549 = vmatprep.subr.mxu0 0.0
    %550 = vmatpush1.msra.mxu0 0.0
    %551 = vmatprep.subr.mxu0 0.0
    %552 = vmatpush1.msra.mxu0 0.0
    %553 = vmatprep.subr.mxu0 0.0
    %554 = vmatpush1.msra.mxu0 0.0
    %555 = vmatprep.subr.mxu0 0.0
    %556 = vmatpush1.msra.mxu0 0.0
    %557 = vmatprep.subr.mxu0 0.0
    %558 = vmatpush1.msra.mxu0 0.0
    %559 = vmatprep.subr.mxu0 0.0
    %560 = vmatpush1.msra.mxu0 0.0
    %561 = vmatprep.subr.mxu0 0.0
    %562 = vmatpush1.msra.mxu0 0.0
    %563 = vmatprep.subr.mxu0 0.0
    %564 = vmatpush1.msra.mxu0 0.0
    %565 = vmatprep.subr.mxu0 0.0
    %566 = vmatpush1.msra.mxu0 0.0
    %567 = vmatprep.subr.mxu0 0.0
    %568 = vmatpush1.msra.mxu0 0.0
    %569 = vmatprep.subr.mxu0 0.0
    %570 = vmatpush1.msra.mxu0 0.0
    %571 = vmatprep.subr.mxu0 0.0
    %572 = vmatpush1.msra.mxu0 0.0
    %573 = vmatprep.subr.mxu0 0.0
    %574 = vmatpush1.msra.mxu0 0.0
    %575 = vmatprep.subr.mxu0 %v537
    %576 = vmatpush1.msra.mxu0 %v536
    %577 = vmatprep.subr.mxu0 0.0
    %578 = vmatpush2.msra.mxu0 0.0
    %579 = vmatprep.subr.mxu0 0.0
    %580 = vmatpush2.msra.mxu0 0.0
    %581 = vmatprep.subr.mxu0 0.0
    %582 = vmatpush2.msra.mxu0 0.0
    %583 = vmatprep.subr.mxu0 0.0
    %584 = vmatpush2.msra.mxu0 0.0
    %585 = vmatprep.subr.mxu0 0.0
    %586 = vmatpush2.msra.mxu0 0.0
    %587 = vmatprep.subr.mxu0 0.0
    %588 = vmatpush2.msra.mxu0 0.0
    %589 = vmatprep.subr.mxu0 0.0
    %590 = vmatpush2.msra.mxu0 0.0
    %591 = vmatprep.subr.mxu0 0.0
    %592 = vmatpush2.msra.mxu0 0.0
    %593 = vmatprep.subr.mxu0 0.0
    %594 = vmatpush2.msra.mxu0 0.0
    %595 = vmatprep.subr.mxu0 0.0
    %596 = vmatpush2.msra.mxu0 0.0
    %597 = vmatprep.subr.mxu0 0.0
    %598 = vmatpush2.msra.mxu0 0.0
    %599 = vmatprep.subr.mxu0 0.0
    %600 = vmatpush2.msra.mxu0 0.0
    %601 = vmatprep.subr.mxu0 0.0
    %602 = vmatpush2.msra.mxu0 0.0
    %603 = vmatprep.subr.mxu0 0.0
    %604 = vmatpush2.msra.mxu0 0.0
    %605 = vmatprep.subr.mxu0 0.0
    %606 = vmatpush2.msra.mxu0 0.0
    %607 = vmatprep.subr.mxu0 0.0
    %608 = vmatpush2.msra.mxu0 0.0
    %609 = vmatprep.mubr.f32.mxu0 0.0
    %610 = vmatmul.mubr.f32.gmra.mxu0 %v543
    %v611 = vpop.f32.mrf.mxu0
    %v612 = vadd.f32 0.0, %v611
    %v613 = vpop.f32.mrf.mxu0
    %v614 = vadd.f32 0.0, %v613
    %615 = vdwg.mxu0
    %616 = vmatprep.subr.mxu0 0.0
    %617 = vmatpush1.msra.mxu0 0.0
    %618 = vmatprep.subr.mxu0 0.0
    %619 = vmatpush1.msra.mxu0 0.0
    %620 = vmatprep.subr.mxu0 0.0
    %621 = vmatpush1.msra.mxu0 0.0
    %622 = vmatprep.subr.mxu0 0.0
    %623 = vmatpush1.msra.mxu0 0.0
    %624 = vmatprep.subr.mxu0 0.0
    %625 = vmatpush1.msra.mxu0 0.0
    %626 = vmatprep.subr.mxu0 0.0
    %627 = vmatpush1.msra.mxu0 0.0
    %628 = vmatprep.subr.mxu0 0.0
    %629 = vmatpush1.msra.mxu0 0.0
    %630 = vmatprep.subr.mxu0 0.0
    %631 = vmatpush1.msra.mxu0 0.0
    %632 = vmatprep.subr.mxu0 0.0
    %633 = vmatpush1.msra.mxu0 0.0
    %634 = vmatprep.subr.mxu0 0.0
    %635 = vmatpush1.msra.mxu0 0.0
    %636 = vmatprep.subr.mxu0 0.0
    %637 = vmatpush1.msra.mxu0 0.0
    %638 = vmatprep.subr.mxu0 0.0
    %639 = vmatpush1.msra.mxu0 0.0
    %640 = vmatprep.subr.mxu0 0.0
    %641 = vmatpush1.msra.mxu0 0.0
    %642 = vmatprep.subr.mxu0 0.0
    %643 = vmatpush1.msra.mxu0 0.0
    %644 = vmatprep.subr.mxu0 0.0
    %645 = vmatpush1.msra.mxu0 0.0
    %646 = vmatprep.subr.mxu0 0.0
    %647 = vmatpush1.msra.mxu0 %v538
    %648 = vmatprep.subr.mxu0 0.0
    %649 = vmatpush2.msra.mxu0 0.0
    %650 = vmatprep.subr.mxu0 0.0
    %651 = vmatpush2.msra.mxu0 0.0
    %652 = vmatprep.subr.mxu0 0.0
    %653 = vmatpush2.msra.mxu0 0.0
    %654 = vmatprep.subr.mxu0 0.0
    %655 = vmatpush2.msra.mxu0 0.0
    %656 = vmatprep.subr.mxu0 0.0
    %657 = vmatpush2.msra.mxu0 0.0
    %658 = vmatprep.subr.mxu0 0.0
    %659 = vmatpush2.msra.mxu0 0.0
    %660 = vmatprep.subr.mxu0 0.0
    %661 = vmatpush2.msra.mxu0 0.0
    %662 = vmatprep.subr.mxu0 0.0
    %663 = vmatpush2.msra.mxu0 0.0
    %664 = vmatprep.subr.mxu0 0.0
    %665 = vmatpush2.msra.mxu0 0.0
    %666 = vmatprep.subr.mxu0 0.0
    %667 = vmatpush2.msra.mxu0 0.0
    %668 = vmatprep.subr.mxu0 0.0
    %669 = vmatpush2.msra.mxu0 0.0
    %670 = vmatprep.subr.mxu0 0.0
    %671 = vmatpush2.msra.mxu0 0.0
    %672 = vmatprep.subr.mxu0 0.0
    %673 = vmatpush2.msra.mxu0 0.0
    %674 = vmatprep.subr.mxu0 0.0
    %675 = vmatpush2.msra.mxu0 0.0
    %676 = vmatprep.subr.mxu0 0.0
    %677 = vmatpush2.msra.mxu0 0.0
    %678 = vmatprep.subr.mxu0 0.0
    %679 = vmatpush2.msra.mxu0 0.0
    %680 = vmatprep.mubr.f32.mxu0 0.0
    %681 = vmatmul.mubr.f32.gmra.mxu0 %v543
    %v682 = vpop.f32.mrf.mxu0
    %v683 = vadd.f32 0.0, %v682
    %v684 = vpop.f32.mrf.mxu0
    %685 = vdwg.mxu0
    %v686 = vadd.f32 %v522, %v612
    %v687 = vadd.f32 %v523, %v614
    %v688 = vadd.f32 %v524, %v683
    %s689 = scalar_lea.vmem %s2, 32
    %v690 = vld [vmem:[%s689] sm:$0xff]
    %v692 = vsel %vm57, %v690, 0
    %694 = vmatprep.subr.mxu0 0.0
    %695 = vmatpush1.msra.mxu0 0.0
    %696 = vmatprep.subr.mxu0 0.0
    %697 = vmatpush1.msra.mxu0 0.0
    %698 = vmatprep.subr.mxu0 0.0
    %699 = vmatpush1.msra.mxu0 0.0
    %700 = vmatprep.subr.mxu0 0.0
    %701 = vmatpush1.msra.mxu0 0.0
    %702 = vmatprep.subr.mxu0 0.0
    %703 = vmatpush1.msra.mxu0 0.0
    %704 = vmatprep.subr.mxu0 0.0
    %705 = vmatpush1.msra.mxu0 0.0
    %706 = vmatprep.subr.mxu0 0.0
    %707 = vmatpush1.msra.mxu0 0.0
    %708 = vmatprep.subr.mxu0 0.0
    %709 = vmatpush1.msra.mxu0 0.0
    %710 = vmatprep.subr.mxu0 0.0
    %711 = vmatpush1.msra.mxu0 0.0
    %712 = vmatprep.subr.mxu0 0.0
    %713 = vmatpush1.msra.mxu0 0.0
    %714 = vmatprep.subr.mxu0 0.0
    %715 = vmatpush1.msra.mxu0 0.0
    %716 = vmatprep.subr.mxu0 0.0
    %717 = vmatpush1.msra.mxu0 0.0
    %718 = vmatprep.subr.mxu0 0.0
    %719 = vmatpush1.msra.mxu0 0.0
    %720 = vmatprep.subr.mxu0 0.0
    %721 = vmatpush1.msra.mxu0 0.0
    %722 = vmatprep.subr.mxu0 0.0
    %723 = vmatpush1.msra.mxu0 0.0
    %724 = vmatprep.subr.mxu0 %v34
    %725 = vmatpush1.msra.mxu0 %v33
    %726 = vmatprep.subr.mxu0 0.0
    %727 = vmatpush2.msra.mxu0 0.0
    %728 = vmatprep.subr.mxu0 0.0
    %729 = vmatpush2.msra.mxu0 0.0
    %730 = vmatprep.subr.mxu0 0.0
    %731 = vmatpush2.msra.mxu0 0.0
    %732 = vmatprep.subr.mxu0 0.0
    %733 = vmatpush2.msra.mxu0 0.0
    %734 = vmatprep.subr.mxu0 0.0
    %735 = vmatpush2.msra.mxu0 0.0
    %736 = vmatprep.subr.mxu0 0.0
    %737 = vmatpush2.msra.mxu0 0.0
    %738 = vmatprep.subr.mxu0 0.0
    %739 = vmatpush2.msra.mxu0 0.0
    %740 = vmatprep.subr.mxu0 0.0
    %741 = vmatpush2.msra.mxu0 0.0
    %742 = vmatprep.subr.mxu0 0.0
    %743 = vmatpush2.msra.mxu0 0.0
    %744 = vmatprep.subr.mxu0 0.0
    %745 = vmatpush2.msra.mxu0 0.0
    %746 = vmatprep.subr.mxu0 0.0
    %747 = vmatpush2.msra.mxu0 0.0
    %748 = vmatprep.subr.mxu0 0.0
    %749 = vmatpush2.msra.mxu0 0.0
    %750 = vmatprep.subr.mxu0 0.0
    %751 = vmatpush2.msra.mxu0 0.0
    %752 = vmatprep.subr.mxu0 0.0
    %753 = vmatpush2.msra.mxu0 0.0
    %754 = vmatprep.subr.mxu0 0.0
    %755 = vmatpush2.msra.mxu0 0.0
    %756 = vmatprep.subr.mxu0 0.0
    %757 = vmatpush2.msra.mxu0 0.0
    %758 = vmatprep.mubr.f32.mxu0 0.0
    %759 = vmatmul.mubr.f32.gmra.mxu0 %v692
    %v760 = vpop.f32.mrf.mxu0
    %v761 = vadd.f32 0.0, %v760
    %v762 = vpop.f32.mrf.mxu0
    %v763 = vadd.f32 0.0, %v762
    %764 = vdwg.mxu0
    %765 = vmatprep.subr.mxu0 0.0
    %766 = vmatpush1.msra.mxu0 0.0
    %767 = vmatprep.subr.mxu0 0.0
    %768 = vmatpush1.msra.mxu0 0.0
    %769 = vmatprep.subr.mxu0 0.0
    %770 = vmatpush1.msra.mxu0 0.0
    %771 = vmatprep.subr.mxu0 0.0
    %772 = vmatpush1.msra.mxu0 0.0
    %773 = vmatprep.subr.mxu0 0.0
    %774 = vmatpush1.msra.mxu0 0.0
    %775 = vmatprep.subr.mxu0 0.0
    %776 = vmatpush1.msra.mxu0 0.0
    %777 = vmatprep.subr.mxu0 0.0
    %778 = vmatpush1.msra.mxu0 0.0
    %779 = vmatprep.subr.mxu0 0.0
    %780 = vmatpush1.msra.mxu0 0.0
    %781 = vmatprep.subr.mxu0 0.0
    %782 = vmatpush1.msra.mxu0 0.0
    %783 = vmatprep.subr.mxu0 0.0
    %784 = vmatpush1.msra.mxu0 0.0
    %785 = vmatprep.subr.mxu0 0.0
    %786 = vmatpush1.msra.mxu0 0.0
    %787 = vmatprep.subr.mxu0 0.0
    %788 = vmatpush1.msra.mxu0 0.0
    %789 = vmatprep.subr.mxu0 0.0
    %790 = vmatpush1.msra.mxu0 0.0
    %791 = vmatprep.subr.mxu0 0.0
    %792 = vmatpush1.msra.mxu0 0.0
    %793 = vmatprep.subr.mxu0 0.0
    %794 = vmatpush1.msra.mxu0 0.0
    %795 = vmatprep.subr.mxu0 0.0
    %796 = vmatpush1.msra.mxu0 %v35
    %797 = vmatprep.subr.mxu0 0.0
    %798 = vmatpush2.msra.mxu0 0.0
    %799 = vmatprep.subr.mxu0 0.0
    %800 = vmatpush2.msra.mxu0 0.0
    %801 = vmatprep.subr.mxu0 0.0
    %802 = vmatpush2.msra.mxu0 0.0
    %803 = vmatprep.subr.mxu0 0.0
    %804 = vmatpush2.msra.mxu0 0.0
    %805 = vmatprep.subr.mxu0 0.0
    %806 = vmatpush2.msra.mxu0 0.0
    %807 = vmatprep.subr.mxu0 0.0
    %808 = vmatpush2.msra.mxu0 0.0
    %809 = vmatprep.subr.mxu0 0.0
    %810 = vmatpush2.msra.mxu0 0.0
    %811 = vmatprep.subr.mxu0 0.0
    %812 = vmatpush2.msra.mxu0 0.0
    %813 = vmatprep.subr.mxu0 0.0
    %814 = vmatpush2.msra.mxu0 0.0
    %815 = vmatprep.subr.mxu0 0.0
    %816 = vmatpush2.msra.mxu0 0.0
    %817 = vmatprep.subr.mxu0 0.0
    %818 = vmatpush2.msra.mxu0 0.0
    %819 = vmatprep.subr.mxu0 0.0
    %820 = vmatpush2.msra.mxu0 0.0
    %821 = vmatprep.subr.mxu0 0.0
    %822 = vmatpush2.msra.mxu0 0.0
    %823 = vmatprep.subr.mxu0 0.0
    %824 = vmatpush2.msra.mxu0 0.0
    %825 = vmatprep.subr.mxu0 0.0
    %826 = vmatpush2.msra.mxu0 0.0
    %827 = vmatprep.subr.mxu0 0.0
    %828 = vmatpush2.msra.mxu0 0.0
    %829 = vmatprep.mubr.f32.mxu0 0.0
    %830 = vmatmul.mubr.f32.gmra.mxu0 %v692
    %v831 = vpop.f32.mrf.mxu0
    %v832 = vadd.f32 0.0, %v831
    %v833 = vpop.f32.mrf.mxu0
    %834 = vdwg.mxu0
    %v835 = vadd.f32 %v686, %v761
    %v836 = vadd.f32 %v687, %v763
    %v837 = vadd.f32 %v688, %v832
    %s838 = scalar_lea.vmem %s2, 40
    %v839 = vld [vmem:[%s838] sm:$0xff]
    %v840 = vld [vmem:[%s1 + $0x8] sm:$0xff]
    %v841 = vld [vmem:[%s1 + $0x10] sm:$0xff]
    %v842 = vld [vmem:[%s1 + $0x18] sm:$0xff]
    %v843 = vld [vmem:[%s1 + $0x20] sm:$0xff]
    %848 = vrot.lane.b32.xlu0 %v840, 127
    %v849 = vpop.permute.xlu0 %848
    %850 = vrot.lane.b32.xlu0 %v841, 127
    %v851 = vpop.permute.xlu0 %850
    %852 = vrot.lane.b32.xlu0 %v842, 127
    %v853 = vpop.permute.xlu0 %852
    %854 = vrot.lane.b32.xlu0 %v843, 127
    %v855 = vpop.permute.xlu0 %854
    %vm856 = vcmask 1039360
    %v857 = vsel %vm856, %v849, %v851
    %v858 = vsel %vm856, %v851, %v853
    %v859 = vsel %vm856, %v853, %v855
    %v864 = vsel %vm57, %v839, 0
    %866 = vmatprep.subr.mxu0 0.0
    %867 = vmatpush1.msra.mxu0 0.0
    %868 = vmatprep.subr.mxu0 0.0
    %869 = vmatpush1.msra.mxu0 0.0
    %870 = vmatprep.subr.mxu0 0.0
    %871 = vmatpush1.msra.mxu0 0.0
    %872 = vmatprep.subr.mxu0 0.0
    %873 = vmatpush1.msra.mxu0 0.0
    %874 = vmatprep.subr.mxu0 0.0
    %875 = vmatpush1.msra.mxu0 0.0
    %876 = vmatprep.subr.mxu0 0.0
    %877 = vmatpush1.msra.mxu0 0.0
    %878 = vmatprep.subr.mxu0 0.0
    %879 = vmatpush1.msra.mxu0 0.0
    %880 = vmatprep.subr.mxu0 0.0
    %881 = vmatpush1.msra.mxu0 0.0
    %882 = vmatprep.subr.mxu0 0.0
    %883 = vmatpush1.msra.mxu0 0.0
    %884 = vmatprep.subr.mxu0 0.0
    %885 = vmatpush1.msra.mxu0 0.0
    %886 = vmatprep.subr.mxu0 0.0
    %887 = vmatpush1.msra.mxu0 0.0
    %888 = vmatprep.subr.mxu0 0.0
    %889 = vmatpush1.msra.mxu0 0.0
    %890 = vmatprep.subr.mxu0 0.0
    %891 = vmatpush1.msra.mxu0 0.0
    %892 = vmatprep.subr.mxu0 0.0
    %893 = vmatpush1.msra.mxu0 0.0
    %894 = vmatprep.subr.mxu0 0.0
    %895 = vmatpush1.msra.mxu0 0.0
    %896 = vmatprep.subr.mxu0 %v858
    %897 = vmatpush1.msra.mxu0 %v857
    %898 = vmatprep.subr.mxu0 0.0
    %899 = vmatpush2.msra.mxu0 0.0
    %900 = vmatprep.subr.mxu0 0.0
    %901 = vmatpush2.msra.mxu0 0.0
    %902 = vmatprep.subr.mxu0 0.0
    %903 = vmatpush2.msra.mxu0 0.0
    %904 = vmatprep.subr.mxu0 0.0
    %905 = vmatpush2.msra.mxu0 0.0
    %906 = vmatprep.subr.mxu0 0.0
    %907 = vmatpush2.msra.mxu0 0.0
    %908 = vmatprep.subr.mxu0 0.0
    %909 = vmatpush2.msra.mxu0 0.0
    %910 = vmatprep.subr.mxu0 0.0
    %911 = vmatpush2.msra.mxu0 0.0
    %912 = vmatprep.subr.mxu0 0.0
    %913 = vmatpush2.msra.mxu0 0.0
    %914 = vmatprep.subr.mxu0 0.0
    %915 = vmatpush2.msra.mxu0 0.0
    %916 = vmatprep.subr.mxu0 0.0
    %917 = vmatpush2.msra.mxu0 0.0
    %918 = vmatprep.subr.mxu0 0.0
    %919 = vmatpush2.msra.mxu0 0.0
    %920 = vmatprep.subr.mxu0 0.0
    %921 = vmatpush2.msra.mxu0 0.0
    %922 = vmatprep.subr.mxu0 0.0
    %923 = vmatpush2.msra.mxu0 0.0
    %924 = vmatprep.subr.mxu0 0.0
    %925 = vmatpush2.msra.mxu0 0.0
    %926 = vmatprep.subr.mxu0 0.0
    %927 = vmatpush2.msra.mxu0 0.0
    %928 = vmatprep.subr.mxu0 0.0
    %929 = vmatpush2.msra.mxu0 0.0
    %930 = vmatprep.mubr.f32.mxu0 0.0
    %931 = vmatmul.mubr.f32.gmra.mxu0 %v864
    %v932 = vpop.f32.mrf.mxu0
    %v933 = vadd.f32 0.0, %v932
    %v934 = vpop.f32.mrf.mxu0
    %v935 = vadd.f32 0.0, %v934
    %936 = vdwg.mxu0
    %937 = vmatprep.subr.mxu0 0.0
    %938 = vmatpush1.msra.mxu0 0.0
    %939 = vmatprep.subr.mxu0 0.0
    %940 = vmatpush1.msra.mxu0 0.0
    %941 = vmatprep.subr.mxu0 0.0
    %942 = vmatpush1.msra.mxu0 0.0
    %943 = vmatprep.subr.mxu0 0.0
    %944 = vmatpush1.msra.mxu0 0.0
    %945 = vmatprep.subr.mxu0 0.0
    %946 = vmatpush1.msra.mxu0 0.0
    %947 = vmatprep.subr.mxu0 0.0
    %948 = vmatpush1.msra.mxu0 0.0
    %949 = vmatprep.subr.mxu0 0.0
    %950 = vmatpush1.msra.mxu0 0.0
    %951 = vmatprep.subr.mxu0 0.0
    %952 = vmatpush1.msra.mxu0 0.0
    %953 = vmatprep.subr.mxu0 0.0
    %954 = vmatpush1.msra.mxu0 0.0
    %955 = vmatprep.subr.mxu0 0.0
    %956 = vmatpush1.msra.mxu0 0.0
    %957 = vmatprep.subr.mxu0 0.0
    %958 = vmatpush1.msra.mxu0 0.0
    %959 = vmatprep.subr.mxu0 0.0
    %960 = vmatpush1.msra.mxu0 0.0
    %961 = vmatprep.subr.mxu0 0.0
    %962 = vmatpush1.msra.mxu0 0.0
    %963 = vmatprep.subr.mxu0 0.0
    %964 = vmatpush1.msra.mxu0 0.0
    %965 = vmatprep.subr.mxu0 0.0
    %966 = vmatpush1.msra.mxu0 0.0
    %967 = vmatprep.subr.mxu0 0.0
    %968 = vmatpush1.msra.mxu0 %v859
    %969 = vmatprep.subr.mxu0 0.0
    %970 = vmatpush2.msra.mxu0 0.0
    %971 = vmatprep.subr.mxu0 0.0
    %972 = vmatpush2.msra.mxu0 0.0
    %973 = vmatprep.subr.mxu0 0.0
    %974 = vmatpush2.msra.mxu0 0.0
    %975 = vmatprep.subr.mxu0 0.0
    %976 = vmatpush2.msra.mxu0 0.0
    %977 = vmatprep.subr.mxu0 0.0
    %978 = vmatpush2.msra.mxu0 0.0
    %979 = vmatprep.subr.mxu0 0.0
    %980 = vmatpush2.msra.mxu0 0.0
    %981 = vmatprep.subr.mxu0 0.0
    %982 = vmatpush2.msra.mxu0 0.0
    %983 = vmatprep.subr.mxu0 0.0
    %984 = vmatpush2.msra.mxu0 0.0
    %985 = vmatprep.subr.mxu0 0.0
    %986 = vmatpush2.msra.mxu0 0.0
    %987 = vmatprep.subr.mxu0 0.0
    %988 = vmatpush2.msra.mxu0 0.0
    %989 = vmatprep.subr.mxu0 0.0
    %990 = vmatpush2.msra.mxu0 0.0
    %991 = vmatprep.subr.mxu0 0.0
    %992 = vmatpush2.msra.mxu0 0.0
    %993 = vmatprep.subr.mxu0 0.0
    %994 = vmatpush2.msra.mxu0 0.0
    %995 = vmatprep.subr.mxu0 0.0
    %996 = vmatpush2.msra.mxu0 0.0
    %997 = vmatprep.subr.mxu0 0.0
    %998 = vmatpush2.msra.mxu0 0.0
    %999 = vmatprep.subr.mxu0 0.0
    %1000 = vmatpush2.msra.mxu0 0.0
    %1001 = vmatprep.mubr.f32.mxu0 0.0
    %1002 = vmatmul.mubr.f32.gmra.mxu0 %v864
    %v1003 = vpop.f32.mrf.mxu0
    %v1004 = vadd.f32 0.0, %v1003
    %v1005 = vpop.f32.mrf.mxu0
    %1006 = vdwg.mxu0
    %v1007 = vadd.f32 %v835, %v933
    %v1008 = vadd.f32 %v836, %v935
    %v1009 = vadd.f32 %v837, %v1004
    %s1010 = scalar_lea.vmem %s2, 48
    %v1011 = vld [vmem:[%s1010] sm:$0xff]
    %1012 = vrot.lane.b32.xlu0 %v840, 111
    %v1013 = vpop.permute.xlu0 %1012
    %1014 = vrot.lane.b32.xlu0 %v841, 111
    %v1015 = vpop.permute.xlu0 %1014
    %1016 = vrot.lane.b32.xlu0 %v842, 111
    %v1017 = vpop.permute.xlu0 %1016
    %1018 = vrot.lane.b32.xlu0 %v843, 111
    %v1019 = vpop.permute.xlu0 %1018
    %vm1020 = vcmask 908288
    %v1021 = vsel %vm1020, %v1013, %v1015
    %v1022 = vsel %vm1020, %v1015, %v1017
    %v1023 = vsel %vm1020, %v1017, %v1019
    %v1028 = vsel %vm57, %v1011, 0
    %1030 = vmatprep.subr.mxu0 0.0
    %1031 = vmatpush1.msra.mxu0 0.0
    %1032 = vmatprep.subr.mxu0 0.0
    %1033 = vmatpush1.msra.mxu0 0.0
    %1034 = vmatprep.subr.mxu0 0.0
    %1035 = vmatpush1.msra.mxu0 0.0
    %1036 = vmatprep.subr.mxu0 0.0
    %1037 = vmatpush1.msra.mxu0 0.0
    %1038 = vmatprep.subr.mxu0 0.0
    %1039 = vmatpush1.msra.mxu0 0.0
    %1040 = vmatprep.subr.mxu0 0.0
    %1041 = vmatpush1.msra.mxu0 0.0
    %1042 = vmatprep.subr.mxu0 0.0
    %1043 = vmatpush1.msra.mxu0 0.0
    %1044 = vmatprep.subr.mxu0 0.0
    %1045 = vmatpush1.msra.mxu0 0.0
    %1046 = vmatprep.subr.mxu0 0.0
    %1047 = vmatpush1.msra.mxu0 0.0
    %1048 = vmatprep.subr.mxu0 0.0
    %1049 = vmatpush1.msra.mxu0 0.0
    %1050 = vmatprep.subr.mxu0 0.0
    %1051 = vmatpush1.msra.mxu0 0.0
    %1052 = vmatprep.subr.mxu0 0.0
    %1053 = vmatpush1.msra.mxu0 0.0
    %1054 = vmatprep.subr.mxu0 0.0
    %1055 = vmatpush1.msra.mxu0 0.0
    %1056 = vmatprep.subr.mxu0 0.0
    %1057 = vmatpush1.msra.mxu0 0.0
    %1058 = vmatprep.subr.mxu0 0.0
    %1059 = vmatpush1.msra.mxu0 0.0
    %1060 = vmatprep.subr.mxu0 %v1022
    %1061 = vmatpush1.msra.mxu0 %v1021
    %1062 = vmatprep.subr.mxu0 0.0
    %1063 = vmatpush2.msra.mxu0 0.0
    %1064 = vmatprep.subr.mxu0 0.0
    %1065 = vmatpush2.msra.mxu0 0.0
    %1066 = vmatprep.subr.mxu0 0.0
    %1067 = vmatpush2.msra.mxu0 0.0
    %1068 = vmatprep.subr.mxu0 0.0
    %1069 = vmatpush2.msra.mxu0 0.0
    %1070 = vmatprep.subr.mxu0 0.0
    %1071 = vmatpush2.msra.mxu0 0.0
    %1072 = vmatprep.subr.mxu0 0.0
    %1073 = vmatpush2.msra.mxu0 0.0
    %1074 = vmatprep.subr.mxu0 0.0
    %1075 = vmatpush2.msra.mxu0 0.0
    %1076 = vmatprep.subr.mxu0 0.0
    %1077 = vmatpush2.msra.mxu0 0.0
    %1078 = vmatprep.subr.mxu0 0.0
    %1079 = vmatpush2.msra.mxu0 0.0
    %1080 = vmatprep.subr.mxu0 0.0
    %1081 = vmatpush2.msra.mxu0 0.0
    %1082 = vmatprep.subr.mxu0 0.0
    %1083 = vmatpush2.msra.mxu0 0.0
    %1084 = vmatprep.subr.mxu0 0.0
    %1085 = vmatpush2.msra.mxu0 0.0
    %1086 = vmatprep.subr.mxu0 0.0
    %1087 = vmatpush2.msra.mxu0 0.0
    %1088 = vmatprep.subr.mxu0 0.0
    %1089 = vmatpush2.msra.mxu0 0.0
    %1090 = vmatprep.subr.mxu0 0.0
    %1091 = vmatpush2.msra.mxu0 0.0
    %1092 = vmatprep.subr.mxu0 0.0
    %1093 = vmatpush2.msra.mxu0 0.0
    %1094 = vmatprep.mubr.f32.mxu0 0.0
    %1095 = vmatmul.mubr.f32.gmra.mxu0 %v1028
    %v1096 = vpop.f32.mrf.mxu0
    %v1097 = vadd.f32 0.0, %v1096
    %v1098 = vpop.f32.mrf.mxu0
    %v1099 = vadd.f32 0.0, %v1098
    %1100 = vdwg.mxu0
    %1101 = vmatprep.subr.mxu0 0.0
    %1102 = vmatpush1.msra.mxu0 0.0
    %1103 = vmatprep.subr.mxu0 0.0
    %1104 = vmatpush1.msra.mxu0 0.0
    %1105 = vmatprep.subr.mxu0 0.0
    %1106 = vmatpush1.msra.mxu0 0.0
    %1107 = vmatprep.subr.mxu0 0.0
    %1108 = vmatpush1.msra.mxu0 0.0
    %1109 = vmatprep.subr.mxu0 0.0
    %1110 = vmatpush1.msra.mxu0 0.0
    %1111 = vmatprep.subr.mxu0 0.0
    %1112 = vmatpush1.msra.mxu0 0.0
    %1113 = vmatprep.subr.mxu0 0.0
    %1114 = vmatpush1.msra.mxu0 0.0
    %1115 = vmatprep.subr.mxu0 0.0
    %1116 = vmatpush1.msra.mxu0 0.0
    %1117 = vmatprep.subr.mxu0 0.0
    %1118 = vmatpush1.msra.mxu0 0.0
    %1119 = vmatprep.subr.mxu0 0.0
    %1120 = vmatpush1.msra.mxu0 0.0
    %1121 = vmatprep.subr.mxu0 0.0
    %1122 = vmatpush1.msra.mxu0 0.0
    %1123 = vmatprep.subr.mxu0 0.0
    %1124 = vmatpush1.msra.mxu0 0.0
    %1125 = vmatprep.subr.mxu0 0.0
    %1126 = vmatpush1.msra.mxu0 0.0
    %1127 = vmatprep.subr.mxu0 0.0
    %1128 = vmatpush1.msra.mxu0 0.0
    %1129 = vmatprep.subr.mxu0 0.0
    %1130 = vmatpush1.msra.mxu0 0.0
    %1131 = vmatprep.subr.mxu0 0.0
    %1132 = vmatpush1.msra.mxu0 %v1023
    %1133 = vmatprep.subr.mxu0 0.0
    %1134 = vmatpush2.msra.mxu0 0.0
    %1135 = vmatprep.subr.mxu0 0.0
    %1136 = vmatpush2.msra.mxu0 0.0
    %1137 = vmatprep.subr.mxu0 0.0
    %1138 = vmatpush2.msra.mxu0 0.0
    %1139 = vmatprep.subr.mxu0 0.0
    %1140 = vmatpush2.msra.mxu0 0.0
    %1141 = vmatprep.subr.mxu0 0.0
    %1142 = vmatpush2.msra.mxu0 0.0
    %1143 = vmatprep.subr.mxu0 0.0
    %1144 = vmatpush2.msra.mxu0 0.0
    %1145 = vmatprep.subr.mxu0 0.0
    %1146 = vmatpush2.msra.mxu0 0.0
    %1147 = vmatprep.subr.mxu0 0.0
    %1148 = vmatpush2.msra.mxu0 0.0
    %1149 = vmatprep.subr.mxu0 0.0
    %1150 = vmatpush2.msra.mxu0 0.0
    %1151 = vmatprep.subr.mxu0 0.0
    %1152 = vmatpush2.msra.mxu0 0.0
    %1153 = vmatprep.subr.mxu0 0.0
    %1154 = vmatpush2.msra.mxu0 0.0
    %1155 = vmatprep.subr.mxu0 0.0
    %1156 = vmatpush2.msra.mxu0 0.0
    %1157 = vmatprep.subr.mxu0 0.0
    %1158 = vmatpush2.msra.mxu0 0.0
    %1159 = vmatprep.subr.mxu0 0.0
    %1160 = vmatpush2.msra.mxu0 0.0
    %1161 = vmatprep.subr.mxu0 0.0
    %1162 = vmatpush2.msra.mxu0 0.0
    %1163 = vmatprep.subr.mxu0 0.0
    %1164 = vmatpush2.msra.mxu0 0.0
    %1165 = vmatprep.mubr.f32.mxu0 0.0
    %1166 = vmatmul.mubr.f32.gmra.mxu0 %v1028
    %v1167 = vpop.f32.mrf.mxu0
    %v1168 = vadd.f32 0.0, %v1167
    %v1169 = vpop.f32.mrf.mxu0
    %1170 = vdwg.mxu0
    %v1171 = vadd.f32 %v1007, %v1097
    %v1172 = vadd.f32 %v1008, %v1099
    %v1173 = vadd.f32 %v1009, %v1168
    %s1174 = scalar_lea.vmem %s2, 56
    %v1175 = vld [vmem:[%s1174] sm:$0xff]
    %1176 = vrot.lane.b32.xlu0 %v840, 110
    %v1177 = vpop.permute.xlu0 %1176
    %1178 = vrot.lane.b32.xlu0 %v841, 110
    %v1179 = vpop.permute.xlu0 %1178
    %1180 = vrot.lane.b32.xlu0 %v842, 110
    %v1181 = vpop.permute.xlu0 %1180
    %1182 = vrot.lane.b32.xlu0 %v843, 110
    %v1183 = vpop.permute.xlu0 %1182
    %vm1184 = vcmask 900096
    %v1185 = vsel %vm1184, %v1177, %v1179
    %v1186 = vsel %vm1184, %v1179, %v1181
    %v1187 = vsel %vm1184, %v1181, %v1183
    %v1192 = vsel %vm57, %v1175, 0
    %1194 = vmatprep.subr.mxu0 0.0
    %1195 = vmatpush1.msra.mxu0 0.0
    %1196 = vmatprep.subr.mxu0 0.0
    %1197 = vmatpush1.msra.mxu0 0.0
    %1198 = vmatprep.subr.mxu0 0.0
    %1199 = vmatpush1.msra.mxu0 0.0
    %1200 = vmatprep.subr.mxu0 0.0
    %1201 = vmatpush1.msra.mxu0 0.0
    %1202 = vmatprep.subr.mxu0 0.0
    %1203 = vmatpush1.msra.mxu0 0.0
    %1204 = vmatprep.subr.mxu0 0.0
    %1205 = vmatpush1.msra.mxu0 0.0
    %1206 = vmatprep.subr.mxu0 0.0
    %1207 = vmatpush1.msra.mxu0 0.0
    %1208 = vmatprep.subr.mxu0 0.0
    %1209 = vmatpush1.msra.mxu0 0.0
    %1210 = vmatprep.subr.mxu0 0.0
    %1211 = vmatpush1.msra.mxu0 0.0
    %1212 = vmatprep.subr.mxu0 0.0
    %1213 = vmatpush1.msra.mxu0 0.0
    %1214 = vmatprep.subr.mxu0 0.0
    %1215 = vmatpush1.msra.mxu0 0.0
    %1216 = vmatprep.subr.mxu0 0.0
    %1217 = vmatpush1.msra.mxu0 0.0
    %1218 = vmatprep.subr.mxu0 0.0
    %1219 = vmatpush1.msra.mxu0 0.0
    %1220 = vmatprep.subr.mxu0 0.0
    %1221 = vmatpush1.msra.mxu0 0.0
    %1222 = vmatprep.subr.mxu0 0.0
    %1223 = vmatpush1.msra.mxu0 0.0
    %1224 = vmatprep.subr.mxu0 %v1186
    %1225 = vmatpush1.msra.mxu0 %v1185
    %1226 = vmatprep.subr.mxu0 0.0
    %1227 = vmatpush2.msra.mxu0 0.0
    %1228 = vmatprep.subr.mxu0 0.0
    %1229 = vmatpush2.msra.mxu0 0.0
    %1230 = vmatprep.subr.mxu0 0.0
    %1231 = vmatpush2.msra.mxu0 0.0
    %1232 = vmatprep.subr.mxu0 0.0
    %1233 = vmatpush2.msra.mxu0 0.0
    %1234 = vmatprep.subr.mxu0 0.0
    %1235 = vmatpush2.msra.mxu0 0.0
    %1236 = vmatprep.subr.mxu0 0.0
    %1237 = vmatpush2.msra.mxu0 0.0
    %1238 = vmatprep.subr.mxu0 0.0
    %1239 = vmatpush2.msra.mxu0 0.0
    %1240 = vmatprep.subr.mxu0 0.0
    %1241 = vmatpush2.msra.mxu0 0.0
    %1242 = vmatprep.subr.mxu0 0.0
    %1243 = vmatpush2.msra.mxu0 0.0
    %1244 = vmatprep.subr.mxu0 0.0
    %1245 = vmatpush2.msra.mxu0 0.0
    %1246 = vmatprep.subr.mxu0 0.0
    %1247 = vmatpush2.msra.mxu0 0.0
    %1248 = vmatprep.subr.mxu0 0.0
    %1249 = vmatpush2.msra.mxu0 0.0
    %1250 = vmatprep.subr.mxu0 0.0
    %1251 = vmatpush2.msra.mxu0 0.0
    %1252 = vmatprep.subr.mxu0 0.0
    %1253 = vmatpush2.msra.mxu0 0.0
    %1254 = vmatprep.subr.mxu0 0.0
    %1255 = vmatpush2.msra.mxu0 0.0
    %1256 = vmatprep.subr.mxu0 0.0
    %1257 = vmatpush2.msra.mxu0 0.0
    %1258 = vmatprep.mubr.f32.mxu0 0.0
    %1259 = vmatmul.mubr.f32.gmra.mxu0 %v1192
    %v1260 = vpop.f32.mrf.mxu0
    %v1261 = vadd.f32 0.0, %v1260
    %v1262 = vpop.f32.mrf.mxu0
    %v1263 = vadd.f32 0.0, %v1262
    %1264 = vdwg.mxu0
    %1265 = vmatprep.subr.mxu0 0.0
    %1266 = vmatpush1.msra.mxu0 0.0
    %1267 = vmatprep.subr.mxu0 0.0
    %1268 = vmatpush1.msra.mxu0 0.0
    %1269 = vmatprep.subr.mxu0 0.0
    %1270 = vmatpush1.msra.mxu0 0.0
    %1271 = vmatprep.subr.mxu0 0.0
    %1272 = vmatpush1.msra.mxu0 0.0
    %1273 = vmatprep.subr.mxu0 0.0
    %1274 = vmatpush1.msra.mxu0 0.0
    %1275 = vmatprep.subr.mxu0 0.0
    %1276 = vmatpush1.msra.mxu0 0.0
    %1277 = vmatprep.subr.mxu0 0.0
    %1278 = vmatpush1.msra.mxu0 0.0
    %1279 = vmatprep.subr.mxu0 0.0
    %1280 = vmatpush1.msra.mxu0 0.0
    %1281 = vmatprep.subr.mxu0 0.0
    %1282 = vmatpush1.msra.mxu0 0.0
    %1283 = vmatprep.subr.mxu0 0.0
    %1284 = vmatpush1.msra.mxu0 0.0
    %1285 = vmatprep.subr.mxu0 0.0
    %1286 = vmatpush1.msra.mxu0 0.0
    %1287 = vmatprep.subr.mxu0 0.0
    %1288 = vmatpush1.msra.mxu0 0.0
    %1289 = vmatprep.subr.mxu0 0.0
    %1290 = vmatpush1.msra.mxu0 0.0
    %1291 = vmatprep.subr.mxu0 0.0
    %1292 = vmatpush1.msra.mxu0 0.0
    %1293 = vmatprep.subr.mxu0 0.0
    %1294 = vmatpush1.msra.mxu0 0.0
    %1295 = vmatprep.subr.mxu0 0.0
    %1296 = vmatpush1.msra.mxu0 %v1187
    %1297 = vmatprep.subr.mxu0 0.0
    %1298 = vmatpush2.msra.mxu0 0.0
    %1299 = vmatprep.subr.mxu0 0.0
    %1300 = vmatpush2.msra.mxu0 0.0
    %1301 = vmatprep.subr.mxu0 0.0
    %1302 = vmatpush2.msra.mxu0 0.0
    %1303 = vmatprep.subr.mxu0 0.0
    %1304 = vmatpush2.msra.mxu0 0.0
    %1305 = vmatprep.subr.mxu0 0.0
    %1306 = vmatpush2.msra.mxu0 0.0
    %1307 = vmatprep.subr.mxu0 0.0
    %1308 = vmatpush2.msra.mxu0 0.0
    %1309 = vmatprep.subr.mxu0 0.0
    %1310 = vmatpush2.msra.mxu0 0.0
    %1311 = vmatprep.subr.mxu0 0.0
    %1312 = vmatpush2.msra.mxu0 0.0
    %1313 = vmatprep.subr.mxu0 0.0
    %1314 = vmatpush2.msra.mxu0 0.0
    %1315 = vmatprep.subr.mxu0 0.0
    %1316 = vmatpush2.msra.mxu0 0.0
    %1317 = vmatprep.subr.mxu0 0.0
    %1318 = vmatpush2.msra.mxu0 0.0
    %1319 = vmatprep.subr.mxu0 0.0
    %1320 = vmatpush2.msra.mxu0 0.0
    %1321 = vmatprep.subr.mxu0 0.0
    %1322 = vmatpush2.msra.mxu0 0.0
    %1323 = vmatprep.subr.mxu0 0.0
    %1324 = vmatpush2.msra.mxu0 0.0
    %1325 = vmatprep.subr.mxu0 0.0
    %1326 = vmatpush2.msra.mxu0 0.0
    %1327 = vmatprep.subr.mxu0 0.0
    %1328 = vmatpush2.msra.mxu0 0.0
    %1329 = vmatprep.mubr.f32.mxu0 0.0
    %1330 = vmatmul.mubr.f32.gmra.mxu0 %v1192
    %v1331 = vpop.f32.mrf.mxu0
    %v1332 = vadd.f32 0.0, %v1331
    %v1333 = vpop.f32.mrf.mxu0
    %1334 = vdwg.mxu0
    %v1335 = vadd.f32 %v1171, %v1261
    %v1336 = vadd.f32 %v1172, %v1263
    %v1337 = vadd.f32 %v1173, %v1332
    %s1338 = scalar_lea.vmem %s2, 64
    %v1339 = vld [vmem:[%s1338] sm:$0xff]
    %1340 = vrot.lane.b32.xlu0 %v840, 109
    %v1341 = vpop.permute.xlu0 %1340
    %1342 = vrot.lane.b32.xlu0 %v841, 109
    %v1343 = vpop.permute.xlu0 %1342
    %1344 = vrot.lane.b32.xlu0 %v842, 109
    %v1345 = vpop.permute.xlu0 %1344
    %1346 = vrot.lane.b32.xlu0 %v843, 109
    %v1347 = vpop.permute.xlu0 %1346
    %vm1348 = vcmask 891904
    %v1349 = vsel %vm1348, %v1341, %v1343
    %v1350 = vsel %vm1348, %v1343, %v1345
    %v1351 = vsel %vm1348, %v1345, %v1347
    %v1356 = vsel %vm57, %v1339, 0
    %1358 = vmatprep.subr.mxu0 0.0
    %1359 = vmatpush1.msra.mxu0 0.0
    %1360 = vmatprep.subr.mxu0 0.0
    %1361 = vmatpush1.msra.mxu0 0.0
    %1362 = vmatprep.subr.mxu0 0.0
    %1363 = vmatpush1.msra.mxu0 0.0
    %1364 = vmatprep.subr.mxu0 0.0
    %1365 = vmatpush1.msra.mxu0 0.0
    %1366 = vmatprep.subr.mxu0 0.0
    %1367 = vmatpush1.msra.mxu0 0.0
    %1368 = vmatprep.subr.mxu0 0.0
    %1369 = vmatpush1.msra.mxu0 0.0
    %1370 = vmatprep.subr.mxu0 0.0
    %1371 = vmatpush1.msra.mxu0 0.0
    %1372 = vmatprep.subr.mxu0 0.0
    %1373 = vmatpush1.msra.mxu0 0.0
    %1374 = vmatprep.subr.mxu0 0.0
    %1375 = vmatpush1.msra.mxu0 0.0
    %1376 = vmatprep.subr.mxu0 0.0
    %1377 = vmatpush1.msra.mxu0 0.0
    %1378 = vmatprep.subr.mxu0 0.0
    %1379 = vmatpush1.msra.mxu0 0.0
    %1380 = vmatprep.subr.mxu0 0.0
    %1381 = vmatpush1.msra.mxu0 0.0
    %1382 = vmatprep.subr.mxu0 0.0
    %1383 = vmatpush1.msra.mxu0 0.0
    %1384 = vmatprep.subr.mxu0 0.0
    %1385 = vmatpush1.msra.mxu0 0.0
    %1386 = vmatprep.subr.mxu0 0.0
    %1387 = vmatpush1.msra.mxu0 0.0
    %1388 = vmatprep.subr.mxu0 %v1350
    %1389 = vmatpush1.msra.mxu0 %v1349
    %1390 = vmatprep.subr.mxu0 0.0
    %1391 = vmatpush2.msra.mxu0 0.0
    %1392 = vmatprep.subr.mxu0 0.0
    %1393 = vmatpush2.msra.mxu0 0.0
    %1394 = vmatprep.subr.mxu0 0.0
    %1395 = vmatpush2.msra.mxu0 0.0
    %1396 = vmatprep.subr.mxu0 0.0
    %1397 = vmatpush2.msra.mxu0 0.0
    %1398 = vmatprep.subr.mxu0 0.0
    %1399 = vmatpush2.msra.mxu0 0.0
    %1400 = vmatprep.subr.mxu0 0.0
    %1401 = vmatpush2.msra.mxu0 0.0
    %1402 = vmatprep.subr.mxu0 0.0
    %1403 = vmatpush2.msra.mxu0 0.0
    %1404 = vmatprep.subr.mxu0 0.0
    %1405 = vmatpush2.msra.mxu0 0.0
    %1406 = vmatprep.subr.mxu0 0.0
    %1407 = vmatpush2.msra.mxu0 0.0
    %1408 = vmatprep.subr.mxu0 0.0
    %1409 = vmatpush2.msra.mxu0 0.0
    %1410 = vmatprep.subr.mxu0 0.0
    %1411 = vmatpush2.msra.mxu0 0.0
    %1412 = vmatprep.subr.mxu0 0.0
    %1413 = vmatpush2.msra.mxu0 0.0
    %1414 = vmatprep.subr.mxu0 0.0
    %1415 = vmatpush2.msra.mxu0 0.0
    %1416 = vmatprep.subr.mxu0 0.0
    %1417 = vmatpush2.msra.mxu0 0.0
    %1418 = vmatprep.subr.mxu0 0.0
    %1419 = vmatpush2.msra.mxu0 0.0
    %1420 = vmatprep.subr.mxu0 0.0
    %1421 = vmatpush2.msra.mxu0 0.0
    %1422 = vmatprep.mubr.f32.mxu0 0.0
    %1423 = vmatmul.mubr.f32.gmra.mxu0 %v1356
    %v1424 = vpop.f32.mrf.mxu0
    %v1425 = vadd.f32 0.0, %v1424
    %v1426 = vpop.f32.mrf.mxu0
    %v1427 = vadd.f32 0.0, %v1426
    %1428 = vdwg.mxu0
    %1429 = vmatprep.subr.mxu0 0.0
    %1430 = vmatpush1.msra.mxu0 0.0
    %1431 = vmatprep.subr.mxu0 0.0
    %1432 = vmatpush1.msra.mxu0 0.0
    %1433 = vmatprep.subr.mxu0 0.0
    %1434 = vmatpush1.msra.mxu0 0.0
    %1435 = vmatprep.subr.mxu0 0.0
    %1436 = vmatpush1.msra.mxu0 0.0
    %1437 = vmatprep.subr.mxu0 0.0
    %1438 = vmatpush1.msra.mxu0 0.0
    %1439 = vmatprep.subr.mxu0 0.0
    %1440 = vmatpush1.msra.mxu0 0.0
    %1441 = vmatprep.subr.mxu0 0.0
    %1442 = vmatpush1.msra.mxu0 0.0
    %1443 = vmatprep.subr.mxu0 0.0
    %1444 = vmatpush1.msra.mxu0 0.0
    %1445 = vmatprep.subr.mxu0 0.0
    %1446 = vmatpush1.msra.mxu0 0.0
    %1447 = vmatprep.subr.mxu0 0.0
    %1448 = vmatpush1.msra.mxu0 0.0
    %1449 = vmatprep.subr.mxu0 0.0
    %1450 = vmatpush1.msra.mxu0 0.0
    %1451 = vmatprep.subr.mxu0 0.0
    %1452 = vmatpush1.msra.mxu0 0.0
    %1453 = vmatprep.subr.mxu0 0.0
    %1454 = vmatpush1.msra.mxu0 0.0
    %1455 = vmatprep.subr.mxu0 0.0
    %1456 = vmatpush1.msra.mxu0 0.0
    %1457 = vmatprep.subr.mxu0 0.0
    %1458 = vmatpush1.msra.mxu0 0.0
    %1459 = vmatprep.subr.mxu0 0.0
    %1460 = vmatpush1.msra.mxu0 %v1351
    %1461 = vmatprep.subr.mxu0 0.0
    %1462 = vmatpush2.msra.mxu0 0.0
    %1463 = vmatprep.subr.mxu0 0.0
    %1464 = vmatpush2.msra.mxu0 0.0
    %1465 = vmatprep.subr.mxu0 0.0
    %1466 = vmatpush2.msra.mxu0 0.0
    %1467 = vmatprep.subr.mxu0 0.0
    %1468 = vmatpush2.msra.mxu0 0.0
    %1469 = vmatprep.subr.mxu0 0.0
    %1470 = vmatpush2.msra.mxu0 0.0
    %1471 = vmatprep.subr.mxu0 0.0
    %1472 = vmatpush2.msra.mxu0 0.0
    %1473 = vmatprep.subr.mxu0 0.0
    %1474 = vmatpush2.msra.mxu0 0.0
    %1475 = vmatprep.subr.mxu0 0.0
    %1476 = vmatpush2.msra.mxu0 0.0
    %1477 = vmatprep.subr.mxu0 0.0
    %1478 = vmatpush2.msra.mxu0 0.0
    %1479 = vmatprep.subr.mxu0 0.0
    %1480 = vmatpush2.msra.mxu0 0.0
    %1481 = vmatprep.subr.mxu0 0.0
    %1482 = vmatpush2.msra.mxu0 0.0
    %1483 = vmatprep.subr.mxu0 0.0
    %1484 = vmatpush2.msra.mxu0 0.0
    %1485 = vmatprep.subr.mxu0 0.0
    %1486 = vmatpush2.msra.mxu0 0.0
    %1487 = vmatprep.subr.mxu0 0.0
    %1488 = vmatpush2.msra.mxu0 0.0
    %1489 = vmatprep.subr.mxu0 0.0
    %1490 = vmatpush2.msra.mxu0 0.0
    %1491 = vmatprep.subr.mxu0 0.0
    %1492 = vmatpush2.msra.mxu0 0.0
    %1493 = vmatprep.mubr.f32.mxu0 0.0
    %1494 = vmatmul.mubr.f32.gmra.mxu0 %v1356
    %v1495 = vpop.f32.mrf.mxu0
    %v1496 = vadd.f32 0.0, %v1495
    %v1497 = vpop.f32.mrf.mxu0
    %1498 = vdwg.mxu0
    %v1499 = vadd.f32 %v1335, %v1425
    %v1500 = vadd.f32 %v1336, %v1427
    %v1501 = vadd.f32 %v1337, %v1496
    %1503 = vset.pattern.permute.xlu0 0
    %1504 = vperm.xlu0 %1503, %v30
    %v1505 = vpop.permute.xlu0 %1504
    %v1507 = vadd.f32 %v1499, %v1505
    %v1508 = vadd.f32 %v1500, %v1505
    %v1509 = vadd.f32 %v1501, %v1505
    %vm1510 = vcmp.ge.f32.partialorder %v1507, 0.0
    %vm1511 = vcmp.ge.f32.partialorder %v1508, 0.0
    %vm1512 = vcmp.ge.f32.partialorder %v1509, 0.0
    %v1513 = vmul.f32 %v1507, 0.01
    %v1514 = vmul.f32 %v1508, 0.01
    %v1515 = vmul.f32 %v1509, 0.01
    %v1516 = vsel %vm1510, %v1507, %v1513
    %v1517 = vsel %vm1511, %v1508, %v1514
    %v1518 = vsel %vm1512, %v1509, %v1515
    %v1519 = vld [vmem:[%s4 + $0x1] sm:$0x7]
    %v1521 = vlaneseq
    %v1522 = vshrl.u32 %v1521, 7
    %v1523 = vsub.s32 0, %v1522
    %v1524 = vrot.slane %v1519, %v1523
    %v1525 = vlaneseq
    %v1526 = vshrl.u32 %v1525, 7
    %v1527 = vsub.s32 1, %v1526
    %v1528 = vrot.slane %v1519, %v1527
    %v1529 = vlaneseq
    %v1530 = vshrl.u32 %v1529, 7
    %v1531 = vsub.s32 2, %v1530
    %v1532 = vrot.slane %v1519, %v1531
    %v1536 = vmul.f32 %v1516, %v1524
    %v1537 = vmul.f32 %v1517, %v1528
    %v1538 = vmul.f32 %v1518, %v1532
    %1539 = vst [vmem:[#allocation2 + $0x8] sm:$0xff] %v1536
    %1540 = vst [vmem:[#allocation2 + $0x10] sm:$0xff] %v1537
    %1541 = vst [vmem:[#allocation2 + $0x18] sm:$0xff] %v1538
    %s1542 = scalar_lea.vmem %s3, 8
    %v1543 = vld [vmem:[%s1542] sm:$0xff]
    %s1544 = scalar_lea.vmem %s2, 72
    %v1545 = vld [vmem:[%s1544] sm:$0xff]
    %v1546 = vld [vmem:[#allocation2] sm:$0xff]
    %v1547 = vld [vmem:[#allocation2 + $0x8] sm:$0xff]
    %v1548 = vld [vmem:[#allocation2 + $0x10] sm:$0xff]
    %v1549 = vld [vmem:[#allocation2 + $0x18] sm:$0xff]
    %s1550 = scalar_lea.vmem %s2, 80
    %v1551 = vld [vmem:[%s1550] sm:$0xff]
    %1556 = vrot.lane.b32.xlu0 %v1546, 18
    %v1557 = vpop.permute.xlu0 %1556
    %1558 = vrot.lane.b32.xlu0 %v1547, 18
    %v1559 = vpop.permute.xlu0 %1558
    %1560 = vrot.lane.b32.xlu0 %v1548, 18
    %v1561 = vpop.permute.xlu0 %1560
    %1562 = vrot.lane.b32.xlu0 %v1549, 18
    %v1563 = vpop.permute.xlu0 %1562
    %v1564 = vsel %vm50, %v1557, %v1559
    %v1565 = vsel %vm50, %v1559, %v1561
    %v1566 = vsel %vm50, %v1561, %v1563
    %v1571 = vsel %vm57, %v1551, 0
    %1573 = vmatprep.subr.mxu0 0.0
    %1574 = vmatpush1.msra.mxu0 0.0
    %1575 = vmatprep.subr.mxu0 0.0
    %1576 = vmatpush1.msra.mxu0 0.0
    %1577 = vmatprep.subr.mxu0 0.0
    %1578 = vmatpush1.msra.mxu0 0.0
    %1579 = vmatprep.subr.mxu0 0.0
    %1580 = vmatpush1.msra.mxu0 0.0
    %1581 = vmatprep.subr.mxu0 0.0
    %1582 = vmatpush1.msra.mxu0 0.0
    %1583 = vmatprep.subr.mxu0 0.0
    %1584 = vmatpush1.msra.mxu0 0.0
    %1585 = vmatprep.subr.mxu0 0.0
    %1586 = vmatpush1.msra.mxu0 0.0
    %1587 = vmatprep.subr.mxu0 0.0
    %1588 = vmatpush1.msra.mxu0 0.0
    %1589 = vmatprep.subr.mxu0 0.0
    %1590 = vmatpush1.msra.mxu0 0.0
    %1591 = vmatprep.subr.mxu0 0.0
    %1592 = vmatpush1.msra.mxu0 0.0
    %1593 = vmatprep.subr.mxu0 0.0
    %1594 = vmatpush1.msra.mxu0 0.0
    %1595 = vmatprep.subr.mxu0 0.0
    %1596 = vmatpush1.msra.mxu0 0.0
    %1597 = vmatprep.subr.mxu0 0.0
    %1598 = vmatpush1.msra.mxu0 0.0
    %1599 = vmatprep.subr.mxu0 0.0
    %1600 = vmatpush1.msra.mxu0 0.0
    %1601 = vmatprep.subr.mxu0 0.0
    %1602 = vmatpush1.msra.mxu0 0.0
    %1603 = vmatprep.subr.mxu0 %v1565
    %1604 = vmatpush1.msra.mxu0 %v1564
    %1605 = vmatprep.subr.mxu0 0.0
    %1606 = vmatpush2.msra.mxu0 0.0
    %1607 = vmatprep.subr.mxu0 0.0
    %1608 = vmatpush2.msra.mxu0 0.0
    %1609 = vmatprep.subr.mxu0 0.0
    %1610 = vmatpush2.msra.mxu0 0.0
    %1611 = vmatprep.subr.mxu0 0.0
    %1612 = vmatpush2.msra.mxu0 0.0
    %1613 = vmatprep.subr.mxu0 0.0
    %1614 = vmatpush2.msra.mxu0 0.0
    %1615 = vmatprep.subr.mxu0 0.0
    %1616 = vmatpush2.msra.mxu0 0.0
    %1617 = vmatprep.subr.mxu0 0.0
    %1618 = vmatpush2.msra.mxu0 0.0
    %1619 = vmatprep.subr.mxu0 0.0
    %1620 = vmatpush2.msra.mxu0 0.0
    %1621 = vmatprep.subr.mxu0 0.0
    %1622 = vmatpush2.msra.mxu0 0.0
    %1623 = vmatprep.subr.mxu0 0.0
    %1624 = vmatpush2.msra.mxu0 0.0
    %1625 = vmatprep.subr.mxu0 0.0
    %1626 = vmatpush2.msra.mxu0 0.0
    %1627 = vmatprep.subr.mxu0 0.0
    %1628 = vmatpush2.msra.mxu0 0.0
    %1629 = vmatprep.subr.mxu0 0.0
    %1630 = vmatpush2.msra.mxu0 0.0
    %1631 = vmatprep.subr.mxu0 0.0
    %1632 = vmatpush2.msra.mxu0 0.0
    %1633 = vmatprep.subr.mxu0 0.0
    %1634 = vmatpush2.msra.mxu0 0.0
    %1635 = vmatprep.subr.mxu0 0.0
    %1636 = vmatpush2.msra.mxu0 0.0
    %1637 = vmatprep.mubr.f32.mxu0 0.0
    %1638 = vmatmul.mubr.f32.gmra.mxu0 %v1571
    %v1639 = vpop.f32.mrf.mxu0
    %v1640 = vadd.f32 0.0, %v1639
    %v1641 = vpop.f32.mrf.mxu0
    %v1642 = vadd.f32 0.0, %v1641
    %1643 = vdwg.mxu0
    %1644 = vmatprep.subr.mxu0 0.0
    %1645 = vmatpush1.msra.mxu0 0.0
    %1646 = vmatprep.subr.mxu0 0.0
    %1647 = vmatpush1.msra.mxu0 0.0
    %1648 = vmatprep.subr.mxu0 0.0
    %1649 = vmatpush1.msra.mxu0 0.0
    %1650 = vmatprep.subr.mxu0 0.0
    %1651 = vmatpush1.msra.mxu0 0.0
    %1652 = vmatprep.subr.mxu0 0.0
    %1653 = vmatpush1.msra.mxu0 0.0
    %1654 = vmatprep.subr.mxu0 0.0
    %1655 = vmatpush1.msra.mxu0 0.0
    %1656 = vmatprep.subr.mxu0 0.0
    %1657 = vmatpush1.msra.mxu0 0.0
    %1658 = vmatprep.subr.mxu0 0.0
    %1659 = vmatpush1.msra.mxu0 0.0
    %1660 = vmatprep.subr.mxu0 0.0
    %1661 = vmatpush1.msra.mxu0 0.0
    %1662 = vmatprep.subr.mxu0 0.0
    %1663 = vmatpush1.msra.mxu0 0.0
    %1664 = vmatprep.subr.mxu0 0.0
    %1665 = vmatpush1.msra.mxu0 0.0
    %1666 = vmatprep.subr.mxu0 0.0
    %1667 = vmatpush1.msra.mxu0 0.0
    %1668 = vmatprep.subr.mxu0 0.0
    %1669 = vmatpush1.msra.mxu0 0.0
    %1670 = vmatprep.subr.mxu0 0.0
    %1671 = vmatpush1.msra.mxu0 0.0
    %1672 = vmatprep.subr.mxu0 0.0
    %1673 = vmatpush1.msra.mxu0 0.0
    %1674 = vmatprep.subr.mxu0 0.0
    %1675 = vmatpush1.msra.mxu0 %v1566
    %1676 = vmatprep.subr.mxu0 0.0
    %1677 = vmatpush2.msra.mxu0 0.0
    %1678 = vmatprep.subr.mxu0 0.0
    %1679 = vmatpush2.msra.mxu0 0.0
    %1680 = vmatprep.subr.mxu0 0.0
    %1681 = vmatpush2.msra.mxu0 0.0
    %1682 = vmatprep.subr.mxu0 0.0
    %1683 = vmatpush2.msra.mxu0 0.0
    %1684 = vmatprep.subr.mxu0 0.0
    %1685 = vmatpush2.msra.mxu0 0.0
    %1686 = vmatprep.subr.mxu0 0.0
    %1687 = vmatpush2.msra.mxu0 0.0
    %1688 = vmatprep.subr.mxu0 0.0
    %1689 = vmatpush2.msra.mxu0 0.0
    %1690 = vmatprep.subr.mxu0 0.0
    %1691 = vmatpush2.msra.mxu0 0.0
    %1692 = vmatprep.subr.mxu0 0.0
    %1693 = vmatpush2.msra.mxu0 0.0
    %1694 = vmatprep.subr.mxu0 0.0
    %1695 = vmatpush2.msra.mxu0 0.0
    %1696 = vmatprep.subr.mxu0 0.0
    %1697 = vmatpush2.msra.mxu0 0.0
    %1698 = vmatprep.subr.mxu0 0.0
    %1699 = vmatpush2.msra.mxu0 0.0
    %1700 = vmatprep.subr.mxu0 0.0
    %1701 = vmatpush2.msra.mxu0 0.0
    %1702 = vmatprep.subr.mxu0 0.0
    %1703 = vmatpush2.msra.mxu0 0.0
    %1704 = vmatprep.subr.mxu0 0.0
    %1705 = vmatpush2.msra.mxu0 0.0
    %1706 = vmatprep.subr.mxu0 0.0
    %1707 = vmatpush2.msra.mxu0 0.0
    %1708 = vmatprep.mubr.f32.mxu0 0.0
    %1709 = vmatmul.mubr.f32.gmra.mxu0 %v1571
    %v1710 = vpop.f32.mrf.mxu0
    %v1711 = vadd.f32 0.0, %v1710
    %v1712 = vpop.f32.mrf.mxu0
    %1713 = vdwg.mxu0
    %1714 = vrot.lane.b32.xlu0 %v1546, 19
    %v1715 = vpop.permute.xlu0 %1714
    %1716 = vrot.lane.b32.xlu0 %v1547, 19
    %v1717 = vpop.permute.xlu0 %1716
    %1718 = vrot.lane.b32.xlu0 %v1548, 19
    %v1719 = vpop.permute.xlu0 %1718
    %1720 = vrot.lane.b32.xlu0 %v1549, 19
    %v1721 = vpop.permute.xlu0 %1720
    %v1722 = vsel %vm210, %v1715, %v1717
    %v1723 = vsel %vm210, %v1717, %v1719
    %v1724 = vsel %vm210, %v1719, %v1721
    %v1729 = vsel %vm57, %v1545, 0
    %1731 = vmatprep.subr.mxu0 0.0
    %1732 = vmatpush1.msra.mxu0 0.0
    %1733 = vmatprep.subr.mxu0 0.0
    %1734 = vmatpush1.msra.mxu0 0.0
    %1735 = vmatprep.subr.mxu0 0.0
    %1736 = vmatpush1.msra.mxu0 0.0
    %1737 = vmatprep.subr.mxu0 0.0
    %1738 = vmatpush1.msra.mxu0 0.0
    %1739 = vmatprep.subr.mxu0 0.0
    %1740 = vmatpush1.msra.mxu0 0.0
    %1741 = vmatprep.subr.mxu0 0.0
    %1742 = vmatpush1.msra.mxu0 0.0
    %1743 = vmatprep.subr.mxu0 0.0
    %1744 = vmatpush1.msra.mxu0 0.0
    %1745 = vmatprep.subr.mxu0 0.0
    %1746 = vmatpush1.msra.mxu0 0.0
    %1747 = vmatprep.subr.mxu0 0.0
    %1748 = vmatpush1.msra.mxu0 0.0
    %1749 = vmatprep.subr.mxu0 0.0
    %1750 = vmatpush1.msra.mxu0 0.0
    %1751 = vmatprep.subr.mxu0 0.0
    %1752 = vmatpush1.msra.mxu0 0.0
    %1753 = vmatprep.subr.mxu0 0.0
    %1754 = vmatpush1.msra.mxu0 0.0
    %1755 = vmatprep.subr.mxu0 0.0
    %1756 = vmatpush1.msra.mxu0 0.0
    %1757 = vmatprep.subr.mxu0 0.0
    %1758 = vmatpush1.msra.mxu0 0.0
    %1759 = vmatprep.subr.mxu0 0.0
    %1760 = vmatpush1.msra.mxu0 0.0
    %1761 = vmatprep.subr.mxu0 %v1723
    %1762 = vmatpush1.msra.mxu0 %v1722
    %1763 = vmatprep.subr.mxu0 0.0
    %1764 = vmatpush2.msra.mxu0 0.0
    %1765 = vmatprep.subr.mxu0 0.0
    %1766 = vmatpush2.msra.mxu0 0.0
    %1767 = vmatprep.subr.mxu0 0.0
    %1768 = vmatpush2.msra.mxu0 0.0
    %1769 = vmatprep.subr.mxu0 0.0
    %1770 = vmatpush2.msra.mxu0 0.0
    %1771 = vmatprep.subr.mxu0 0.0
    %1772 = vmatpush2.msra.mxu0 0.0
    %1773 = vmatprep.subr.mxu0 0.0
    %1774 = vmatpush2.msra.mxu0 0.0
    %1775 = vmatprep.subr.mxu0 0.0
    %1776 = vmatpush2.msra.mxu0 0.0
    %1777 = vmatprep.subr.mxu0 0.0
    %1778 = vmatpush2.msra.mxu0 0.0
    %1779 = vmatprep.subr.mxu0 0.0
    %1780 = vmatpush2.msra.mxu0 0.0
    %1781 = vmatprep.subr.mxu0 0.0
    %1782 = vmatpush2.msra.mxu0 0.0
    %1783 = vmatprep.subr.mxu0 0.0
    %1784 = vmatpush2.msra.mxu0 0.0
    %1785 = vmatprep.subr.mxu0 0.0
    %1786 = vmatpush2.msra.mxu0 0.0
    %1787 = vmatprep.subr.mxu0 0.0
    %1788 = vmatpush2.msra.mxu0 0.0
    %1789 = vmatprep.subr.mxu0 0.0
    %1790 = vmatpush2.msra.mxu0 0.0
    %1791 = vmatprep.subr.mxu0 0.0
    %1792 = vmatpush2.msra.mxu0 0.0
    %1793 = vmatprep.subr.mxu0 0.0
    %1794 = vmatpush2.msra.mxu0 0.0
    %1795 = vmatprep.mubr.f32.mxu0 0.0
    %1796 = vmatmul.mubr.f32.gmra.mxu0 %v1729
    %v1797 = vpop.f32.mrf.mxu0
    %v1798 = vadd.f32 %v1640, %v1797
    %v1799 = vpop.f32.mrf.mxu0
    %v1800 = vadd.f32 %v1642, %v1799
    %1801 = vdwg.mxu0
    %1802 = vmatprep.subr.mxu0 0.0
    %1803 = vmatpush1.msra.mxu0 0.0
    %1804 = vmatprep.subr.mxu0 0.0
    %1805 = vmatpush1.msra.mxu0 0.0
    %1806 = vmatprep.subr.mxu0 0.0
    %1807 = vmatpush1.msra.mxu0 0.0
    %1808 = vmatprep.subr.mxu0 0.0
    %1809 = vmatpush1.msra.mxu0 0.0
    %1810 = vmatprep.subr.mxu0 0.0
    %1811 = vmatpush1.msra.mxu0 0.0
    %1812 = vmatprep.subr.mxu0 0.0
    %1813 = vmatpush1.msra.mxu0 0.0
    %1814 = vmatprep.subr.mxu0 0.0
    %1815 = vmatpush1.msra.mxu0 0.0
    %1816 = vmatprep.subr.mxu0 0.0
    %1817 = vmatpush1.msra.mxu0 0.0
    %1818 = vmatprep.subr.mxu0 0.0
    %1819 = vmatpush1.msra.mxu0 0.0
    %1820 = vmatprep.subr.mxu0 0.0
    %1821 = vmatpush1.msra.mxu0 0.0
    %1822 = vmatprep.subr.mxu0 0.0
    %1823 = vmatpush1.msra.mxu0 0.0
    %1824 = vmatprep.subr.mxu0 0.0
    %1825 = vmatpush1.msra.mxu0 0.0
    %1826 = vmatprep.subr.mxu0 0.0
    %1827 = vmatpush1.msra.mxu0 0.0
    %1828 = vmatprep.subr.mxu0 0.0
    %1829 = vmatpush1.msra.mxu0 0.0
    %1830 = vmatprep.subr.mxu0 0.0
    %1831 = vmatpush1.msra.mxu0 0.0
    %1832 = vmatprep.subr.mxu0 0.0
    %1833 = vmatpush1.msra.mxu0 %v1724
    %1834 = vmatprep.subr.mxu0 0.0
    %1835 = vmatpush2.msra.mxu0 0.0
    %1836 = vmatprep.subr.mxu0 0.0
    %1837 = vmatpush2.msra.mxu0 0.0
    %1838 = vmatprep.subr.mxu0 0.0
    %1839 = vmatpush2.msra.mxu0 0.0
    %1840 = vmatprep.subr.mxu0 0.0
    %1841 = vmatpush2.msra.mxu0 0.0
    %1842 = vmatprep.subr.mxu0 0.0
    %1843 = vmatpush2.msra.mxu0 0.0
    %1844 = vmatprep.subr.mxu0 0.0
    %1845 = vmatpush2.msra.mxu0 0.0
    %1846 = vmatprep.subr.mxu0 0.0
    %1847 = vmatpush2.msra.mxu0 0.0
    %1848 = vmatprep.subr.mxu0 0.0
    %1849 = vmatpush2.msra.mxu0 0.0
    %1850 = vmatprep.subr.mxu0 0.0
    %1851 = vmatpush2.msra.mxu0 0.0
    %1852 = vmatprep.subr.mxu0 0.0
    %1853 = vmatpush2.msra.mxu0 0.0
    %1854 = vmatprep.subr.mxu0 0.0
    %1855 = vmatpush2.msra.mxu0 0.0
    %1856 = vmatprep.subr.mxu0 0.0
    %1857 = vmatpush2.msra.mxu0 0.0
    %1858 = vmatprep.subr.mxu0 0.0
    %1859 = vmatpush2.msra.mxu0 0.0
    %1860 = vmatprep.subr.mxu0 0.0
    %1861 = vmatpush2.msra.mxu0 0.0
    %1862 = vmatprep.subr.mxu0 0.0
    %1863 = vmatpush2.msra.mxu0 0.0
    %1864 = vmatprep.subr.mxu0 0.0
    %1865 = vmatpush2.msra.mxu0 0.0
    %1866 = vmatprep.mubr.f32.mxu0 0.0
    %1867 = vmatmul.mubr.f32.gmra.mxu0 %v1729
    %v1868 = vpop.f32.mrf.mxu0
    %v1869 = vadd.f32 %v1711, %v1868
    %v1870 = vpop.f32.mrf.mxu0
    %1871 = vdwg.mxu0
    %s1872 = scalar_lea.vmem %s2, 88
    %v1873 = vld [vmem:[%s1872] sm:$0xff]
    %1874 = vrot.lane.b32.xlu0 %v1546, 17
    %v1875 = vpop.permute.xlu0 %1874
    %1876 = vrot.lane.b32.xlu0 %v1547, 17
    %v1877 = vpop.permute.xlu0 %1876
    %1878 = vrot.lane.b32.xlu0 %v1548, 17
    %v1879 = vpop.permute.xlu0 %1878
    %1880 = vrot.lane.b32.xlu0 %v1549, 17
    %v1881 = vpop.permute.xlu0 %1880
    %v1882 = vsel %vm371, %v1875, %v1877
    %v1883 = vsel %vm371, %v1877, %v1879
    %v1884 = vsel %vm371, %v1879, %v1881
    %v1889 = vsel %vm57, %v1873, 0
    %1891 = vmatprep.subr.mxu0 0.0
    %1892 = vmatpush1.msra.mxu0 0.0
    %1893 = vmatprep.subr.mxu0 0.0
    %1894 = vmatpush1.msra.mxu0 0.0
    %1895 = vmatprep.subr.mxu0 0.0
    %1896 = vmatpush1.msra.mxu0 0.0
    %1897 = vmatprep.subr.mxu0 0.0
    %1898 = vmatpush1.msra.mxu0 0.0
    %1899 = vmatprep.subr.mxu0 0.0
    %1900 = vmatpush1.msra.mxu0 0.0
    %1901 = vmatprep.subr.mxu0 0.0
    %1902 = vmatpush1.msra.mxu0 0.0
    %1903 = vmatprep.subr.mxu0 0.0
    %1904 = vmatpush1.msra.mxu0 0.0
    %1905 = vmatprep.subr.mxu0 0.0
    %1906 = vmatpush1.msra.mxu0 0.0
    %1907 = vmatprep.subr.mxu0 0.0
    %1908 = vmatpush1.msra.mxu0 0.0
    %1909 = vmatprep.subr.mxu0 0.0
    %1910 = vmatpush1.msra.mxu0 0.0
    %1911 = vmatprep.subr.mxu0 0.0
    %1912 = vmatpush1.msra.mxu0 0.0
    %1913 = vmatprep.subr.mxu0 0.0
    %1914 = vmatpush1.msra.mxu0 0.0
    %1915 = vmatprep.subr.mxu0 0.0
    %1916 = vmatpush1.msra.mxu0 0.0
    %1917 = vmatprep.subr.mxu0 0.0
    %1918 = vmatpush1.msra.mxu0 0.0
    %1919 = vmatprep.subr.mxu0 0.0
    %1920 = vmatpush1.msra.mxu0 0.0
    %1921 = vmatprep.subr.mxu0 %v1883
    %1922 = vmatpush1.msra.mxu0 %v1882
    %1923 = vmatprep.subr.mxu0 0.0
    %1924 = vmatpush2.msra.mxu0 0.0
    %1925 = vmatprep.subr.mxu0 0.0
    %1926 = vmatpush2.msra.mxu0 0.0
    %1927 = vmatprep.subr.mxu0 0.0
    %1928 = vmatpush2.msra.mxu0 0.0
    %1929 = vmatprep.subr.mxu0 0.0
    %1930 = vmatpush2.msra.mxu0 0.0
    %1931 = vmatprep.subr.mxu0 0.0
    %1932 = vmatpush2.msra.mxu0 0.0
    %1933 = vmatprep.subr.mxu0 0.0
    %1934 = vmatpush2.msra.mxu0 0.0
    %1935 = vmatprep.subr.mxu0 0.0
    %1936 = vmatpush2.msra.mxu0 0.0
    %1937 = vmatprep.subr.mxu0 0.0
    %1938 = vmatpush2.msra.mxu0 0.0
    %1939 = vmatprep.subr.mxu0 0.0
    %1940 = vmatpush2.msra.mxu0 0.0
    %1941 = vmatprep.subr.mxu0 0.0
    %1942 = vmatpush2.msra.mxu0 0.0
    %1943 = vmatprep.subr.mxu0 0.0
    %1944 = vmatpush2.msra.mxu0 0.0
    %1945 = vmatprep.subr.mxu0 0.0
    %1946 = vmatpush2.msra.mxu0 0.0
    %1947 = vmatprep.subr.mxu0 0.0
    %1948 = vmatpush2.msra.mxu0 0.0
    %1949 = vmatprep.subr.mxu0 0.0
    %1950 = vmatpush2.msra.mxu0 0.0
    %1951 = vmatprep.subr.mxu0 0.0
    %1952 = vmatpush2.msra.mxu0 0.0
    %1953 = vmatprep.subr.mxu0 0.0
    %1954 = vmatpush2.msra.mxu0 0.0
    %1955 = vmatprep.mubr.f32.mxu0 0.0
    %1956 = vmatmul.mubr.f32.gmra.mxu0 %v1889
    %v1957 = vpop.f32.mrf.mxu0
    %v1958 = vadd.f32 0.0, %v1957
    %v1959 = vpop.f32.mrf.mxu0
    %v1960 = vadd.f32 0.0, %v1959
    %1961 = vdwg.mxu0
    %1962 = vmatprep.subr.mxu0 0.0
    %1963 = vmatpush1.msra.mxu0 0.0
    %1964 = vmatprep.subr.mxu0 0.0
    %1965 = vmatpush1.msra.mxu0 0.0
    %1966 = vmatprep.subr.mxu0 0.0
    %1967 = vmatpush1.msra.mxu0 0.0
    %1968 = vmatprep.subr.mxu0 0.0
    %1969 = vmatpush1.msra.mxu0 0.0
    %1970 = vmatprep.subr.mxu0 0.0
    %1971 = vmatpush1.msra.mxu0 0.0
    %1972 = vmatprep.subr.mxu0 0.0
    %1973 = vmatpush1.msra.mxu0 0.0
    %1974 = vmatprep.subr.mxu0 0.0
    %1975 = vmatpush1.msra.mxu0 0.0
    %1976 = vmatprep.subr.mxu0 0.0
    %1977 = vmatpush1.msra.mxu0 0.0
    %1978 = vmatprep.subr.mxu0 0.0
    %1979 = vmatpush1.msra.mxu0 0.0
    %1980 = vmatprep.subr.mxu0 0.0
    %1981 = vmatpush1.msra.mxu0 0.0
    %1982 = vmatprep.subr.mxu0 0.0
    %1983 = vmatpush1.msra.mxu0 0.0
    %1984 = vmatprep.subr.mxu0 0.0
    %1985 = vmatpush1.msra.mxu0 0.0
    %1986 = vmatprep.subr.mxu0 0.0
    %1987 = vmatpush1.msra.mxu0 0.0
    %1988 = vmatprep.subr.mxu0 0.0
    %1989 = vmatpush1.msra.mxu0 0.0
    %1990 = vmatprep.subr.mxu0 0.0
    %1991 = vmatpush1.msra.mxu0 0.0
    %1992 = vmatprep.subr.mxu0 0.0
    %1993 = vmatpush1.msra.mxu0 %v1884
    %1994 = vmatprep.subr.mxu0 0.0
    %1995 = vmatpush2.msra.mxu0 0.0
    %1996 = vmatprep.subr.mxu0 0.0
    %1997 = vmatpush2.msra.mxu0 0.0
    %1998 = vmatprep.subr.mxu0 0.0
    %1999 = vmatpush2.msra.mxu0 0.0
    %2000 = vmatprep.subr.mxu0 0.0
    %2001 = vmatpush2.msra.mxu0 0.0
    %2002 = vmatprep.subr.mxu0 0.0
    %2003 = vmatpush2.msra.mxu0 0.0
    %2004 = vmatprep.subr.mxu0 0.0
    %2005 = vmatpush2.msra.mxu0 0.0
    %2006 = vmatprep.subr.mxu0 0.0
    %2007 = vmatpush2.msra.mxu0 0.0
    %2008 = vmatprep.subr.mxu0 0.0
    %2009 = vmatpush2.msra.mxu0 0.0
    %2010 = vmatprep.subr.mxu0 0.0
    %2011 = vmatpush2.msra.mxu0 0.0
    %2012 = vmatprep.subr.mxu0 0.0
    %2013 = vmatpush2.msra.mxu0 0.0
    %2014 = vmatprep.subr.mxu0 0.0
    %2015 = vmatpush2.msra.mxu0 0.0
    %2016 = vmatprep.subr.mxu0 0.0
    %2017 = vmatpush2.msra.mxu0 0.0
    %2018 = vmatprep.subr.mxu0 0.0
    %2019 = vmatpush2.msra.mxu0 0.0
    %2020 = vmatprep.subr.mxu0 0.0
    %2021 = vmatpush2.msra.mxu0 0.0
    %2022 = vmatprep.subr.mxu0 0.0
    %2023 = vmatpush2.msra.mxu0 0.0
    %2024 = vmatprep.subr.mxu0 0.0
    %2025 = vmatpush2.msra.mxu0 0.0
    %2026 = vmatprep.mubr.f32.mxu0 0.0
    %2027 = vmatmul.mubr.f32.gmra.mxu0 %v1889
    %v2028 = vpop.f32.mrf.mxu0
    %v2029 = vadd.f32 0.0, %v2028
    %v2030 = vpop.f32.mrf.mxu0
    %2031 = vdwg.mxu0
    %v2032 = vadd.f32 %v1798, %v1958
    %v2033 = vadd.f32 %v1800, %v1960
    %v2034 = vadd.f32 %v1869, %v2029
    %s2035 = scalar_lea.vmem %s2, 96
    %v2036 = vld [vmem:[%s2035] sm:$0xff]
    %2037 = vrot.lane.b32.xlu0 %v1546, 1
    %v2038 = vpop.permute.xlu0 %2037
    %2039 = vrot.lane.b32.xlu0 %v1547, 1
    %v2040 = vpop.permute.xlu0 %2039
    %2041 = vrot.lane.b32.xlu0 %v1548, 1
    %v2042 = vpop.permute.xlu0 %2041
    %2043 = vrot.lane.b32.xlu0 %v1549, 1
    %v2044 = vpop.permute.xlu0 %2043
    %v2045 = vsel %vm535, %v2038, %v2040
    %v2046 = vsel %vm535, %v2040, %v2042
    %v2047 = vsel %vm535, %v2042, %v2044
    %v2052 = vsel %vm57, %v2036, 0
    %2054 = vmatprep.subr.mxu0 0.0
    %2055 = vmatpush1.msra.mxu0 0.0
    %2056 = vmatprep.subr.mxu0 0.0
    %2057 = vmatpush1.msra.mxu0 0.0
    %2058 = vmatprep.subr.mxu0 0.0
    %2059 = vmatpush1.msra.mxu0 0.0
    %2060 = vmatprep.subr.mxu0 0.0
    %2061 = vmatpush1.msra.mxu0 0.0
    %2062 = vmatprep.subr.mxu0 0.0
    %2063 = vmatpush1.msra.mxu0 0.0
    %2064 = vmatprep.subr.mxu0 0.0
    %2065 = vmatpush1.msra.mxu0 0.0
    %2066 = vmatprep.subr.mxu0 0.0
    %2067 = vmatpush1.msra.mxu0 0.0
    %2068 = vmatprep.subr.mxu0 0.0
    %2069 = vmatpush1.msra.mxu0 0.0
    %2070 = vmatprep.subr.mxu0 0.0
    %2071 = vmatpush1.msra.mxu0 0.0
    %2072 = vmatprep.subr.mxu0 0.0
    %2073 = vmatpush1.msra.mxu0 0.0
    %2074 = vmatprep.subr.mxu0 0.0
    %2075 = vmatpush1.msra.mxu0 0.0
    %2076 = vmatprep.subr.mxu0 0.0
    %2077 = vmatpush1.msra.mxu0 0.0
    %2078 = vmatprep.subr.mxu0 0.0
    %2079 = vmatpush1.msra.mxu0 0.0
    %2080 = vmatprep.subr.mxu0 0.0
    %2081 = vmatpush1.msra.mxu0 0.0
    %2082 = vmatprep.subr.mxu0 0.0
    %2083 = vmatpush1.msra.mxu0 0.0
    %2084 = vmatprep.subr.mxu0 %v2046
    %2085 = vmatpush1.msra.mxu0 %v2045
    %2086 = vmatprep.subr.mxu0 0.0
    %2087 = vmatpush2.msra.mxu0 0.0
    %2088 = vmatprep.subr.mxu0 0.0
    %2089 = vmatpush2.msra.mxu0 0.0
    %2090 = vmatprep.subr.mxu0 0.0
    %2091 = vmatpush2.msra.mxu0 0.0
    %2092 = vmatprep.subr.mxu0 0.0
    %2093 = vmatpush2.msra.mxu0 0.0
    %2094 = vmatprep.subr.mxu0 0.0
    %2095 = vmatpush2.msra.mxu0 0.0
    %2096 = vmatprep.subr.mxu0 0.0
    %2097 = vmatpush2.msra.mxu0 0.0
    %2098 = vmatprep.subr.mxu0 0.0
    %2099 = vmatpush2.msra.mxu0 0.0
    %2100 = vmatprep.subr.mxu0 0.0
    %2101 = vmatpush2.msra.mxu0 0.0
    %2102 = vmatprep.subr.mxu0 0.0
    %2103 = vmatpush2.msra.mxu0 0.0
    %2104 = vmatprep.subr.mxu0 0.0
    %2105 = vmatpush2.msra.mxu0 0.0
    %2106 = vmatprep.subr.mxu0 0.0
    %2107 = vmatpush2.msra.mxu0 0.0
    %2108 = vmatprep.subr.mxu0 0.0
    %2109 = vmatpush2.msra.mxu0 0.0
    %2110 = vmatprep.subr.mxu0 0.0
    %2111 = vmatpush2.msra.mxu0 0.0
    %2112 = vmatprep.subr.mxu0 0.0
    %2113 = vmatpush2.msra.mxu0 0.0
    %2114 = vmatprep.subr.mxu0 0.0
    %2115 = vmatpush2.msra.mxu0 0.0
    %2116 = vmatprep.subr.mxu0 0.0
    %2117 = vmatpush2.msra.mxu0 0.0
    %2118 = vmatprep.mubr.f32.mxu0 0.0
    %2119 = vmatmul.mubr.f32.gmra.mxu0 %v2052
    %v2120 = vpop.f32.mrf.mxu0
    %v2121 = vadd.f32 0.0, %v2120
    %v2122 = vpop.f32.mrf.mxu0
    %v2123 = vadd.f32 0.0, %v2122
    %2124 = vdwg.mxu0
    %2125 = vmatprep.subr.mxu0 0.0
    %2126 = vmatpush1.msra.mxu0 0.0
    %2127 = vmatprep.subr.mxu0 0.0
    %2128 = vmatpush1.msra.mxu0 0.0
    %2129 = vmatprep.subr.mxu0 0.0
    %2130 = vmatpush1.msra.mxu0 0.0
    %2131 = vmatprep.subr.mxu0 0.0
    %2132 = vmatpush1.msra.mxu0 0.0
    %2133 = vmatprep.subr.mxu0 0.0
    %2134 = vmatpush1.msra.mxu0 0.0
    %2135 = vmatprep.subr.mxu0 0.0
    %2136 = vmatpush1.msra.mxu0 0.0
    %2137 = vmatprep.subr.mxu0 0.0
    %2138 = vmatpush1.msra.mxu0 0.0
    %2139 = vmatprep.subr.mxu0 0.0
    %2140 = vmatpush1.msra.mxu0 0.0
    %2141 = vmatprep.subr.mxu0 0.0
    %2142 = vmatpush1.msra.mxu0 0.0
    %2143 = vmatprep.subr.mxu0 0.0
    %2144 = vmatpush1.msra.mxu0 0.0
    %2145 = vmatprep.subr.mxu0 0.0
    %2146 = vmatpush1.msra.mxu0 0.0
    %2147 = vmatprep.subr.mxu0 0.0
    %2148 = vmatpush1.msra.mxu0 0.0
    %2149 = vmatprep.subr.mxu0 0.0
    %2150 = vmatpush1.msra.mxu0 0.0
    %2151 = vmatprep.subr.mxu0 0.0
    %2152 = vmatpush1.msra.mxu0 0.0
    %2153 = vmatprep.subr.mxu0 0.0
    %2154 = vmatpush1.msra.mxu0 0.0
    %2155 = vmatprep.subr.mxu0 0.0
    %2156 = vmatpush1.msra.mxu0 %v2047
    %2157 = vmatprep.subr.mxu0 0.0
    %2158 = vmatpush2.msra.mxu0 0.0
    %2159 = vmatprep.subr.mxu0 0.0
    %2160 = vmatpush2.msra.mxu0 0.0
    %2161 = vmatprep.subr.mxu0 0.0
    %2162 = vmatpush2.msra.mxu0 0.0
    %2163 = vmatprep.subr.mxu0 0.0
    %2164 = vmatpush2.msra.mxu0 0.0
    %2165 = vmatprep.subr.mxu0 0.0
    %2166 = vmatpush2.msra.mxu0 0.0
    %2167 = vmatprep.subr.mxu0 0.0
    %2168 = vmatpush2.msra.mxu0 0.0
    %2169 = vmatprep.subr.mxu0 0.0
    %2170 = vmatpush2.msra.mxu0 0.0
    %2171 = vmatprep.subr.mxu0 0.0
    %2172 = vmatpush2.msra.mxu0 0.0
    %2173 = vmatprep.subr.mxu0 0.0
    %2174 = vmatpush2.msra.mxu0 0.0
    %2175 = vmatprep.subr.mxu0 0.0
    %2176 = vmatpush2.msra.mxu0 0.0
    %2177 = vmatprep.subr.mxu0 0.0
    %2178 = vmatpush2.msra.mxu0 0.0
    %2179 = vmatprep.subr.mxu0 0.0
    %2180 = vmatpush2.msra.mxu0 0.0
    %2181 = vmatprep.subr.mxu0 0.0
    %2182 = vmatpush2.msra.mxu0 0.0
    %2183 = vmatprep.subr.mxu0 0.0
    %2184 = vmatpush2.msra.mxu0 0.0
    %2185 = vmatprep.subr.mxu0 0.0
    %2186 = vmatpush2.msra.mxu0 0.0
    %2187 = vmatprep.subr.mxu0 0.0
    %2188 = vmatpush2.msra.mxu0 0.0
    %2189 = vmatprep.mubr.f32.mxu0 0.0
    %2190 = vmatmul.mubr.f32.gmra.mxu0 %v2052
    %v2191 = vpop.f32.mrf.mxu0
    %v2192 = vadd.f32 0.0, %v2191
    %v2193 = vpop.f32.mrf.mxu0
    %2194 = vdwg.mxu0
    %v2195 = vadd.f32 %v2032, %v2121
    %v2196 = vadd.f32 %v2033, %v2123
    %v2197 = vadd.f32 %v2034, %v2192
    %s2198 = scalar_lea.vmem %s2, 104
    %v2199 = vld [vmem:[%s2198] sm:$0xff]
    %v2201 = vsel %vm57, %v2199, 0
    %2203 = vmatprep.subr.mxu0 0.0
    %2204 = vmatpush1.msra.mxu0 0.0
    %2205 = vmatprep.subr.mxu0 0.0
    %2206 = vmatpush1.msra.mxu0 0.0
    %2207 = vmatprep.subr.mxu0 0.0
    %2208 = vmatpush1.msra.mxu0 0.0
    %2209 = vmatprep.subr.mxu0 0.0
    %2210 = vmatpush1.msra.mxu0 0.0
    %2211 = vmatprep.subr.mxu0 0.0
    %2212 = vmatpush1.msra.mxu0 0.0
    %2213 = vmatprep.subr.mxu0 0.0
    %2214 = vmatpush1.msra.mxu0 0.0
    %2215 = vmatprep.subr.mxu0 0.0
    %2216 = vmatpush1.msra.mxu0 0.0
    %2217 = vmatprep.subr.mxu0 0.0
    %2218 = vmatpush1.msra.mxu0 0.0
    %2219 = vmatprep.subr.mxu0 0.0
    %2220 = vmatpush1.msra.mxu0 0.0
    %2221 = vmatprep.subr.mxu0 0.0
    %2222 = vmatpush1.msra.mxu0 0.0
    %2223 = vmatprep.subr.mxu0 0.0
    %2224 = vmatpush1.msra.mxu0 0.0
    %2225 = vmatprep.subr.mxu0 0.0
    %2226 = vmatpush1.msra.mxu0 0.0
    %2227 = vmatprep.subr.mxu0 0.0
    %2228 = vmatpush1.msra.mxu0 0.0
    %2229 = vmatprep.subr.mxu0 0.0
    %2230 = vmatpush1.msra.mxu0 0.0
    %2231 = vmatprep.subr.mxu0 0.0
    %2232 = vmatpush1.msra.mxu0 0.0
    %2233 = vmatprep.subr.mxu0 %v1548
    %2234 = vmatpush1.msra.mxu0 %v1547
    %2235 = vmatprep.subr.mxu0 0.0
    %2236 = vmatpush2.msra.mxu0 0.0
    %2237 = vmatprep.subr.mxu0 0.0
    %2238 = vmatpush2.msra.mxu0 0.0
    %2239 = vmatprep.subr.mxu0 0.0
    %2240 = vmatpush2.msra.mxu0 0.0
    %2241 = vmatprep.subr.mxu0 0.0
    %2242 = vmatpush2.msra.mxu0 0.0
    %2243 = vmatprep.subr.mxu0 0.0
    %2244 = vmatpush2.msra.mxu0 0.0
    %2245 = vmatprep.subr.mxu0 0.0
    %2246 = vmatpush2.msra.mxu0 0.0
    %2247 = vmatprep.subr.mxu0 0.0
    %2248 = vmatpush2.msra.mxu0 0.0
    %2249 = vmatprep.subr.mxu0 0.0
    %2250 = vmatpush2.msra.mxu0 0.0
    %2251 = vmatprep.subr.mxu0 0.0
    %2252 = vmatpush2.msra.mxu0 0.0
    %2253 = vmatprep.subr.mxu0 0.0
    %2254 = vmatpush2.msra.mxu0 0.0
    %2255 = vmatprep.subr.mxu0 0.0
    %2256 = vmatpush2.msra.mxu0 0.0
    %2257 = vmatprep.subr.mxu0 0.0
    %2258 = vmatpush2.msra.mxu0 0.0
    %2259 = vmatprep.subr.mxu0 0.0
    %2260 = vmatpush2.msra.mxu0 0.0
    %2261 = vmatprep.subr.mxu0 0.0
    %2262 = vmatpush2.msra.mxu0 0.0
    %2263 = vmatprep.subr.mxu0 0.0
    %2264 = vmatpush2.msra.mxu0 0.0
    %2265 = vmatprep.subr.mxu0 0.0
    %2266 = vmatpush2.msra.mxu0 0.0
    %2267 = vmatprep.mubr.f32.mxu0 0.0
    %2268 = vmatmul.mubr.f32.gmra.mxu0 %v2201
    %v2269 = vpop.f32.mrf.mxu0
    %v2270 = vadd.f32 0.0, %v2269
    %v2271 = vpop.f32.mrf.mxu0
    %v2272 = vadd.f32 0.0, %v2271
    %2273 = vdwg.mxu0
    %2274 = vmatprep.subr.mxu0 0.0
    %2275 = vmatpush1.msra.mxu0 0.0
    %2276 = vmatprep.subr.mxu0 0.0
    %2277 = vmatpush1.msra.mxu0 0.0
    %2278 = vmatprep.subr.mxu0 0.0
    %2279 = vmatpush1.msra.mxu0 0.0
    %2280 = vmatprep.subr.mxu0 0.0
    %2281 = vmatpush1.msra.mxu0 0.0
    %2282 = vmatprep.subr.mxu0 0.0
    %2283 = vmatpush1.msra.mxu0 0.0
    %2284 = vmatprep.subr.mxu0 0.0
    %2285 = vmatpush1.msra.mxu0 0.0
    %2286 = vmatprep.subr.mxu0 0.0
    %2287 = vmatpush1.msra.mxu0 0.0
    %2288 = vmatprep.subr.mxu0 0.0
    %2289 = vmatpush1.msra.mxu0 0.0
    %2290 = vmatprep.subr.mxu0 0.0
    %2291 = vmatpush1.msra.mxu0 0.0
    %2292 = vmatprep.subr.mxu0 0.0
    %2293 = vmatpush1.msra.mxu0 0.0
    %2294 = vmatprep.subr.mxu0 0.0
    %2295 = vmatpush1.msra.mxu0 0.0
    %2296 = vmatprep.subr.mxu0 0.0
    %2297 = vmatpush1.msra.mxu0 0.0
    %2298 = vmatprep.subr.mxu0 0.0
    %2299 = vmatpush1.msra.mxu0 0.0
    %2300 = vmatprep.subr.mxu0 0.0
    %2301 = vmatpush1.msra.mxu0 0.0
    %2302 = vmatprep.subr.mxu0 0.0
    %2303 = vmatpush1.msra.mxu0 0.0
    %2304 = vmatprep.subr.mxu0 0.0
    %2305 = vmatpush1.msra.mxu0 %v1549
    %2306 = vmatprep.subr.mxu0 0.0
    %2307 = vmatpush2.msra.mxu0 0.0
    %2308 = vmatprep.subr.mxu0 0.0
    %2309 = vmatpush2.msra.mxu0 0.0
    %2310 = vmatprep.subr.mxu0 0.0
    %2311 = vmatpush2.msra.mxu0 0.0
    %2312 = vmatprep.subr.mxu0 0.0
    %2313 = vmatpush2.msra.mxu0 0.0
    %2314 = vmatprep.subr.mxu0 0.0
    %2315 = vmatpush2.msra.mxu0 0.0
    %2316 = vmatprep.subr.mxu0 0.0
    %2317 = vmatpush2.msra.mxu0 0.0
    %2318 = vmatprep.subr.mxu0 0.0
    %2319 = vmatpush2.msra.mxu0 0.0
    %2320 = vmatprep.subr.mxu0 0.0
    %2321 = vmatpush2.msra.mxu0 0.0
    %2322 = vmatprep.subr.mxu0 0.0
    %2323 = vmatpush2.msra.mxu0 0.0
    %2324 = vmatprep.subr.mxu0 0.0
    %2325 = vmatpush2.msra.mxu0 0.0
    %2326 = vmatprep.subr.mxu0 0.0
    %2327 = vmatpush2.msra.mxu0 0.0
    %2328 = vmatprep.subr.mxu0 0.0
    %2329 = vmatpush2.msra.mxu0 0.0
    %2330 = vmatprep.subr.mxu0 0.0
    %2331 = vmatpush2.msra.mxu0 0.0
    %2332 = vmatprep.subr.mxu0 0.0
    %2333 = vmatpush2.msra.mxu0 0.0
    %2334 = vmatprep.subr.mxu0 0.0
    %2335 = vmatpush2.msra.mxu0 0.0
    %2336 = vmatprep.subr.mxu0 0.0
    %2337 = vmatpush2.msra.mxu0 0.0
    %2338 = vmatprep.mubr.f32.mxu0 0.0
    %2339 = vmatmul.mubr.f32.gmra.mxu0 %v2201
    %v2340 = vpop.f32.mrf.mxu0
    %v2341 = vadd.f32 0.0, %v2340
    %v2342 = vpop.f32.mrf.mxu0
    %2343 = vdwg.mxu0
    %v2344 = vadd.f32 %v2195, %v2270
    %v2345 = vadd.f32 %v2196, %v2272
    %v2346 = vadd.f32 %v2197, %v2341
    %s2347 = scalar_lea.vmem %s2, 112
    %v2348 = vld [vmem:[%s2347] sm:$0xff]
    %v2349 = vld [vmem:[#allocation2 + $0x8] sm:$0xff]
    %v2350 = vld [vmem:[#allocation2 + $0x10] sm:$0xff]
    %v2351 = vld [vmem:[#allocation2 + $0x18] sm:$0xff]
    %v2352 = vld [vmem:[#allocation2 + $0x20] sm:$0xff]
    %2357 = vrot.lane.b32.xlu0 %v2349, 127
    %v2358 = vpop.permute.xlu0 %2357
    %2359 = vrot.lane.b32.xlu0 %v2350, 127
    %v2360 = vpop.permute.xlu0 %2359
    %2361 = vrot.lane.b32.xlu0 %v2351, 127
    %v2362 = vpop.permute.xlu0 %2361
    %2363 = vrot.lane.b32.xlu0 %v2352, 127
    %v2364 = vpop.permute.xlu0 %2363
    %v2365 = vsel %vm856, %v2358, %v2360
    %v2366 = vsel %vm856, %v2360, %v2362
    %v2367 = vsel %vm856, %v2362, %v2364
    %v2372 = vsel %vm57, %v2348, 0
    %2374 = vmatprep.subr.mxu0 0.0
    %2375 = vmatpush1.msra.mxu0 0.0
    %2376 = vmatprep.subr.mxu0 0.0
    %2377 = vmatpush1.msra.mxu0 0.0
    %2378 = vmatprep.subr.mxu0 0.0
    %2379 = vmatpush1.msra.mxu0 0.0
    %2380 = vmatprep.subr.mxu0 0.0
    %2381 = vmatpush1.msra.mxu0 0.0
    %2382 = vmatprep.subr.mxu0 0.0
    %2383 = vmatpush1.msra.mxu0 0.0
    %2384 = vmatprep.subr.mxu0 0.0
    %2385 = vmatpush1.msra.mxu0 0.0
    %2386 = vmatprep.subr.mxu0 0.0
    %2387 = vmatpush1.msra.mxu0 0.0
    %2388 = vmatprep.subr.mxu0 0.0
    %2389 = vmatpush1.msra.mxu0 0.0
    %2390 = vmatprep.subr.mxu0 0.0
    %2391 = vmatpush1.msra.mxu0 0.0
    %2392 = vmatprep.subr.mxu0 0.0
    %2393 = vmatpush1.msra.mxu0 0.0
    %2394 = vmatprep.subr.mxu0 0.0
    %2395 = vmatpush1.msra.mxu0 0.0
    %2396 = vmatprep.subr.mxu0 0.0
    %2397 = vmatpush1.msra.mxu0 0.0
    %2398 = vmatprep.subr.mxu0 0.0
    %2399 = vmatpush1.msra.mxu0 0.0
    %2400 = vmatprep.subr.mxu0 0.0
    %2401 = vmatpush1.msra.mxu0 0.0
    %2402 = vmatprep.subr.mxu0 0.0
    %2403 = vmatpush1.msra.mxu0 0.0
    %2404 = vmatprep.subr.mxu0 %v2366
    %2405 = vmatpush1.msra.mxu0 %v2365
    %2406 = vmatprep.subr.mxu0 0.0
    %2407 = vmatpush2.msra.mxu0 0.0
    %2408 = vmatprep.subr.mxu0 0.0
    %2409 = vmatpush2.msra.mxu0 0.0
    %2410 = vmatprep.subr.mxu0 0.0
    %2411 = vmatpush2.msra.mxu0 0.0
    %2412 = vmatprep.subr.mxu0 0.0
    %2413 = vmatpush2.msra.mxu0 0.0
    %2414 = vmatprep.subr.mxu0 0.0
    %2415 = vmatpush2.msra.mxu0 0.0
    %2416 = vmatprep.subr.mxu0 0.0
    %2417 = vmatpush2.msra.mxu0 0.0
    %2418 = vmatprep.subr.mxu0 0.0
    %2419 = vmatpush2.msra.mxu0 0.0
    %2420 = vmatprep.subr.mxu0 0.0
    %2421 = vmatpush2.msra.mxu0 0.0
    %2422 = vmatprep.subr.mxu0 0.0
    %2423 = vmatpush2.msra.mxu0 0.0
    %2424 = vmatprep.subr.mxu0 0.0
    %2425 = vmatpush2.msra.mxu0 0.0
    %2426 = vmatprep.subr.mxu0 0.0
    %2427 = vmatpush2.msra.mxu0 0.0
    %2428 = vmatprep.subr.mxu0 0.0
    %2429 = vmatpush2.msra.mxu0 0.0
    %2430 = vmatprep.subr.mxu0 0.0
    %2431 = vmatpush2.msra.mxu0 0.0
    %2432 = vmatprep.subr.mxu0 0.0
    %2433 = vmatpush2.msra.mxu0 0.0
    %2434 = vmatprep.subr.mxu0 0.0
    %2435 = vmatpush2.msra.mxu0 0.0
    %2436 = vmatprep.subr.mxu0 0.0
    %2437 = vmatpush2.msra.mxu0 0.0
    %2438 = vmatprep.mubr.f32.mxu0 0.0
    %2439 = vmatmul.mubr.f32.gmra.mxu0 %v2372
    %v2440 = vpop.f32.mrf.mxu0
    %v2441 = vadd.f32 0.0, %v2440
    %v2442 = vpop.f32.mrf.mxu0
    %v2443 = vadd.f32 0.0, %v2442
    %2444 = vdwg.mxu0
    %2445 = vmatprep.subr.mxu0 0.0
    %2446 = vmatpush1.msra.mxu0 0.0
    %2447 = vmatprep.subr.mxu0 0.0
    %2448 = vmatpush1.msra.mxu0 0.0
    %2449 = vmatprep.subr.mxu0 0.0
    %2450 = vmatpush1.msra.mxu0 0.0
    %2451 = vmatprep.subr.mxu0 0.0
    %2452 = vmatpush1.msra.mxu0 0.0
    %2453 = vmatprep.subr.mxu0 0.0
    %2454 = vmatpush1.msra.mxu0 0.0
    %2455 = vmatprep.subr.mxu0 0.0
    %2456 = vmatpush1.msra.mxu0 0.0
    %2457 = vmatprep.subr.mxu0 0.0
    %2458 = vmatpush1.msra.mxu0 0.0
    %2459 = vmatprep.subr.mxu0 0.0
    %2460 = vmatpush1.msra.mxu0 0.0
    %2461 = vmatprep.subr.mxu0 0.0
    %2462 = vmatpush1.msra.mxu0 0.0
    %2463 = vmatprep.subr.mxu0 0.0
    %2464 = vmatpush1.msra.mxu0 0.0
    %2465 = vmatprep.subr.mxu0 0.0
    %2466 = vmatpush1.msra.mxu0 0.0
    %2467 = vmatprep.subr.mxu0 0.0
    %2468 = vmatpush1.msra.mxu0 0.0
    %2469 = vmatprep.subr.mxu0 0.0
    %2470 = vmatpush1.msra.mxu0 0.0
    %2471 = vmatprep.subr.mxu0 0.0
    %2472 = vmatpush1.msra.mxu0 0.0
    %2473 = vmatprep.subr.mxu0 0.0
    %2474 = vmatpush1.msra.mxu0 0.0
    %2475 = vmatprep.subr.mxu0 0.0
    %2476 = vmatpush1.msra.mxu0 %v2367
    %2477 = vmatprep.subr.mxu0 0.0
    %2478 = vmatpush2.msra.mxu0 0.0
    %2479 = vmatprep.subr.mxu0 0.0
    %2480 = vmatpush2.msra.mxu0 0.0
    %2481 = vmatprep.subr.mxu0 0.0
    %2482 = vmatpush2.msra.mxu0 0.0
    %2483 = vmatprep.subr.mxu0 0.0
    %2484 = vmatpush2.msra.mxu0 0.0
    %2485 = vmatprep.subr.mxu0 0.0
    %2486 = vmatpush2.msra.mxu0 0.0
    %2487 = vmatprep.subr.mxu0 0.0
    %2488 = vmatpush2.msra.mxu0 0.0
    %2489 = vmatprep.subr.mxu0 0.0
    %2490 = vmatpush2.msra.mxu0 0.0
    %2491 = vmatprep.subr.mxu0 0.0
    %2492 = vmatpush2.msra.mxu0 0.0
    %2493 = vmatprep.subr.mxu0 0.0
    %2494 = vmatpush2.msra.mxu0 0.0
    %2495 = vmatprep.subr.mxu0 0.0
    %2496 = vmatpush2.msra.mxu0 0.0
    %2497 = vmatprep.subr.mxu0 0.0
    %2498 = vmatpush2.msra.mxu0 0.0
    %2499 = vmatprep.subr.mxu0 0.0
    %2500 = vmatpush2.msra.mxu0 0.0
    %2501 = vmatprep.subr.mxu0 0.0
    %2502 = vmatpush2.msra.mxu0 0.0
    %2503 = vmatprep.subr.mxu0 0.0
    %2504 = vmatpush2.msra.mxu0 0.0
    %2505 = vmatprep.subr.mxu0 0.0
    %2506 = vmatpush2.msra.mxu0 0.0
    %2507 = vmatprep.subr.mxu0 0.0
    %2508 = vmatpush2.msra.mxu0 0.0
    %2509 = vmatprep.mubr.f32.mxu0 0.0
    %2510 = vmatmul.mubr.f32.gmra.mxu0 %v2372
    %v2511 = vpop.f32.mrf.mxu0
    %v2512 = vadd.f32 0.0, %v2511
    %v2513 = vpop.f32.mrf.mxu0
    %2514 = vdwg.mxu0
    %v2515 = vadd.f32 %v2344, %v2441
    %v2516 = vadd.f32 %v2345, %v2443
    %v2517 = vadd.f32 %v2346, %v2512
    %s2518 = scalar_lea.vmem %s2, 120
    %v2519 = vld [vmem:[%s2518] sm:$0xff]
    %2520 = vrot.lane.b32.xlu0 %v2349, 111
    %v2521 = vpop.permute.xlu0 %2520
    %2522 = vrot.lane.b32.xlu0 %v2350, 111
    %v2523 = vpop.permute.xlu0 %2522
    %2524 = vrot.lane.b32.xlu0 %v2351, 111
    %v2525 = vpop.permute.xlu0 %2524
    %2526 = vrot.lane.b32.xlu0 %v2352, 111
    %v2527 = vpop.permute.xlu0 %2526
    %v2528 = vsel %vm1020, %v2521, %v2523
    %v2529 = vsel %vm1020, %v2523, %v2525
    %v2530 = vsel %vm1020, %v2525, %v2527
    %v2535 = vsel %vm57, %v2519, 0
    %2537 = vmatprep.subr.mxu0 0.0
    %2538 = vmatpush1.msra.mxu0 0.0
    %2539 = vmatprep.subr.mxu0 0.0
    %2540 = vmatpush1.msra.mxu0 0.0
    %2541 = vmatprep.subr.mxu0 0.0
    %2542 = vmatpush1.msra.mxu0 0.0
    %2543 = vmatprep.subr.mxu0 0.0
    %2544 = vmatpush1.msra.mxu0 0.0
    %2545 = vmatprep.subr.mxu0 0.0
    %2546 = vmatpush1.msra.mxu0 0.0
    %2547 = vmatprep.subr.mxu0 0.0
    %2548 = vmatpush1.msra.mxu0 0.0
    %2549 = vmatprep.subr.mxu0 0.0
    %2550 = vmatpush1.msra.mxu0 0.0
    %2551 = vmatprep.subr.mxu0 0.0
    %2552 = vmatpush1.msra.mxu0 0.0
    %2553 = vmatprep.subr.mxu0 0.0
    %2554 = vmatpush1.msra.mxu0 0.0
    %2555 = vmatprep.subr.mxu0 0.0
    %2556 = vmatpush1.msra.mxu0 0.0
    %2557 = vmatprep.subr.mxu0 0.0
    %2558 = vmatpush1.msra.mxu0 0.0
    %2559 = vmatprep.subr.mxu0 0.0
    %2560 = vmatpush1.msra.mxu0 0.0
    %2561 = vmatprep.subr.mxu0 0.0
    %2562 = vmatpush1.msra.mxu0 0.0
    %2563 = vmatprep.subr.mxu0 0.0
    %2564 = vmatpush1.msra.mxu0 0.0
    %2565 = vmatprep.subr.mxu0 0.0
    %2566 = vmatpush1.msra.mxu0 0.0
    %2567 = vmatprep.subr.mxu0 %v2529
    %2568 = vmatpush1.msra.mxu0 %v2528
    %2569 = vmatprep.subr.mxu0 0.0
    %2570 = vmatpush2.msra.mxu0 0.0
    %2571 = vmatprep.subr.mxu0 0.0
    %2572 = vmatpush2.msra.mxu0 0.0
    %2573 = vmatprep.subr.mxu0 0.0
    %2574 = vmatpush2.msra.mxu0 0.0
    %2575 = vmatprep.subr.mxu0 0.0
    %2576 = vmatpush2.msra.mxu0 0.0
    %2577 = vmatprep.subr.mxu0 0.0
    %2578 = vmatpush2.msra.mxu0 0.0
    %2579 = vmatprep.subr.mxu0 0.0
    %2580 = vmatpush2.msra.mxu0 0.0
    %2581 = vmatprep.subr.mxu0 0.0
    %2582 = vmatpush2.msra.mxu0 0.0
    %2583 = vmatprep.subr.mxu0 0.0
    %2584 = vmatpush2.msra.mxu0 0.0
    %2585 = vmatprep.subr.mxu0 0.0
    %2586 = vmatpush2.msra.mxu0 0.0
    %2587 = vmatprep.subr.mxu0 0.0
    %2588 = vmatpush2.msra.mxu0 0.0
    %2589 = vmatprep.subr.mxu0 0.0
    %2590 = vmatpush2.msra.mxu0 0.0
    %2591 = vmatprep.subr.mxu0 0.0
    %2592 = vmatpush2.msra.mxu0 0.0
    %2593 = vmatprep.subr.mxu0 0.0
    %2594 = vmatpush2.msra.mxu0 0.0
    %2595 = vmatprep.subr.mxu0 0.0
    %2596 = vmatpush2.msra.mxu0 0.0
    %2597 = vmatprep.subr.mxu0 0.0
    %2598 = vmatpush2.msra.mxu0 0.0
    %2599 = vmatprep.subr.mxu0 0.0
    %2600 = vmatpush2.msra.mxu0 0.0
    %2601 = vmatprep.mubr.f32.mxu0 0.0
    %2602 = vmatmul.mubr.f32.gmra.mxu0 %v2535
    %v2603 = vpop.f32.mrf.mxu0
    %v2604 = vadd.f32 0.0, %v2603
    %v2605 = vpop.f32.mrf.mxu0
    %v2606 = vadd.f32 0.0, %v2605
    %2607 = vdwg.mxu0
    %2608 = vmatprep.subr.mxu0 0.0
    %2609 = vmatpush1.msra.mxu0 0.0
    %2610 = vmatprep.subr.mxu0 0.0
    %2611 = vmatpush1.msra.mxu0 0.0
    %2612 = vmatprep.subr.mxu0 0.0
    %2613 = vmatpush1.msra.mxu0 0.0
    %2614 = vmatprep.subr.mxu0 0.0
    %2615 = vmatpush1.msra.mxu0 0.0
    %2616 = vmatprep.subr.mxu0 0.0
    %2617 = vmatpush1.msra.mxu0 0.0
    %2618 = vmatprep.subr.mxu0 0.0
    %2619 = vmatpush1.msra.mxu0 0.0
    %2620 = vmatprep.subr.mxu0 0.0
    %2621 = vmatpush1.msra.mxu0 0.0
    %2622 = vmatprep.subr.mxu0 0.0
    %2623 = vmatpush1.msra.mxu0 0.0
    %2624 = vmatprep.subr.mxu0 0.0
    %2625 = vmatpush1.msra.mxu0 0.0
    %2626 = vmatprep.subr.mxu0 0.0
    %2627 = vmatpush1.msra.mxu0 0.0
    %2628 = vmatprep.subr.mxu0 0.0
    %2629 = vmatpush1.msra.mxu0 0.0
    %2630 = vmatprep.subr.mxu0 0.0
    %2631 = vmatpush1.msra.mxu0 0.0
    %2632 = vmatprep.subr.mxu0 0.0
    %2633 = vmatpush1.msra.mxu0 0.0
    %2634 = vmatprep.subr.mxu0 0.0
    %2635 = vmatpush1.msra.mxu0 0.0
    %2636 = vmatprep.subr.mxu0 0.0
    %2637 = vmatpush1.msra.mxu0 0.0
    %2638 = vmatprep.subr.mxu0 0.0
    %2639 = vmatpush1.msra.mxu0 %v2530
    %2640 = vmatprep.subr.mxu0 0.0
    %2641 = vmatpush2.msra.mxu0 0.0
    %2642 = vmatprep.subr.mxu0 0.0
    %2643 = vmatpush2.msra.mxu0 0.0
    %2644 = vmatprep.subr.mxu0 0.0
    %2645 = vmatpush2.msra.mxu0 0.0
    %2646 = vmatprep.subr.mxu0 0.0
    %2647 = vmatpush2.msra.mxu0 0.0
    %2648 = vmatprep.subr.mxu0 0.0
    %2649 = vmatpush2.msra.mxu0 0.0
    %2650 = vmatprep.subr.mxu0 0.0
    %2651 = vmatpush2.msra.mxu0 0.0
    %2652 = vmatprep.subr.mxu0 0.0
    %2653 = vmatpush2.msra.mxu0 0.0
    %2654 = vmatprep.subr.mxu0 0.0
    %2655 = vmatpush2.msra.mxu0 0.0
    %2656 = vmatprep.subr.mxu0 0.0
    %2657 = vmatpush2.msra.mxu0 0.0
    %2658 = vmatprep.subr.mxu0 0.0
    %2659 = vmatpush2.msra.mxu0 0.0
    %2660 = vmatprep.subr.mxu0 0.0
    %2661 = vmatpush2.msra.mxu0 0.0
    %2662 = vmatprep.subr.mxu0 0.0
    %2663 = vmatpush2.msra.mxu0 0.0
    %2664 = vmatprep.subr.mxu0 0.0
    %2665 = vmatpush2.msra.mxu0 0.0
    %2666 = vmatprep.subr.mxu0 0.0
    %2667 = vmatpush2.msra.mxu0 0.0
    %2668 = vmatprep.subr.mxu0 0.0
    %2669 = vmatpush2.msra.mxu0 0.0
    %2670 = vmatprep.subr.mxu0 0.0
    %2671 = vmatpush2.msra.mxu0 0.0
    %2672 = vmatprep.mubr.f32.mxu0 0.0
    %2673 = vmatmul.mubr.f32.gmra.mxu0 %v2535
    %v2674 = vpop.f32.mrf.mxu0
    %v2675 = vadd.f32 0.0, %v2674
    %v2676 = vpop.f32.mrf.mxu0
    %2677 = vdwg.mxu0
    %v2678 = vadd.f32 %v2515, %v2604
    %v2679 = vadd.f32 %v2516, %v2606
    %v2680 = vadd.f32 %v2517, %v2675
    %s2681 = scalar_lea.vmem %s2, 128
    %v2682 = vld [vmem:[%s2681] sm:$0xff]
    %2683 = vrot.lane.b32.xlu0 %v2349, 110
    %v2684 = vpop.permute.xlu0 %2683
    %2685 = vrot.lane.b32.xlu0 %v2350, 110
    %v2686 = vpop.permute.xlu0 %2685
    %2687 = vrot.lane.b32.xlu0 %v2351, 110
    %v2688 = vpop.permute.xlu0 %2687
    %2689 = vrot.lane.b32.xlu0 %v2352, 110
    %v2690 = vpop.permute.xlu0 %2689
    %v2691 = vsel %vm1184, %v2684, %v2686
    %v2692 = vsel %vm1184, %v2686, %v2688
    %v2693 = vsel %vm1184, %v2688, %v2690
    %v2698 = vsel %vm57, %v2682, 0
    %2700 = vmatprep.subr.mxu0 0.0
    %2701 = vmatpush1.msra.mxu0 0.0
    %2702 = vmatprep.subr.mxu0 0.0
    %2703 = vmatpush1.msra.mxu0 0.0
    %2704 = vmatprep.subr.mxu0 0.0
    %2705 = vmatpush1.msra.mxu0 0.0
    %2706 = vmatprep.subr.mxu0 0.0
    %2707 = vmatpush1.msra.mxu0 0.0
    %2708 = vmatprep.subr.mxu0 0.0
    %2709 = vmatpush1.msra.mxu0 0.0
    %2710 = vmatprep.subr.mxu0 0.0
    %2711 = vmatpush1.msra.mxu0 0.0
    %2712 = vmatprep.subr.mxu0 0.0
    %2713 = vmatpush1.msra.mxu0 0.0
    %2714 = vmatprep.subr.mxu0 0.0
    %2715 = vmatpush1.msra.mxu0 0.0
    %2716 = vmatprep.subr.mxu0 0.0
    %2717 = vmatpush1.msra.mxu0 0.0
    %2718 = vmatprep.subr.mxu0 0.0
    %2719 = vmatpush1.msra.mxu0 0.0
    %2720 = vmatprep.subr.mxu0 0.0
    %2721 = vmatpush1.msra.mxu0 0.0
    %2722 = vmatprep.subr.mxu0 0.0
    %2723 = vmatpush1.msra.mxu0 0.0
    %2724 = vmatprep.subr.mxu0 0.0
    %2725 = vmatpush1.msra.mxu0 0.0
    %2726 = vmatprep.subr.mxu0 0.0
    %2727 = vmatpush1.msra.mxu0 0.0
    %2728 = vmatprep.subr.mxu0 0.0
    %2729 = vmatpush1.msra.mxu0 0.0
    %2730 = vmatprep.subr.mxu0 %v2692
    %2731 = vmatpush1.msra.mxu0 %v2691
    %2732 = vmatprep.subr.mxu0 0.0
    %2733 = vmatpush2.msra.mxu0 0.0
    %2734 = vmatprep.subr.mxu0 0.0
    %2735 = vmatpush2.msra.mxu0 0.0
    %2736 = vmatprep.subr.mxu0 0.0
    %2737 = vmatpush2.msra.mxu0 0.0
    %2738 = vmatprep.subr.mxu0 0.0
    %2739 = vmatpush2.msra.mxu0 0.0
    %2740 = vmatprep.subr.mxu0 0.0
    %2741 = vmatpush2.msra.mxu0 0.0
    %2742 = vmatprep.subr.mxu0 0.0
    %2743 = vmatpush2.msra.mxu0 0.0
    %2744 = vmatprep.subr.mxu0 0.0
    %2745 = vmatpush2.msra.mxu0 0.0
    %2746 = vmatprep.subr.mxu0 0.0
    %2747 = vmatpush2.msra.mxu0 0.0
    %2748 = vmatprep.subr.mxu0 0.0
    %2749 = vmatpush2.msra.mxu0 0.0
    %2750 = vmatprep.subr.mxu0 0.0
    %2751 = vmatpush2.msra.mxu0 0.0
    %2752 = vmatprep.subr.mxu0 0.0
    %2753 = vmatpush2.msra.mxu0 0.0
    %2754 = vmatprep.subr.mxu0 0.0
    %2755 = vmatpush2.msra.mxu0 0.0
    %2756 = vmatprep.subr.mxu0 0.0
    %2757 = vmatpush2.msra.mxu0 0.0
    %2758 = vmatprep.subr.mxu0 0.0
    %2759 = vmatpush2.msra.mxu0 0.0
    %2760 = vmatprep.subr.mxu0 0.0
    %2761 = vmatpush2.msra.mxu0 0.0
    %2762 = vmatprep.subr.mxu0 0.0
    %2763 = vmatpush2.msra.mxu0 0.0
    %2764 = vmatprep.mubr.f32.mxu0 0.0
    %2765 = vmatmul.mubr.f32.gmra.mxu0 %v2698
    %v2766 = vpop.f32.mrf.mxu0
    %v2767 = vadd.f32 0.0, %v2766
    %v2768 = vpop.f32.mrf.mxu0
    %v2769 = vadd.f32 0.0, %v2768
    %2770 = vdwg.mxu0
    %2771 = vmatprep.subr.mxu0 0.0
    %2772 = vmatpush1.msra.mxu0 0.0
    %2773 = vmatprep.subr.mxu0 0.0
    %2774 = vmatpush1.msra.mxu0 0.0
    %2775 = vmatprep.subr.mxu0 0.0
    %2776 = vmatpush1.msra.mxu0 0.0
    %2777 = vmatprep.subr.mxu0 0.0
    %2778 = vmatpush1.msra.mxu0 0.0
    %2779 = vmatprep.subr.mxu0 0.0
    %2780 = vmatpush1.msra.mxu0 0.0
    %2781 = vmatprep.subr.mxu0 0.0
    %2782 = vmatpush1.msra.mxu0 0.0
    %2783 = vmatprep.subr.mxu0 0.0
    %2784 = vmatpush1.msra.mxu0 0.0
    %2785 = vmatprep.subr.mxu0 0.0
    %2786 = vmatpush1.msra.mxu0 0.0
    %2787 = vmatprep.subr.mxu0 0.0
    %2788 = vmatpush1.msra.mxu0 0.0
    %2789 = vmatprep.subr.mxu0 0.0
    %2790 = vmatpush1.msra.mxu0 0.0
    %2791 = vmatprep.subr.mxu0 0.0
    %2792 = vmatpush1.msra.mxu0 0.0
    %2793 = vmatprep.subr.mxu0 0.0
    %2794 = vmatpush1.msra.mxu0 0.0
    %2795 = vmatprep.subr.mxu0 0.0
    %2796 = vmatpush1.msra.mxu0 0.0
    %2797 = vmatprep.subr.mxu0 0.0
    %2798 = vmatpush1.msra.mxu0 0.0
    %2799 = vmatprep.subr.mxu0 0.0
    %2800 = vmatpush1.msra.mxu0 0.0
    %2801 = vmatprep.subr.mxu0 0.0
    %2802 = vmatpush1.msra.mxu0 %v2693
    %2803 = vmatprep.subr.mxu0 0.0
    %2804 = vmatpush2.msra.mxu0 0.0
    %2805 = vmatprep.subr.mxu0 0.0
    %2806 = vmatpush2.msra.mxu0 0.0
    %2807 = vmatprep.subr.mxu0 0.0
    %2808 = vmatpush2.msra.mxu0 0.0
    %2809 = vmatprep.subr.mxu0 0.0
    %2810 = vmatpush2.msra.mxu0 0.0
    %2811 = vmatprep.subr.mxu0 0.0
    %2812 = vmatpush2.msra.mxu0 0.0
    %2813 = vmatprep.subr.mxu0 0.0
    %2814 = vmatpush2.msra.mxu0 0.0
    %2815 = vmatprep.subr.mxu0 0.0
    %2816 = vmatpush2.msra.mxu0 0.0
    %2817 = vmatprep.subr.mxu0 0.0
    %2818 = vmatpush2.msra.mxu0 0.0
    %2819 = vmatprep.subr.mxu0 0.0
    %2820 = vmatpush2.msra.mxu0 0.0
    %2821 = vmatprep.subr.mxu0 0.0
    %2822 = vmatpush2.msra.mxu0 0.0
    %2823 = vmatprep.subr.mxu0 0.0
    %2824 = vmatpush2.msra.mxu0 0.0
    %2825 = vmatprep.subr.mxu0 0.0
    %2826 = vmatpush2.msra.mxu0 0.0
    %2827 = vmatprep.subr.mxu0 0.0
    %2828 = vmatpush2.msra.mxu0 0.0
    %2829 = vmatprep.subr.mxu0 0.0
    %2830 = vmatpush2.msra.mxu0 0.0
    %2831 = vmatprep.subr.mxu0 0.0
    %2832 = vmatpush2.msra.mxu0 0.0
    %2833 = vmatprep.subr.mxu0 0.0
    %2834 = vmatpush2.msra.mxu0 0.0
    %2835 = vmatprep.mubr.f32.mxu0 0.0
    %2836 = vmatmul.mubr.f32.gmra.mxu0 %v2698
    %v2837 = vpop.f32.mrf.mxu0
    %v2838 = vadd.f32 0.0, %v2837
    %v2839 = vpop.f32.mrf.mxu0
    %2840 = vdwg.mxu0
    %v2841 = vadd.f32 %v2678, %v2767
    %v2842 = vadd.f32 %v2679, %v2769
    %v2843 = vadd.f32 %v2680, %v2838
    %s2844 = scalar_lea.vmem %s2, 136
    %v2845 = vld [vmem:[%s2844] sm:$0xff]
    %2846 = vrot.lane.b32.xlu0 %v2349, 109
    %v2847 = vpop.permute.xlu0 %2846
    %2848 = vrot.lane.b32.xlu0 %v2350, 109
    %v2849 = vpop.permute.xlu0 %2848
    %2850 = vrot.lane.b32.xlu0 %v2351, 109
    %v2851 = vpop.permute.xlu0 %2850
    %2852 = vrot.lane.b32.xlu0 %v2352, 109
    %v2853 = vpop.permute.xlu0 %2852
    %v2854 = vsel %vm1348, %v2847, %v2849
    %v2855 = vsel %vm1348, %v2849, %v2851
    %v2856 = vsel %vm1348, %v2851, %v2853
    %v2861 = vsel %vm57, %v2845, 0
    %2863 = vmatprep.subr.mxu0 0.0
    %2864 = vmatpush1.msra.mxu0 0.0
    %2865 = vmatprep.subr.mxu0 0.0
    %2866 = vmatpush1.msra.mxu0 0.0
    %2867 = vmatprep.subr.mxu0 0.0
    %2868 = vmatpush1.msra.mxu0 0.0
    %2869 = vmatprep.subr.mxu0 0.0
    %2870 = vmatpush1.msra.mxu0 0.0
    %2871 = vmatprep.subr.mxu0 0.0
    %2872 = vmatpush1.msra.mxu0 0.0
    %2873 = vmatprep.subr.mxu0 0.0
    %2874 = vmatpush1.msra.mxu0 0.0
    %2875 = vmatprep.subr.mxu0 0.0
    %2876 = vmatpush1.msra.mxu0 0.0
    %2877 = vmatprep.subr.mxu0 0.0
    %2878 = vmatpush1.msra.mxu0 0.0
    %2879 = vmatprep.subr.mxu0 0.0
    %2880 = vmatpush1.msra.mxu0 0.0
    %2881 = vmatprep.subr.mxu0 0.0
    %2882 = vmatpush1.msra.mxu0 0.0
    %2883 = vmatprep.subr.mxu0 0.0
    %2884 = vmatpush1.msra.mxu0 0.0
    %2885 = vmatprep.subr.mxu0 0.0
    %2886 = vmatpush1.msra.mxu0 0.0
    %2887 = vmatprep.subr.mxu0 0.0
    %2888 = vmatpush1.msra.mxu0 0.0
    %2889 = vmatprep.subr.mxu0 0.0
    %2890 = vmatpush1.msra.mxu0 0.0
    %2891 = vmatprep.subr.mxu0 0.0
    %2892 = vmatpush1.msra.mxu0 0.0
    %2893 = vmatprep.subr.mxu0 %v2855
    %2894 = vmatpush1.msra.mxu0 %v2854
    %2895 = vmatprep.subr.mxu0 0.0
    %2896 = vmatpush2.msra.mxu0 0.0
    %2897 = vmatprep.subr.mxu0 0.0
    %2898 = vmatpush2.msra.mxu0 0.0
    %2899 = vmatprep.subr.mxu0 0.0
    %2900 = vmatpush2.msra.mxu0 0.0
    %2901 = vmatprep.subr.mxu0 0.0
    %2902 = vmatpush2.msra.mxu0 0.0
    %2903 = vmatprep.subr.mxu0 0.0
    %2904 = vmatpush2.msra.mxu0 0.0
    %2905 = vmatprep.subr.mxu0 0.0
    %2906 = vmatpush2.msra.mxu0 0.0
    %2907 = vmatprep.subr.mxu0 0.0
    %2908 = vmatpush2.msra.mxu0 0.0
    %2909 = vmatprep.subr.mxu0 0.0
    %2910 = vmatpush2.msra.mxu0 0.0
    %2911 = vmatprep.subr.mxu0 0.0
    %2912 = vmatpush2.msra.mxu0 0.0
    %2913 = vmatprep.subr.mxu0 0.0
    %2914 = vmatpush2.msra.mxu0 0.0
    %2915 = vmatprep.subr.mxu0 0.0
    %2916 = vmatpush2.msra.mxu0 0.0
    %2917 = vmatprep.subr.mxu0 0.0
    %2918 = vmatpush2.msra.mxu0 0.0
    %2919 = vmatprep.subr.mxu0 0.0
    %2920 = vmatpush2.msra.mxu0 0.0
    %2921 = vmatprep.subr.mxu0 0.0
    %2922 = vmatpush2.msra.mxu0 0.0
    %2923 = vmatprep.subr.mxu0 0.0
    %2924 = vmatpush2.msra.mxu0 0.0
    %2925 = vmatprep.subr.mxu0 0.0
    %2926 = vmatpush2.msra.mxu0 0.0
    %2927 = vmatprep.mubr.f32.mxu0 0.0
    %2928 = vmatmul.mubr.f32.gmra.mxu0 %v2861
    %v2929 = vpop.f32.mrf.mxu0
    %v2930 = vadd.f32 0.0, %v2929
    %v2931 = vpop.f32.mrf.mxu0
    %v2932 = vadd.f32 0.0, %v2931
    %2933 = vdwg.mxu0
    %2934 = vmatprep.subr.mxu0 0.0
    %2935 = vmatpush1.msra.mxu0 0.0
    %2936 = vmatprep.subr.mxu0 0.0
    %2937 = vmatpush1.msra.mxu0 0.0
    %2938 = vmatprep.subr.mxu0 0.0
    %2939 = vmatpush1.msra.mxu0 0.0
    %2940 = vmatprep.subr.mxu0 0.0
    %2941 = vmatpush1.msra.mxu0 0.0
    %2942 = vmatprep.subr.mxu0 0.0
    %2943 = vmatpush1.msra.mxu0 0.0
    %2944 = vmatprep.subr.mxu0 0.0
    %2945 = vmatpush1.msra.mxu0 0.0
    %2946 = vmatprep.subr.mxu0 0.0
    %2947 = vmatpush1.msra.mxu0 0.0
    %2948 = vmatprep.subr.mxu0 0.0
    %2949 = vmatpush1.msra.mxu0 0.0
    %2950 = vmatprep.subr.mxu0 0.0
    %2951 = vmatpush1.msra.mxu0 0.0
    %2952 = vmatprep.subr.mxu0 0.0
    %2953 = vmatpush1.msra.mxu0 0.0
    %2954 = vmatprep.subr.mxu0 0.0
    %2955 = vmatpush1.msra.mxu0 0.0
    %2956 = vmatprep.subr.mxu0 0.0
    %2957 = vmatpush1.msra.mxu0 0.0
    %2958 = vmatprep.subr.mxu0 0.0
    %2959 = vmatpush1.msra.mxu0 0.0
    %2960 = vmatprep.subr.mxu0 0.0
    %2961 = vmatpush1.msra.mxu0 0.0
    %2962 = vmatprep.subr.mxu0 0.0
    %2963 = vmatpush1.msra.mxu0 0.0
    %2964 = vmatprep.subr.mxu0 0.0
    %2965 = vmatpush1.msra.mxu0 %v2856
    %2966 = vmatprep.subr.mxu0 0.0
    %2967 = vmatpush2.msra.mxu0 0.0
    %2968 = vmatprep.subr.mxu0 0.0
    %2969 = vmatpush2.msra.mxu0 0.0
    %2970 = vmatprep.subr.mxu0 0.0
    %2971 = vmatpush2.msra.mxu0 0.0
    %2972 = vmatprep.subr.mxu0 0.0
    %2973 = vmatpush2.msra.mxu0 0.0
    %2974 = vmatprep.subr.mxu0 0.0
    %2975 = vmatpush2.msra.mxu0 0.0
    %2976 = vmatprep.subr.mxu0 0.0
    %2977 = vmatpush2.msra.mxu0 0.0
    %2978 = vmatprep.subr.mxu0 0.0
    %2979 = vmatpush2.msra.mxu0 0.0
    %2980 = vmatprep.subr.mxu0 0.0
    %2981 = vmatpush2.msra.mxu0 0.0
    %2982 = vmatprep.subr.mxu0 0.0
    %2983 = vmatpush2.msra.mxu0 0.0
    %2984 = vmatprep.subr.mxu0 0.0
    %2985 = vmatpush2.msra.mxu0 0.0
    %2986 = vmatprep.subr.mxu0 0.0
    %2987 = vmatpush2.msra.mxu0 0.0
    %2988 = vmatprep.subr.mxu0 0.0
    %2989 = vmatpush2.msra.mxu0 0.0
    %2990 = vmatprep.subr.mxu0 0.0
    %2991 = vmatpush2.msra.mxu0 0.0
    %2992 = vmatprep.subr.mxu0 0.0
    %2993 = vmatpush2.msra.mxu0 0.0
    %2994 = vmatprep.subr.mxu0 0.0
    %2995 = vmatpush2.msra.mxu0 0.0
    %2996 = vmatprep.subr.mxu0 0.0
    %2997 = vmatpush2.msra.mxu0 0.0
    %2998 = vmatprep.mubr.f32.mxu0 0.0
    %2999 = vmatmul.mubr.f32.gmra.mxu0 %v2861
    %v3000 = vpop.f32.mrf.mxu0
    %v3001 = vadd.f32 0.0, %v3000
    %v3002 = vpop.f32.mrf.mxu0
    %3003 = vdwg.mxu0
    %v3004 = vadd.f32 %v2841, %v2930
    %v3005 = vadd.f32 %v2842, %v2932
    %v3006 = vadd.f32 %v2843, %v3001
    %3008 = vset.pattern.permute.xlu0 0
    %3009 = vperm.xlu0 %3008, %v1543
    %v3010 = vpop.permute.xlu0 %3009
    %v3012 = vadd.f32 %v3004, %v3010
    %v3013 = vadd.f32 %v3005, %v3010
    %v3014 = vadd.f32 %v3006, %v3010
    %vm3015 = vcmp.ge.f32.partialorder %v3012, 0.0
    %vm3016 = vcmp.ge.f32.partialorder %v3013, 0.0
    %vm3017 = vcmp.ge.f32.partialorder %v3014, 0.0
    %v3018 = vmul.f32 %v3012, 0.01
    %v3019 = vmul.f32 %v3013, 0.01
    %v3020 = vmul.f32 %v3014, 0.01
    %v3021 = vsel %vm3015, %v3012, %v3018
    %v3022 = vsel %vm3016, %v3013, %v3019
    %v3023 = vsel %vm3017, %v3014, %v3020
    %v3024 = vld [vmem:[%s4 + $0x1] sm:$0x7]
    %v3026 = vlaneseq
    %v3027 = vshrl.u32 %v3026, 7
    %v3028 = vsub.s32 0, %v3027
    %v3029 = vrot.slane %v3024, %v3028
    %v3030 = vlaneseq
    %v3031 = vshrl.u32 %v3030, 7
    %v3032 = vsub.s32 1, %v3031
    %v3033 = vrot.slane %v3024, %v3032
    %v3034 = vlaneseq
    %v3035 = vshrl.u32 %v3034, 7
    %v3036 = vsub.s32 2, %v3035
    %v3037 = vrot.slane %v3024, %v3036
    %v3041 = vmul.f32 %v3021, %v3029
    %v3042 = vmul.f32 %v3022, %v3033
    %v3043 = vmul.f32 %v3023, %v3037
    %3044 = vst [vmem:[#allocation3 + $0x8] sm:$0xff] %v3041
    %3045 = vst [vmem:[#allocation3 + $0x10] sm:$0xff] %v3042
    %3046 = vst [vmem:[#allocation3 + $0x18] sm:$0xff] %v3043
    %s3047 = scalar_lea.vmem %s3, 16
    %v3048 = vld [vmem:[%s3047] sm:$0xff]
    %s3049 = scalar_lea.vmem %s2, 144
    %v3050 = vld [vmem:[%s3049] sm:$0xff]
    %v3051 = vld [vmem:[#allocation3] sm:$0xff]
    %v3052 = vld [vmem:[#allocation3 + $0x8] sm:$0xff]
    %v3053 = vld [vmem:[#allocation3 + $0x10] sm:$0xff]
    %v3054 = vld [vmem:[#allocation3 + $0x18] sm:$0xff]
    %s3055 = scalar_lea.vmem %s2, 152
    %v3056 = vld [vmem:[%s3055] sm:$0xff]
    %3061 = vrot.lane.b32.xlu0 %v3051, 18
    %v3062 = vpop.permute.xlu0 %3061
    %3063 = vrot.lane.b32.xlu0 %v3052, 18
    %v3064 = vpop.permute.xlu0 %3063
    %3065 = vrot.lane.b32.xlu0 %v3053, 18
    %v3066 = vpop.permute.xlu0 %3065
    %3067 = vrot.lane.b32.xlu0 %v3054, 18
    %v3068 = vpop.permute.xlu0 %3067
    %v3069 = vsel %vm50, %v3062, %v3064
    %v3070 = vsel %vm50, %v3064, %v3066
    %v3071 = vsel %vm50, %v3066, %v3068
    %v3076 = vsel %vm57, %v3056, 0
    %3078 = vmatprep.subr.mxu0 0.0
    %3079 = vmatpush1.msra.mxu0 0.0
    %3080 = vmatprep.subr.mxu0 0.0
    %3081 = vmatpush1.msra.mxu0 0.0
    %3082 = vmatprep.subr.mxu0 0.0
    %3083 = vmatpush1.msra.mxu0 0.0
    %3084 = vmatprep.subr.mxu0 0.0
    %3085 = vmatpush1.msra.mxu0 0.0
    %3086 = vmatprep.subr.mxu0 0.0
    %3087 = vmatpush1.msra.mxu0 0.0
    %3088 = vmatprep.subr.mxu0 0.0
    %3089 = vmatpush1.msra.mxu0 0.0
    %3090 = vmatprep.subr.mxu0 0.0
    %3091 = vmatpush1.msra.mxu0 0.0
    %3092 = vmatprep.subr.mxu0 0.0
    %3093 = vmatpush1.msra.mxu0 0.0
    %3094 = vmatprep.subr.mxu0 0.0
    %3095 = vmatpush1.msra.mxu0 0.0
    %3096 = vmatprep.subr.mxu0 0.0
    %3097 = vmatpush1.msra.mxu0 0.0
    %3098 = vmatprep.subr.mxu0 0.0
    %3099 = vmatpush1.msra.mxu0 0.0
    %3100 = vmatprep.subr.mxu0 0.0
    %3101 = vmatpush1.msra.mxu0 0.0
    %3102 = vmatprep.subr.mxu0 0.0
    %3103 = vmatpush1.msra.mxu0 0.0
    %3104 = vmatprep.subr.mxu0 0.0
    %3105 = vmatpush1.msra.mxu0 0.0
    %3106 = vmatprep.subr.mxu0 0.0
    %3107 = vmatpush1.msra.mxu0 0.0
    %3108 = vmatprep.subr.mxu0 %v3070
    %3109 = vmatpush1.msra.mxu0 %v3069
    %3110 = vmatprep.subr.mxu0 0.0
    %3111 = vmatpush2.msra.mxu0 0.0
    %3112 = vmatprep.subr.mxu0 0.0
    %3113 = vmatpush2.msra.mxu0 0.0
    %3114 = vmatprep.subr.mxu0 0.0
    %3115 = vmatpush2.msra.mxu0 0.0
    %3116 = vmatprep.subr.mxu0 0.0
    %3117 = vmatpush2.msra.mxu0 0.0
    %3118 = vmatprep.subr.mxu0 0.0
    %3119 = vmatpush2.msra.mxu0 0.0
    %3120 = vmatprep.subr.mxu0 0.0
    %3121 = vmatpush2.msra.mxu0 0.0
    %3122 = vmatprep.subr.mxu0 0.0
    %3123 = vmatpush2.msra.mxu0 0.0
    %3124 = vmatprep.subr.mxu0 0.0
    %3125 = vmatpush2.msra.mxu0 0.0
    %3126 = vmatprep.subr.mxu0 0.0
    %3127 = vmatpush2.msra.mxu0 0.0
    %3128 = vmatprep.subr.mxu0 0.0
    %3129 = vmatpush2.msra.mxu0 0.0
    %3130 = vmatprep.subr.mxu0 0.0
    %3131 = vmatpush2.msra.mxu0 0.0
    %3132 = vmatprep.subr.mxu0 0.0
    %3133 = vmatpush2.msra.mxu0 0.0
    %3134 = vmatprep.subr.mxu0 0.0
    %3135 = vmatpush2.msra.mxu0 0.0
    %3136 = vmatprep.subr.mxu0 0.0
    %3137 = vmatpush2.msra.mxu0 0.0
    %3138 = vmatprep.subr.mxu0 0.0
    %3139 = vmatpush2.msra.mxu0 0.0
    %3140 = vmatprep.subr.mxu0 0.0
    %3141 = vmatpush2.msra.mxu0 0.0
    %3142 = vmatprep.mubr.f32.mxu0 0.0
    %3143 = vmatmul.mubr.f32.gmra.mxu0 %v3076
    %v3144 = vpop.f32.mrf.mxu0
    %v3145 = vadd.f32 0.0, %v3144
    %v3146 = vpop.f32.mrf.mxu0
    %v3147 = vadd.f32 0.0, %v3146
    %3148 = vdwg.mxu0
    %3149 = vmatprep.subr.mxu0 0.0
    %3150 = vmatpush1.msra.mxu0 0.0
    %3151 = vmatprep.subr.mxu0 0.0
    %3152 = vmatpush1.msra.mxu0 0.0
    %3153 = vmatprep.subr.mxu0 0.0
    %3154 = vmatpush1.msra.mxu0 0.0
    %3155 = vmatprep.subr.mxu0 0.0
    %3156 = vmatpush1.msra.mxu0 0.0
    %3157 = vmatprep.subr.mxu0 0.0
    %3158 = vmatpush1.msra.mxu0 0.0
    %3159 = vmatprep.subr.mxu0 0.0
    %3160 = vmatpush1.msra.mxu0 0.0
    %3161 = vmatprep.subr.mxu0 0.0
    %3162 = vmatpush1.msra.mxu0 0.0
    %3163 = vmatprep.subr.mxu0 0.0
    %3164 = vmatpush1.msra.mxu0 0.0
    %3165 = vmatprep.subr.mxu0 0.0
    %3166 = vmatpush1.msra.mxu0 0.0
    %3167 = vmatprep.subr.mxu0 0.0
    %3168 = vmatpush1.msra.mxu0 0.0
    %3169 = vmatprep.subr.mxu0 0.0
    %3170 = vmatpush1.msra.mxu0 0.0
    %3171 = vmatprep.subr.mxu0 0.0
    %3172 = vmatpush1.msra.mxu0 0.0
    %3173 = vmatprep.subr.mxu0 0.0
    %3174 = vmatpush1.msra.mxu0 0.0
    %3175 = vmatprep.subr.mxu0 0.0
    %3176 = vmatpush1.msra.mxu0 0.0
    %3177 = vmatprep.subr.mxu0 0.0
    %3178 = vmatpush1.msra.mxu0 0.0
    %3179 = vmatprep.subr.mxu0 0.0
    %3180 = vmatpush1.msra.mxu0 %v3071
    %3181 = vmatprep.subr.mxu0 0.0
    %3182 = vmatpush2.msra.mxu0 0.0
    %3183 = vmatprep.subr.mxu0 0.0
    %3184 = vmatpush2.msra.mxu0 0.0
    %3185 = vmatprep.subr.mxu0 0.0
    %3186 = vmatpush2.msra.mxu0 0.0
    %3187 = vmatprep.subr.mxu0 0.0
    %3188 = vmatpush2.msra.mxu0 0.0
    %3189 = vmatprep.subr.mxu0 0.0
    %3190 = vmatpush2.msra.mxu0 0.0
    %3191 = vmatprep.subr.mxu0 0.0
    %3192 = vmatpush2.msra.mxu0 0.0
    %3193 = vmatprep.subr.mxu0 0.0
    %3194 = vmatpush2.msra.mxu0 0.0
    %3195 = vmatprep.subr.mxu0 0.0
    %3196 = vmatpush2.msra.mxu0 0.0
    %3197 = vmatprep.subr.mxu0 0.0
    %3198 = vmatpush2.msra.mxu0 0.0
    %3199 = vmatprep.subr.mxu0 0.0
    %3200 = vmatpush2.msra.mxu0 0.0
    %3201 = vmatprep.subr.mxu0 0.0
    %3202 = vmatpush2.msra.mxu0 0.0
    %3203 = vmatprep.subr.mxu0 0.0
    %3204 = vmatpush2.msra.mxu0 0.0
    %3205 = vmatprep.subr.mxu0 0.0
    %3206 = vmatpush2.msra.mxu0 0.0
    %3207 = vmatprep.subr.mxu0 0.0
    %3208 = vmatpush2.msra.mxu0 0.0
    %3209 = vmatprep.subr.mxu0 0.0
    %3210 = vmatpush2.msra.mxu0 0.0
    %3211 = vmatprep.subr.mxu0 0.0
    %3212 = vmatpush2.msra.mxu0 0.0
    %3213 = vmatprep.mubr.f32.mxu0 0.0
    %3214 = vmatmul.mubr.f32.gmra.mxu0 %v3076
    %v3215 = vpop.f32.mrf.mxu0
    %v3216 = vadd.f32 0.0, %v3215
    %v3217 = vpop.f32.mrf.mxu0
    %3218 = vdwg.mxu0
    %3219 = vrot.lane.b32.xlu0 %v3051, 19
    %v3220 = vpop.permute.xlu0 %3219
    %3221 = vrot.lane.b32.xlu0 %v3052, 19
    %v3222 = vpop.permute.xlu0 %3221
    %3223 = vrot.lane.b32.xlu0 %v3053, 19
    %v3224 = vpop.permute.xlu0 %3223
    %3225 = vrot.lane.b32.xlu0 %v3054, 19
    %v3226 = vpop.permute.xlu0 %3225
    %v3227 = vsel %vm210, %v3220, %v3222
    %v3228 = vsel %vm210, %v3222, %v3224
    %v3229 = vsel %vm210, %v3224, %v3226
    %v3234 = vsel %vm57, %v3050, 0
    %3236 = vmatprep.subr.mxu0 0.0
    %3237 = vmatpush1.msra.mxu0 0.0
    %3238 = vmatprep.subr.mxu0 0.0
    %3239 = vmatpush1.msra.mxu0 0.0
    %3240 = vmatprep.subr.mxu0 0.0
    %3241 = vmatpush1.msra.mxu0 0.0
    %3242 = vmatprep.subr.mxu0 0.0
    %3243 = vmatpush1.msra.mxu0 0.0
    %3244 = vmatprep.subr.mxu0 0.0
    %3245 = vmatpush1.msra.mxu0 0.0
    %3246 = vmatprep.subr.mxu0 0.0
    %3247 = vmatpush1.msra.mxu0 0.0
    %3248 = vmatprep.subr.mxu0 0.0
    %3249 = vmatpush1.msra.mxu0 0.0
    %3250 = vmatprep.subr.mxu0 0.0
    %3251 = vmatpush1.msra.mxu0 0.0
    %3252 = vmatprep.subr.mxu0 0.0
    %3253 = vmatpush1.msra.mxu0 0.0
    %3254 = vmatprep.subr.mxu0 0.0
    %3255 = vmatpush1.msra.mxu0 0.0
    %3256 = vmatprep.subr.mxu0 0.0
    %3257 = vmatpush1.msra.mxu0 0.0
    %3258 = vmatprep.subr.mxu0 0.0
    %3259 = vmatpush1.msra.mxu0 0.0
    %3260 = vmatprep.subr.mxu0 0.0
    %3261 = vmatpush1.msra.mxu0 0.0
    %3262 = vmatprep.subr.mxu0 0.0
    %3263 = vmatpush1.msra.mxu0 0.0
    %3264 = vmatprep.subr.mxu0 0.0
    %3265 = vmatpush1.msra.mxu0 0.0
    %3266 = vmatprep.subr.mxu0 %v3228
    %3267 = vmatpush1.msra.mxu0 %v3227
    %3268 = vmatprep.subr.mxu0 0.0
    %3269 = vmatpush2.msra.mxu0 0.0
    %3270 = vmatprep.subr.mxu0 0.0
    %3271 = vmatpush2.msra.mxu0 0.0
    %3272 = vmatprep.subr.mxu0 0.0
    %3273 = vmatpush2.msra.mxu0 0.0
    %3274 = vmatprep.subr.mxu0 0.0
    %3275 = vmatpush2.msra.mxu0 0.0
    %3276 = vmatprep.subr.mxu0 0.0
    %3277 = vmatpush2.msra.mxu0 0.0
    %3278 = vmatprep.subr.mxu0 0.0
    %3279 = vmatpush2.msra.mxu0 0.0
    %3280 = vmatprep.subr.mxu0 0.0
    %3281 = vmatpush2.msra.mxu0 0.0
    %3282 = vmatprep.subr.mxu0 0.0
    %3283 = vmatpush2.msra.mxu0 0.0
    %3284 = vmatprep.subr.mxu0 0.0
    %3285 = vmatpush2.msra.mxu0 0.0
    %3286 = vmatprep.subr.mxu0 0.0
    %3287 = vmatpush2.msra.mxu0 0.0
    %3288 = vmatprep.subr.mxu0 0.0
    %3289 = vmatpush2.msra.mxu0 0.0
    %3290 = vmatprep.subr.mxu0 0.0
    %3291 = vmatpush2.msra.mxu0 0.0
    %3292 = vmatprep.subr.mxu0 0.0
    %3293 = vmatpush2.msra.mxu0 0.0
    %3294 = vmatprep.subr.mxu0 0.0
    %3295 = vmatpush2.msra.mxu0 0.0
    %3296 = vmatprep.subr.mxu0 0.0
    %3297 = vmatpush2.msra.mxu0 0.0
    %3298 = vmatprep.subr.mxu0 0.0
    %3299 = vmatpush2.msra.mxu0 0.0
    %3300 = vmatprep.mubr.f32.mxu0 0.0
    %3301 = vmatmul.mubr.f32.gmra.mxu0 %v3234
    %v3302 = vpop.f32.mrf.mxu0
    %v3303 = vadd.f32 %v3145, %v3302
    %v3304 = vpop.f32.mrf.mxu0
    %v3305 = vadd.f32 %v3147, %v3304
    %3306 = vdwg.mxu0
    %3307 = vmatprep.subr.mxu0 0.0
    %3308 = vmatpush1.msra.mxu0 0.0
    %3309 = vmatprep.subr.mxu0 0.0
    %3310 = vmatpush1.msra.mxu0 0.0
    %3311 = vmatprep.subr.mxu0 0.0
    %3312 = vmatpush1.msra.mxu0 0.0
    %3313 = vmatprep.subr.mxu0 0.0
    %3314 = vmatpush1.msra.mxu0 0.0
    %3315 = vmatprep.subr.mxu0 0.0
    %3316 = vmatpush1.msra.mxu0 0.0
    %3317 = vmatprep.subr.mxu0 0.0
    %3318 = vmatpush1.msra.mxu0 0.0
    %3319 = vmatprep.subr.mxu0 0.0
    %3320 = vmatpush1.msra.mxu0 0.0
    %3321 = vmatprep.subr.mxu0 0.0
    %3322 = vmatpush1.msra.mxu0 0.0
    %3323 = vmatprep.subr.mxu0 0.0
    %3324 = vmatpush1.msra.mxu0 0.0
    %3325 = vmatprep.subr.mxu0 0.0
    %3326 = vmatpush1.msra.mxu0 0.0
    %3327 = vmatprep.subr.mxu0 0.0
    %3328 = vmatpush1.msra.mxu0 0.0
    %3329 = vmatprep.subr.mxu0 0.0
    %3330 = vmatpush1.msra.mxu0 0.0
    %3331 = vmatprep.subr.mxu0 0.0
    %3332 = vmatpush1.msra.mxu0 0.0
    %3333 = vmatprep.subr.mxu0 0.0
    %3334 = vmatpush1.msra.mxu0 0.0
    %3335 = vmatprep.subr.mxu0 0.0
    %3336 = vmatpush1.msra.mxu0 0.0
    %3337 = vmatprep.subr.mxu0 0.0
    %3338 = vmatpush1.msra.mxu0 %v3229
    %3339 = vmatprep.subr.mxu0 0.0
    %3340 = vmatpush2.msra.mxu0 0.0
    %3341 = vmatprep.subr.mxu0 0.0
    %3342 = vmatpush2.msra.mxu0 0.0
    %3343 = vmatprep.subr.mxu0 0.0
    %3344 = vmatpush2.msra.mxu0 0.0
    %3345 = vmatprep.subr.mxu0 0.0
    %3346 = vmatpush2.msra.mxu0 0.0
    %3347 = vmatprep.subr.mxu0 0.0
    %3348 = vmatpush2.msra.mxu0 0.0
    %3349 = vmatprep.subr.mxu0 0.0
    %3350 = vmatpush2.msra.mxu0 0.0
    %3351 = vmatprep.subr.mxu0 0.0
    %3352 = vmatpush2.msra.mxu0 0.0
    %3353 = vmatprep.subr.mxu0 0.0
    %3354 = vmatpush2.msra.mxu0 0.0
    %3355 = vmatprep.subr.mxu0 0.0
    %3356 = vmatpush2.msra.mxu0 0.0
    %3357 = vmatprep.subr.mxu0 0.0
    %3358 = vmatpush2.msra.mxu0 0.0
    %3359 = vmatprep.subr.mxu0 0.0
    %3360 = vmatpush2.msra.mxu0 0.0
    %3361 = vmatprep.subr.mxu0 0.0
    %3362 = vmatpush2.msra.mxu0 0.0
    %3363 = vmatprep.subr.mxu0 0.0
    %3364 = vmatpush2.msra.mxu0 0.0
    %3365 = vmatprep.subr.mxu0 0.0
    %3366 = vmatpush2.msra.mxu0 0.0
    %3367 = vmatprep.subr.mxu0 0.0
    %3368 = vmatpush2.msra.mxu0 0.0
    %3369 = vmatprep.subr.mxu0 0.0
    %3370 = vmatpush2.msra.mxu0 0.0
    %3371 = vmatprep.mubr.f32.mxu0 0.0
    %3372 = vmatmul.mubr.f32.gmra.mxu0 %v3234
    %v3373 = vpop.f32.mrf.mxu0
    %v3374 = vadd.f32 %v3216, %v3373
    %v3375 = vpop.f32.mrf.mxu0
    %3376 = vdwg.mxu0
    %s3377 = scalar_lea.vmem %s2, 160
    %v3378 = vld [vmem:[%s3377] sm:$0xff]
    %3379 = vrot.lane.b32.xlu0 %v3051, 17
    %v3380 = vpop.permute.xlu0 %3379
    %3381 = vrot.lane.b32.xlu0 %v3052, 17
    %v3382 = vpop.permute.xlu0 %3381
    %3383 = vrot.lane.b32.xlu0 %v3053, 17
    %v3384 = vpop.permute.xlu0 %3383
    %3385 = vrot.lane.b32.xlu0 %v3054, 17
    %v3386 = vpop.permute.xlu0 %3385
    %v3387 = vsel %vm371, %v3380, %v3382
    %v3388 = vsel %vm371, %v3382, %v3384
    %v3389 = vsel %vm371, %v3384, %v3386
    %v3394 = vsel %vm57, %v3378, 0
    %3396 = vmatprep.subr.mxu0 0.0
    %3397 = vmatpush1.msra.mxu0 0.0
    %3398 = vmatprep.subr.mxu0 0.0
    %3399 = vmatpush1.msra.mxu0 0.0
    %3400 = vmatprep.subr.mxu0 0.0
    %3401 = vmatpush1.msra.mxu0 0.0
    %3402 = vmatprep.subr.mxu0 0.0
    %3403 = vmatpush1.msra.mxu0 0.0
    %3404 = vmatprep.subr.mxu0 0.0
    %3405 = vmatpush1.msra.mxu0 0.0
    %3406 = vmatprep.subr.mxu0 0.0
    %3407 = vmatpush1.msra.mxu0 0.0
    %3408 = vmatprep.subr.mxu0 0.0
    %3409 = vmatpush1.msra.mxu0 0.0
    %3410 = vmatprep.subr.mxu0 0.0
    %3411 = vmatpush1.msra.mxu0 0.0
    %3412 = vmatprep.subr.mxu0 0.0
    %3413 = vmatpush1.msra.mxu0 0.0
    %3414 = vmatprep.subr.mxu0 0.0
    %3415 = vmatpush1.msra.mxu0 0.0
    %3416 = vmatprep.subr.mxu0 0.0
    %3417 = vmatpush1.msra.mxu0 0.0
    %3418 = vmatprep.subr.mxu0 0.0
    %3419 = vmatpush1.msra.mxu0 0.0
    %3420 = vmatprep.subr.mxu0 0.0
    %3421 = vmatpush1.msra.mxu0 0.0
    %3422 = vmatprep.subr.mxu0 0.0
    %3423 = vmatpush1.msra.mxu0 0.0
    %3424 = vmatprep.subr.mxu0 0.0
    %3425 = vmatpush1.msra.mxu0 0.0
    %3426 = vmatprep.subr.mxu0 %v3388
    %3427 = vmatpush1.msra.mxu0 %v3387
    %3428 = vmatprep.subr.mxu0 0.0
    %3429 = vmatpush2.msra.mxu0 0.0
    %3430 = vmatprep.subr.mxu0 0.0
    %3431 = vmatpush2.msra.mxu0 0.0
    %3432 = vmatprep.subr.mxu0 0.0
    %3433 = vmatpush2.msra.mxu0 0.0
    %3434 = vmatprep.subr.mxu0 0.0
    %3435 = vmatpush2.msra.mxu0 0.0
    %3436 = vmatprep.subr.mxu0 0.0
    %3437 = vmatpush2.msra.mxu0 0.0
    %3438 = vmatprep.subr.mxu0 0.0
    %3439 = vmatpush2.msra.mxu0 0.0
    %3440 = vmatprep.subr.mxu0 0.0
    %3441 = vmatpush2.msra.mxu0 0.0
    %3442 = vmatprep.subr.mxu0 0.0
    %3443 = vmatpush2.msra.mxu0 0.0
    %3444 = vmatprep.subr.mxu0 0.0
    %3445 = vmatpush2.msra.mxu0 0.0
    %3446 = vmatprep.subr.mxu0 0.0
    %3447 = vmatpush2.msra.mxu0 0.0
    %3448 = vmatprep.subr.mxu0 0.0
    %3449 = vmatpush2.msra.mxu0 0.0
    %3450 = vmatprep.subr.mxu0 0.0
    %3451 = vmatpush2.msra.mxu0 0.0
    %3452 = vmatprep.subr.mxu0 0.0
    %3453 = vmatpush2.msra.mxu0 0.0
    %3454 = vmatprep.subr.mxu0 0.0
    %3455 = vmatpush2.msra.mxu0 0.0
    %3456 = vmatprep.subr.mxu0 0.0
    %3457 = vmatpush2.msra.mxu0 0.0
    %3458 = vmatprep.subr.mxu0 0.0
    %3459 = vmatpush2.msra.mxu0 0.0
    %3460 = vmatprep.mubr.f32.mxu0 0.0
    %3461 = vmatmul.mubr.f32.gmra.mxu0 %v3394
    %v3462 = vpop.f32.mrf.mxu0
    %v3463 = vadd.f32 0.0, %v3462
    %v3464 = vpop.f32.mrf.mxu0
    %v3465 = vadd.f32 0.0, %v3464
    %3466 = vdwg.mxu0
    %3467 = vmatprep.subr.mxu0 0.0
    %3468 = vmatpush1.msra.mxu0 0.0
    %3469 = vmatprep.subr.mxu0 0.0
    %3470 = vmatpush1.msra.mxu0 0.0
    %3471 = vmatprep.subr.mxu0 0.0
    %3472 = vmatpush1.msra.mxu0 0.0
    %3473 = vmatprep.subr.mxu0 0.0
    %3474 = vmatpush1.msra.mxu0 0.0
    %3475 = vmatprep.subr.mxu0 0.0
    %3476 = vmatpush1.msra.mxu0 0.0
    %3477 = vmatprep.subr.mxu0 0.0
    %3478 = vmatpush1.msra.mxu0 0.0
    %3479 = vmatprep.subr.mxu0 0.0
    %3480 = vmatpush1.msra.mxu0 0.0
    %3481 = vmatprep.subr.mxu0 0.0
    %3482 = vmatpush1.msra.mxu0 0.0
    %3483 = vmatprep.subr.mxu0 0.0
    %3484 = vmatpush1.msra.mxu0 0.0
    %3485 = vmatprep.subr.mxu0 0.0
    %3486 = vmatpush1.msra.mxu0 0.0
    %3487 = vmatprep.subr.mxu0 0.0
    %3488 = vmatpush1.msra.mxu0 0.0
    %3489 = vmatprep.subr.mxu0 0.0
    %3490 = vmatpush1.msra.mxu0 0.0
    %3491 = vmatprep.subr.mxu0 0.0
    %3492 = vmatpush1.msra.mxu0 0.0
    %3493 = vmatprep.subr.mxu0 0.0
    %3494 = vmatpush1.msra.mxu0 0.0
    %3495 = vmatprep.subr.mxu0 0.0
    %3496 = vmatpush1.msra.mxu0 0.0
    %3497 = vmatprep.subr.mxu0 0.0
    %3498 = vmatpush1.msra.mxu0 %v3389
    %3499 = vmatprep.subr.mxu0 0.0
    %3500 = vmatpush2.msra.mxu0 0.0
    %3501 = vmatprep.subr.mxu0 0.0
    %3502 = vmatpush2.msra.mxu0 0.0
    %3503 = vmatprep.subr.mxu0 0.0
    %3504 = vmatpush2.msra.mxu0 0.0
    %3505 = vmatprep.subr.mxu0 0.0
    %3506 = vmatpush2.msra.mxu0 0.0
    %3507 = vmatprep.subr.mxu0 0.0
    %3508 = vmatpush2.msra.mxu0 0.0
    %3509 = vmatprep.subr.mxu0 0.0
    %3510 = vmatpush2.msra.mxu0 0.0
    %3511 = vmatprep.subr.mxu0 0.0
    %3512 = vmatpush2.msra.mxu0 0.0
    %3513 = vmatprep.subr.mxu0 0.0
    %3514 = vmatpush2.msra.mxu0 0.0
    %3515 = vmatprep.subr.mxu0 0.0
    %3516 = vmatpush2.msra.mxu0 0.0
    %3517 = vmatprep.subr.mxu0 0.0
    %3518 = vmatpush2.msra.mxu0 0.0
    %3519 = vmatprep.subr.mxu0 0.0
    %3520 = vmatpush2.msra.mxu0 0.0
    %3521 = vmatprep.subr.mxu0 0.0
    %3522 = vmatpush2.msra.mxu0 0.0
    %3523 = vmatprep.subr.mxu0 0.0
    %3524 = vmatpush2.msra.mxu0 0.0
    %3525 = vmatprep.subr.mxu0 0.0
    %3526 = vmatpush2.msra.mxu0 0.0
    %3527 = vmatprep.subr.mxu0 0.0
    %3528 = vmatpush2.msra.mxu0 0.0
    %3529 = vmatprep.subr.mxu0 0.0
    %3530 = vmatpush2.msra.mxu0 0.0
    %3531 = vmatprep.mubr.f32.mxu0 0.0
    %3532 = vmatmul.mubr.f32.gmra.mxu0 %v3394
    %v3533 = vpop.f32.mrf.mxu0
    %v3534 = vadd.f32 0.0, %v3533
    %v3535 = vpop.f32.mrf.mxu0
    %3536 = vdwg.mxu0
    %v3537 = vadd.f32 %v3303, %v3463
    %v3538 = vadd.f32 %v3305, %v3465
    %v3539 = vadd.f32 %v3374, %v3534
    %s3540 = scalar_lea.vmem %s2, 168
    %v3541 = vld [vmem:[%s3540] sm:$0xff]
    %3542 = vrot.lane.b32.xlu0 %v3051, 1
    %v3543 = vpop.permute.xlu0 %3542
    %3544 = vrot.lane.b32.xlu0 %v3052, 1
    %v3545 = vpop.permute.xlu0 %3544
    %3546 = vrot.lane.b32.xlu0 %v3053, 1
    %v3547 = vpop.permute.xlu0 %3546
    %3548 = vrot.lane.b32.xlu0 %v3054, 1
    %v3549 = vpop.permute.xlu0 %3548
    %v3550 = vsel %vm535, %v3543, %v3545
    %v3551 = vsel %vm535, %v3545, %v3547
    %v3552 = vsel %vm535, %v3547, %v3549
    %v3557 = vsel %vm57, %v3541, 0
    %3559 = vmatprep.subr.mxu0 0.0
    %3560 = vmatpush1.msra.mxu0 0.0
    %3561 = vmatprep.subr.mxu0 0.0
    %3562 = vmatpush1.msra.mxu0 0.0
    %3563 = vmatprep.subr.mxu0 0.0
    %3564 = vmatpush1.msra.mxu0 0.0
    %3565 = vmatprep.subr.mxu0 0.0
    %3566 = vmatpush1.msra.mxu0 0.0
    %3567 = vmatprep.subr.mxu0 0.0
    %3568 = vmatpush1.msra.mxu0 0.0
    %3569 = vmatprep.subr.mxu0 0.0
    %3570 = vmatpush1.msra.mxu0 0.0
    %3571 = vmatprep.subr.mxu0 0.0
    %3572 = vmatpush1.msra.mxu0 0.0
    %3573 = vmatprep.subr.mxu0 0.0
    %3574 = vmatpush1.msra.mxu0 0.0
    %3575 = vmatprep.subr.mxu0 0.0
    %3576 = vmatpush1.msra.mxu0 0.0
    %3577 = vmatprep.subr.mxu0 0.0
    %3578 = vmatpush1.msra.mxu0 0.0
    %3579 = vmatprep.subr.mxu0 0.0
    %3580 = vmatpush1.msra.mxu0 0.0
    %3581 = vmatprep.subr.mxu0 0.0
    %3582 = vmatpush1.msra.mxu0 0.0
    %3583 = vmatprep.subr.mxu0 0.0
    %3584 = vmatpush1.msra.mxu0 0.0
    %3585 = vmatprep.subr.mxu0 0.0
    %3586 = vmatpush1.msra.mxu0 0.0
    %3587 = vmatprep.subr.mxu0 0.0
    %3588 = vmatpush1.msra.mxu0 0.0
    %3589 = vmatprep.subr.mxu0 %v3551
    %3590 = vmatpush1.msra.mxu0 %v3550
    %3591 = vmatprep.subr.mxu0 0.0
    %3592 = vmatpush2.msra.mxu0 0.0
    %3593 = vmatprep.subr.mxu0 0.0
    %3594 = vmatpush2.msra.mxu0 0.0
    %3595 = vmatprep.subr.mxu0 0.0
    %3596 = vmatpush2.msra.mxu0 0.0
    %3597 = vmatprep.subr.mxu0 0.0
    %3598 = vmatpush2.msra.mxu0 0.0
    %3599 = vmatprep.subr.mxu0 0.0
    %3600 = vmatpush2.msra.mxu0 0.0
    %3601 = vmatprep.subr.mxu0 0.0
    %3602 = vmatpush2.msra.mxu0 0.0
    %3603 = vmatprep.subr.mxu0 0.0
    %3604 = vmatpush2.msra.mxu0 0.0
    %3605 = vmatprep.subr.mxu0 0.0
    %3606 = vmatpush2.msra.mxu0 0.0
    %3607 = vmatprep.subr.mxu0 0.0
    %3608 = vmatpush2.msra.mxu0 0.0
    %3609 = vmatprep.subr.mxu0 0.0
    %3610 = vmatpush2.msra.mxu0 0.0
    %3611 = vmatprep.subr.mxu0 0.0
    %3612 = vmatpush2.msra.mxu0 0.0
    %3613 = vmatprep.subr.mxu0 0.0
    %3614 = vmatpush2.msra.mxu0 0.0
    %3615 = vmatprep.subr.mxu0 0.0
    %3616 = vmatpush2.msra.mxu0 0.0
    %3617 = vmatprep.subr.mxu0 0.0
    %3618 = vmatpush2.msra.mxu0 0.0
    %3619 = vmatprep.subr.mxu0 0.0
    %3620 = vmatpush2.msra.mxu0 0.0
    %3621 = vmatprep.subr.mxu0 0.0
    %3622 = vmatpush2.msra.mxu0 0.0
    %3623 = vmatprep.mubr.f32.mxu0 0.0
    %3624 = vmatmul.mubr.f32.gmra.mxu0 %v3557
    %v3625 = vpop.f32.mrf.mxu0
    %v3626 = vadd.f32 0.0, %v3625
    %v3627 = vpop.f32.mrf.mxu0
    %v3628 = vadd.f32 0.0, %v3627
    %3629 = vdwg.mxu0
    %3630 = vmatprep.subr.mxu0 0.0
    %3631 = vmatpush1.msra.mxu0 0.0
    %3632 = vmatprep.subr.mxu0 0.0
    %3633 = vmatpush1.msra.mxu0 0.0
    %3634 = vmatprep.subr.mxu0 0.0
    %3635 = vmatpush1.msra.mxu0 0.0
    %3636 = vmatprep.subr.mxu0 0.0
    %3637 = vmatpush1.msra.mxu0 0.0
    %3638 = vmatprep.subr.mxu0 0.0
    %3639 = vmatpush1.msra.mxu0 0.0
    %3640 = vmatprep.subr.mxu0 0.0
    %3641 = vmatpush1.msra.mxu0 0.0
    %3642 = vmatprep.subr.mxu0 0.0
    %3643 = vmatpush1.msra.mxu0 0.0
    %3644 = vmatprep.subr.mxu0 0.0
    %3645 = vmatpush1.msra.mxu0 0.0
    %3646 = vmatprep.subr.mxu0 0.0
    %3647 = vmatpush1.msra.mxu0 0.0
    %3648 = vmatprep.subr.mxu0 0.0
    %3649 = vmatpush1.msra.mxu0 0.0
    %3650 = vmatprep.subr.mxu0 0.0
    %3651 = vmatpush1.msra.mxu0 0.0
    %3652 = vmatprep.subr.mxu0 0.0
    %3653 = vmatpush1.msra.mxu0 0.0
    %3654 = vmatprep.subr.mxu0 0.0
    %3655 = vmatpush1.msra.mxu0 0.0
    %3656 = vmatprep.subr.mxu0 0.0
    %3657 = vmatpush1.msra.mxu0 0.0
    %3658 = vmatprep.subr.mxu0 0.0
    %3659 = vmatpush1.msra.mxu0 0.0
    %3660 = vmatprep.subr.mxu0 0.0
    %3661 = vmatpush1.msra.mxu0 %v3552
    %3662 = vmatprep.subr.mxu0 0.0
    %3663 = vmatpush2.msra.mxu0 0.0
    %3664 = vmatprep.subr.mxu0 0.0
    %3665 = vmatpush2.msra.mxu0 0.0
    %3666 = vmatprep.subr.mxu0 0.0
    %3667 = vmatpush2.msra.mxu0 0.0
    %3668 = vmatprep.subr.mxu0 0.0
    %3669 = vmatpush2.msra.mxu0 0.0
    %3670 = vmatprep.subr.mxu0 0.0
    %3671 = vmatpush2.msra.mxu0 0.0
    %3672 = vmatprep.subr.mxu0 0.0
    %3673 = vmatpush2.msra.mxu0 0.0
    %3674 = vmatprep.subr.mxu0 0.0
    %3675 = vmatpush2.msra.mxu0 0.0
    %3676 = vmatprep.subr.mxu0 0.0
    %3677 = vmatpush2.msra.mxu0 0.0
    %3678 = vmatprep.subr.mxu0 0.0
    %3679 = vmatpush2.msra.mxu0 0.0
    %3680 = vmatprep.subr.mxu0 0.0
    %3681 = vmatpush2.msra.mxu0 0.0
    %3682 = vmatprep.subr.mxu0 0.0
    %3683 = vmatpush2.msra.mxu0 0.0
    %3684 = vmatprep.subr.mxu0 0.0
    %3685 = vmatpush2.msra.mxu0 0.0
    %3686 = vmatprep.subr.mxu0 0.0
    %3687 = vmatpush2.msra.mxu0 0.0
    %3688 = vmatprep.subr.mxu0 0.0
    %3689 = vmatpush2.msra.mxu0 0.0
    %3690 = vmatprep.subr.mxu0 0.0
    %3691 = vmatpush2.msra.mxu0 0.0
    %3692 = vmatprep.subr.mxu0 0.0
    %3693 = vmatpush2.msra.mxu0 0.0
    %3694 = vmatprep.mubr.f32.mxu0 0.0
    %3695 = vmatmul.mubr.f32.gmra.mxu0 %v3557
    %v3696 = vpop.f32.mrf.mxu0
    %v3697 = vadd.f32 0.0, %v3696
    %v3698 = vpop.f32.mrf.mxu0
    %3699 = vdwg.mxu0
    %v3700 = vadd.f32 %v3537, %v3626
    %v3701 = vadd.f32 %v3538, %v3628
    %v3702 = vadd.f32 %v3539, %v3697
    %s3703 = scalar_lea.vmem %s2, 176
    %v3704 = vld [vmem:[%s3703] sm:$0xff]
    %v3706 = vsel %vm57, %v3704, 0
    %3708 = vmatprep.subr.mxu0 0.0
    %3709 = vmatpush1.msra.mxu0 0.0
    %3710 = vmatprep.subr.mxu0 0.0
    %3711 = vmatpush1.msra.mxu0 0.0
    %3712 = vmatprep.subr.mxu0 0.0
    %3713 = vmatpush1.msra.mxu0 0.0
    %3714 = vmatprep.subr.mxu0 0.0
    %3715 = vmatpush1.msra.mxu0 0.0
    %3716 = vmatprep.subr.mxu0 0.0
    %3717 = vmatpush1.msra.mxu0 0.0
    %3718 = vmatprep.subr.mxu0 0.0
    %3719 = vmatpush1.msra.mxu0 0.0
    %3720 = vmatprep.subr.mxu0 0.0
    %3721 = vmatpush1.msra.mxu0 0.0
    %3722 = vmatprep.subr.mxu0 0.0
    %3723 = vmatpush1.msra.mxu0 0.0
    %3724 = vmatprep.subr.mxu0 0.0
    %3725 = vmatpush1.msra.mxu0 0.0
    %3726 = vmatprep.subr.mxu0 0.0
    %3727 = vmatpush1.msra.mxu0 0.0
    %3728 = vmatprep.subr.mxu0 0.0
    %3729 = vmatpush1.msra.mxu0 0.0
    %3730 = vmatprep.subr.mxu0 0.0
    %3731 = vmatpush1.msra.mxu0 0.0
    %3732 = vmatprep.subr.mxu0 0.0
    %3733 = vmatpush1.msra.mxu0 0.0
    %3734 = vmatprep.subr.mxu0 0.0
    %3735 = vmatpush1.msra.mxu0 0.0
    %3736 = vmatprep.subr.mxu0 0.0
    %3737 = vmatpush1.msra.mxu0 0.0
    %3738 = vmatprep.subr.mxu0 %v3053
    %3739 = vmatpush1.msra.mxu0 %v3052
    %3740 = vmatprep.subr.mxu0 0.0
    %3741 = vmatpush2.msra.mxu0 0.0
    %3742 = vmatprep.subr.mxu0 0.0
    %3743 = vmatpush2.msra.mxu0 0.0
    %3744 = vmatprep.subr.mxu0 0.0
    %3745 = vmatpush2.msra.mxu0 0.0
    %3746 = vmatprep.subr.mxu0 0.0
    %3747 = vmatpush2.msra.mxu0 0.0
    %3748 = vmatprep.subr.mxu0 0.0
    %3749 = vmatpush2.msra.mxu0 0.0
    %3750 = vmatprep.subr.mxu0 0.0
    %3751 = vmatpush2.msra.mxu0 0.0
    %3752 = vmatprep.subr.mxu0 0.0
    %3753 = vmatpush2.msra.mxu0 0.0
    %3754 = vmatprep.subr.mxu0 0.0
    %3755 = vmatpush2.msra.mxu0 0.0
    %3756 = vmatprep.subr.mxu0 0.0
    %3757 = vmatpush2.msra.mxu0 0.0
    %3758 = vmatprep.subr.mxu0 0.0
    %3759 = vmatpush2.msra.mxu0 0.0
    %3760 = vmatprep.subr.mxu0 0.0
    %3761 = vmatpush2.msra.mxu0 0.0
    %3762 = vmatprep.subr.mxu0 0.0
    %3763 = vmatpush2.msra.mxu0 0.0
    %3764 = vmatprep.subr.mxu0 0.0
    %3765 = vmatpush2.msra.mxu0 0.0
    %3766 = vmatprep.subr.mxu0 0.0
    %3767 = vmatpush2.msra.mxu0 0.0
    %3768 = vmatprep.subr.mxu0 0.0
    %3769 = vmatpush2.msra.mxu0 0.0
    %3770 = vmatprep.subr.mxu0 0.0
    %3771 = vmatpush2.msra.mxu0 0.0
    %3772 = vmatprep.mubr.f32.mxu0 0.0
    %3773 = vmatmul.mubr.f32.gmra.mxu0 %v3706
    %v3774 = vpop.f32.mrf.mxu0
    %v3775 = vadd.f32 0.0, %v3774
    %v3776 = vpop.f32.mrf.mxu0
    %v3777 = vadd.f32 0.0, %v3776
    %3778 = vdwg.mxu0
    %3779 = vmatprep.subr.mxu0 0.0
    %3780 = vmatpush1.msra.mxu0 0.0
    %3781 = vmatprep.subr.mxu0 0.0
    %3782 = vmatpush1.msra.mxu0 0.0
    %3783 = vmatprep.subr.mxu0 0.0
    %3784 = vmatpush1.msra.mxu0 0.0
    %3785 = vmatprep.subr.mxu0 0.0
    %3786 = vmatpush1.msra.mxu0 0.0
    %3787 = vmatprep.subr.mxu0 0.0
    %3788 = vmatpush1.msra.mxu0 0.0
    %3789 = vmatprep.subr.mxu0 0.0
    %3790 = vmatpush1.msra.mxu0 0.0
    %3791 = vmatprep.subr.mxu0 0.0
    %3792 = vmatpush1.msra.mxu0 0.0
    %3793 = vmatprep.subr.mxu0 0.0
    %3794 = vmatpush1.msra.mxu0 0.0
    %3795 = vmatprep.subr.mxu0 0.0
    %3796 = vmatpush1.msra.mxu0 0.0
    %3797 = vmatprep.subr.mxu0 0.0
    %3798 = vmatpush1.msra.mxu0 0.0
    %3799 = vmatprep.subr.mxu0 0.0
    %3800 = vmatpush1.msra.mxu0 0.0
    %3801 = vmatprep.subr.mxu0 0.0
    %3802 = vmatpush1.msra.mxu0 0.0
    %3803 = vmatprep.subr.mxu0 0.0
    %3804 = vmatpush1.msra.mxu0 0.0
    %3805 = vmatprep.subr.mxu0 0.0
    %3806 = vmatpush1.msra.mxu0 0.0
    %3807 = vmatprep.subr.mxu0 0.0
    %3808 = vmatpush1.msra.mxu0 0.0
    %3809 = vmatprep.subr.mxu0 0.0
    %3810 = vmatpush1.msra.mxu0 %v3054
    %3811 = vmatprep.subr.mxu0 0.0
    %3812 = vmatpush2.msra.mxu0 0.0
    %3813 = vmatprep.subr.mxu0 0.0
    %3814 = vmatpush2.msra.mxu0 0.0
    %3815 = vmatprep.subr.mxu0 0.0
    %3816 = vmatpush2.msra.mxu0 0.0
    %3817 = vmatprep.subr.mxu0 0.0
    %3818 = vmatpush2.msra.mxu0 0.0
    %3819 = vmatprep.subr.mxu0 0.0
    %3820 = vmatpush2.msra.mxu0 0.0
    %3821 = vmatprep.subr.mxu0 0.0
    %3822 = vmatpush2.msra.mxu0 0.0
    %3823 = vmatprep.subr.mxu0 0.0
    %3824 = vmatpush2.msra.mxu0 0.0
    %3825 = vmatprep.subr.mxu0 0.0
    %3826 = vmatpush2.msra.mxu0 0.0
    %3827 = vmatprep.subr.mxu0 0.0
    %3828 = vmatpush2.msra.mxu0 0.0
    %3829 = vmatprep.subr.mxu0 0.0
    %3830 = vmatpush2.msra.mxu0 0.0
    %3831 = vmatprep.subr.mxu0 0.0
    %3832 = vmatpush2.msra.mxu0 0.0
    %3833 = vmatprep.subr.mxu0 0.0
    %3834 = vmatpush2.msra.mxu0 0.0
    %3835 = vmatprep.subr.mxu0 0.0
    %3836 = vmatpush2.msra.mxu0 0.0
    %3837 = vmatprep.subr.mxu0 0.0
    %3838 = vmatpush2.msra.mxu0 0.0
    %3839 = vmatprep.subr.mxu0 0.0
    %3840 = vmatpush2.msra.mxu0 0.0
    %3841 = vmatprep.subr.mxu0 0.0
    %3842 = vmatpush2.msra.mxu0 0.0
    %3843 = vmatprep.mubr.f32.mxu0 0.0
    %3844 = vmatmul.mubr.f32.gmra.mxu0 %v3706
    %v3845 = vpop.f32.mrf.mxu0
    %v3846 = vadd.f32 0.0, %v3845
    %v3847 = vpop.f32.mrf.mxu0
    %3848 = vdwg.mxu0
    %v3849 = vadd.f32 %v3700, %v3775
    %v3850 = vadd.f32 %v3701, %v3777
    %v3851 = vadd.f32 %v3702, %v3846
    %s3852 = scalar_lea.vmem %s2, 184
    %v3853 = vld [vmem:[%s3852] sm:$0xff]
    %v3854 = vld [vmem:[#allocation3 + $0x8] sm:$0xff]
    %v3855 = vld [vmem:[#allocation3 + $0x10] sm:$0xff]
    %v3856 = vld [vmem:[#allocation3 + $0x18] sm:$0xff]
    %v3857 = vld [vmem:[#allocation3 + $0x20] sm:$0xff]
    %3862 = vrot.lane.b32.xlu0 %v3854, 127
    %v3863 = vpop.permute.xlu0 %3862
    %3864 = vrot.lane.b32.xlu0 %v3855, 127
    %v3865 = vpop.permute.xlu0 %3864
    %3866 = vrot.lane.b32.xlu0 %v3856, 127
    %v3867 = vpop.permute.xlu0 %3866
    %3868 = vrot.lane.b32.xlu0 %v3857, 127
    %v3869 = vpop.permute.xlu0 %3868
    %v3870 = vsel %vm856, %v3863, %v3865
    %v3871 = vsel %vm856, %v3865, %v3867
    %v3872 = vsel %vm856, %v3867, %v3869
    %v3877 = vsel %vm57, %v3853, 0
    %3879 = vmatprep.subr.mxu0 0.0
    %3880 = vmatpush1.msra.mxu0 0.0
    %3881 = vmatprep.subr.mxu0 0.0
    %3882 = vmatpush1.msra.mxu0 0.0
    %3883 = vmatprep.subr.mxu0 0.0
    %3884 = vmatpush1.msra.mxu0 0.0
    %3885 = vmatprep.subr.mxu0 0.0
    %3886 = vmatpush1.msra.mxu0 0.0
    %3887 = vmatprep.subr.mxu0 0.0
    %3888 = vmatpush1.msra.mxu0 0.0
    %3889 = vmatprep.subr.mxu0 0.0
    %3890 = vmatpush1.msra.mxu0 0.0
    %3891 = vmatprep.subr.mxu0 0.0
    %3892 = vmatpush1.msra.mxu0 0.0
    %3893 = vmatprep.subr.mxu0 0.0
    %3894 = vmatpush1.msra.mxu0 0.0
    %3895 = vmatprep.subr.mxu0 0.0
    %3896 = vmatpush1.msra.mxu0 0.0
    %3897 = vmatprep.subr.mxu0 0.0
    %3898 = vmatpush1.msra.mxu0 0.0
    %3899 = vmatprep.subr.mxu0 0.0
    %3900 = vmatpush1.msra.mxu0 0.0
    %3901 = vmatprep.subr.mxu0 0.0
    %3902 = vmatpush1.msra.mxu0 0.0
    %3903 = vmatprep.subr.mxu0 0.0
    %3904 = vmatpush1.msra.mxu0 0.0
    %3905 = vmatprep.subr.mxu0 0.0
    %3906 = vmatpush1.msra.mxu0 0.0
    %3907 = vmatprep.subr.mxu0 0.0
    %3908 = vmatpush1.msra.mxu0 0.0
    %3909 = vmatprep.subr.mxu0 %v3871
    %3910 = vmatpush1.msra.mxu0 %v3870
    %3911 = vmatprep.subr.mxu0 0.0
    %3912 = vmatpush2.msra.mxu0 0.0
    %3913 = vmatprep.subr.mxu0 0.0
    %3914 = vmatpush2.msra.mxu0 0.0
    %3915 = vmatprep.subr.mxu0 0.0
    %3916 = vmatpush2.msra.mxu0 0.0
    %3917 = vmatprep.subr.mxu0 0.0
    %3918 = vmatpush2.msra.mxu0 0.0
    %3919 = vmatprep.subr.mxu0 0.0
    %3920 = vmatpush2.msra.mxu0 0.0
    %3921 = vmatprep.subr.mxu0 0.0
    %3922 = vmatpush2.msra.mxu0 0.0
    %3923 = vmatprep.subr.mxu0 0.0
    %3924 = vmatpush2.msra.mxu0 0.0
    %3925 = vmatprep.subr.mxu0 0.0
    %3926 = vmatpush2.msra.mxu0 0.0
    %3927 = vmatprep.subr.mxu0 0.0
    %3928 = vmatpush2.msra.mxu0 0.0
    %3929 = vmatprep.subr.mxu0 0.0
    %3930 = vmatpush2.msra.mxu0 0.0
    %3931 = vmatprep.subr.mxu0 0.0
    %3932 = vmatpush2.msra.mxu0 0.0
    %3933 = vmatprep.subr.mxu0 0.0
    %3934 = vmatpush2.msra.mxu0 0.0
    %3935 = vmatprep.subr.mxu0 0.0
    %3936 = vmatpush2.msra.mxu0 0.0
    %3937 = vmatprep.subr.mxu0 0.0
    %3938 = vmatpush2.msra.mxu0 0.0
    %3939 = vmatprep.subr.mxu0 0.0
    %3940 = vmatpush2.msra.mxu0 0.0
    %3941 = vmatprep.subr.mxu0 0.0
    %3942 = vmatpush2.msra.mxu0 0.0
    %3943 = vmatprep.mubr.f32.mxu0 0.0
    %3944 = vmatmul.mubr.f32.gmra.mxu0 %v3877
    %v3945 = vpop.f32.mrf.mxu0
    %v3946 = vadd.f32 0.0, %v3945
    %v3947 = vpop.f32.mrf.mxu0
    %v3948 = vadd.f32 0.0, %v3947
    %3949 = vdwg.mxu0
    %3950 = vmatprep.subr.mxu0 0.0
    %3951 = vmatpush1.msra.mxu0 0.0
    %3952 = vmatprep.subr.mxu0 0.0
    %3953 = vmatpush1.msra.mxu0 0.0
    %3954 = vmatprep.subr.mxu0 0.0
    %3955 = vmatpush1.msra.mxu0 0.0
    %3956 = vmatprep.subr.mxu0 0.0
    %3957 = vmatpush1.msra.mxu0 0.0
    %3958 = vmatprep.subr.mxu0 0.0
    %3959 = vmatpush1.msra.mxu0 0.0
    %3960 = vmatprep.subr.mxu0 0.0
    %3961 = vmatpush1.msra.mxu0 0.0
    %3962 = vmatprep.subr.mxu0 0.0
    %3963 = vmatpush1.msra.mxu0 0.0
    %3964 = vmatprep.subr.mxu0 0.0
    %3965 = vmatpush1.msra.mxu0 0.0
    %3966 = vmatprep.subr.mxu0 0.0
    %3967 = vmatpush1.msra.mxu0 0.0
    %3968 = vmatprep.subr.mxu0 0.0
    %3969 = vmatpush1.msra.mxu0 0.0
    %3970 = vmatprep.subr.mxu0 0.0
    %3971 = vmatpush1.msra.mxu0 0.0
    %3972 = vmatprep.subr.mxu0 0.0
    %3973 = vmatpush1.msra.mxu0 0.0
    %3974 = vmatprep.subr.mxu0 0.0
    %3975 = vmatpush1.msra.mxu0 0.0
    %3976 = vmatprep.subr.mxu0 0.0
    %3977 = vmatpush1.msra.mxu0 0.0
    %3978 = vmatprep.subr.mxu0 0.0
    %3979 = vmatpush1.msra.mxu0 0.0
    %3980 = vmatprep.subr.mxu0 0.0
    %3981 = vmatpush1.msra.mxu0 %v3872
    %3982 = vmatprep.subr.mxu0 0.0
    %3983 = vmatpush2.msra.mxu0 0.0
    %3984 = vmatprep.subr.mxu0 0.0
    %3985 = vmatpush2.msra.mxu0 0.0
    %3986 = vmatprep.subr.mxu0 0.0
    %3987 = vmatpush2.msra.mxu0 0.0
    %3988 = vmatprep.subr.mxu0 0.0
    %3989 = vmatpush2.msra.mxu0 0.0
    %3990 = vmatprep.subr.mxu0 0.0
    %3991 = vmatpush2.msra.mxu0 0.0
    %3992 = vmatprep.subr.mxu0 0.0
    %3993 = vmatpush2.msra.mxu0 0.0
    %3994 = vmatprep.subr.mxu0 0.0
    %3995 = vmatpush2.msra.mxu0 0.0
    %3996 = vmatprep.subr.mxu0 0.0
    %3997 = vmatpush2.msra.mxu0 0.0
    %3998 = vmatprep.subr.mxu0 0.0
    %3999 = vmatpush2.msra.mxu0 0.0
    %4000 = vmatprep.subr.mxu0 0.0
    %4001 = vmatpush2.msra.mxu0 0.0
    %4002 = vmatprep.subr.mxu0 0.0
    %4003 = vmatpush2.msra.mxu0 0.0
    %4004 = vmatprep.subr.mxu0 0.0
    %4005 = vmatpush2.msra.mxu0 0.0
    %4006 = vmatprep.subr.mxu0 0.0
    %4007 = vmatpush2.msra.mxu0 0.0
    %4008 = vmatprep.subr.mxu0 0.0
    %4009 = vmatpush2.msra.mxu0 0.0
    %4010 = vmatprep.subr.mxu0 0.0
    %4011 = vmatpush2.msra.mxu0 0.0
    %4012 = vmatprep.subr.mxu0 0.0
    %4013 = vmatpush2.msra.mxu0 0.0
    %4014 = vmatprep.mubr.f32.mxu0 0.0
    %4015 = vmatmul.mubr.f32.gmra.mxu0 %v3877
    %v4016 = vpop.f32.mrf.mxu0
    %v4017 = vadd.f32 0.0, %v4016
    %v4018 = vpop.f32.mrf.mxu0
    %4019 = vdwg.mxu0
    %v4020 = vadd.f32 %v3849, %v3946
    %v4021 = vadd.f32 %v3850, %v3948
    %v4022 = vadd.f32 %v3851, %v4017
    %s4023 = scalar_lea.vmem %s2, 192
    %v4024 = vld [vmem:[%s4023] sm:$0xff]
    %4025 = vrot.lane.b32.xlu0 %v3854, 111
    %v4026 = vpop.permute.xlu0 %4025
    %4027 = vrot.lane.b32.xlu0 %v3855, 111
    %v4028 = vpop.permute.xlu0 %4027
    %4029 = vrot.lane.b32.xlu0 %v3856, 111
    %v4030 = vpop.permute.xlu0 %4029
    %4031 = vrot.lane.b32.xlu0 %v3857, 111
    %v4032 = vpop.permute.xlu0 %4031
    %v4033 = vsel %vm1020, %v4026, %v4028
    %v4034 = vsel %vm1020, %v4028, %v4030
    %v4035 = vsel %vm1020, %v4030, %v4032
    %v4040 = vsel %vm57, %v4024, 0
    %4042 = vmatprep.subr.mxu0 0.0
    %4043 = vmatpush1.msra.mxu0 0.0
    %4044 = vmatprep.subr.mxu0 0.0
    %4045 = vmatpush1.msra.mxu0 0.0
    %4046 = vmatprep.subr.mxu0 0.0
    %4047 = vmatpush1.msra.mxu0 0.0
    %4048 = vmatprep.subr.mxu0 0.0
    %4049 = vmatpush1.msra.mxu0 0.0
    %4050 = vmatprep.subr.mxu0 0.0
    %4051 = vmatpush1.msra.mxu0 0.0
    %4052 = vmatprep.subr.mxu0 0.0
    %4053 = vmatpush1.msra.mxu0 0.0
    %4054 = vmatprep.subr.mxu0 0.0
    %4055 = vmatpush1.msra.mxu0 0.0
    %4056 = vmatprep.subr.mxu0 0.0
    %4057 = vmatpush1.msra.mxu0 0.0
    %4058 = vmatprep.subr.mxu0 0.0
    %4059 = vmatpush1.msra.mxu0 0.0
    %4060 = vmatprep.subr.mxu0 0.0
    %4061 = vmatpush1.msra.mxu0 0.0
    %4062 = vmatprep.subr.mxu0 0.0
    %4063 = vmatpush1.msra.mxu0 0.0
    %4064 = vmatprep.subr.mxu0 0.0
    %4065 = vmatpush1.msra.mxu0 0.0
    %4066 = vmatprep.subr.mxu0 0.0
    %4067 = vmatpush1.msra.mxu0 0.0
    %4068 = vmatprep.subr.mxu0 0.0
    %4069 = vmatpush1.msra.mxu0 0.0
    %4070 = vmatprep.subr.mxu0 0.0
    %4071 = vmatpush1.msra.mxu0 0.0
    %4072 = vmatprep.subr.mxu0 %v4034
    %4073 = vmatpush1.msra.mxu0 %v4033
    %4074 = vmatprep.subr.mxu0 0.0
    %4075 = vmatpush2.msra.mxu0 0.0
    %4076 = vmatprep.subr.mxu0 0.0
    %4077 = vmatpush2.msra.mxu0 0.0
    %4078 = vmatprep.subr.mxu0 0.0
    %4079 = vmatpush2.msra.mxu0 0.0
    %4080 = vmatprep.subr.mxu0 0.0
    %4081 = vmatpush2.msra.mxu0 0.0
    %4082 = vmatprep.subr.mxu0 0.0
    %4083 = vmatpush2.msra.mxu0 0.0
    %4084 = vmatprep.subr.mxu0 0.0
    %4085 = vmatpush2.msra.mxu0 0.0
    %4086 = vmatprep.subr.mxu0 0.0
    %4087 = vmatpush2.msra.mxu0 0.0
    %4088 = vmatprep.subr.mxu0 0.0
    %4089 = vmatpush2.msra.mxu0 0.0
    %4090 = vmatprep.subr.mxu0 0.0
    %4091 = vmatpush2.msra.mxu0 0.0
    %4092 = vmatprep.subr.mxu0 0.0
    %4093 = vmatpush2.msra.mxu0 0.0
    %4094 = vmatprep.subr.mxu0 0.0
    %4095 = vmatpush2.msra.mxu0 0.0
    %4096 = vmatprep.subr.mxu0 0.0
    %4097 = vmatpush2.msra.mxu0 0.0
    %4098 = vmatprep.subr.mxu0 0.0
    %4099 = vmatpush2.msra.mxu0 0.0
    %4100 = vmatprep.subr.mxu0 0.0
    %4101 = vmatpush2.msra.mxu0 0.0
    %4102 = vmatprep.subr.mxu0 0.0
    %4103 = vmatpush2.msra.mxu0 0.0
    %4104 = vmatprep.subr.mxu0 0.0
    %4105 = vmatpush2.msra.mxu0 0.0
    %4106 = vmatprep.mubr.f32.mxu0 0.0
    %4107 = vmatmul.mubr.f32.gmra.mxu0 %v4040
    %v4108 = vpop.f32.mrf.mxu0
    %v4109 = vadd.f32 0.0, %v4108
    %v4110 = vpop.f32.mrf.mxu0
    %v4111 = vadd.f32 0.0, %v4110
    %4112 = vdwg.mxu0
    %4113 = vmatprep.subr.mxu0 0.0
    %4114 = vmatpush1.msra.mxu0 0.0
    %4115 = vmatprep.subr.mxu0 0.0
    %4116 = vmatpush1.msra.mxu0 0.0
    %4117 = vmatprep.subr.mxu0 0.0
    %4118 = vmatpush1.msra.mxu0 0.0
    %4119 = vmatprep.subr.mxu0 0.0
    %4120 = vmatpush1.msra.mxu0 0.0
    %4121 = vmatprep.subr.mxu0 0.0
    %4122 = vmatpush1.msra.mxu0 0.0
    %4123 = vmatprep.subr.mxu0 0.0
    %4124 = vmatpush1.msra.mxu0 0.0
    %4125 = vmatprep.subr.mxu0 0.0
    %4126 = vmatpush1.msra.mxu0 0.0
    %4127 = vmatprep.subr.mxu0 0.0
    %4128 = vmatpush1.msra.mxu0 0.0
    %4129 = vmatprep.subr.mxu0 0.0
    %4130 = vmatpush1.msra.mxu0 0.0
    %4131 = vmatprep.subr.mxu0 0.0
    %4132 = vmatpush1.msra.mxu0 0.0
    %4133 = vmatprep.subr.mxu0 0.0
    %4134 = vmatpush1.msra.mxu0 0.0
    %4135 = vmatprep.subr.mxu0 0.0
    %4136 = vmatpush1.msra.mxu0 0.0
    %4137 = vmatprep.subr.mxu0 0.0
    %4138 = vmatpush1.msra.mxu0 0.0
    %4139 = vmatprep.subr.mxu0 0.0
    %4140 = vmatpush1.msra.mxu0 0.0
    %4141 = vmatprep.subr.mxu0 0.0
    %4142 = vmatpush1.msra.mxu0 0.0
    %4143 = vmatprep.subr.mxu0 0.0
    %4144 = vmatpush1.msra.mxu0 %v4035
    %4145 = vmatprep.subr.mxu0 0.0
    %4146 = vmatpush2.msra.mxu0 0.0
    %4147 = vmatprep.subr.mxu0 0.0
    %4148 = vmatpush2.msra.mxu0 0.0
    %4149 = vmatprep.subr.mxu0 0.0
    %4150 = vmatpush2.msra.mxu0 0.0
    %4151 = vmatprep.subr.mxu0 0.0
    %4152 = vmatpush2.msra.mxu0 0.0
    %4153 = vmatprep.subr.mxu0 0.0
    %4154 = vmatpush2.msra.mxu0 0.0
    %4155 = vmatprep.subr.mxu0 0.0
    %4156 = vmatpush2.msra.mxu0 0.0
    %4157 = vmatprep.subr.mxu0 0.0
    %4158 = vmatpush2.msra.mxu0 0.0
    %4159 = vmatprep.subr.mxu0 0.0
    %4160 = vmatpush2.msra.mxu0 0.0
    %4161 = vmatprep.subr.mxu0 0.0
    %4162 = vmatpush2.msra.mxu0 0.0
    %4163 = vmatprep.subr.mxu0 0.0
    %4164 = vmatpush2.msra.mxu0 0.0
    %4165 = vmatprep.subr.mxu0 0.0
    %4166 = vmatpush2.msra.mxu0 0.0
    %4167 = vmatprep.subr.mxu0 0.0
    %4168 = vmatpush2.msra.mxu0 0.0
    %4169 = vmatprep.subr.mxu0 0.0
    %4170 = vmatpush2.msra.mxu0 0.0
    %4171 = vmatprep.subr.mxu0 0.0
    %4172 = vmatpush2.msra.mxu0 0.0
    %4173 = vmatprep.subr.mxu0 0.0
    %4174 = vmatpush2.msra.mxu0 0.0
    %4175 = vmatprep.subr.mxu0 0.0
    %4176 = vmatpush2.msra.mxu0 0.0
    %4177 = vmatprep.mubr.f32.mxu0 0.0
    %4178 = vmatmul.mubr.f32.gmra.mxu0 %v4040
    %v4179 = vpop.f32.mrf.mxu0
    %v4180 = vadd.f32 0.0, %v4179
    %v4181 = vpop.f32.mrf.mxu0
    %4182 = vdwg.mxu0
    %v4183 = vadd.f32 %v4020, %v4109
    %v4184 = vadd.f32 %v4021, %v4111
    %v4185 = vadd.f32 %v4022, %v4180
    %s4186 = scalar_lea.vmem %s2, 200
    %v4187 = vld [vmem:[%s4186] sm:$0xff]
    %4188 = vrot.lane.b32.xlu0 %v3854, 110
    %v4189 = vpop.permute.xlu0 %4188
    %4190 = vrot.lane.b32.xlu0 %v3855, 110
    %v4191 = vpop.permute.xlu0 %4190
    %4192 = vrot.lane.b32.xlu0 %v3856, 110
    %v4193 = vpop.permute.xlu0 %4192
    %4194 = vrot.lane.b32.xlu0 %v3857, 110
    %v4195 = vpop.permute.xlu0 %4194
    %v4196 = vsel %vm1184, %v4189, %v4191
    %v4197 = vsel %vm1184, %v4191, %v4193
    %v4198 = vsel %vm1184, %v4193, %v4195
    %v4203 = vsel %vm57, %v4187, 0
    %4205 = vmatprep.subr.mxu0 0.0
    %4206 = vmatpush1.msra.mxu0 0.0
    %4207 = vmatprep.subr.mxu0 0.0
    %4208 = vmatpush1.msra.mxu0 0.0
    %4209 = vmatprep.subr.mxu0 0.0
    %4210 = vmatpush1.msra.mxu0 0.0
    %4211 = vmatprep.subr.mxu0 0.0
    %4212 = vmatpush1.msra.mxu0 0.0
    %4213 = vmatprep.subr.mxu0 0.0
    %4214 = vmatpush1.msra.mxu0 0.0
    %4215 = vmatprep.subr.mxu0 0.0
    %4216 = vmatpush1.msra.mxu0 0.0
    %4217 = vmatprep.subr.mxu0 0.0
    %4218 = vmatpush1.msra.mxu0 0.0
    %4219 = vmatprep.subr.mxu0 0.0
    %4220 = vmatpush1.msra.mxu0 0.0
    %4221 = vmatprep.subr.mxu0 0.0
    %4222 = vmatpush1.msra.mxu0 0.0
    %4223 = vmatprep.subr.mxu0 0.0
    %4224 = vmatpush1.msra.mxu0 0.0
    %4225 = vmatprep.subr.mxu0 0.0
    %4226 = vmatpush1.msra.mxu0 0.0
    %4227 = vmatprep.subr.mxu0 0.0
    %4228 = vmatpush1.msra.mxu0 0.0
    %4229 = vmatprep.subr.mxu0 0.0
    %4230 = vmatpush1.msra.mxu0 0.0
    %4231 = vmatprep.subr.mxu0 0.0
    %4232 = vmatpush1.msra.mxu0 0.0
    %4233 = vmatprep.subr.mxu0 0.0
    %4234 = vmatpush1.msra.mxu0 0.0
    %4235 = vmatprep.subr.mxu0 %v4197
    %4236 = vmatpush1.msra.mxu0 %v4196
    %4237 = vmatprep.subr.mxu0 0.0
    %4238 = vmatpush2.msra.mxu0 0.0
    %4239 = vmatprep.subr.mxu0 0.0
    %4240 = vmatpush2.msra.mxu0 0.0
    %4241 = vmatprep.subr.mxu0 0.0
    %4242 = vmatpush2.msra.mxu0 0.0
    %4243 = vmatprep.subr.mxu0 0.0
    %4244 = vmatpush2.msra.mxu0 0.0
    %4245 = vmatprep.subr.mxu0 0.0
    %4246 = vmatpush2.msra.mxu0 0.0
    %4247 = vmatprep.subr.mxu0 0.0
    %4248 = vmatpush2.msra.mxu0 0.0
    %4249 = vmatprep.subr.mxu0 0.0
    %4250 = vmatpush2.msra.mxu0 0.0
    %4251 = vmatprep.subr.mxu0 0.0
    %4252 = vmatpush2.msra.mxu0 0.0
    %4253 = vmatprep.subr.mxu0 0.0
    %4254 = vmatpush2.msra.mxu0 0.0
    %4255 = vmatprep.subr.mxu0 0.0
    %4256 = vmatpush2.msra.mxu0 0.0
    %4257 = vmatprep.subr.mxu0 0.0
    %4258 = vmatpush2.msra.mxu0 0.0
    %4259 = vmatprep.subr.mxu0 0.0
    %4260 = vmatpush2.msra.mxu0 0.0
    %4261 = vmatprep.subr.mxu0 0.0
    %4262 = vmatpush2.msra.mxu0 0.0
    %4263 = vmatprep.subr.mxu0 0.0
    %4264 = vmatpush2.msra.mxu0 0.0
    %4265 = vmatprep.subr.mxu0 0.0
    %4266 = vmatpush2.msra.mxu0 0.0
    %4267 = vmatprep.subr.mxu0 0.0
    %4268 = vmatpush2.msra.mxu0 0.0
    %4269 = vmatprep.mubr.f32.mxu0 0.0
    %4270 = vmatmul.mubr.f32.gmra.mxu0 %v4203
    %v4271 = vpop.f32.mrf.mxu0
    %v4272 = vadd.f32 0.0, %v4271
    %v4273 = vpop.f32.mrf.mxu0
    %v4274 = vadd.f32 0.0, %v4273
    %4275 = vdwg.mxu0
    %4276 = vmatprep.subr.mxu0 0.0
    %4277 = vmatpush1.msra.mxu0 0.0
    %4278 = vmatprep.subr.mxu0 0.0
    %4279 = vmatpush1.msra.mxu0 0.0
    %4280 = vmatprep.subr.mxu0 0.0
    %4281 = vmatpush1.msra.mxu0 0.0
    %4282 = vmatprep.subr.mxu0 0.0
    %4283 = vmatpush1.msra.mxu0 0.0
    %4284 = vmatprep.subr.mxu0 0.0
    %4285 = vmatpush1.msra.mxu0 0.0
    %4286 = vmatprep.subr.mxu0 0.0
    %4287 = vmatpush1.msra.mxu0 0.0
    %4288 = vmatprep.subr.mxu0 0.0
    %4289 = vmatpush1.msra.mxu0 0.0
    %4290 = vmatprep.subr.mxu0 0.0
    %4291 = vmatpush1.msra.mxu0 0.0
    %4292 = vmatprep.subr.mxu0 0.0
    %4293 = vmatpush1.msra.mxu0 0.0
    %4294 = vmatprep.subr.mxu0 0.0
    %4295 = vmatpush1.msra.mxu0 0.0
    %4296 = vmatprep.subr.mxu0 0.0
    %4297 = vmatpush1.msra.mxu0 0.0
    %4298 = vmatprep.subr.mxu0 0.0
    %4299 = vmatpush1.msra.mxu0 0.0
    %4300 = vmatprep.subr.mxu0 0.0
    %4301 = vmatpush1.msra.mxu0 0.0
    %4302 = vmatprep.subr.mxu0 0.0
    %4303 = vmatpush1.msra.mxu0 0.0
    %4304 = vmatprep.subr.mxu0 0.0
    %4305 = vmatpush1.msra.mxu0 0.0
    %4306 = vmatprep.subr.mxu0 0.0
    %4307 = vmatpush1.msra.mxu0 %v4198
    %4308 = vmatprep.subr.mxu0 0.0
    %4309 = vmatpush2.msra.mxu0 0.0
    %4310 = vmatprep.subr.mxu0 0.0
    %4311 = vmatpush2.msra.mxu0 0.0
    %4312 = vmatprep.subr.mxu0 0.0
    %4313 = vmatpush2.msra.mxu0 0.0
    %4314 = vmatprep.subr.mxu0 0.0
    %4315 = vmatpush2.msra.mxu0 0.0
    %4316 = vmatprep.subr.mxu0 0.0
    %4317 = vmatpush2.msra.mxu0 0.0
    %4318 = vmatprep.subr.mxu0 0.0
    %4319 = vmatpush2.msra.mxu0 0.0
    %4320 = vmatprep.subr.mxu0 0.0
    %4321 = vmatpush2.msra.mxu0 0.0
    %4322 = vmatprep.subr.mxu0 0.0
    %4323 = vmatpush2.msra.mxu0 0.0
    %4324 = vmatprep.subr.mxu0 0.0
    %4325 = vmatpush2.msra.mxu0 0.0
    %4326 = vmatprep.subr.mxu0 0.0
    %4327 = vmatpush2.msra.mxu0 0.0
    %4328 = vmatprep.subr.mxu0 0.0
    %4329 = vmatpush2.msra.mxu0 0.0
    %4330 = vmatprep.subr.mxu0 0.0
    %4331 = vmatpush2.msra.mxu0 0.0
    %4332 = vmatprep.subr.mxu0 0.0
    %4333 = vmatpush2.msra.mxu0 0.0
    %4334 = vmatprep.subr.mxu0 0.0
    %4335 = vmatpush2.msra.mxu0 0.0
    %4336 = vmatprep.subr.mxu0 0.0
    %4337 = vmatpush2.msra.mxu0 0.0
    %4338 = vmatprep.subr.mxu0 0.0
    %4339 = vmatpush2.msra.mxu0 0.0
    %4340 = vmatprep.mubr.f32.mxu0 0.0
    %4341 = vmatmul.mubr.f32.gmra.mxu0 %v4203
    %v4342 = vpop.f32.mrf.mxu0
    %v4343 = vadd.f32 0.0, %v4342
    %v4344 = vpop.f32.mrf.mxu0
    %4345 = vdwg.mxu0
    %v4346 = vadd.f32 %v4183, %v4272
    %v4347 = vadd.f32 %v4184, %v4274
    %v4348 = vadd.f32 %v4185, %v4343
    %s4349 = scalar_lea.vmem %s2, 208
    %v4350 = vld [vmem:[%s4349] sm:$0xff]
    %4351 = vrot.lane.b32.xlu0 %v3854, 109
    %v4352 = vpop.permute.xlu0 %4351
    %4353 = vrot.lane.b32.xlu0 %v3855, 109
    %v4354 = vpop.permute.xlu0 %4353
    %4355 = vrot.lane.b32.xlu0 %v3856, 109
    %v4356 = vpop.permute.xlu0 %4355
    %4357 = vrot.lane.b32.xlu0 %v3857, 109
    %v4358 = vpop.permute.xlu0 %4357
    %v4359 = vsel %vm1348, %v4352, %v4354
    %v4360 = vsel %vm1348, %v4354, %v4356
    %v4361 = vsel %vm1348, %v4356, %v4358
    %v4366 = vsel %vm57, %v4350, 0
    %4368 = vmatprep.subr.mxu0 0.0
    %4369 = vmatpush1.msra.mxu0 0.0
    %4370 = vmatprep.subr.mxu0 0.0
    %4371 = vmatpush1.msra.mxu0 0.0
    %4372 = vmatprep.subr.mxu0 0.0
    %4373 = vmatpush1.msra.mxu0 0.0
    %4374 = vmatprep.subr.mxu0 0.0
    %4375 = vmatpush1.msra.mxu0 0.0
    %4376 = vmatprep.subr.mxu0 0.0
    %4377 = vmatpush1.msra.mxu0 0.0
    %4378 = vmatprep.subr.mxu0 0.0
    %4379 = vmatpush1.msra.mxu0 0.0
    %4380 = vmatprep.subr.mxu0 0.0
    %4381 = vmatpush1.msra.mxu0 0.0
    %4382 = vmatprep.subr.mxu0 0.0
    %4383 = vmatpush1.msra.mxu0 0.0
    %4384 = vmatprep.subr.mxu0 0.0
    %4385 = vmatpush1.msra.mxu0 0.0
    %4386 = vmatprep.subr.mxu0 0.0
    %4387 = vmatpush1.msra.mxu0 0.0
    %4388 = vmatprep.subr.mxu0 0.0
    %4389 = vmatpush1.msra.mxu0 0.0
    %4390 = vmatprep.subr.mxu0 0.0
    %4391 = vmatpush1.msra.mxu0 0.0
    %4392 = vmatprep.subr.mxu0 0.0
    %4393 = vmatpush1.msra.mxu0 0.0
    %4394 = vmatprep.subr.mxu0 0.0
    %4395 = vmatpush1.msra.mxu0 0.0
    %4396 = vmatprep.subr.mxu0 0.0
    %4397 = vmatpush1.msra.mxu0 0.0
    %4398 = vmatprep.subr.mxu0 %v4360
    %4399 = vmatpush1.msra.mxu0 %v4359
    %4400 = vmatprep.subr.mxu0 0.0
    %4401 = vmatpush2.msra.mxu0 0.0
    %4402 = vmatprep.subr.mxu0 0.0
    %4403 = vmatpush2.msra.mxu0 0.0
    %4404 = vmatprep.subr.mxu0 0.0
    %4405 = vmatpush2.msra.mxu0 0.0
    %4406 = vmatprep.subr.mxu0 0.0
    %4407 = vmatpush2.msra.mxu0 0.0
    %4408 = vmatprep.subr.mxu0 0.0
    %4409 = vmatpush2.msra.mxu0 0.0
    %4410 = vmatprep.subr.mxu0 0.0
    %4411 = vmatpush2.msra.mxu0 0.0
    %4412 = vmatprep.subr.mxu0 0.0
    %4413 = vmatpush2.msra.mxu0 0.0
    %4414 = vmatprep.subr.mxu0 0.0
    %4415 = vmatpush2.msra.mxu0 0.0
    %4416 = vmatprep.subr.mxu0 0.0
    %4417 = vmatpush2.msra.mxu0 0.0
    %4418 = vmatprep.subr.mxu0 0.0
    %4419 = vmatpush2.msra.mxu0 0.0
    %4420 = vmatprep.subr.mxu0 0.0
    %4421 = vmatpush2.msra.mxu0 0.0
    %4422 = vmatprep.subr.mxu0 0.0
    %4423 = vmatpush2.msra.mxu0 0.0
    %4424 = vmatprep.subr.mxu0 0.0
    %4425 = vmatpush2.msra.mxu0 0.0
    %4426 = vmatprep.subr.mxu0 0.0
    %4427 = vmatpush2.msra.mxu0 0.0
    %4428 = vmatprep.subr.mxu0 0.0
    %4429 = vmatpush2.msra.mxu0 0.0
    %4430 = vmatprep.subr.mxu0 0.0
    %4431 = vmatpush2.msra.mxu0 0.0
    %4432 = vmatprep.mubr.f32.mxu0 0.0
    %4433 = vmatmul.mubr.f32.gmra.mxu0 %v4366
    %v4434 = vpop.f32.mrf.mxu0
    %v4435 = vadd.f32 0.0, %v4434
    %v4436 = vpop.f32.mrf.mxu0
    %v4437 = vadd.f32 0.0, %v4436
    %4438 = vdwg.mxu0
    %4439 = vmatprep.subr.mxu0 0.0
    %4440 = vmatpush1.msra.mxu0 0.0
    %4441 = vmatprep.subr.mxu0 0.0
    %4442 = vmatpush1.msra.mxu0 0.0
    %4443 = vmatprep.subr.mxu0 0.0
    %4444 = vmatpush1.msra.mxu0 0.0
    %4445 = vmatprep.subr.mxu0 0.0
    %4446 = vmatpush1.msra.mxu0 0.0
    %4447 = vmatprep.subr.mxu0 0.0
    %4448 = vmatpush1.msra.mxu0 0.0
    %4449 = vmatprep.subr.mxu0 0.0
    %4450 = vmatpush1.msra.mxu0 0.0
    %4451 = vmatprep.subr.mxu0 0.0
    %4452 = vmatpush1.msra.mxu0 0.0
    %4453 = vmatprep.subr.mxu0 0.0
    %4454 = vmatpush1.msra.mxu0 0.0
    %4455 = vmatprep.subr.mxu0 0.0
    %4456 = vmatpush1.msra.mxu0 0.0
    %4457 = vmatprep.subr.mxu0 0.0
    %4458 = vmatpush1.msra.mxu0 0.0
    %4459 = vmatprep.subr.mxu0 0.0
    %4460 = vmatpush1.msra.mxu0 0.0
    %4461 = vmatprep.subr.mxu0 0.0
    %4462 = vmatpush1.msra.mxu0 0.0
    %4463 = vmatprep.subr.mxu0 0.0
    %4464 = vmatpush1.msra.mxu0 0.0
    %4465 = vmatprep.subr.mxu0 0.0
    %4466 = vmatpush1.msra.mxu0 0.0
    %4467 = vmatprep.subr.mxu0 0.0
    %4468 = vmatpush1.msra.mxu0 0.0
    %4469 = vmatprep.subr.mxu0 0.0
    %4470 = vmatpush1.msra.mxu0 %v4361
    %4471 = vmatprep.subr.mxu0 0.0
    %4472 = vmatpush2.msra.mxu0 0.0
    %4473 = vmatprep.subr.mxu0 0.0
    %4474 = vmatpush2.msra.mxu0 0.0
    %4475 = vmatprep.subr.mxu0 0.0
    %4476 = vmatpush2.msra.mxu0 0.0
    %4477 = vmatprep.subr.mxu0 0.0
    %4478 = vmatpush2.msra.mxu0 0.0
    %4479 = vmatprep.subr.mxu0 0.0
    %4480 = vmatpush2.msra.mxu0 0.0
    %4481 = vmatprep.subr.mxu0 0.0
    %4482 = vmatpush2.msra.mxu0 0.0
    %4483 = vmatprep.subr.mxu0 0.0
    %4484 = vmatpush2.msra.mxu0 0.0
    %4485 = vmatprep.subr.mxu0 0.0
    %4486 = vmatpush2.msra.mxu0 0.0
    %4487 = vmatprep.subr.mxu0 0.0
    %4488 = vmatpush2.msra.mxu0 0.0
    %4489 = vmatprep.subr.mxu0 0.0
    %4490 = vmatpush2.msra.mxu0 0.0
    %4491 = vmatprep.subr.mxu0 0.0
    %4492 = vmatpush2.msra.mxu0 0.0
    %4493 = vmatprep.subr.mxu0 0.0
    %4494 = vmatpush2.msra.mxu0 0.0
    %4495 = vmatprep.subr.mxu0 0.0
    %4496 = vmatpush2.msra.mxu0 0.0
    %4497 = vmatprep.subr.mxu0 0.0
    %4498 = vmatpush2.msra.mxu0 0.0
    %4499 = vmatprep.subr.mxu0 0.0
    %4500 = vmatpush2.msra.mxu0 0.0
    %4501 = vmatprep.subr.mxu0 0.0
    %4502 = vmatpush2.msra.mxu0 0.0
    %4503 = vmatprep.mubr.f32.mxu0 0.0
    %4504 = vmatmul.mubr.f32.gmra.mxu0 %v4366
    %v4505 = vpop.f32.mrf.mxu0
    %v4506 = vadd.f32 0.0, %v4505
    %v4507 = vpop.f32.mrf.mxu0
    %4508 = vdwg.mxu0
    %v4509 = vadd.f32 %v4346, %v4435
    %v4510 = vadd.f32 %v4347, %v4437
    %v4511 = vadd.f32 %v4348, %v4506
    %4513 = vset.pattern.permute.xlu0 0
    %4514 = vperm.xlu0 %4513, %v3048
    %v4515 = vpop.permute.xlu0 %4514
    %v4517 = vadd.f32 %v4509, %v4515
    %v4518 = vadd.f32 %v4510, %v4515
    %v4519 = vadd.f32 %v4511, %v4515
    %vm4520 = vcmp.ge.f32.partialorder %v4517, 0.0
    %vm4521 = vcmp.ge.f32.partialorder %v4518, 0.0
    %vm4522 = vcmp.ge.f32.partialorder %v4519, 0.0
    %v4523 = vmul.f32 %v4517, 0.01
    %v4524 = vmul.f32 %v4518, 0.01
    %v4525 = vmul.f32 %v4519, 0.01
    %v4526 = vsel %vm4520, %v4517, %v4523
    %v4527 = vsel %vm4521, %v4518, %v4524
    %v4528 = vsel %vm4522, %v4519, %v4525
    %v4529 = vld [vmem:[%s4 + $0x1] sm:$0x7]
    %v4531 = vlaneseq
    %v4532 = vshrl.u32 %v4531, 7
    %v4533 = vsub.s32 0, %v4532
    %v4534 = vrot.slane %v4529, %v4533
    %v4535 = vlaneseq
    %v4536 = vshrl.u32 %v4535, 7
    %v4537 = vsub.s32 1, %v4536
    %v4538 = vrot.slane %v4529, %v4537
    %v4539 = vlaneseq
    %v4540 = vshrl.u32 %v4539, 7
    %v4541 = vsub.s32 2, %v4540
    %v4542 = vrot.slane %v4529, %v4541
    %v4546 = vmul.f32 %v4526, %v4534
    %v4547 = vmul.f32 %v4527, %v4538
    %v4548 = vmul.f32 %v4528, %v4542
    %4549 = vst [vmem:[#allocation2 + $0x8] sm:$0xff] %v4546
    %4550 = vst [vmem:[#allocation2 + $0x10] sm:$0xff] %v4547
    %4551 = vst [vmem:[#allocation2 + $0x18] sm:$0xff] %v4548
    %v4552 = vld [vmem:[%s1 + $0x8] sm:$0xff]
    %v4553 = vld [vmem:[%s1 + $0x10] sm:$0xff]
    %v4554 = vld [vmem:[%s1 + $0x18] sm:$0xff]
    %v4555 = vld [vmem:[#allocation2 + $0x8] sm:$0xff]
    %v4556 = vld [vmem:[#allocation2 + $0x10] sm:$0xff]
    %v4557 = vld [vmem:[#allocation2 + $0x18] sm:$0xff]
    %v4558 = vstv %s25
    %v4559 = vmul.f32 %v4558, %v4552
    %v4560 = vmul.f32 %v4558, %v4553
    %v4561 = vmul.f32 %v4558, %v4554
    %s4562 = ssub.f32 1.0, %s25
    %v4563 = vstv %s4562
    %v4564 = vmul.f32 %v4563, %v4555
    %v4565 = vmul.f32 %v4563, %v4556
    %v4566 = vmul.f32 %v4563, %v4557
    %v4567 = vadd.f32 %v4559, %v4564
    %v4568 = vadd.f32 %v4560, %v4565
    %v4569 = vadd.f32 %v4561, %v4566
    %4570 = vst [vmem:[#allocation5 + $0x8] sm:$0xff] %v4567
    %4571 = vst [vmem:[#allocation5 + $0x10] sm:$0xff] %v4568
    %4572 = vst [vmem:[#allocation5 + $0x18] sm:$0xff] %v4569
    %v4573 = vmul.f32 %v4552, %v4552
    %v4574 = vmul.f32 %v4553, %v4553
    %v4575 = vmul.f32 %v4554, %v4554
    %v4576 = vadd.f32 %v4573, %v4574
    %v4577 = vadd.f32 %v4576, %v4575
    %4578 = vadd.xlane.f32.xlu0 %v4577
    %v4579 = vpop.xlane.xlu0 %4578
    %v4580 = vrot.slane %v4579, 4
    %v4581 = vadd.f32 %v4579, %v4580
    %v4582 = vrot.slane %v4581, 2
    %v4583 = vadd.f32 %v4581, %v4582
    %v4584 = vrot.slane %v4583, 1
    %v4585 = vadd.f32 %v4583, %v4584
    %v4586 = vadd.f32 %v4585, 0.0
    %v4587 = vmul.f32 %v4567, %v4567
    %v4588 = vmul.f32 %v4568, %v4568
    %v4589 = vmul.f32 %v4569, %v4569
    %v4590 = vadd.f32 %v4587, %v4588
    %v4591 = vadd.f32 %v4590, %v4589
    %4592 = vadd.xlane.f32.xlu0 %v4591
    %v4593 = vpop.xlane.xlu0 %4592
    %v4594 = vrot.slane %v4593, 4
    %v4595 = vadd.f32 %v4593, %v4594
    %v4596 = vrot.slane %v4595, 2
    %v4597 = vadd.f32 %v4595, %v4596
    %v4598 = vrot.slane %v4597, 1
    %v4599 = vadd.f32 %v4597, %v4598
    %v4600 = vadd.f32 %v4599, 0.0
    %v4601 = vld [vmem:[%s3] sm:$0xff]
    %v4602 = vld [vmem:[%s2] sm:$0xff]
    %s4603 = scalar_lea.vmem %s1, 40
    %v4604 = vld [vmem:[%s4603] sm:$0xff]
    %v4605 = vld [vmem:[%s4603 + $0x8] sm:$0xff]
    %v4606 = vld [vmem:[%s4603 + $0x10] sm:$0xff]
    %v4607 = vld [vmem:[%s4603 + $0x18] sm:$0xff]
    %v4608 = vld [vmem:[%s36] sm:$0xff]
    %4613 = vrot.lane.b32.xlu0 %v4604, 18
    %v4614 = vpop.permute.xlu0 %4613
    %4615 = vrot.lane.b32.xlu0 %v4605, 18
    %v4616 = vpop.permute.xlu0 %4615
    %4617 = vrot.lane.b32.xlu0 %v4606, 18
    %v4618 = vpop.permute.xlu0 %4617
    %4619 = vrot.lane.b32.xlu0 %v4607, 18
    %v4620 = vpop.permute.xlu0 %4619
    %v4621 = vsel %vm50, %v4614, %v4616
    %v4622 = vsel %vm50, %v4616, %v4618
    %v4623 = vsel %vm50, %v4618, %v4620
    %v4628 = vsel %vm57, %v4608, 0
    %4630 = vmatprep.subr.mxu0 0.0
    %4631 = vmatpush1.msra.mxu0 0.0
    %4632 = vmatprep.subr.mxu0 0.0
    %4633 = vmatpush1.msra.mxu0 0.0
    %4634 = vmatprep.subr.mxu0 0.0
    %4635 = vmatpush1.msra.mxu0 0.0
    %4636 = vmatprep.subr.mxu0 0.0
    %4637 = vmatpush1.msra.mxu0 0.0
    %4638 = vmatprep.subr.mxu0 0.0
    %4639 = vmatpush1.msra.mxu0 0.0
    %4640 = vmatprep.subr.mxu0 0.0
    %4641 = vmatpush1.msra.mxu0 0.0
    %4642 = vmatprep.subr.mxu0 0.0
    %4643 = vmatpush1.msra.mxu0 0.0
    %4644 = vmatprep.subr.mxu0 0.0
    %4645 = vmatpush1.msra.mxu0 0.0
    %4646 = vmatprep.subr.mxu0 0.0
    %4647 = vmatpush1.msra.mxu0 0.0
    %4648 = vmatprep.subr.mxu0 0.0
    %4649 = vmatpush1.msra.mxu0 0.0
    %4650 = vmatprep.subr.mxu0 0.0
    %4651 = vmatpush1.msra.mxu0 0.0
    %4652 = vmatprep.subr.mxu0 0.0
    %4653 = vmatpush1.msra.mxu0 0.0
    %4654 = vmatprep.subr.mxu0 0.0
    %4655 = vmatpush1.msra.mxu0 0.0
    %4656 = vmatprep.subr.mxu0 0.0
    %4657 = vmatpush1.msra.mxu0 0.0
    %4658 = vmatprep.subr.mxu0 0.0
    %4659 = vmatpush1.msra.mxu0 0.0
    %4660 = vmatprep.subr.mxu0 %v4622
    %4661 = vmatpush1.msra.mxu0 %v4621
    %4662 = vmatprep.subr.mxu0 0.0
    %4663 = vmatpush2.msra.mxu0 0.0
    %4664 = vmatprep.subr.mxu0 0.0
    %4665 = vmatpush2.msra.mxu0 0.0
    %4666 = vmatprep.subr.mxu0 0.0
    %4667 = vmatpush2.msra.mxu0 0.0
    %4668 = vmatprep.subr.mxu0 0.0
    %4669 = vmatpush2.msra.mxu0 0.0
    %4670 = vmatprep.subr.mxu0 0.0
    %4671 = vmatpush2.msra.mxu0 0.0
    %4672 = vmatprep.subr.mxu0 0.0
    %4673 = vmatpush2.msra.mxu0 0.0
    %4674 = vmatprep.subr.mxu0 0.0
    %4675 = vmatpush2.msra.mxu0 0.0
    %4676 = vmatprep.subr.mxu0 0.0
    %4677 = vmatpush2.msra.mxu0 0.0
    %4678 = vmatprep.subr.mxu0 0.0
    %4679 = vmatpush2.msra.mxu0 0.0
    %4680 = vmatprep.subr.mxu0 0.0
    %4681 = vmatpush2.msra.mxu0 0.0
    %4682 = vmatprep.subr.mxu0 0.0
    %4683 = vmatpush2.msra.mxu0 0.0
    %4684 = vmatprep.subr.mxu0 0.0
    %4685 = vmatpush2.msra.mxu0 0.0
    %4686 = vmatprep.subr.mxu0 0.0
    %4687 = vmatpush2.msra.mxu0 0.0
    %4688 = vmatprep.subr.mxu0 0.0
    %4689 = vmatpush2.msra.mxu0 0.0
    %4690 = vmatprep.subr.mxu0 0.0
    %4691 = vmatpush2.msra.mxu0 0.0
    %4692 = vmatprep.subr.mxu0 0.0
    %4693 = vmatpush2.msra.mxu0 0.0
    %4694 = vmatprep.mubr.f32.mxu0 0.0
    %4695 = vmatmul.mubr.f32.gmra.mxu0 %v4628
    %v4696 = vpop.f32.mrf.mxu0
    %v4697 = vadd.f32 0.0, %v4696
    %v4698 = vpop.f32.mrf.mxu0
    %v4699 = vadd.f32 0.0, %v4698
    %4700 = vdwg.mxu0
    %4701 = vmatprep.subr.mxu0 0.0
    %4702 = vmatpush1.msra.mxu0 0.0
    %4703 = vmatprep.subr.mxu0 0.0
    %4704 = vmatpush1.msra.mxu0 0.0
    %4705 = vmatprep.subr.mxu0 0.0
    %4706 = vmatpush1.msra.mxu0 0.0
    %4707 = vmatprep.subr.mxu0 0.0
    %4708 = vmatpush1.msra.mxu0 0.0
    %4709 = vmatprep.subr.mxu0 0.0
    %4710 = vmatpush1.msra.mxu0 0.0
    %4711 = vmatprep.subr.mxu0 0.0
    %4712 = vmatpush1.msra.mxu0 0.0
    %4713 = vmatprep.subr.mxu0 0.0
    %4714 = vmatpush1.msra.mxu0 0.0
    %4715 = vmatprep.subr.mxu0 0.0
    %4716 = vmatpush1.msra.mxu0 0.0
    %4717 = vmatprep.subr.mxu0 0.0
    %4718 = vmatpush1.msra.mxu0 0.0
    %4719 = vmatprep.subr.mxu0 0.0
    %4720 = vmatpush1.msra.mxu0 0.0
    %4721 = vmatprep.subr.mxu0 0.0
    %4722 = vmatpush1.msra.mxu0 0.0
    %4723 = vmatprep.subr.mxu0 0.0
    %4724 = vmatpush1.msra.mxu0 0.0
    %4725 = vmatprep.subr.mxu0 0.0
    %4726 = vmatpush1.msra.mxu0 0.0
    %4727 = vmatprep.subr.mxu0 0.0
    %4728 = vmatpush1.msra.mxu0 0.0
    %4729 = vmatprep.subr.mxu0 0.0
    %4730 = vmatpush1.msra.mxu0 0.0
    %4731 = vmatprep.subr.mxu0 0.0
    %4732 = vmatpush1.msra.mxu0 %v4623
    %4733 = vmatprep.subr.mxu0 0.0
    %4734 = vmatpush2.msra.mxu0 0.0
    %4735 = vmatprep.subr.mxu0 0.0
    %4736 = vmatpush2.msra.mxu0 0.0
    %4737 = vmatprep.subr.mxu0 0.0
    %4738 = vmatpush2.msra.mxu0 0.0
    %4739 = vmatprep.subr.mxu0 0.0
    %4740 = vmatpush2.msra.mxu0 0.0
    %4741 = vmatprep.subr.mxu0 0.0
    %4742 = vmatpush2.msra.mxu0 0.0
    %4743 = vmatprep.subr.mxu0 0.0
    %4744 = vmatpush2.msra.mxu0 0.0
    %4745 = vmatprep.subr.mxu0 0.0
    %4746 = vmatpush2.msra.mxu0 0.0
    %4747 = vmatprep.subr.mxu0 0.0
    %4748 = vmatpush2.msra.mxu0 0.0
    %4749 = vmatprep.subr.mxu0 0.0
    %4750 = vmatpush2.msra.mxu0 0.0
    %4751 = vmatprep.subr.mxu0 0.0
    %4752 = vmatpush2.msra.mxu0 0.0
    %4753 = vmatprep.subr.mxu0 0.0
    %4754 = vmatpush2.msra.mxu0 0.0
    %4755 = vmatprep.subr.mxu0 0.0
    %4756 = vmatpush2.msra.mxu0 0.0
    %4757 = vmatprep.subr.mxu0 0.0
    %4758 = vmatpush2.msra.mxu0 0.0
    %4759 = vmatprep.subr.mxu0 0.0
    %4760 = vmatpush2.msra.mxu0 0.0
    %4761 = vmatprep.subr.mxu0 0.0
    %4762 = vmatpush2.msra.mxu0 0.0
    %4763 = vmatprep.subr.mxu0 0.0
    %4764 = vmatpush2.msra.mxu0 0.0
    %4765 = vmatprep.mubr.f32.mxu0 0.0
    %4766 = vmatmul.mubr.f32.gmra.mxu0 %v4628
    %v4767 = vpop.f32.mrf.mxu0
    %v4768 = vadd.f32 0.0, %v4767
    %v4769 = vpop.f32.mrf.mxu0
    %4770 = vdwg.mxu0
    %4771 = vrot.lane.b32.xlu0 %v4604, 19
    %v4772 = vpop.permute.xlu0 %4771
    %4773 = vrot.lane.b32.xlu0 %v4605, 19
    %v4774 = vpop.permute.xlu0 %4773
    %4775 = vrot.lane.b32.xlu0 %v4606, 19
    %v4776 = vpop.permute.xlu0 %4775
    %4777 = vrot.lane.b32.xlu0 %v4607, 19
    %v4778 = vpop.permute.xlu0 %4777
    %v4779 = vsel %vm210, %v4772, %v4774
    %v4780 = vsel %vm210, %v4774, %v4776
    %v4781 = vsel %vm210, %v4776, %v4778
    %v4786 = vsel %vm57, %v4602, 0
    %4788 = vmatprep.subr.mxu0 0.0
    %4789 = vmatpush1.msra.mxu0 0.0
    %4790 = vmatprep.subr.mxu0 0.0
    %4791 = vmatpush1.msra.mxu0 0.0
    %4792 = vmatprep.subr.mxu0 0.0
    %4793 = vmatpush1.msra.mxu0 0.0
    %4794 = vmatprep.subr.mxu0 0.0
    %4795 = vmatpush1.msra.mxu0 0.0
    %4796 = vmatprep.subr.mxu0 0.0
    %4797 = vmatpush1.msra.mxu0 0.0
    %4798 = vmatprep.subr.mxu0 0.0
    %4799 = vmatpush1.msra.mxu0 0.0
    %4800 = vmatprep.subr.mxu0 0.0
    %4801 = vmatpush1.msra.mxu0 0.0
    %4802 = vmatprep.subr.mxu0 0.0
    %4803 = vmatpush1.msra.mxu0 0.0
    %4804 = vmatprep.subr.mxu0 0.0
    %4805 = vmatpush1.msra.mxu0 0.0
    %4806 = vmatprep.subr.mxu0 0.0
    %4807 = vmatpush1.msra.mxu0 0.0
    %4808 = vmatprep.subr.mxu0 0.0
    %4809 = vmatpush1.msra.mxu0 0.0
    %4810 = vmatprep.subr.mxu0 0.0
    %4811 = vmatpush1.msra.mxu0 0.0
    %4812 = vmatprep.subr.mxu0 0.0
    %4813 = vmatpush1.msra.mxu0 0.0
    %4814 = vmatprep.subr.mxu0 0.0
    %4815 = vmatpush1.msra.mxu0 0.0
    %4816 = vmatprep.subr.mxu0 0.0
    %4817 = vmatpush1.msra.mxu0 0.0
    %4818 = vmatprep.subr.mxu0 %v4780
    %4819 = vmatpush1.msra.mxu0 %v4779
    %4820 = vmatprep.subr.mxu0 0.0
    %4821 = vmatpush2.msra.mxu0 0.0
    %4822 = vmatprep.subr.mxu0 0.0
    %4823 = vmatpush2.msra.mxu0 0.0
    %4824 = vmatprep.subr.mxu0 0.0
    %4825 = vmatpush2.msra.mxu0 0.0
    %4826 = vmatprep.subr.mxu0 0.0
    %4827 = vmatpush2.msra.mxu0 0.0
    %4828 = vmatprep.subr.mxu0 0.0
    %4829 = vmatpush2.msra.mxu0 0.0
    %4830 = vmatprep.subr.mxu0 0.0
    %4831 = vmatpush2.msra.mxu0 0.0
    %4832 = vmatprep.subr.mxu0 0.0
    %4833 = vmatpush2.msra.mxu0 0.0
    %4834 = vmatprep.subr.mxu0 0.0
    %4835 = vmatpush2.msra.mxu0 0.0
    %4836 = vmatprep.subr.mxu0 0.0
    %4837 = vmatpush2.msra.mxu0 0.0
    %4838 = vmatprep.subr.mxu0 0.0
    %4839 = vmatpush2.msra.mxu0 0.0
    %4840 = vmatprep.subr.mxu0 0.0
    %4841 = vmatpush2.msra.mxu0 0.0
    %4842 = vmatprep.subr.mxu0 0.0
    %4843 = vmatpush2.msra.mxu0 0.0
    %4844 = vmatprep.subr.mxu0 0.0
    %4845 = vmatpush2.msra.mxu0 0.0
    %4846 = vmatprep.subr.mxu0 0.0
    %4847 = vmatpush2.msra.mxu0 0.0
    %4848 = vmatprep.subr.mxu0 0.0
    %4849 = vmatpush2.msra.mxu0 0.0
    %4850 = vmatprep.subr.mxu0 0.0
    %4851 = vmatpush2.msra.mxu0 0.0
    %4852 = vmatprep.mubr.f32.mxu0 0.0
    %4853 = vmatmul.mubr.f32.gmra.mxu0 %v4786
    %v4854 = vpop.f32.mrf.mxu0
    %v4855 = vadd.f32 %v4697, %v4854
    %v4856 = vpop.f32.mrf.mxu0
    %v4857 = vadd.f32 %v4699, %v4856
    %4858 = vdwg.mxu0
    %4859 = vmatprep.subr.mxu0 0.0
    %4860 = vmatpush1.msra.mxu0 0.0
    %4861 = vmatprep.subr.mxu0 0.0
    %4862 = vmatpush1.msra.mxu0 0.0
    %4863 = vmatprep.subr.mxu0 0.0
    %4864 = vmatpush1.msra.mxu0 0.0
    %4865 = vmatprep.subr.mxu0 0.0
    %4866 = vmatpush1.msra.mxu0 0.0
    %4867 = vmatprep.subr.mxu0 0.0
    %4868 = vmatpush1.msra.mxu0 0.0
    %4869 = vmatprep.subr.mxu0 0.0
    %4870 = vmatpush1.msra.mxu0 0.0
    %4871 = vmatprep.subr.mxu0 0.0
    %4872 = vmatpush1.msra.mxu0 0.0
    %4873 = vmatprep.subr.mxu0 0.0
    %4874 = vmatpush1.msra.mxu0 0.0
    %4875 = vmatprep.subr.mxu0 0.0
    %4876 = vmatpush1.msra.mxu0 0.0
    %4877 = vmatprep.subr.mxu0 0.0
    %4878 = vmatpush1.msra.mxu0 0.0
    %4879 = vmatprep.subr.mxu0 0.0
    %4880 = vmatpush1.msra.mxu0 0.0
    %4881 = vmatprep.subr.mxu0 0.0
    %4882 = vmatpush1.msra.mxu0 0.0
    %4883 = vmatprep.subr.mxu0 0.0
    %4884 = vmatpush1.msra.mxu0 0.0
    %4885 = vmatprep.subr.mxu0 0.0
    %4886 = vmatpush1.msra.mxu0 0.0
    %4887 = vmatprep.subr.mxu0 0.0
    %4888 = vmatpush1.msra.mxu0 0.0
    %4889 = vmatprep.subr.mxu0 0.0
    %4890 = vmatpush1.msra.mxu0 %v4781
    %4891 = vmatprep.subr.mxu0 0.0
    %4892 = vmatpush2.msra.mxu0 0.0
    %4893 = vmatprep.subr.mxu0 0.0
    %4894 = vmatpush2.msra.mxu0 0.0
    %4895 = vmatprep.subr.mxu0 0.0
    %4896 = vmatpush2.msra.mxu0 0.0
    %4897 = vmatprep.subr.mxu0 0.0
    %4898 = vmatpush2.msra.mxu0 0.0
    %4899 = vmatprep.subr.mxu0 0.0
    %4900 = vmatpush2.msra.mxu0 0.0
    %4901 = vmatprep.subr.mxu0 0.0
    %4902 = vmatpush2.msra.mxu0 0.0
    %4903 = vmatprep.subr.mxu0 0.0
    %4904 = vmatpush2.msra.mxu0 0.0
    %4905 = vmatprep.subr.mxu0 0.0
    %4906 = vmatpush2.msra.mxu0 0.0
    %4907 = vmatprep.subr.mxu0 0.0
    %4908 = vmatpush2.msra.mxu0 0.0
    %4909 = vmatprep.subr.mxu0 0.0
    %4910 = vmatpush2.msra.mxu0 0.0
    %4911 = vmatprep.subr.mxu0 0.0
    %4912 = vmatpush2.msra.mxu0 0.0
    %4913 = vmatprep.subr.mxu0 0.0
    %4914 = vmatpush2.msra.mxu0 0.0
    %4915 = vmatprep.subr.mxu0 0.0
    %4916 = vmatpush2.msra.mxu0 0.0
    %4917 = vmatprep.subr.mxu0 0.0
    %4918 = vmatpush2.msra.mxu0 0.0
    %4919 = vmatprep.subr.mxu0 0.0
    %4920 = vmatpush2.msra.mxu0 0.0
    %4921 = vmatprep.subr.mxu0 0.0
    %4922 = vmatpush2.msra.mxu0 0.0
    %4923 = vmatprep.mubr.f32.mxu0 0.0
    %4924 = vmatmul.mubr.f32.gmra.mxu0 %v4786
    %v4925 = vpop.f32.mrf.mxu0
    %v4926 = vadd.f32 %v4768, %v4925
    %v4927 = vpop.f32.mrf.mxu0
    %4928 = vdwg.mxu0
    %v4929 = vld [vmem:[%s361] sm:$0xff]
    %4930 = vrot.lane.b32.xlu0 %v4604, 17
    %v4931 = vpop.permute.xlu0 %4930
    %4932 = vrot.lane.b32.xlu0 %v4605, 17
    %v4933 = vpop.permute.xlu0 %4932
    %4934 = vrot.lane.b32.xlu0 %v4606, 17
    %v4935 = vpop.permute.xlu0 %4934
    %4936 = vrot.lane.b32.xlu0 %v4607, 17
    %v4937 = vpop.permute.xlu0 %4936
    %v4938 = vsel %vm371, %v4931, %v4933
    %v4939 = vsel %vm371, %v4933, %v4935
    %v4940 = vsel %vm371, %v4935, %v4937
    %v4945 = vsel %vm57, %v4929, 0
    %4947 = vmatprep.subr.mxu0 0.0
    %4948 = vmatpush1.msra.mxu0 0.0
    %4949 = vmatprep.subr.mxu0 0.0
    %4950 = vmatpush1.msra.mxu0 0.0
    %4951 = vmatprep.subr.mxu0 0.0
    %4952 = vmatpush1.msra.mxu0 0.0
    %4953 = vmatprep.subr.mxu0 0.0
    %4954 = vmatpush1.msra.mxu0 0.0
    %4955 = vmatprep.subr.mxu0 0.0
    %4956 = vmatpush1.msra.mxu0 0.0
    %4957 = vmatprep.subr.mxu0 0.0
    %4958 = vmatpush1.msra.mxu0 0.0
    %4959 = vmatprep.subr.mxu0 0.0
    %4960 = vmatpush1.msra.mxu0 0.0
    %4961 = vmatprep.subr.mxu0 0.0
    %4962 = vmatpush1.msra.mxu0 0.0
    %4963 = vmatprep.subr.mxu0 0.0
    %4964 = vmatpush1.msra.mxu0 0.0
    %4965 = vmatprep.subr.mxu0 0.0
    %4966 = vmatpush1.msra.mxu0 0.0
    %4967 = vmatprep.subr.mxu0 0.0
    %4968 = vmatpush1.msra.mxu0 0.0
    %4969 = vmatprep.subr.mxu0 0.0
    %4970 = vmatpush1.msra.mxu0 0.0
    %4971 = vmatprep.subr.mxu0 0.0
    %4972 = vmatpush1.msra.mxu0 0.0
    %4973 = vmatprep.subr.mxu0 0.0
    %4974 = vmatpush1.msra.mxu0 0.0
    %4975 = vmatprep.subr.mxu0 0.0
    %4976 = vmatpush1.msra.mxu0 0.0
    %4977 = vmatprep.subr.mxu0 %v4939
    %4978 = vmatpush1.msra.mxu0 %v4938
    %4979 = vmatprep.subr.mxu0 0.0
    %4980 = vmatpush2.msra.mxu0 0.0
    %4981 = vmatprep.subr.mxu0 0.0
    %4982 = vmatpush2.msra.mxu0 0.0
    %4983 = vmatprep.subr.mxu0 0.0
    %4984 = vmatpush2.msra.mxu0 0.0
    %4985 = vmatprep.subr.mxu0 0.0
    %4986 = vmatpush2.msra.mxu0 0.0
    %4987 = vmatprep.subr.mxu0 0.0
    %4988 = vmatpush2.msra.mxu0 0.0
    %4989 = vmatprep.subr.mxu0 0.0
    %4990 = vmatpush2.msra.mxu0 0.0
    %4991 = vmatprep.subr.mxu0 0.0
    %4992 = vmatpush2.msra.mxu0 0.0
    %4993 = vmatprep.subr.mxu0 0.0
    %4994 = vmatpush2.msra.mxu0 0.0
    %4995 = vmatprep.subr.mxu0 0.0
    %4996 = vmatpush2.msra.mxu0 0.0
    %4997 = vmatprep.subr.mxu0 0.0
    %4998 = vmatpush2.msra.mxu0 0.0
    %4999 = vmatprep.subr.mxu0 0.0
    %5000 = vmatpush2.msra.mxu0 0.0
    %5001 = vmatprep.subr.mxu0 0.0
    %5002 = vmatpush2.msra.mxu0 0.0
    %5003 = vmatprep.subr.mxu0 0.0
    %5004 = vmatpush2.msra.mxu0 0.0
    %5005 = vmatprep.subr.mxu0 0.0
    %5006 = vmatpush2.msra.mxu0 0.0
    %5007 = vmatprep.subr.mxu0 0.0
    %5008 = vmatpush2.msra.mxu0 0.0
    %5009 = vmatprep.subr.mxu0 0.0
    %5010 = vmatpush2.msra.mxu0 0.0
    %5011 = vmatprep.mubr.f32.mxu0 0.0
    %5012 = vmatmul.mubr.f32.gmra.mxu0 %v4945
    %v5013 = vpop.f32.mrf.mxu0
    %v5014 = vadd.f32 0.0, %v5013
    %v5015 = vpop.f32.mrf.mxu0
    %v5016 = vadd.f32 0.0, %v5015
    %5017 = vdwg.mxu0
    %5018 = vmatprep.subr.mxu0 0.0
    %5019 = vmatpush1.msra.mxu0 0.0
    %5020 = vmatprep.subr.mxu0 0.0
    %5021 = vmatpush1.msra.mxu0 0.0
    %5022 = vmatprep.subr.mxu0 0.0
    %5023 = vmatpush1.msra.mxu0 0.0
    %5024 = vmatprep.subr.mxu0 0.0
    %5025 = vmatpush1.msra.mxu0 0.0
    %5026 = vmatprep.subr.mxu0 0.0
    %5027 = vmatpush1.msra.mxu0 0.0
    %5028 = vmatprep.subr.mxu0 0.0
    %5029 = vmatpush1.msra.mxu0 0.0
    %5030 = vmatprep.subr.mxu0 0.0
    %5031 = vmatpush1.msra.mxu0 0.0
    %5032 = vmatprep.subr.mxu0 0.0
    %5033 = vmatpush1.msra.mxu0 0.0
    %5034 = vmatprep.subr.mxu0 0.0
    %5035 = vmatpush1.msra.mxu0 0.0
    %5036 = vmatprep.subr.mxu0 0.0
    %5037 = vmatpush1.msra.mxu0 0.0
    %5038 = vmatprep.subr.mxu0 0.0
    %5039 = vmatpush1.msra.mxu0 0.0
    %5040 = vmatprep.subr.mxu0 0.0
    %5041 = vmatpush1.msra.mxu0 0.0
    %5042 = vmatprep.subr.mxu0 0.0
    %5043 = vmatpush1.msra.mxu0 0.0
    %5044 = vmatprep.subr.mxu0 0.0
    %5045 = vmatpush1.msra.mxu0 0.0
    %5046 = vmatprep.subr.mxu0 0.0
    %5047 = vmatpush1.msra.mxu0 0.0
    %5048 = vmatprep.subr.mxu0 0.0
    %5049 = vmatpush1.msra.mxu0 %v4940
    %5050 = vmatprep.subr.mxu0 0.0
    %5051 = vmatpush2.msra.mxu0 0.0
    %5052 = vmatprep.subr.mxu0 0.0
    %5053 = vmatpush2.msra.mxu0 0.0
    %5054 = vmatprep.subr.mxu0 0.0
    %5055 = vmatpush2.msra.mxu0 0.0
    %5056 = vmatprep.subr.mxu0 0.0
    %5057 = vmatpush2.msra.mxu0 0.0
    %5058 = vmatprep.subr.mxu0 0.0
    %5059 = vmatpush2.msra.mxu0 0.0
    %5060 = vmatprep.subr.mxu0 0.0
    %5061 = vmatpush2.msra.mxu0 0.0
    %5062 = vmatprep.subr.mxu0 0.0
    %5063 = vmatpush2.msra.mxu0 0.0
    %5064 = vmatprep.subr.mxu0 0.0
    %5065 = vmatpush2.msra.mxu0 0.0
    %5066 = vmatprep.subr.mxu0 0.0
    %5067 = vmatpush2.msra.mxu0 0.0
    %5068 = vmatprep.subr.mxu0 0.0
    %5069 = vmatpush2.msra.mxu0 0.0
    %5070 = vmatprep.subr.mxu0 0.0
    %5071 = vmatpush2.msra.mxu0 0.0
    %5072 = vmatprep.subr.mxu0 0.0
    %5073 = vmatpush2.msra.mxu0 0.0
    %5074 = vmatprep.subr.mxu0 0.0
    %5075 = vmatpush2.msra.mxu0 0.0
    %5076 = vmatprep.subr.mxu0 0.0
    %5077 = vmatpush2.msra.mxu0 0.0
    %5078 = vmatprep.subr.mxu0 0.0
    %5079 = vmatpush2.msra.mxu0 0.0
    %5080 = vmatprep.subr.mxu0 0.0
    %5081 = vmatpush2.msra.mxu0 0.0
    %5082 = vmatprep.mubr.f32.mxu0 0.0
    %5083 = vmatmul.mubr.f32.gmra.mxu0 %v4945
    %v5084 = vpop.f32.mrf.mxu0
    %v5085 = vadd.f32 0.0, %v5084
    %v5086 = vpop.f32.mrf.mxu0
    %5087 = vdwg.mxu0
    %v5088 = vadd.f32 %v4855, %v5014
    %v5089 = vadd.f32 %v4857, %v5016
    %v5090 = vadd.f32 %v4926, %v5085
    %v5091 = vld [vmem:[%s525] sm:$0xff]
    %5092 = vrot.lane.b32.xlu0 %v4604, 1
    %v5093 = vpop.permute.xlu0 %5092
    %5094 = vrot.lane.b32.xlu0 %v4605, 1
    %v5095 = vpop.permute.xlu0 %5094
    %5096 = vrot.lane.b32.xlu0 %v4606, 1
    %v5097 = vpop.permute.xlu0 %5096
    %5098 = vrot.lane.b32.xlu0 %v4607, 1
    %v5099 = vpop.permute.xlu0 %5098
    %v5100 = vsel %vm535, %v5093, %v5095
    %v5101 = vsel %vm535, %v5095, %v5097
    %v5102 = vsel %vm535, %v5097, %v5099
    %v5107 = vsel %vm57, %v5091, 0
    %5109 = vmatprep.subr.mxu0 0.0
    %5110 = vmatpush1.msra.mxu0 0.0
    %5111 = vmatprep.subr.mxu0 0.0
    %5112 = vmatpush1.msra.mxu0 0.0
    %5113 = vmatprep.subr.mxu0 0.0
    %5114 = vmatpush1.msra.mxu0 0.0
    %5115 = vmatprep.subr.mxu0 0.0
    %5116 = vmatpush1.msra.mxu0 0.0
    %5117 = vmatprep.subr.mxu0 0.0
    %5118 = vmatpush1.msra.mxu0 0.0
    %5119 = vmatprep.subr.mxu0 0.0
    %5120 = vmatpush1.msra.mxu0 0.0
    %5121 = vmatprep.subr.mxu0 0.0
    %5122 = vmatpush1.msra.mxu0 0.0
    %5123 = vmatprep.subr.mxu0 0.0
    %5124 = vmatpush1.msra.mxu0 0.0
    %5125 = vmatprep.subr.mxu0 0.0
    %5126 = vmatpush1.msra.mxu0 0.0
    %5127 = vmatprep.subr.mxu0 0.0
    %5128 = vmatpush1.msra.mxu0 0.0
    %5129 = vmatprep.subr.mxu0 0.0
    %5130 = vmatpush1.msra.mxu0 0.0
    %5131 = vmatprep.subr.mxu0 0.0
    %5132 = vmatpush1.msra.mxu0 0.0
    %5133 = vmatprep.subr.mxu0 0.0
    %5134 = vmatpush1.msra.mxu0 0.0
    %5135 = vmatprep.subr.mxu0 0.0
    %5136 = vmatpush1.msra.mxu0 0.0
    %5137 = vmatprep.subr.mxu0 0.0
    %5138 = vmatpush1.msra.mxu0 0.0
    %5139 = vmatprep.subr.mxu0 %v5101
    %5140 = vmatpush1.msra.mxu0 %v5100
    %5141 = vmatprep.subr.mxu0 0.0
    %5142 = vmatpush2.msra.mxu0 0.0
    %5143 = vmatprep.subr.mxu0 0.0
    %5144 = vmatpush2.msra.mxu0 0.0
    %5145 = vmatprep.subr.mxu0 0.0
    %5146 = vmatpush2.msra.mxu0 0.0
    %5147 = vmatprep.subr.mxu0 0.0
    %5148 = vmatpush2.msra.mxu0 0.0
    %5149 = vmatprep.subr.mxu0 0.0
    %5150 = vmatpush2.msra.mxu0 0.0
    %5151 = vmatprep.subr.mxu0 0.0
    %5152 = vmatpush2.msra.mxu0 0.0
    %5153 = vmatprep.subr.mxu0 0.0
    %5154 = vmatpush2.msra.mxu0 0.0
    %5155 = vmatprep.subr.mxu0 0.0
    %5156 = vmatpush2.msra.mxu0 0.0
    %5157 = vmatprep.subr.mxu0 0.0
    %5158 = vmatpush2.msra.mxu0 0.0
    %5159 = vmatprep.subr.mxu0 0.0
    %5160 = vmatpush2.msra.mxu0 0.0
    %5161 = vmatprep.subr.mxu0 0.0
    %5162 = vmatpush2.msra.mxu0 0.0
    %5163 = vmatprep.subr.mxu0 0.0
    %5164 = vmatpush2.msra.mxu0 0.0
    %5165 = vmatprep.subr.mxu0 0.0
    %5166 = vmatpush2.msra.mxu0 0.0
    %5167 = vmatprep.subr.mxu0 0.0
    %5168 = vmatpush2.msra.mxu0 0.0
    %5169 = vmatprep.subr.mxu0 0.0
    %5170 = vmatpush2.msra.mxu0 0.0
    %5171 = vmatprep.subr.mxu0 0.0
    %5172 = vmatpush2.msra.mxu0 0.0
    %5173 = vmatprep.mubr.f32.mxu0 0.0
    %5174 = vmatmul.mubr.f32.gmra.mxu0 %v5107
    %v5175 = vpop.f32.mrf.mxu0
    %v5176 = vadd.f32 0.0, %v5175
    %v5177 = vpop.f32.mrf.mxu0
    %v5178 = vadd.f32 0.0, %v5177
    %5179 = vdwg.mxu0
    %5180 = vmatprep.subr.mxu0 0.0
    %5181 = vmatpush1.msra.mxu0 0.0
    %5182 = vmatprep.subr.mxu0 0.0
    %5183 = vmatpush1.msra.mxu0 0.0
    %5184 = vmatprep.subr.mxu0 0.0
    %5185 = vmatpush1.msra.mxu0 0.0
    %5186 = vmatprep.subr.mxu0 0.0
    %5187 = vmatpush1.msra.mxu0 0.0
    %5188 = vmatprep.subr.mxu0 0.0
    %5189 = vmatpush1.msra.mxu0 0.0
    %5190 = vmatprep.subr.mxu0 0.0
    %5191 = vmatpush1.msra.mxu0 0.0
    %5192 = vmatprep.subr.mxu0 0.0
    %5193 = vmatpush1.msra.mxu0 0.0
    %5194 = vmatprep.subr.mxu0 0.0
    %5195 = vmatpush1.msra.mxu0 0.0
    %5196 = vmatprep.subr.mxu0 0.0
    %5197 = vmatpush1.msra.mxu0 0.0
    %5198 = vmatprep.subr.mxu0 0.0
    %5199 = vmatpush1.msra.mxu0 0.0
    %5200 = vmatprep.subr.mxu0 0.0
    %5201 = vmatpush1.msra.mxu0 0.0
    %5202 = vmatprep.subr.mxu0 0.0
    %5203 = vmatpush1.msra.mxu0 0.0
    %5204 = vmatprep.subr.mxu0 0.0
    %5205 = vmatpush1.msra.mxu0 0.0
    %5206 = vmatprep.subr.mxu0 0.0
    %5207 = vmatpush1.msra.mxu0 0.0
    %5208 = vmatprep.subr.mxu0 0.0
    %5209 = vmatpush1.msra.mxu0 0.0
    %5210 = vmatprep.subr.mxu0 0.0
    %5211 = vmatpush1.msra.mxu0 %v5102
    %5212 = vmatprep.subr.mxu0 0.0
    %5213 = vmatpush2.msra.mxu0 0.0
    %5214 = vmatprep.subr.mxu0 0.0
    %5215 = vmatpush2.msra.mxu0 0.0
    %5216 = vmatprep.subr.mxu0 0.0
    %5217 = vmatpush2.msra.mxu0 0.0
    %5218 = vmatprep.subr.mxu0 0.0
    %5219 = vmatpush2.msra.mxu0 0.0
    %5220 = vmatprep.subr.mxu0 0.0
    %5221 = vmatpush2.msra.mxu0 0.0
    %5222 = vmatprep.subr.mxu0 0.0
    %5223 = vmatpush2.msra.mxu0 0.0
    %5224 = vmatprep.subr.mxu0 0.0
    %5225 = vmatpush2.msra.mxu0 0.0
    %5226 = vmatprep.subr.mxu0 0.0
    %5227 = vmatpush2.msra.mxu0 0.0
    %5228 = vmatprep.subr.mxu0 0.0
    %5229 = vmatpush2.msra.mxu0 0.0
    %5230 = vmatprep.subr.mxu0 0.0
    %5231 = vmatpush2.msra.mxu0 0.0
    %5232 = vmatprep.subr.mxu0 0.0
    %5233 = vmatpush2.msra.mxu0 0.0
    %5234 = vmatprep.subr.mxu0 0.0
    %5235 = vmatpush2.msra.mxu0 0.0
    %5236 = vmatprep.subr.mxu0 0.0
    %5237 = vmatpush2.msra.mxu0 0.0
    %5238 = vmatprep.subr.mxu0 0.0
    %5239 = vmatpush2.msra.mxu0 0.0
    %5240 = vmatprep.subr.mxu0 0.0
    %5241 = vmatpush2.msra.mxu0 0.0
    %5242 = vmatprep.subr.mxu0 0.0
    %5243 = vmatpush2.msra.mxu0 0.0
    %5244 = vmatprep.mubr.f32.mxu0 0.0
    %5245 = vmatmul.mubr.f32.gmra.mxu0 %v5107
    %v5246 = vpop.f32.mrf.mxu0
    %v5247 = vadd.f32 0.0, %v5246
    %v5248 = vpop.f32.mrf.mxu0
    %5249 = vdwg.mxu0
    %v5250 = vadd.f32 %v5088, %v5176
    %v5251 = vadd.f32 %v5089, %v5178
    %v5252 = vadd.f32 %v5090, %v5247
    %v5253 = vld [vmem:[%s689] sm:$0xff]
    %v5255 = vsel %vm57, %v5253, 0
    %5257 = vmatprep.subr.mxu0 0.0
    %5258 = vmatpush1.msra.mxu0 0.0
    %5259 = vmatprep.subr.mxu0 0.0
    %5260 = vmatpush1.msra.mxu0 0.0
    %5261 = vmatprep.subr.mxu0 0.0
    %5262 = vmatpush1.msra.mxu0 0.0
    %5263 = vmatprep.subr.mxu0 0.0
    %5264 = vmatpush1.msra.mxu0 0.0
    %5265 = vmatprep.subr.mxu0 0.0
    %5266 = vmatpush1.msra.mxu0 0.0
    %5267 = vmatprep.subr.mxu0 0.0
    %5268 = vmatpush1.msra.mxu0 0.0
    %5269 = vmatprep.subr.mxu0 0.0
    %5270 = vmatpush1.msra.mxu0 0.0
    %5271 = vmatprep.subr.mxu0 0.0
    %5272 = vmatpush1.msra.mxu0 0.0
    %5273 = vmatprep.subr.mxu0 0.0
    %5274 = vmatpush1.msra.mxu0 0.0
    %5275 = vmatprep.subr.mxu0 0.0
    %5276 = vmatpush1.msra.mxu0 0.0
    %5277 = vmatprep.subr.mxu0 0.0
    %5278 = vmatpush1.msra.mxu0 0.0
    %5279 = vmatprep.subr.mxu0 0.0
    %5280 = vmatpush1.msra.mxu0 0.0
    %5281 = vmatprep.subr.mxu0 0.0
    %5282 = vmatpush1.msra.mxu0 0.0
    %5283 = vmatprep.subr.mxu0 0.0
    %5284 = vmatpush1.msra.mxu0 0.0
    %5285 = vmatprep.subr.mxu0 0.0
    %5286 = vmatpush1.msra.mxu0 0.0
    %5287 = vmatprep.subr.mxu0 %v4606
    %5288 = vmatpush1.msra.mxu0 %v4605
    %5289 = vmatprep.subr.mxu0 0.0
    %5290 = vmatpush2.msra.mxu0 0.0
    %5291 = vmatprep.subr.mxu0 0.0
    %5292 = vmatpush2.msra.mxu0 0.0
    %5293 = vmatprep.subr.mxu0 0.0
    %5294 = vmatpush2.msra.mxu0 0.0
    %5295 = vmatprep.subr.mxu0 0.0
    %5296 = vmatpush2.msra.mxu0 0.0
    %5297 = vmatprep.subr.mxu0 0.0
    %5298 = vmatpush2.msra.mxu0 0.0
    %5299 = vmatprep.subr.mxu0 0.0
    %5300 = vmatpush2.msra.mxu0 0.0
    %5301 = vmatprep.subr.mxu0 0.0
    %5302 = vmatpush2.msra.mxu0 0.0
    %5303 = vmatprep.subr.mxu0 0.0
    %5304 = vmatpush2.msra.mxu0 0.0
    %5305 = vmatprep.subr.mxu0 0.0
    %5306 = vmatpush2.msra.mxu0 0.0
    %5307 = vmatprep.subr.mxu0 0.0
    %5308 = vmatpush2.msra.mxu0 0.0
    %5309 = vmatprep.subr.mxu0 0.0
    %5310 = vmatpush2.msra.mxu0 0.0
    %5311 = vmatprep.subr.mxu0 0.0
    %5312 = vmatpush2.msra.mxu0 0.0
    %5313 = vmatprep.subr.mxu0 0.0
    %5314 = vmatpush2.msra.mxu0 0.0
    %5315 = vmatprep.subr.mxu0 0.0
    %5316 = vmatpush2.msra.mxu0 0.0
    %5317 = vmatprep.subr.mxu0 0.0
    %5318 = vmatpush2.msra.mxu0 0.0
    %5319 = vmatprep.subr.mxu0 0.0
    %5320 = vmatpush2.msra.mxu0 0.0
    %5321 = vmatprep.mubr.f32.mxu0 0.0
    %5322 = vmatmul.mubr.f32.gmra.mxu0 %v5255
    %v5323 = vpop.f32.mrf.mxu0
    %v5324 = vadd.f32 0.0, %v5323
    %v5325 = vpop.f32.mrf.mxu0
    %v5326 = vadd.f32 0.0, %v5325
    %5327 = vdwg.mxu0
    %5328 = vmatprep.subr.mxu0 0.0
    %5329 = vmatpush1.msra.mxu0 0.0
    %5330 = vmatprep.subr.mxu0 0.0
    %5331 = vmatpush1.msra.mxu0 0.0
    %5332 = vmatprep.subr.mxu0 0.0
    %5333 = vmatpush1.msra.mxu0 0.0
    %5334 = vmatprep.subr.mxu0 0.0
    %5335 = vmatpush1.msra.mxu0 0.0
    %5336 = vmatprep.subr.mxu0 0.0
    %5337 = vmatpush1.msra.mxu0 0.0
    %5338 = vmatprep.subr.mxu0 0.0
    %5339 = vmatpush1.msra.mxu0 0.0
    %5340 = vmatprep.subr.mxu0 0.0
    %5341 = vmatpush1.msra.mxu0 0.0
    %5342 = vmatprep.subr.mxu0 0.0
    %5343 = vmatpush1.msra.mxu0 0.0
    %5344 = vmatprep.subr.mxu0 0.0
    %5345 = vmatpush1.msra.mxu0 0.0
    %5346 = vmatprep.subr.mxu0 0.0
    %5347 = vmatpush1.msra.mxu0 0.0
    %5348 = vmatprep.subr.mxu0 0.0
    %5349 = vmatpush1.msra.mxu0 0.0
    %5350 = vmatprep.subr.mxu0 0.0
    %5351 = vmatpush1.msra.mxu0 0.0
    %5352 = vmatprep.subr.mxu0 0.0
    %5353 = vmatpush1.msra.mxu0 0.0
    %5354 = vmatprep.subr.mxu0 0.0
    %5355 = vmatpush1.msra.mxu0 0.0
    %5356 = vmatprep.subr.mxu0 0.0
    %5357 = vmatpush1.msra.mxu0 0.0
    %5358 = vmatprep.subr.mxu0 0.0
    %5359 = vmatpush1.msra.mxu0 %v4607
    %5360 = vmatprep.subr.mxu0 0.0
    %5361 = vmatpush2.msra.mxu0 0.0
    %5362 = vmatprep.subr.mxu0 0.0
    %5363 = vmatpush2.msra.mxu0 0.0
    %5364 = vmatprep.subr.mxu0 0.0
    %5365 = vmatpush2.msra.mxu0 0.0
    %5366 = vmatprep.subr.mxu0 0.0
    %5367 = vmatpush2.msra.mxu0 0.0
    %5368 = vmatprep.subr.mxu0 0.0
    %5369 = vmatpush2.msra.mxu0 0.0
    %5370 = vmatprep.subr.mxu0 0.0
    %5371 = vmatpush2.msra.mxu0 0.0
    %5372 = vmatprep.subr.mxu0 0.0
    %5373 = vmatpush2.msra.mxu0 0.0
    %5374 = vmatprep.subr.mxu0 0.0
    %5375 = vmatpush2.msra.mxu0 0.0
    %5376 = vmatprep.subr.mxu0 0.0
    %5377 = vmatpush2.msra.mxu0 0.0
    %5378 = vmatprep.subr.mxu0 0.0
    %5379 = vmatpush2.msra.mxu0 0.0
    %5380 = vmatprep.subr.mxu0 0.0
    %5381 = vmatpush2.msra.mxu0 0.0
    %5382 = vmatprep.subr.mxu0 0.0
    %5383 = vmatpush2.msra.mxu0 0.0
    %5384 = vmatprep.subr.mxu0 0.0
    %5385 = vmatpush2.msra.mxu0 0.0
    %5386 = vmatprep.subr.mxu0 0.0
    %5387 = vmatpush2.msra.mxu0 0.0
    %5388 = vmatprep.subr.mxu0 0.0
    %5389 = vmatpush2.msra.mxu0 0.0
    %5390 = vmatprep.subr.mxu0 0.0
    %5391 = vmatpush2.msra.mxu0 0.0
    %5392 = vmatprep.mubr.f32.mxu0 0.0
    %5393 = vmatmul.mubr.f32.gmra.mxu0 %v5255
    %v5394 = vpop.f32.mrf.mxu0
    %v5395 = vadd.f32 0.0, %v5394
    %v5396 = vpop.f32.mrf.mxu0
    %5397 = vdwg.mxu0
    %v5398 = vadd.f32 %v5250, %v5324
    %v5399 = vadd.f32 %v5251, %v5326
    %v5400 = vadd.f32 %v5252, %v5395
    %v5401 = vld [vmem:[%s838] sm:$0xff]
    %v5402 = vld [vmem:[%s4603 + $0x8] sm:$0xff]
    %v5403 = vld [vmem:[%s4603 + $0x10] sm:$0xff]
    %v5404 = vld [vmem:[%s4603 + $0x18] sm:$0xff]
    %v5405 = vld [vmem:[%s4603 + $0x20] sm:$0xff]
    %5410 = vrot.lane.b32.xlu0 %v5402, 127
    %v5411 = vpop.permute.xlu0 %5410
    %5412 = vrot.lane.b32.xlu0 %v5403, 127
    %v5413 = vpop.permute.xlu0 %5412
    %5414 = vrot.lane.b32.xlu0 %v5404, 127
    %v5415 = vpop.permute.xlu0 %5414
    %5416 = vrot.lane.b32.xlu0 %v5405, 127
    %v5417 = vpop.permute.xlu0 %5416
    %v5418 = vsel %vm856, %v5411, %v5413
    %v5419 = vsel %vm856, %v5413, %v5415
    %v5420 = vsel %vm856, %v5415, %v5417
    %v5425 = vsel %vm57, %v5401, 0
    %5427 = vmatprep.subr.mxu0 0.0
    %5428 = vmatpush1.msra.mxu0 0.0
    %5429 = vmatprep.subr.mxu0 0.0
    %5430 = vmatpush1.msra.mxu0 0.0
    %5431 = vmatprep.subr.mxu0 0.0
    %5432 = vmatpush1.msra.mxu0 0.0
    %5433 = vmatprep.subr.mxu0 0.0
    %5434 = vmatpush1.msra.mxu0 0.0
    %5435 = vmatprep.subr.mxu0 0.0
    %5436 = vmatpush1.msra.mxu0 0.0
    %5437 = vmatprep.subr.mxu0 0.0
    %5438 = vmatpush1.msra.mxu0 0.0
    %5439 = vmatprep.subr.mxu0 0.0
    %5440 = vmatpush1.msra.mxu0 0.0
    %5441 = vmatprep.subr.mxu0 0.0
    %5442 = vmatpush1.msra.mxu0 0.0
    %5443 = vmatprep.subr.mxu0 0.0
    %5444 = vmatpush1.msra.mxu0 0.0
    %5445 = vmatprep.subr.mxu0 0.0
    %5446 = vmatpush1.msra.mxu0 0.0
    %5447 = vmatprep.subr.mxu0 0.0
    %5448 = vmatpush1.msra.mxu0 0.0
    %5449 = vmatprep.subr.mxu0 0.0
    %5450 = vmatpush1.msra.mxu0 0.0
    %5451 = vmatprep.subr.mxu0 0.0
    %5452 = vmatpush1.msra.mxu0 0.0
    %5453 = vmatprep.subr.mxu0 0.0
    %5454 = vmatpush1.msra.mxu0 0.0
    %5455 = vmatprep.subr.mxu0 0.0
    %5456 = vmatpush1.msra.mxu0 0.0
    %5457 = vmatprep.subr.mxu0 %v5419
    %5458 = vmatpush1.msra.mxu0 %v5418
    %5459 = vmatprep.subr.mxu0 0.0
    %5460 = vmatpush2.msra.mxu0 0.0
    %5461 = vmatprep.subr.mxu0 0.0
    %5462 = vmatpush2.msra.mxu0 0.0
    %5463 = vmatprep.subr.mxu0 0.0
    %5464 = vmatpush2.msra.mxu0 0.0
    %5465 = vmatprep.subr.mxu0 0.0
    %5466 = vmatpush2.msra.mxu0 0.0
    %5467 = vmatprep.subr.mxu0 0.0
    %5468 = vmatpush2.msra.mxu0 0.0
    %5469 = vmatprep.subr.mxu0 0.0
    %5470 = vmatpush2.msra.mxu0 0.0
    %5471 = vmatprep.subr.mxu0 0.0
    %5472 = vmatpush2.msra.mxu0 0.0
    %5473 = vmatprep.subr.mxu0 0.0
    %5474 = vmatpush2.msra.mxu0 0.0
    %5475 = vmatprep.subr.mxu0 0.0
    %5476 = vmatpush2.msra.mxu0 0.0
    %5477 = vmatprep.subr.mxu0 0.0
    %5478 = vmatpush2.msra.mxu0 0.0
    %5479 = vmatprep.subr.mxu0 0.0
    %5480 = vmatpush2.msra.mxu0 0.0
    %5481 = vmatprep.subr.mxu0 0.0
    %5482 = vmatpush2.msra.mxu0 0.0
    %5483 = vmatprep.subr.mxu0 0.0
    %5484 = vmatpush2.msra.mxu0 0.0
    %5485 = vmatprep.subr.mxu0 0.0
    %5486 = vmatpush2.msra.mxu0 0.0
    %5487 = vmatprep.subr.mxu0 0.0
    %5488 = vmatpush2.msra.mxu0 0.0
    %5489 = vmatprep.subr.mxu0 0.0
    %5490 = vmatpush2.msra.mxu0 0.0
    %5491 = vmatprep.mubr.f32.mxu0 0.0
    %5492 = vmatmul.mubr.f32.gmra.mxu0 %v5425
    %v5493 = vpop.f32.mrf.mxu0
    %v5494 = vadd.f32 0.0, %v5493
    %v5495 = vpop.f32.mrf.mxu0
    %v5496 = vadd.f32 0.0, %v5495
    %5497 = vdwg.mxu0
    %5498 = vmatprep.subr.mxu0 0.0
    %5499 = vmatpush1.msra.mxu0 0.0
    %5500 = vmatprep.subr.mxu0 0.0
    %5501 = vmatpush1.msra.mxu0 0.0
    %5502 = vmatprep.subr.mxu0 0.0
    %5503 = vmatpush1.msra.mxu0 0.0
    %5504 = vmatprep.subr.mxu0 0.0
    %5505 = vmatpush1.msra.mxu0 0.0
    %5506 = vmatprep.subr.mxu0 0.0
    %5507 = vmatpush1.msra.mxu0 0.0
    %5508 = vmatprep.subr.mxu0 0.0
    %5509 = vmatpush1.msra.mxu0 0.0
    %5510 = vmatprep.subr.mxu0 0.0
    %5511 = vmatpush1.msra.mxu0 0.0
    %5512 = vmatprep.subr.mxu0 0.0
    %5513 = vmatpush1.msra.mxu0 0.0
    %5514 = vmatprep.subr.mxu0 0.0
    %5515 = vmatpush1.msra.mxu0 0.0
    %5516 = vmatprep.subr.mxu0 0.0
    %5517 = vmatpush1.msra.mxu0 0.0
    %5518 = vmatprep.subr.mxu0 0.0
    %5519 = vmatpush1.msra.mxu0 0.0
    %5520 = vmatprep.subr.mxu0 0.0
    %5521 = vmatpush1.msra.mxu0 0.0
    %5522 = vmatprep.subr.mxu0 0.0
    %5523 = vmatpush1.msra.mxu0 0.0
    %5524 = vmatprep.subr.mxu0 0.0
    %5525 = vmatpush1.msra.mxu0 0.0
    %5526 = vmatprep.subr.mxu0 0.0
    %5527 = vmatpush1.msra.mxu0 0.0
    %5528 = vmatprep.subr.mxu0 0.0
    %5529 = vmatpush1.msra.mxu0 %v5420
    %5530 = vmatprep.subr.mxu0 0.0
    %5531 = vmatpush2.msra.mxu0 0.0
    %5532 = vmatprep.subr.mxu0 0.0
    %5533 = vmatpush2.msra.mxu0 0.0
    %5534 = vmatprep.subr.mxu0 0.0
    %5535 = vmatpush2.msra.mxu0 0.0
    %5536 = vmatprep.subr.mxu0 0.0
    %5537 = vmatpush2.msra.mxu0 0.0
    %5538 = vmatprep.subr.mxu0 0.0
    %5539 = vmatpush2.msra.mxu0 0.0
    %5540 = vmatprep.subr.mxu0 0.0
    %5541 = vmatpush2.msra.mxu0 0.0
    %5542 = vmatprep.subr.mxu0 0.0
    %5543 = vmatpush2.msra.mxu0 0.0
    %5544 = vmatprep.subr.mxu0 0.0
    %5545 = vmatpush2.msra.mxu0 0.0
    %5546 = vmatprep.subr.mxu0 0.0
    %5547 = vmatpush2.msra.mxu0 0.0
    %5548 = vmatprep.subr.mxu0 0.0
    %5549 = vmatpush2.msra.mxu0 0.0
    %5550 = vmatprep.subr.mxu0 0.0
    %5551 = vmatpush2.msra.mxu0 0.0
    %5552 = vmatprep.subr.mxu0 0.0
    %5553 = vmatpush2.msra.mxu0 0.0
    %5554 = vmatprep.subr.mxu0 0.0
    %5555 = vmatpush2.msra.mxu0 0.0
    %5556 = vmatprep.subr.mxu0 0.0
    %5557 = vmatpush2.msra.mxu0 0.0
    %5558 = vmatprep.subr.mxu0 0.0
    %5559 = vmatpush2.msra.mxu0 0.0
    %5560 = vmatprep.subr.mxu0 0.0
    %5561 = vmatpush2.msra.mxu0 0.0
    %5562 = vmatprep.mubr.f32.mxu0 0.0
    %5563 = vmatmul.mubr.f32.gmra.mxu0 %v5425
    %v5564 = vpop.f32.mrf.mxu0
    %v5565 = vadd.f32 0.0, %v5564
    %v5566 = vpop.f32.mrf.mxu0
    %5567 = vdwg.mxu0
    %v5568 = vadd.f32 %v5398, %v5494
    %v5569 = vadd.f32 %v5399, %v5496
    %v5570 = vadd.f32 %v5400, %v5565
    %v5571 = vld [vmem:[%s1010] sm:$0xff]
    %5572 = vrot.lane.b32.xlu0 %v5402, 111
    %v5573 = vpop.permute.xlu0 %5572
    %5574 = vrot.lane.b32.xlu0 %v5403, 111
    %v5575 = vpop.permute.xlu0 %5574
    %5576 = vrot.lane.b32.xlu0 %v5404, 111
    %v5577 = vpop.permute.xlu0 %5576
    %5578 = vrot.lane.b32.xlu0 %v5405, 111
    %v5579 = vpop.permute.xlu0 %5578
    %v5580 = vsel %vm1020, %v5573, %v5575
    %v5581 = vsel %vm1020, %v5575, %v5577
    %v5582 = vsel %vm1020, %v5577, %v5579
    %v5587 = vsel %vm57, %v5571, 0
    %5589 = vmatprep.subr.mxu0 0.0
    %5590 = vmatpush1.msra.mxu0 0.0
    %5591 = vmatprep.subr.mxu0 0.0
    %5592 = vmatpush1.msra.mxu0 0.0
    %5593 = vmatprep.subr.mxu0 0.0
    %5594 = vmatpush1.msra.mxu0 0.0
    %5595 = vmatprep.subr.mxu0 0.0
    %5596 = vmatpush1.msra.mxu0 0.0
    %5597 = vmatprep.subr.mxu0 0.0
    %5598 = vmatpush1.msra.mxu0 0.0
    %5599 = vmatprep.subr.mxu0 0.0
    %5600 = vmatpush1.msra.mxu0 0.0
    %5601 = vmatprep.subr.mxu0 0.0
    %5602 = vmatpush1.msra.mxu0 0.0
    %5603 = vmatprep.subr.mxu0 0.0
    %5604 = vmatpush1.msra.mxu0 0.0
    %5605 = vmatprep.subr.mxu0 0.0
    %5606 = vmatpush1.msra.mxu0 0.0
    %5607 = vmatprep.subr.mxu0 0.0
    %5608 = vmatpush1.msra.mxu0 0.0
    %5609 = vmatprep.subr.mxu0 0.0
    %5610 = vmatpush1.msra.mxu0 0.0
    %5611 = vmatprep.subr.mxu0 0.0
    %5612 = vmatpush1.msra.mxu0 0.0
    %5613 = vmatprep.subr.mxu0 0.0
    %5614 = vmatpush1.msra.mxu0 0.0
    %5615 = vmatprep.subr.mxu0 0.0
    %5616 = vmatpush1.msra.mxu0 0.0
    %5617 = vmatprep.subr.mxu0 0.0
    %5618 = vmatpush1.msra.mxu0 0.0
    %5619 = vmatprep.subr.mxu0 %v5581
    %5620 = vmatpush1.msra.mxu0 %v5580
    %5621 = vmatprep.subr.mxu0 0.0
    %5622 = vmatpush2.msra.mxu0 0.0
    %5623 = vmatprep.subr.mxu0 0.0
    %5624 = vmatpush2.msra.mxu0 0.0
    %5625 = vmatprep.subr.mxu0 0.0
    %5626 = vmatpush2.msra.mxu0 0.0
    %5627 = vmatprep.subr.mxu0 0.0
    %5628 = vmatpush2.msra.mxu0 0.0
    %5629 = vmatprep.subr.mxu0 0.0
    %5630 = vmatpush2.msra.mxu0 0.0
    %5631 = vmatprep.subr.mxu0 0.0
    %5632 = vmatpush2.msra.mxu0 0.0
    %5633 = vmatprep.subr.mxu0 0.0
    %5634 = vmatpush2.msra.mxu0 0.0
    %5635 = vmatprep.subr.mxu0 0.0
    %5636 = vmatpush2.msra.mxu0 0.0
    %5637 = vmatprep.subr.mxu0 0.0
    %5638 = vmatpush2.msra.mxu0 0.0
    %5639 = vmatprep.subr.mxu0 0.0
    %5640 = vmatpush2.msra.mxu0 0.0
    %5641 = vmatprep.subr.mxu0 0.0
    %5642 = vmatpush2.msra.mxu0 0.0
    %5643 = vmatprep.subr.mxu0 0.0
    %5644 = vmatpush2.msra.mxu0 0.0
    %5645 = vmatprep.subr.mxu0 0.0
    %5646 = vmatpush2.msra.mxu0 0.0
    %5647 = vmatprep.subr.mxu0 0.0
    %5648 = vmatpush2.msra.mxu0 0.0
    %5649 = vmatprep.subr.mxu0 0.0
    %5650 = vmatpush2.msra.mxu0 0.0
    %5651 = vmatprep.subr.mxu0 0.0
    %5652 = vmatpush2.msra.mxu0 0.0
    %5653 = vmatprep.mubr.f32.mxu0 0.0
    %5654 = vmatmul.mubr.f32.gmra.mxu0 %v5587
    %v5655 = vpop.f32.mrf.mxu0
    %v5656 = vadd.f32 0.0, %v5655
    %v5657 = vpop.f32.mrf.mxu0
    %v5658 = vadd.f32 0.0, %v5657
    %5659 = vdwg.mxu0
    %5660 = vmatprep.subr.mxu0 0.0
    %5661 = vmatpush1.msra.mxu0 0.0
    %5662 = vmatprep.subr.mxu0 0.0
    %5663 = vmatpush1.msra.mxu0 0.0
    %5664 = vmatprep.subr.mxu0 0.0
    %5665 = vmatpush1.msra.mxu0 0.0
    %5666 = vmatprep.subr.mxu0 0.0
    %5667 = vmatpush1.msra.mxu0 0.0
    %5668 = vmatprep.subr.mxu0 0.0
    %5669 = vmatpush1.msra.mxu0 0.0
    %5670 = vmatprep.subr.mxu0 0.0
    %5671 = vmatpush1.msra.mxu0 0.0
    %5672 = vmatprep.subr.mxu0 0.0
    %5673 = vmatpush1.msra.mxu0 0.0
    %5674 = vmatprep.subr.mxu0 0.0
    %5675 = vmatpush1.msra.mxu0 0.0
    %5676 = vmatprep.subr.mxu0 0.0
    %5677 = vmatpush1.msra.mxu0 0.0
    %5678 = vmatprep.subr.mxu0 0.0
    %5679 = vmatpush1.msra.mxu0 0.0
    %5680 = vmatprep.subr.mxu0 0.0
    %5681 = vmatpush1.msra.mxu0 0.0
    %5682 = vmatprep.subr.mxu0 0.0
    %5683 = vmatpush1.msra.mxu0 0.0
    %5684 = vmatprep.subr.mxu0 0.0
    %5685 = vmatpush1.msra.mxu0 0.0
    %5686 = vmatprep.subr.mxu0 0.0
    %5687 = vmatpush1.msra.mxu0 0.0
    %5688 = vmatprep.subr.mxu0 0.0
    %5689 = vmatpush1.msra.mxu0 0.0
    %5690 = vmatprep.subr.mxu0 0.0
    %5691 = vmatpush1.msra.mxu0 %v5582
    %5692 = vmatprep.subr.mxu0 0.0
    %5693 = vmatpush2.msra.mxu0 0.0
    %5694 = vmatprep.subr.mxu0 0.0
    %5695 = vmatpush2.msra.mxu0 0.0
    %5696 = vmatprep.subr.mxu0 0.0
    %5697 = vmatpush2.msra.mxu0 0.0
    %5698 = vmatprep.subr.mxu0 0.0
    %5699 = vmatpush2.msra.mxu0 0.0
    %5700 = vmatprep.subr.mxu0 0.0
    %5701 = vmatpush2.msra.mxu0 0.0
    %5702 = vmatprep.subr.mxu0 0.0
    %5703 = vmatpush2.msra.mxu0 0.0
    %5704 = vmatprep.subr.mxu0 0.0
    %5705 = vmatpush2.msra.mxu0 0.0
    %5706 = vmatprep.subr.mxu0 0.0
    %5707 = vmatpush2.msra.mxu0 0.0
    %5708 = vmatprep.subr.mxu0 0.0
    %5709 = vmatpush2.msra.mxu0 0.0
    %5710 = vmatprep.subr.mxu0 0.0
    %5711 = vmatpush2.msra.mxu0 0.0
    %5712 = vmatprep.subr.mxu0 0.0
    %5713 = vmatpush2.msra.mxu0 0.0
    %5714 = vmatprep.subr.mxu0 0.0
    %5715 = vmatpush2.msra.mxu0 0.0
    %5716 = vmatprep.subr.mxu0 0.0
    %5717 = vmatpush2.msra.mxu0 0.0
    %5718 = vmatprep.subr.mxu0 0.0
    %5719 = vmatpush2.msra.mxu0 0.0
    %5720 = vmatprep.subr.mxu0 0.0
    %5721 = vmatpush2.msra.mxu0 0.0
    %5722 = vmatprep.subr.mxu0 0.0
    %5723 = vmatpush2.msra.mxu0 0.0
    %5724 = vmatprep.mubr.f32.mxu0 0.0
    %5725 = vmatmul.mubr.f32.gmra.mxu0 %v5587
    %v5726 = vpop.f32.mrf.mxu0
    %v5727 = vadd.f32 0.0, %v5726
    %v5728 = vpop.f32.mrf.mxu0
    %5729 = vdwg.mxu0
    %v5730 = vadd.f32 %v5568, %v5656
    %v5731 = vadd.f32 %v5569, %v5658
    %v5732 = vadd.f32 %v5570, %v5727
    %v5733 = vld [vmem:[%s1174] sm:$0xff]
    %5734 = vrot.lane.b32.xlu0 %v5402, 110
    %v5735 = vpop.permute.xlu0 %5734
    %5736 = vrot.lane.b32.xlu0 %v5403, 110
    %v5737 = vpop.permute.xlu0 %5736
    %5738 = vrot.lane.b32.xlu0 %v5404, 110
    %v5739 = vpop.permute.xlu0 %5738
    %5740 = vrot.lane.b32.xlu0 %v5405, 110
    %v5741 = vpop.permute.xlu0 %5740
    %v5742 = vsel %vm1184, %v5735, %v5737
    %v5743 = vsel %vm1184, %v5737, %v5739
    %v5744 = vsel %vm1184, %v5739, %v5741
    %v5749 = vsel %vm57, %v5733, 0
    %5751 = vmatprep.subr.mxu0 0.0
    %5752 = vmatpush1.msra.mxu0 0.0
    %5753 = vmatprep.subr.mxu0 0.0
    %5754 = vmatpush1.msra.mxu0 0.0
    %5755 = vmatprep.subr.mxu0 0.0
    %5756 = vmatpush1.msra.mxu0 0.0
    %5757 = vmatprep.subr.mxu0 0.0
    %5758 = vmatpush1.msra.mxu0 0.0
    %5759 = vmatprep.subr.mxu0 0.0
    %5760 = vmatpush1.msra.mxu0 0.0
    %5761 = vmatprep.subr.mxu0 0.0
    %5762 = vmatpush1.msra.mxu0 0.0
    %5763 = vmatprep.subr.mxu0 0.0
    %5764 = vmatpush1.msra.mxu0 0.0
    %5765 = vmatprep.subr.mxu0 0.0
    %5766 = vmatpush1.msra.mxu0 0.0
    %5767 = vmatprep.subr.mxu0 0.0
    %5768 = vmatpush1.msra.mxu0 0.0
    %5769 = vmatprep.subr.mxu0 0.0
    %5770 = vmatpush1.msra.mxu0 0.0
    %5771 = vmatprep.subr.mxu0 0.0
    %5772 = vmatpush1.msra.mxu0 0.0
    %5773 = vmatprep.subr.mxu0 0.0
    %5774 = vmatpush1.msra.mxu0 0.0
    %5775 = vmatprep.subr.mxu0 0.0
    %5776 = vmatpush1.msra.mxu0 0.0
    %5777 = vmatprep.subr.mxu0 0.0
    %5778 = vmatpush1.msra.mxu0 0.0
    %5779 = vmatprep.subr.mxu0 0.0
    %5780 = vmatpush1.msra.mxu0 0.0
    %5781 = vmatprep.subr.mxu0 %v5743
    %5782 = vmatpush1.msra.mxu0 %v5742
    %5783 = vmatprep.subr.mxu0 0.0
    %5784 = vmatpush2.msra.mxu0 0.0
    %5785 = vmatprep.subr.mxu0 0.0
    %5786 = vmatpush2.msra.mxu0 0.0
    %5787 = vmatprep.subr.mxu0 0.0
    %5788 = vmatpush2.msra.mxu0 0.0
    %5789 = vmatprep.subr.mxu0 0.0
    %5790 = vmatpush2.msra.mxu0 0.0
    %5791 = vmatprep.subr.mxu0 0.0
    %5792 = vmatpush2.msra.mxu0 0.0
    %5793 = vmatprep.subr.mxu0 0.0
    %5794 = vmatpush2.msra.mxu0 0.0
    %5795 = vmatprep.subr.mxu0 0.0
    %5796 = vmatpush2.msra.mxu0 0.0
    %5797 = vmatprep.subr.mxu0 0.0
    %5798 = vmatpush2.msra.mxu0 0.0
    %5799 = vmatprep.subr.mxu0 0.0
    %5800 = vmatpush2.msra.mxu0 0.0
    %5801 = vmatprep.subr.mxu0 0.0
    %5802 = vmatpush2.msra.mxu0 0.0
    %5803 = vmatprep.subr.mxu0 0.0
    %5804 = vmatpush2.msra.mxu0 0.0
    %5805 = vmatprep.subr.mxu0 0.0
    %5806 = vmatpush2.msra.mxu0 0.0
    %5807 = vmatprep.subr.mxu0 0.0
    %5808 = vmatpush2.msra.mxu0 0.0
    %5809 = vmatprep.subr.mxu0 0.0
    %5810 = vmatpush2.msra.mxu0 0.0
    %5811 = vmatprep.subr.mxu0 0.0
    %5812 = vmatpush2.msra.mxu0 0.0
    %5813 = vmatprep.subr.mxu0 0.0
    %5814 = vmatpush2.msra.mxu0 0.0
    %5815 = vmatprep.mubr.f32.mxu0 0.0
    %5816 = vmatmul.mubr.f32.gmra.mxu0 %v5749
    %v5817 = vpop.f32.mrf.mxu0
    %v5818 = vadd.f32 0.0, %v5817
    %v5819 = vpop.f32.mrf.mxu0
    %v5820 = vadd.f32 0.0, %v5819
    %5821 = vdwg.mxu0
    %5822 = vmatprep.subr.mxu0 0.0
    %5823 = vmatpush1.msra.mxu0 0.0
    %5824 = vmatprep.subr.mxu0 0.0
    %5825 = vmatpush1.msra.mxu0 0.0
    %5826 = vmatprep.subr.mxu0 0.0
    %5827 = vmatpush1.msra.mxu0 0.0
    %5828 = vmatprep.subr.mxu0 0.0
    %5829 = vmatpush1.msra.mxu0 0.0
    %5830 = vmatprep.subr.mxu0 0.0
    %5831 = vmatpush1.msra.mxu0 0.0
    %5832 = vmatprep.subr.mxu0 0.0
    %5833 = vmatpush1.msra.mxu0 0.0
    %5834 = vmatprep.subr.mxu0 0.0
    %5835 = vmatpush1.msra.mxu0 0.0
    %5836 = vmatprep.subr.mxu0 0.0
    %5837 = vmatpush1.msra.mxu0 0.0
    %5838 = vmatprep.subr.mxu0 0.0
    %5839 = vmatpush1.msra.mxu0 0.0
    %5840 = vmatprep.subr.mxu0 0.0
    %5841 = vmatpush1.msra.mxu0 0.0
    %5842 = vmatprep.subr.mxu0 0.0
    %5843 = vmatpush1.msra.mxu0 0.0
    %5844 = vmatprep.subr.mxu0 0.0
    %5845 = vmatpush1.msra.mxu0 0.0
    %5846 = vmatprep.subr.mxu0 0.0
    %5847 = vmatpush1.msra.mxu0 0.0
    %5848 = vmatprep.subr.mxu0 0.0
    %5849 = vmatpush1.msra.mxu0 0.0
    %5850 = vmatprep.subr.mxu0 0.0
    %5851 = vmatpush1.msra.mxu0 0.0
    %5852 = vmatprep.subr.mxu0 0.0
    %5853 = vmatpush1.msra.mxu0 %v5744
    %5854 = vmatprep.subr.mxu0 0.0
    %5855 = vmatpush2.msra.mxu0 0.0
    %5856 = vmatprep.subr.mxu0 0.0
    %5857 = vmatpush2.msra.mxu0 0.0
    %5858 = vmatprep.subr.mxu0 0.0
    %5859 = vmatpush2.msra.mxu0 0.0
    %5860 = vmatprep.subr.mxu0 0.0
    %5861 = vmatpush2.msra.mxu0 0.0
    %5862 = vmatprep.subr.mxu0 0.0
    %5863 = vmatpush2.msra.mxu0 0.0
    %5864 = vmatprep.subr.mxu0 0.0
    %5865 = vmatpush2.msra.mxu0 0.0
    %5866 = vmatprep.subr.mxu0 0.0
    %5867 = vmatpush2.msra.mxu0 0.0
    %5868 = vmatprep.subr.mxu0 0.0
    %5869 = vmatpush2.msra.mxu0 0.0
    %5870 = vmatprep.subr.mxu0 0.0
    %5871 = vmatpush2.msra.mxu0 0.0
    %5872 = vmatprep.subr.mxu0 0.0
    %5873 = vmatpush2.msra.mxu0 0.0
    %5874 = vmatprep.subr.mxu0 0.0
    %5875 = vmatpush2.msra.mxu0 0.0
    %5876 = vmatprep.subr.mxu0 0.0
    %5877 = vmatpush2.msra.mxu0 0.0
    %5878 = vmatprep.subr.mxu0 0.0
    %5879 = vmatpush2.msra.mxu0 0.0
    %5880 = vmatprep.subr.mxu0 0.0
    %5881 = vmatpush2.msra.mxu0 0.0
    %5882 = vmatprep.subr.mxu0 0.0
    %5883 = vmatpush2.msra.mxu0 0.0
    %5884 = vmatprep.subr.mxu0 0.0
    %5885 = vmatpush2.msra.mxu0 0.0
    %5886 = vmatprep.mubr.f32.mxu0 0.0
    %5887 = vmatmul.mubr.f32.gmra.mxu0 %v5749
    %v5888 = vpop.f32.mrf.mxu0
    %v5889 = vadd.f32 0.0, %v5888
    %v5890 = vpop.f32.mrf.mxu0
    %5891 = vdwg.mxu0
    %v5892 = vadd.f32 %v5730, %v5818
    %v5893 = vadd.f32 %v5731, %v5820
    %v5894 = vadd.f32 %v5732, %v5889
    %v5895 = vld [vmem:[%s1338] sm:$0xff]
    %5896 = vrot.lane.b32.xlu0 %v5402, 109
    %v5897 = vpop.permute.xlu0 %5896
    %5898 = vrot.lane.b32.xlu0 %v5403, 109
    %v5899 = vpop.permute.xlu0 %5898
    %5900 = vrot.lane.b32.xlu0 %v5404, 109
    %v5901 = vpop.permute.xlu0 %5900
    %5902 = vrot.lane.b32.xlu0 %v5405, 109
    %v5903 = vpop.permute.xlu0 %5902
    %v5904 = vsel %vm1348, %v5897, %v5899
    %v5905 = vsel %vm1348, %v5899, %v5901
    %v5906 = vsel %vm1348, %v5901, %v5903
    %v5911 = vsel %vm57, %v5895, 0
    %5913 = vmatprep.subr.mxu0 0.0
    %5914 = vmatpush1.msra.mxu0 0.0
    %5915 = vmatprep.subr.mxu0 0.0
    %5916 = vmatpush1.msra.mxu0 0.0
    %5917 = vmatprep.subr.mxu0 0.0
    %5918 = vmatpush1.msra.mxu0 0.0
    %5919 = vmatprep.subr.mxu0 0.0
    %5920 = vmatpush1.msra.mxu0 0.0
    %5921 = vmatprep.subr.mxu0 0.0
    %5922 = vmatpush1.msra.mxu0 0.0
    %5923 = vmatprep.subr.mxu0 0.0
    %5924 = vmatpush1.msra.mxu0 0.0
    %5925 = vmatprep.subr.mxu0 0.0
    %5926 = vmatpush1.msra.mxu0 0.0
    %5927 = vmatprep.subr.mxu0 0.0
    %5928 = vmatpush1.msra.mxu0 0.0
    %5929 = vmatprep.subr.mxu0 0.0
    %5930 = vmatpush1.msra.mxu0 0.0
    %5931 = vmatprep.subr.mxu0 0.0
    %5932 = vmatpush1.msra.mxu0 0.0
    %5933 = vmatprep.subr.mxu0 0.0
    %5934 = vmatpush1.msra.mxu0 0.0
    %5935 = vmatprep.subr.mxu0 0.0
    %5936 = vmatpush1.msra.mxu0 0.0
    %5937 = vmatprep.subr.mxu0 0.0
    %5938 = vmatpush1.msra.mxu0 0.0
    %5939 = vmatprep.subr.mxu0 0.0
    %5940 = vmatpush1.msra.mxu0 0.0
    %5941 = vmatprep.subr.mxu0 0.0
    %5942 = vmatpush1.msra.mxu0 0.0
    %5943 = vmatprep.subr.mxu0 %v5905
    %5944 = vmatpush1.msra.mxu0 %v5904
    %5945 = vmatprep.subr.mxu0 0.0
    %5946 = vmatpush2.msra.mxu0 0.0
    %5947 = vmatprep.subr.mxu0 0.0
    %5948 = vmatpush2.msra.mxu0 0.0
    %5949 = vmatprep.subr.mxu0 0.0
    %5950 = vmatpush2.msra.mxu0 0.0
    %5951 = vmatprep.subr.mxu0 0.0
    %5952 = vmatpush2.msra.mxu0 0.0
    %5953 = vmatprep.subr.mxu0 0.0
    %5954 = vmatpush2.msra.mxu0 0.0
    %5955 = vmatprep.subr.mxu0 0.0
    %5956 = vmatpush2.msra.mxu0 0.0
    %5957 = vmatprep.subr.mxu0 0.0
    %5958 = vmatpush2.msra.mxu0 0.0
    %5959 = vmatprep.subr.mxu0 0.0
    %5960 = vmatpush2.msra.mxu0 0.0
    %5961 = vmatprep.subr.mxu0 0.0
    %5962 = vmatpush2.msra.mxu0 0.0
    %5963 = vmatprep.subr.mxu0 0.0
    %5964 = vmatpush2.msra.mxu0 0.0
    %5965 = vmatprep.subr.mxu0 0.0
    %5966 = vmatpush2.msra.mxu0 0.0
    %5967 = vmatprep.subr.mxu0 0.0
    %5968 = vmatpush2.msra.mxu0 0.0
    %5969 = vmatprep.subr.mxu0 0.0
    %5970 = vmatpush2.msra.mxu0 0.0
    %5971 = vmatprep.subr.mxu0 0.0
    %5972 = vmatpush2.msra.mxu0 0.0
    %5973 = vmatprep.subr.mxu0 0.0
    %5974 = vmatpush2.msra.mxu0 0.0
    %5975 = vmatprep.subr.mxu0 0.0
    %5976 = vmatpush2.msra.mxu0 0.0
    %5977 = vmatprep.mubr.f32.mxu0 0.0
    %5978 = vmatmul.mubr.f32.gmra.mxu0 %v5911
    %v5979 = vpop.f32.mrf.mxu0
    %v5980 = vadd.f32 0.0, %v5979
    %v5981 = vpop.f32.mrf.mxu0
    %v5982 = vadd.f32 0.0, %v5981
    %5983 = vdwg.mxu0
    %5984 = vmatprep.subr.mxu0 0.0
    %5985 = vmatpush1.msra.mxu0 0.0
    %5986 = vmatprep.subr.mxu0 0.0
    %5987 = vmatpush1.msra.mxu0 0.0
    %5988 = vmatprep.subr.mxu0 0.0
    %5989 = vmatpush1.msra.mxu0 0.0
    %5990 = vmatprep.subr.mxu0 0.0
    %5991 = vmatpush1.msra.mxu0 0.0
    %5992 = vmatprep.subr.mxu0 0.0
    %5993 = vmatpush1.msra.mxu0 0.0
    %5994 = vmatprep.subr.mxu0 0.0
    %5995 = vmatpush1.msra.mxu0 0.0
    %5996 = vmatprep.subr.mxu0 0.0
    %5997 = vmatpush1.msra.mxu0 0.0
    %5998 = vmatprep.subr.mxu0 0.0
    %5999 = vmatpush1.msra.mxu0 0.0
    %6000 = vmatprep.subr.mxu0 0.0
    %6001 = vmatpush1.msra.mxu0 0.0
    %6002 = vmatprep.subr.mxu0 0.0
    %6003 = vmatpush1.msra.mxu0 0.0
    %6004 = vmatprep.subr.mxu0 0.0
    %6005 = vmatpush1.msra.mxu0 0.0
    %6006 = vmatprep.subr.mxu0 0.0
    %6007 = vmatpush1.msra.mxu0 0.0
    %6008 = vmatprep.subr.mxu0 0.0
    %6009 = vmatpush1.msra.mxu0 0.0
    %6010 = vmatprep.subr.mxu0 0.0
    %6011 = vmatpush1.msra.mxu0 0.0
    %6012 = vmatprep.subr.mxu0 0.0
    %6013 = vmatpush1.msra.mxu0 0.0
    %6014 = vmatprep.subr.mxu0 0.0
    %6015 = vmatpush1.msra.mxu0 %v5906
    %6016 = vmatprep.subr.mxu0 0.0
    %6017 = vmatpush2.msra.mxu0 0.0
    %6018 = vmatprep.subr.mxu0 0.0
    %6019 = vmatpush2.msra.mxu0 0.0
    %6020 = vmatprep.subr.mxu0 0.0
    %6021 = vmatpush2.msra.mxu0 0.0
    %6022 = vmatprep.subr.mxu0 0.0
    %6023 = vmatpush2.msra.mxu0 0.0
    %6024 = vmatprep.subr.mxu0 0.0
    %6025 = vmatpush2.msra.mxu0 0.0
    %6026 = vmatprep.subr.mxu0 0.0
    %6027 = vmatpush2.msra.mxu0 0.0
    %6028 = vmatprep.subr.mxu0 0.0
    %6029 = vmatpush2.msra.mxu0 0.0
    %6030 = vmatprep.subr.mxu0 0.0
    %6031 = vmatpush2.msra.mxu0 0.0
    %6032 = vmatprep.subr.mxu0 0.0
    %6033 = vmatpush2.msra.mxu0 0.0
    %6034 = vmatprep.subr.mxu0 0.0
    %6035 = vmatpush2.msra.mxu0 0.0
    %6036 = vmatprep.subr.mxu0 0.0
    %6037 = vmatpush2.msra.mxu0 0.0
    %6038 = vmatprep.subr.mxu0 0.0
    %6039 = vmatpush2.msra.mxu0 0.0
    %6040 = vmatprep.subr.mxu0 0.0
    %6041 = vmatpush2.msra.mxu0 0.0
    %6042 = vmatprep.subr.mxu0 0.0
    %6043 = vmatpush2.msra.mxu0 0.0
    %6044 = vmatprep.subr.mxu0 0.0
    %6045 = vmatpush2.msra.mxu0 0.0
    %6046 = vmatprep.subr.mxu0 0.0
    %6047 = vmatpush2.msra.mxu0 0.0
    %6048 = vmatprep.mubr.f32.mxu0 0.0
    %6049 = vmatmul.mubr.f32.gmra.mxu0 %v5911
    %v6050 = vpop.f32.mrf.mxu0
    %v6051 = vadd.f32 0.0, %v6050
    %v6052 = vpop.f32.mrf.mxu0
    %6053 = vdwg.mxu0
    %v6054 = vadd.f32 %v5892, %v5980
    %v6055 = vadd.f32 %v5893, %v5982
    %v6056 = vadd.f32 %v5894, %v6051
    %6058 = vset.pattern.permute.xlu0 0
    %6059 = vperm.xlu0 %6058, %v4601
    %v6060 = vpop.permute.xlu0 %6059
    %v6062 = vadd.f32 %v6054, %v6060
    %v6063 = vadd.f32 %v6055, %v6060
    %v6064 = vadd.f32 %v6056, %v6060
    %vm6065 = vcmp.ge.f32.partialorder %v6062, 0.0
    %vm6066 = vcmp.ge.f32.partialorder %v6063, 0.0
    %vm6067 = vcmp.ge.f32.partialorder %v6064, 0.0
    %v6068 = vmul.f32 %v6062, 0.01
    %v6069 = vmul.f32 %v6063, 0.01
    %v6070 = vmul.f32 %v6064, 0.01
    %v6071 = vsel %vm6065, %v6062, %v6068
    %v6072 = vsel %vm6066, %v6063, %v6069
    %v6073 = vsel %vm6067, %v6064, %v6070
    %v6074 = vld [vmem:[%s4 + $0x1] sm:$0x7]
    %v6076 = vlaneseq
    %v6077 = vshrl.u32 %v6076, 7
    %v6078 = vsub.s32 0, %v6077
    %v6079 = vrot.slane %v6074, %v6078
    %v6080 = vlaneseq
    %v6081 = vshrl.u32 %v6080, 7
    %v6082 = vsub.s32 1, %v6081
    %v6083 = vrot.slane %v6074, %v6082
    %v6084 = vlaneseq
    %v6085 = vshrl.u32 %v6084, 7
    %v6086 = vsub.s32 2, %v6085
    %v6087 = vrot.slane %v6074, %v6086
    %v6091 = vmul.f32 %v6071, %v6079
    %v6092 = vmul.f32 %v6072, %v6083
    %v6093 = vmul.f32 %v6073, %v6087
    %6094 = vst [vmem:[#allocation2 + $0x8] sm:$0xff] %v6091
    %6095 = vst [vmem:[#allocation2 + $0x10] sm:$0xff] %v6092
    %6096 = vst [vmem:[#allocation2 + $0x18] sm:$0xff] %v6093
    %v6097 = vld [vmem:[%s1542] sm:$0xff]
    %v6098 = vld [vmem:[%s1544] sm:$0xff]
    %v6099 = vld [vmem:[#allocation2] sm:$0xff]
    %v6100 = vld [vmem:[#allocation2 + $0x8] sm:$0xff]
    %v6101 = vld [vmem:[#allocation2 + $0x10] sm:$0xff]
    %v6102 = vld [vmem:[#allocation2 + $0x18] sm:$0xff]
    %v6103 = vld [vmem:[%s1550] sm:$0xff]
    %6108 = vrot.lane.b32.xlu0 %v6099, 18
    %v6109 = vpop.permute.xlu0 %6108
    %6110 = vrot.lane.b32.xlu0 %v6100, 18
    %v6111 = vpop.permute.xlu0 %6110
    %6112 = vrot.lane.b32.xlu0 %v6101, 18
    %v6113 = vpop.permute.xlu0 %6112
    %6114 = vrot.lane.b32.xlu0 %v6102, 18
    %v6115 = vpop.permute.xlu0 %6114
    %v6116 = vsel %vm50, %v6109, %v6111
    %v6117 = vsel %vm50, %v6111, %v6113
    %v6118 = vsel %vm50, %v6113, %v6115
    %v6123 = vsel %vm57, %v6103, 0
    %6125 = vmatprep.subr.mxu0 0.0
    %6126 = vmatpush1.msra.mxu0 0.0
    %6127 = vmatprep.subr.mxu0 0.0
    %6128 = vmatpush1.msra.mxu0 0.0
    %6129 = vmatprep.subr.mxu0 0.0
    %6130 = vmatpush1.msra.mxu0 0.0
    %6131 = vmatprep.subr.mxu0 0.0
    %6132 = vmatpush1.msra.mxu0 0.0
    %6133 = vmatprep.subr.mxu0 0.0
    %6134 = vmatpush1.msra.mxu0 0.0
    %6135 = vmatprep.subr.mxu0 0.0
    %6136 = vmatpush1.msra.mxu0 0.0
    %6137 = vmatprep.subr.mxu0 0.0
    %6138 = vmatpush1.msra.mxu0 0.0
    %6139 = vmatprep.subr.mxu0 0.0
    %6140 = vmatpush1.msra.mxu0 0.0
    %6141 = vmatprep.subr.mxu0 0.0
    %6142 = vmatpush1.msra.mxu0 0.0
    %6143 = vmatprep.subr.mxu0 0.0
    %6144 = vmatpush1.msra.mxu0 0.0
    %6145 = vmatprep.subr.mxu0 0.0
    %6146 = vmatpush1.msra.mxu0 0.0
    %6147 = vmatprep.subr.mxu0 0.0
    %6148 = vmatpush1.msra.mxu0 0.0
    %6149 = vmatprep.subr.mxu0 0.0
    %6150 = vmatpush1.msra.mxu0 0.0
    %6151 = vmatprep.subr.mxu0 0.0
    %6152 = vmatpush1.msra.mxu0 0.0
    %6153 = vmatprep.subr.mxu0 0.0
    %6154 = vmatpush1.msra.mxu0 0.0
    %6155 = vmatprep.subr.mxu0 %v6117
    %6156 = vmatpush1.msra.mxu0 %v6116
    %6157 = vmatprep.subr.mxu0 0.0
    %6158 = vmatpush2.msra.mxu0 0.0
    %6159 = vmatprep.subr.mxu0 0.0
    %6160 = vmatpush2.msra.mxu0 0.0
    %6161 = vmatprep.subr.mxu0 0.0
    %6162 = vmatpush2.msra.mxu0 0.0
    %6163 = vmatprep.subr.mxu0 0.0
    %6164 = vmatpush2.msra.mxu0 0.0
    %6165 = vmatprep.subr.mxu0 0.0
    %6166 = vmatpush2.msra.mxu0 0.0
    %6167 = vmatprep.subr.mxu0 0.0
    %6168 = vmatpush2.msra.mxu0 0.0
    %6169 = vmatprep.subr.mxu0 0.0
    %6170 = vmatpush2.msra.mxu0 0.0
    %6171 = vmatprep.subr.mxu0 0.0
    %6172 = vmatpush2.msra.mxu0 0.0
    %6173 = vmatprep.subr.mxu0 0.0
    %6174 = vmatpush2.msra.mxu0 0.0
    %6175 = vmatprep.subr.mxu0 0.0
    %6176 = vmatpush2.msra.mxu0 0.0
    %6177 = vmatprep.subr.mxu0 0.0
    %6178 = vmatpush2.msra.mxu0 0.0
    %6179 = vmatprep.subr.mxu0 0.0
    %6180 = vmatpush2.msra.mxu0 0.0
    %6181 = vmatprep.subr.mxu0 0.0
    %6182 = vmatpush2.msra.mxu0 0.0
    %6183 = vmatprep.subr.mxu0 0.0
    %6184 = vmatpush2.msra.mxu0 0.0
    %6185 = vmatprep.subr.mxu0 0.0
    %6186 = vmatpush2.msra.mxu0 0.0
    %6187 = vmatprep.subr.mxu0 0.0
    %6188 = vmatpush2.msra.mxu0 0.0
    %6189 = vmatprep.mubr.f32.mxu0 0.0
    %6190 = vmatmul.mubr.f32.gmra.mxu0 %v6123
    %v6191 = vpop.f32.mrf.mxu0
    %v6192 = vadd.f32 0.0, %v6191
    %v6193 = vpop.f32.mrf.mxu0
    %v6194 = vadd.f32 0.0, %v6193
    %6195 = vdwg.mxu0
    %6196 = vmatprep.subr.mxu0 0.0
    %6197 = vmatpush1.msra.mxu0 0.0
    %6198 = vmatprep.subr.mxu0 0.0
    %6199 = vmatpush1.msra.mxu0 0.0
    %6200 = vmatprep.subr.mxu0 0.0
    %6201 = vmatpush1.msra.mxu0 0.0
    %6202 = vmatprep.subr.mxu0 0.0
    %6203 = vmatpush1.msra.mxu0 0.0
    %6204 = vmatprep.subr.mxu0 0.0
    %6205 = vmatpush1.msra.mxu0 0.0
    %6206 = vmatprep.subr.mxu0 0.0
    %6207 = vmatpush1.msra.mxu0 0.0
    %6208 = vmatprep.subr.mxu0 0.0
    %6209 = vmatpush1.msra.mxu0 0.0
    %6210 = vmatprep.subr.mxu0 0.0
    %6211 = vmatpush1.msra.mxu0 0.0
    %6212 = vmatprep.subr.mxu0 0.0
    %6213 = vmatpush1.msra.mxu0 0.0
    %6214 = vmatprep.subr.mxu0 0.0
    %6215 = vmatpush1.msra.mxu0 0.0
    %6216 = vmatprep.subr.mxu0 0.0
    %6217 = vmatpush1.msra.mxu0 0.0
    %6218 = vmatprep.subr.mxu0 0.0
    %6219 = vmatpush1.msra.mxu0 0.0
    %6220 = vmatprep.subr.mxu0 0.0
    %6221 = vmatpush1.msra.mxu0 0.0
    %6222 = vmatprep.subr.mxu0 0.0
    %6223 = vmatpush1.msra.mxu0 0.0
    %6224 = vmatprep.subr.mxu0 0.0
    %6225 = vmatpush1.msra.mxu0 0.0
    %6226 = vmatprep.subr.mxu0 0.0
    %6227 = vmatpush1.msra.mxu0 %v6118
    %6228 = vmatprep.subr.mxu0 0.0
    %6229 = vmatpush2.msra.mxu0 0.0
    %6230 = vmatprep.subr.mxu0 0.0
    %6231 = vmatpush2.msra.mxu0 0.0
    %6232 = vmatprep.subr.mxu0 0.0
    %6233 = vmatpush2.msra.mxu0 0.0
    %6234 = vmatprep.subr.mxu0 0.0
    %6235 = vmatpush2.msra.mxu0 0.0
    %6236 = vmatprep.subr.mxu0 0.0
    %6237 = vmatpush2.msra.mxu0 0.0
    %6238 = vmatprep.subr.mxu0 0.0
    %6239 = vmatpush2.msra.mxu0 0.0
    %6240 = vmatprep.subr.mxu0 0.0
    %6241 = vmatpush2.msra.mxu0 0.0
    %6242 = vmatprep.subr.mxu0 0.0
    %6243 = vmatpush2.msra.mxu0 0.0
    %6244 = vmatprep.subr.mxu0 0.0
    %6245 = vmatpush2.msra.mxu0 0.0
    %6246 = vmatprep.subr.mxu0 0.0
    %6247 = vmatpush2.msra.mxu0 0.0
    %6248 = vmatprep.subr.mxu0 0.0
    %6249 = vmatpush2.msra.mxu0 0.0
    %6250 = vmatprep.subr.mxu0 0.0
    %6251 = vmatpush2.msra.mxu0 0.0
    %6252 = vmatprep.subr.mxu0 0.0
    %6253 = vmatpush2.msra.mxu0 0.0
    %6254 = vmatprep.subr.mxu0 0.0
    %6255 = vmatpush2.msra.mxu0 0.0
    %6256 = vmatprep.subr.mxu0 0.0
    %6257 = vmatpush2.msra.mxu0 0.0
    %6258 = vmatprep.subr.mxu0 0.0
    %6259 = vmatpush2.msra.mxu0 0.0
    %6260 = vmatprep.mubr.f32.mxu0 0.0
    %6261 = vmatmul.mubr.f32.gmra.mxu0 %v6123
    %v6262 = vpop.f32.mrf.mxu0
    %v6263 = vadd.f32 0.0, %v6262
    %v6264 = vpop.f32.mrf.mxu0
    %6265 = vdwg.mxu0
    %6266 = vrot.lane.b32.xlu0 %v6099, 19
    %v6267 = vpop.permute.xlu0 %6266
    %6268 = vrot.lane.b32.xlu0 %v6100, 19
    %v6269 = vpop.permute.xlu0 %6268
    %6270 = vrot.lane.b32.xlu0 %v6101, 19
    %v6271 = vpop.permute.xlu0 %6270
    %6272 = vrot.lane.b32.xlu0 %v6102, 19
    %v6273 = vpop.permute.xlu0 %6272
    %v6274 = vsel %vm210, %v6267, %v6269
    %v6275 = vsel %vm210, %v6269, %v6271
    %v6276 = vsel %vm210, %v6271, %v6273
    %v6281 = vsel %vm57, %v6098, 0
    %6283 = vmatprep.subr.mxu0 0.0
    %6284 = vmatpush1.msra.mxu0 0.0
    %6285 = vmatprep.subr.mxu0 0.0
    %6286 = vmatpush1.msra.mxu0 0.0
    %6287 = vmatprep.subr.mxu0 0.0
    %6288 = vmatpush1.msra.mxu0 0.0
    %6289 = vmatprep.subr.mxu0 0.0
    %6290 = vmatpush1.msra.mxu0 0.0
    %6291 = vmatprep.subr.mxu0 0.0
    %6292 = vmatpush1.msra.mxu0 0.0
    %6293 = vmatprep.subr.mxu0 0.0
    %6294 = vmatpush1.msra.mxu0 0.0
    %6295 = vmatprep.subr.mxu0 0.0
    %6296 = vmatpush1.msra.mxu0 0.0
    %6297 = vmatprep.subr.mxu0 0.0
    %6298 = vmatpush1.msra.mxu0 0.0
    %6299 = vmatprep.subr.mxu0 0.0
    %6300 = vmatpush1.msra.mxu0 0.0
    %6301 = vmatprep.subr.mxu0 0.0
    %6302 = vmatpush1.msra.mxu0 0.0
    %6303 = vmatprep.subr.mxu0 0.0
    %6304 = vmatpush1.msra.mxu0 0.0
    %6305 = vmatprep.subr.mxu0 0.0
    %6306 = vmatpush1.msra.mxu0 0.0
    %6307 = vmatprep.subr.mxu0 0.0
    %6308 = vmatpush1.msra.mxu0 0.0
    %6309 = vmatprep.subr.mxu0 0.0
    %6310 = vmatpush1.msra.mxu0 0.0
    %6311 = vmatprep.subr.mxu0 0.0
    %6312 = vmatpush1.msra.mxu0 0.0
    %6313 = vmatprep.subr.mxu0 %v6275
    %6314 = vmatpush1.msra.mxu0 %v6274
    %6315 = vmatprep.subr.mxu0 0.0
    %6316 = vmatpush2.msra.mxu0 0.0
    %6317 = vmatprep.subr.mxu0 0.0
    %6318 = vmatpush2.msra.mxu0 0.0
    %6319 = vmatprep.subr.mxu0 0.0
    %6320 = vmatpush2.msra.mxu0 0.0
    %6321 = vmatprep.subr.mxu0 0.0
    %6322 = vmatpush2.msra.mxu0 0.0
    %6323 = vmatprep.subr.mxu0 0.0
    %6324 = vmatpush2.msra.mxu0 0.0
    %6325 = vmatprep.subr.mxu0 0.0
    %6326 = vmatpush2.msra.mxu0 0.0
    %6327 = vmatprep.subr.mxu0 0.0
    %6328 = vmatpush2.msra.mxu0 0.0
    %6329 = vmatprep.subr.mxu0 0.0
    %6330 = vmatpush2.msra.mxu0 0.0
    %6331 = vmatprep.subr.mxu0 0.0
    %6332 = vmatpush2.msra.mxu0 0.0
    %6333 = vmatprep.subr.mxu0 0.0
    %6334 = vmatpush2.msra.mxu0 0.0
    %6335 = vmatprep.subr.mxu0 0.0
    %6336 = vmatpush2.msra.mxu0 0.0
    %6337 = vmatprep.subr.mxu0 0.0
    %6338 = vmatpush2.msra.mxu0 0.0
    %6339 = vmatprep.subr.mxu0 0.0
    %6340 = vmatpush2.msra.mxu0 0.0
    %6341 = vmatprep.subr.mxu0 0.0
    %6342 = vmatpush2.msra.mxu0 0.0
    %6343 = vmatprep.subr.mxu0 0.0
    %6344 = vmatpush2.msra.mxu0 0.0
    %6345 = vmatprep.subr.mxu0 0.0
    %6346 = vmatpush2.msra.mxu0 0.0
    %6347 = vmatprep.mubr.f32.mxu0 0.0
    %6348 = vmatmul.mubr.f32.gmra.mxu0 %v6281
    %v6349 = vpop.f32.mrf.mxu0
    %v6350 = vadd.f32 %v6192, %v6349
    %v6351 = vpop.f32.mrf.mxu0
    %v6352 = vadd.f32 %v6194, %v6351
    %6353 = vdwg.mxu0
    %6354 = vmatprep.subr.mxu0 0.0
    %6355 = vmatpush1.msra.mxu0 0.0
    %6356 = vmatprep.subr.mxu0 0.0
    %6357 = vmatpush1.msra.mxu0 0.0
    %6358 = vmatprep.subr.mxu0 0.0
    %6359 = vmatpush1.msra.mxu0 0.0
    %6360 = vmatprep.subr.mxu0 0.0
    %6361 = vmatpush1.msra.mxu0 0.0
    %6362 = vmatprep.subr.mxu0 0.0
    %6363 = vmatpush1.msra.mxu0 0.0
    %6364 = vmatprep.subr.mxu0 0.0
    %6365 = vmatpush1.msra.mxu0 0.0
    %6366 = vmatprep.subr.mxu0 0.0
    %6367 = vmatpush1.msra.mxu0 0.0
    %6368 = vmatprep.subr.mxu0 0.0
    %6369 = vmatpush1.msra.mxu0 0.0
    %6370 = vmatprep.subr.mxu0 0.0
    %6371 = vmatpush1.msra.mxu0 0.0
    %6372 = vmatprep.subr.mxu0 0.0
    %6373 = vmatpush1.msra.mxu0 0.0
    %6374 = vmatprep.subr.mxu0 0.0
    %6375 = vmatpush1.msra.mxu0 0.0
    %6376 = vmatprep.subr.mxu0 0.0
    %6377 = vmatpush1.msra.mxu0 0.0
    %6378 = vmatprep.subr.mxu0 0.0
    %6379 = vmatpush1.msra.mxu0 0.0
    %6380 = vmatprep.subr.mxu0 0.0
    %6381 = vmatpush1.msra.mxu0 0.0
    %6382 = vmatprep.subr.mxu0 0.0
    %6383 = vmatpush1.msra.mxu0 0.0
    %6384 = vmatprep.subr.mxu0 0.0
    %6385 = vmatpush1.msra.mxu0 %v6276
    %6386 = vmatprep.subr.mxu0 0.0
    %6387 = vmatpush2.msra.mxu0 0.0
    %6388 = vmatprep.subr.mxu0 0.0
    %6389 = vmatpush2.msra.mxu0 0.0
    %6390 = vmatprep.subr.mxu0 0.0
    %6391 = vmatpush2.msra.mxu0 0.0
    %6392 = vmatprep.subr.mxu0 0.0
    %6393 = vmatpush2.msra.mxu0 0.0
    %6394 = vmatprep.subr.mxu0 0.0
    %6395 = vmatpush2.msra.mxu0 0.0
    %6396 = vmatprep.subr.mxu0 0.0
    %6397 = vmatpush2.msra.mxu0 0.0
    %6398 = vmatprep.subr.mxu0 0.0
    %6399 = vmatpush2.msra.mxu0 0.0
    %6400 = vmatprep.subr.mxu0 0.0
    %6401 = vmatpush2.msra.mxu0 0.0
    %6402 = vmatprep.subr.mxu0 0.0
    %6403 = vmatpush2.msra.mxu0 0.0
    %6404 = vmatprep.subr.mxu0 0.0
    %6405 = vmatpush2.msra.mxu0 0.0
    %6406 = vmatprep.subr.mxu0 0.0
    %6407 = vmatpush2.msra.mxu0 0.0
    %6408 = vmatprep.subr.mxu0 0.0
    %6409 = vmatpush2.msra.mxu0 0.0
    %6410 = vmatprep.subr.mxu0 0.0
    %6411 = vmatpush2.msra.mxu0 0.0
    %6412 = vmatprep.subr.mxu0 0.0
    %6413 = vmatpush2.msra.mxu0 0.0
    %6414 = vmatprep.subr.mxu0 0.0
    %6415 = vmatpush2.msra.mxu0 0.0
    %6416 = vmatprep.subr.mxu0 0.0
    %6417 = vmatpush2.msra.mxu0 0.0
    %6418 = vmatprep.mubr.f32.mxu0 0.0
    %6419 = vmatmul.mubr.f32.gmra.mxu0 %v6281
    %v6420 = vpop.f32.mrf.mxu0
    %v6421 = vadd.f32 %v6263, %v6420
    %v6422 = vpop.f32.mrf.mxu0
    %6423 = vdwg.mxu0
    %v6424 = vld [vmem:[%s1872] sm:$0xff]
    %6425 = vrot.lane.b32.xlu0 %v6099, 17
    %v6426 = vpop.permute.xlu0 %6425
    %6427 = vrot.lane.b32.xlu0 %v6100, 17
    %v6428 = vpop.permute.xlu0 %6427
    %6429 = vrot.lane.b32.xlu0 %v6101, 17
    %v6430 = vpop.permute.xlu0 %6429
    %6431 = vrot.lane.b32.xlu0 %v6102, 17
    %v6432 = vpop.permute.xlu0 %6431
    %v6433 = vsel %vm371, %v6426, %v6428
    %v6434 = vsel %vm371, %v6428, %v6430
    %v6435 = vsel %vm371, %v6430, %v6432
    %v6440 = vsel %vm57, %v6424, 0
    %6442 = vmatprep.subr.mxu0 0.0
    %6443 = vmatpush1.msra.mxu0 0.0
    %6444 = vmatprep.subr.mxu0 0.0
    %6445 = vmatpush1.msra.mxu0 0.0
    %6446 = vmatprep.subr.mxu0 0.0
    %6447 = vmatpush1.msra.mxu0 0.0
    %6448 = vmatprep.subr.mxu0 0.0
    %6449 = vmatpush1.msra.mxu0 0.0
    %6450 = vmatprep.subr.mxu0 0.0
    %6451 = vmatpush1.msra.mxu0 0.0
    %6452 = vmatprep.subr.mxu0 0.0
    %6453 = vmatpush1.msra.mxu0 0.0
    %6454 = vmatprep.subr.mxu0 0.0
    %6455 = vmatpush1.msra.mxu0 0.0
    %6456 = vmatprep.subr.mxu0 0.0
    %6457 = vmatpush1.msra.mxu0 0.0
    %6458 = vmatprep.subr.mxu0 0.0
    %6459 = vmatpush1.msra.mxu0 0.0
    %6460 = vmatprep.subr.mxu0 0.0
    %6461 = vmatpush1.msra.mxu0 0.0
    %6462 = vmatprep.subr.mxu0 0.0
    %6463 = vmatpush1.msra.mxu0 0.0
    %6464 = vmatprep.subr.mxu0 0.0
    %6465 = vmatpush1.msra.mxu0 0.0
    %6466 = vmatprep.subr.mxu0 0.0
    %6467 = vmatpush1.msra.mxu0 0.0
    %6468 = vmatprep.subr.mxu0 0.0
    %6469 = vmatpush1.msra.mxu0 0.0
    %6470 = vmatprep.subr.mxu0 0.0
    %6471 = vmatpush1.msra.mxu0 0.0
    %6472 = vmatprep.subr.mxu0 %v6434
    %6473 = vmatpush1.msra.mxu0 %v6433
    %6474 = vmatprep.subr.mxu0 0.0
    %6475 = vmatpush2.msra.mxu0 0.0
    %6476 = vmatprep.subr.mxu0 0.0
    %6477 = vmatpush2.msra.mxu0 0.0
    %6478 = vmatprep.subr.mxu0 0.0
    %6479 = vmatpush2.msra.mxu0 0.0
    %6480 = vmatprep.subr.mxu0 0.0
    %6481 = vmatpush2.msra.mxu0 0.0
    %6482 = vmatprep.subr.mxu0 0.0
    %6483 = vmatpush2.msra.mxu0 0.0
    %6484 = vmatprep.subr.mxu0 0.0
    %6485 = vmatpush2.msra.mxu0 0.0
    %6486 = vmatprep.subr.mxu0 0.0
    %6487 = vmatpush2.msra.mxu0 0.0
    %6488 = vmatprep.subr.mxu0 0.0
    %6489 = vmatpush2.msra.mxu0 0.0
    %6490 = vmatprep.subr.mxu0 0.0
    %6491 = vmatpush2.msra.mxu0 0.0
    %6492 = vmatprep.subr.mxu0 0.0
    %6493 = vmatpush2.msra.mxu0 0.0
    %6494 = vmatprep.subr.mxu0 0.0
    %6495 = vmatpush2.msra.mxu0 0.0
    %6496 = vmatprep.subr.mxu0 0.0
    %6497 = vmatpush2.msra.mxu0 0.0
    %6498 = vmatprep.subr.mxu0 0.0
    %6499 = vmatpush2.msra.mxu0 0.0
    %6500 = vmatprep.subr.mxu0 0.0
    %6501 = vmatpush2.msra.mxu0 0.0
    %6502 = vmatprep.subr.mxu0 0.0
    %6503 = vmatpush2.msra.mxu0 0.0
    %6504 = vmatprep.subr.mxu0 0.0
    %6505 = vmatpush2.msra.mxu0 0.0
    %6506 = vmatprep.mubr.f32.mxu0 0.0
    %6507 = vmatmul.mubr.f32.gmra.mxu0 %v6440
    %v6508 = vpop.f32.mrf.mxu0
    %v6509 = vadd.f32 0.0, %v6508
    %v6510 = vpop.f32.mrf.mxu0
    %v6511 = vadd.f32 0.0, %v6510
    %6512 = vdwg.mxu0
    %6513 = vmatprep.subr.mxu0 0.0
    %6514 = vmatpush1.msra.mxu0 0.0
    %6515 = vmatprep.subr.mxu0 0.0
    %6516 = vmatpush1.msra.mxu0 0.0
    %6517 = vmatprep.subr.mxu0 0.0
    %6518 = vmatpush1.msra.mxu0 0.0
    %6519 = vmatprep.subr.mxu0 0.0
    %6520 = vmatpush1.msra.mxu0 0.0
    %6521 = vmatprep.subr.mxu0 0.0
    %6522 = vmatpush1.msra.mxu0 0.0
    %6523 = vmatprep.subr.mxu0 0.0
    %6524 = vmatpush1.msra.mxu0 0.0
    %6525 = vmatprep.subr.mxu0 0.0
    %6526 = vmatpush1.msra.mxu0 0.0
    %6527 = vmatprep.subr.mxu0 0.0
    %6528 = vmatpush1.msra.mxu0 0.0
    %6529 = vmatprep.subr.mxu0 0.0
    %6530 = vmatpush1.msra.mxu0 0.0
    %6531 = vmatprep.subr.mxu0 0.0
    %6532 = vmatpush1.msra.mxu0 0.0
    %6533 = vmatprep.subr.mxu0 0.0
    %6534 = vmatpush1.msra.mxu0 0.0
    %6535 = vmatprep.subr.mxu0 0.0
    %6536 = vmatpush1.msra.mxu0 0.0
    %6537 = vmatprep.subr.mxu0 0.0
    %6538 = vmatpush1.msra.mxu0 0.0
    %6539 = vmatprep.subr.mxu0 0.0
    %6540 = vmatpush1.msra.mxu0 0.0
    %6541 = vmatprep.subr.mxu0 0.0
    %6542 = vmatpush1.msra.mxu0 0.0
    %6543 = vmatprep.subr.mxu0 0.0
    %6544 = vmatpush1.msra.mxu0 %v6435
    %6545 = vmatprep.subr.mxu0 0.0
    %6546 = vmatpush2.msra.mxu0 0.0
    %6547 = vmatprep.subr.mxu0 0.0
    %6548 = vmatpush2.msra.mxu0 0.0
    %6549 = vmatprep.subr.mxu0 0.0
    %6550 = vmatpush2.msra.mxu0 0.0
    %6551 = vmatprep.subr.mxu0 0.0
    %6552 = vmatpush2.msra.mxu0 0.0
    %6553 = vmatprep.subr.mxu0 0.0
    %6554 = vmatpush2.msra.mxu0 0.0
    %6555 = vmatprep.subr.mxu0 0.0
    %6556 = vmatpush2.msra.mxu0 0.0
    %6557 = vmatprep.subr.mxu0 0.0
    %6558 = vmatpush2.msra.mxu0 0.0
    %6559 = vmatprep.subr.mxu0 0.0
    %6560 = vmatpush2.msra.mxu0 0.0
    %6561 = vmatprep.subr.mxu0 0.0
    %6562 = vmatpush2.msra.mxu0 0.0
    %6563 = vmatprep.subr.mxu0 0.0
    %6564 = vmatpush2.msra.mxu0 0.0
    %6565 = vmatprep.subr.mxu0 0.0
    %6566 = vmatpush2.msra.mxu0 0.0
    %6567 = vmatprep.subr.mxu0 0.0
    %6568 = vmatpush2.msra.mxu0 0.0
    %6569 = vmatprep.subr.mxu0 0.0
    %6570 = vmatpush2.msra.mxu0 0.0
    %6571 = vmatprep.subr.mxu0 0.0
    %6572 = vmatpush2.msra.mxu0 0.0
    %6573 = vmatprep.subr.mxu0 0.0
    %6574 = vmatpush2.msra.mxu0 0.0
    %6575 = vmatprep.subr.mxu0 0.0
    %6576 = vmatpush2.msra.mxu0 0.0
    %6577 = vmatprep.mubr.f32.mxu0 0.0
    %6578 = vmatmul.mubr.f32.gmra.mxu0 %v6440
    %v6579 = vpop.f32.mrf.mxu0
    %v6580 = vadd.f32 0.0, %v6579
    %v6581 = vpop.f32.mrf.mxu0
    %6582 = vdwg.mxu0
    %v6583 = vadd.f32 %v6350, %v6509
    %v6584 = vadd.f32 %v6352, %v6511
    %v6585 = vadd.f32 %v6421, %v6580
    %v6586 = vld [vmem:[%s2035] sm:$0xff]
    %6587 = vrot.lane.b32.xlu0 %v6099, 1
    %v6588 = vpop.permute.xlu0 %6587
    %6589 = vrot.lane.b32.xlu0 %v6100, 1
    %v6590 = vpop.permute.xlu0 %6589
    %6591 = vrot.lane.b32.xlu0 %v6101, 1
    %v6592 = vpop.permute.xlu0 %6591
    %6593 = vrot.lane.b32.xlu0 %v6102, 1
    %v6594 = vpop.permute.xlu0 %6593
    %v6595 = vsel %vm535, %v6588, %v6590
    %v6596 = vsel %vm535, %v6590, %v6592
    %v6597 = vsel %vm535, %v6592, %v6594
    %v6602 = vsel %vm57, %v6586, 0
    %6604 = vmatprep.subr.mxu0 0.0
    %6605 = vmatpush1.msra.mxu0 0.0
    %6606 = vmatprep.subr.mxu0 0.0
    %6607 = vmatpush1.msra.mxu0 0.0
    %6608 = vmatprep.subr.mxu0 0.0
    %6609 = vmatpush1.msra.mxu0 0.0
    %6610 = vmatprep.subr.mxu0 0.0
    %6611 = vmatpush1.msra.mxu0 0.0
    %6612 = vmatprep.subr.mxu0 0.0
    %6613 = vmatpush1.msra.mxu0 0.0
    %6614 = vmatprep.subr.mxu0 0.0
    %6615 = vmatpush1.msra.mxu0 0.0
    %6616 = vmatprep.subr.mxu0 0.0
    %6617 = vmatpush1.msra.mxu0 0.0
    %6618 = vmatprep.subr.mxu0 0.0
    %6619 = vmatpush1.msra.mxu0 0.0
    %6620 = vmatprep.subr.mxu0 0.0
    %6621 = vmatpush1.msra.mxu0 0.0
    %6622 = vmatprep.subr.mxu0 0.0
    %6623 = vmatpush1.msra.mxu0 0.0
    %6624 = vmatprep.subr.mxu0 0.0
    %6625 = vmatpush1.msra.mxu0 0.0
    %6626 = vmatprep.subr.mxu0 0.0
    %6627 = vmatpush1.msra.mxu0 0.0
    %6628 = vmatprep.subr.mxu0 0.0
    %6629 = vmatpush1.msra.mxu0 0.0
    %6630 = vmatprep.subr.mxu0 0.0
    %6631 = vmatpush1.msra.mxu0 0.0
    %6632 = vmatprep.subr.mxu0 0.0
    %6633 = vmatpush1.msra.mxu0 0.0
    %6634 = vmatprep.subr.mxu0 %v6596
    %6635 = vmatpush1.msra.mxu0 %v6595
    %6636 = vmatprep.subr.mxu0 0.0
    %6637 = vmatpush2.msra.mxu0 0.0
    %6638 = vmatprep.subr.mxu0 0.0
    %6639 = vmatpush2.msra.mxu0 0.0
    %6640 = vmatprep.subr.mxu0 0.0
    %6641 = vmatpush2.msra.mxu0 0.0
    %6642 = vmatprep.subr.mxu0 0.0
    %6643 = vmatpush2.msra.mxu0 0.0
    %6644 = vmatprep.subr.mxu0 0.0
    %6645 = vmatpush2.msra.mxu0 0.0
    %6646 = vmatprep.subr.mxu0 0.0
    %6647 = vmatpush2.msra.mxu0 0.0
    %6648 = vmatprep.subr.mxu0 0.0
    %6649 = vmatpush2.msra.mxu0 0.0
    %6650 = vmatprep.subr.mxu0 0.0
    %6651 = vmatpush2.msra.mxu0 0.0
    %6652 = vmatprep.subr.mxu0 0.0
    %6653 = vmatpush2.msra.mxu0 0.0
    %6654 = vmatprep.subr.mxu0 0.0
    %6655 = vmatpush2.msra.mxu0 0.0
    %6656 = vmatprep.subr.mxu0 0.0
    %6657 = vmatpush2.msra.mxu0 0.0
    %6658 = vmatprep.subr.mxu0 0.0
    %6659 = vmatpush2.msra.mxu0 0.0
    %6660 = vmatprep.subr.mxu0 0.0
    %6661 = vmatpush2.msra.mxu0 0.0
    %6662 = vmatprep.subr.mxu0 0.0
    %6663 = vmatpush2.msra.mxu0 0.0
    %6664 = vmatprep.subr.mxu0 0.0
    %6665 = vmatpush2.msra.mxu0 0.0
    %6666 = vmatprep.subr.mxu0 0.0
    %6667 = vmatpush2.msra.mxu0 0.0
    %6668 = vmatprep.mubr.f32.mxu0 0.0
    %6669 = vmatmul.mubr.f32.gmra.mxu0 %v6602
    %v6670 = vpop.f32.mrf.mxu0
    %v6671 = vadd.f32 0.0, %v6670
    %v6672 = vpop.f32.mrf.mxu0
    %v6673 = vadd.f32 0.0, %v6672
    %6674 = vdwg.mxu0
    %6675 = vmatprep.subr.mxu0 0.0
    %6676 = vmatpush1.msra.mxu0 0.0
    %6677 = vmatprep.subr.mxu0 0.0
    %6678 = vmatpush1.msra.mxu0 0.0
    %6679 = vmatprep.subr.mxu0 0.0
    %6680 = vmatpush1.msra.mxu0 0.0
    %6681 = vmatprep.subr.mxu0 0.0
    %6682 = vmatpush1.msra.mxu0 0.0
    %6683 = vmatprep.subr.mxu0 0.0
    %6684 = vmatpush1.msra.mxu0 0.0
    %6685 = vmatprep.subr.mxu0 0.0
    %6686 = vmatpush1.msra.mxu0 0.0
    %6687 = vmatprep.subr.mxu0 0.0
    %6688 = vmatpush1.msra.mxu0 0.0
    %6689 = vmatprep.subr.mxu0 0.0
    %6690 = vmatpush1.msra.mxu0 0.0
    %6691 = vmatprep.subr.mxu0 0.0
    %6692 = vmatpush1.msra.mxu0 0.0
    %6693 = vmatprep.subr.mxu0 0.0
    %6694 = vmatpush1.msra.mxu0 0.0
    %6695 = vmatprep.subr.mxu0 0.0
    %6696 = vmatpush1.msra.mxu0 0.0
    %6697 = vmatprep.subr.mxu0 0.0
    %6698 = vmatpush1.msra.mxu0 0.0
    %6699 = vmatprep.subr.mxu0 0.0
    %6700 = vmatpush1.msra.mxu0 0.0
    %6701 = vmatprep.subr.mxu0 0.0
    %6702 = vmatpush1.msra.mxu0 0.0
    %6703 = vmatprep.subr.mxu0 0.0
    %6704 = vmatpush1.msra.mxu0 0.0
    %6705 = vmatprep.subr.mxu0 0.0
    %6706 = vmatpush1.msra.mxu0 %v6597
    %6707 = vmatprep.subr.mxu0 0.0
    %6708 = vmatpush2.msra.mxu0 0.0
    %6709 = vmatprep.subr.mxu0 0.0
    %6710 = vmatpush2.msra.mxu0 0.0
    %6711 = vmatprep.subr.mxu0 0.0
    %6712 = vmatpush2.msra.mxu0 0.0
    %6713 = vmatprep.subr.mxu0 0.0
    %6714 = vmatpush2.msra.mxu0 0.0
    %6715 = vmatprep.subr.mxu0 0.0
    %6716 = vmatpush2.msra.mxu0 0.0
    %6717 = vmatprep.subr.mxu0 0.0
    %6718 = vmatpush2.msra.mxu0 0.0
    %6719 = vmatprep.subr.mxu0 0.0
    %6720 = vmatpush2.msra.mxu0 0.0
    %6721 = vmatprep.subr.mxu0 0.0
    %6722 = vmatpush2.msra.mxu0 0.0
    %6723 = vmatprep.subr.mxu0 0.0
    %6724 = vmatpush2.msra.mxu0 0.0
    %6725 = vmatprep.subr.mxu0 0.0
    %6726 = vmatpush2.msra.mxu0 0.0
    %6727 = vmatprep.subr.mxu0 0.0
    %6728 = vmatpush2.msra.mxu0 0.0
    %6729 = vmatprep.subr.mxu0 0.0
    %6730 = vmatpush2.msra.mxu0 0.0
    %6731 = vmatprep.subr.mxu0 0.0
    %6732 = vmatpush2.msra.mxu0 0.0
    %6733 = vmatprep.subr.mxu0 0.0
    %6734 = vmatpush2.msra.mxu0 0.0
    %6735 = vmatprep.subr.mxu0 0.0
    %6736 = vmatpush2.msra.mxu0 0.0
    %6737 = vmatprep.subr.mxu0 0.0
    %6738 = vmatpush2.msra.mxu0 0.0
    %6739 = vmatprep.mubr.f32.mxu0 0.0
    %6740 = vmatmul.mubr.f32.gmra.mxu0 %v6602
    %v6741 = vpop.f32.mrf.mxu0
    %v6742 = vadd.f32 0.0, %v6741
    %v6743 = vpop.f32.mrf.mxu0
    %6744 = vdwg.mxu0
    %v6745 = vadd.f32 %v6583, %v6671
    %v6746 = vadd.f32 %v6584, %v6673
    %v6747 = vadd.f32 %v6585, %v6742
    %v6748 = vld [vmem:[%s2198] sm:$0xff]
    %v6750 = vsel %vm57, %v6748, 0
    %6752 = vmatprep.subr.mxu0 0.0
    %6753 = vmatpush1.msra.mxu0 0.0
    %6754 = vmatprep.subr.mxu0 0.0
    %6755 = vmatpush1.msra.mxu0 0.0
    %6756 = vmatprep.subr.mxu0 0.0
    %6757 = vmatpush1.msra.mxu0 0.0
    %6758 = vmatprep.subr.mxu0 0.0
    %6759 = vmatpush1.msra.mxu0 0.0
    %6760 = vmatprep.subr.mxu0 0.0
    %6761 = vmatpush1.msra.mxu0 0.0
    %6762 = vmatprep.subr.mxu0 0.0
    %6763 = vmatpush1.msra.mxu0 0.0
    %6764 = vmatprep.subr.mxu0 0.0
    %6765 = vmatpush1.msra.mxu0 0.0
    %6766 = vmatprep.subr.mxu0 0.0
    %6767 = vmatpush1.msra.mxu0 0.0
    %6768 = vmatprep.subr.mxu0 0.0
    %6769 = vmatpush1.msra.mxu0 0.0
    %6770 = vmatprep.subr.mxu0 0.0
    %6771 = vmatpush1.msra.mxu0 0.0
    %6772 = vmatprep.subr.mxu0 0.0
    %6773 = vmatpush1.msra.mxu0 0.0
    %6774 = vmatprep.subr.mxu0 0.0
    %6775 = vmatpush1.msra.mxu0 0.0
    %6776 = vmatprep.subr.mxu0 0.0
    %6777 = vmatpush1.msra.mxu0 0.0
    %6778 = vmatprep.subr.mxu0 0.0
    %6779 = vmatpush1.msra.mxu0 0.0
    %6780 = vmatprep.subr.mxu0 0.0
    %6781 = vmatpush1.msra.mxu0 0.0
    %6782 = vmatprep.subr.mxu0 %v6101
    %6783 = vmatpush1.msra.mxu0 %v6100
    %6784 = vmatprep.subr.mxu0 0.0
    %6785 = vmatpush2.msra.mxu0 0.0
    %6786 = vmatprep.subr.mxu0 0.0
    %6787 = vmatpush2.msra.mxu0 0.0
    %6788 = vmatprep.subr.mxu0 0.0
    %6789 = vmatpush2.msra.mxu0 0.0
    %6790 = vmatprep.subr.mxu0 0.0
    %6791 = vmatpush2.msra.mxu0 0.0
    %6792 = vmatprep.subr.mxu0 0.0
    %6793 = vmatpush2.msra.mxu0 0.0
    %6794 = vmatprep.subr.mxu0 0.0
    %6795 = vmatpush2.msra.mxu0 0.0
    %6796 = vmatprep.subr.mxu0 0.0
    %6797 = vmatpush2.msra.mxu0 0.0
    %6798 = vmatprep.subr.mxu0 0.0
    %6799 = vmatpush2.msra.mxu0 0.0
    %6800 = vmatprep.subr.mxu0 0.0
    %6801 = vmatpush2.msra.mxu0 0.0
    %6802 = vmatprep.subr.mxu0 0.0
    %6803 = vmatpush2.msra.mxu0 0.0
    %6804 = vmatprep.subr.mxu0 0.0
    %6805 = vmatpush2.msra.mxu0 0.0
    %6806 = vmatprep.subr.mxu0 0.0
    %6807 = vmatpush2.msra.mxu0 0.0
    %6808 = vmatprep.subr.mxu0 0.0
    %6809 = vmatpush2.msra.mxu0 0.0
    %6810 = vmatprep.subr.mxu0 0.0
    %6811 = vmatpush2.msra.mxu0 0.0
    %6812 = vmatprep.subr.mxu0 0.0
    %6813 = vmatpush2.msra.mxu0 0.0
    %6814 = vmatprep.subr.mxu0 0.0
    %6815 = vmatpush2.msra.mxu0 0.0
    %6816 = vmatprep.mubr.f32.mxu0 0.0
    %6817 = vmatmul.mubr.f32.gmra.mxu0 %v6750
    %v6818 = vpop.f32.mrf.mxu0
    %v6819 = vadd.f32 0.0, %v6818
    %v6820 = vpop.f32.mrf.mxu0
    %v6821 = vadd.f32 0.0, %v6820
    %6822 = vdwg.mxu0
    %6823 = vmatprep.subr.mxu0 0.0
    %6824 = vmatpush1.msra.mxu0 0.0
    %6825 = vmatprep.subr.mxu0 0.0
    %6826 = vmatpush1.msra.mxu0 0.0
    %6827 = vmatprep.subr.mxu0 0.0
    %6828 = vmatpush1.msra.mxu0 0.0
    %6829 = vmatprep.subr.mxu0 0.0
    %6830 = vmatpush1.msra.mxu0 0.0
    %6831 = vmatprep.subr.mxu0 0.0
    %6832 = vmatpush1.msra.mxu0 0.0
    %6833 = vmatprep.subr.mxu0 0.0
    %6834 = vmatpush1.msra.mxu0 0.0
    %6835 = vmatprep.subr.mxu0 0.0
    %6836 = vmatpush1.msra.mxu0 0.0
    %6837 = vmatprep.subr.mxu0 0.0
    %6838 = vmatpush1.msra.mxu0 0.0
    %6839 = vmatprep.subr.mxu0 0.0
    %6840 = vmatpush1.msra.mxu0 0.0
    %6841 = vmatprep.subr.mxu0 0.0
    %6842 = vmatpush1.msra.mxu0 0.0
    %6843 = vmatprep.subr.mxu0 0.0
    %6844 = vmatpush1.msra.mxu0 0.0
    %6845 = vmatprep.subr.mxu0 0.0
    %6846 = vmatpush1.msra.mxu0 0.0
    %6847 = vmatprep.subr.mxu0 0.0
    %6848 = vmatpush1.msra.mxu0 0.0
    %6849 = vmatprep.subr.mxu0 0.0
    %6850 = vmatpush1.msra.mxu0 0.0
    %6851 = vmatprep.subr.mxu0 0.0
    %6852 = vmatpush1.msra.mxu0 0.0
    %6853 = vmatprep.subr.mxu0 0.0
    %6854 = vmatpush1.msra.mxu0 %v6102
    %6855 = vmatprep.subr.mxu0 0.0
    %6856 = vmatpush2.msra.mxu0 0.0
    %6857 = vmatprep.subr.mxu0 0.0
    %6858 = vmatpush2.msra.mxu0 0.0
    %6859 = vmatprep.subr.mxu0 0.0
    %6860 = vmatpush2.msra.mxu0 0.0
    %6861 = vmatprep.subr.mxu0 0.0
    %6862 = vmatpush2.msra.mxu0 0.0
    %6863 = vmatprep.subr.mxu0 0.0
    %6864 = vmatpush2.msra.mxu0 0.0
    %6865 = vmatprep.subr.mxu0 0.0
    %6866 = vmatpush2.msra.mxu0 0.0
    %6867 = vmatprep.subr.mxu0 0.0
    %6868 = vmatpush2.msra.mxu0 0.0
    %6869 = vmatprep.subr.mxu0 0.0
    %6870 = vmatpush2.msra.mxu0 0.0
    %6871 = vmatprep.subr.mxu0 0.0
    %6872 = vmatpush2.msra.mxu0 0.0
    %6873 = vmatprep.subr.mxu0 0.0
    %6874 = vmatpush2.msra.mxu0 0.0
    %6875 = vmatprep.subr.mxu0 0.0
    %6876 = vmatpush2.msra.mxu0 0.0
    %6877 = vmatprep.subr.mxu0 0.0
    %6878 = vmatpush2.msra.mxu0 0.0
    %6879 = vmatprep.subr.mxu0 0.0
    %6880 = vmatpush2.msra.mxu0 0.0
    %6881 = vmatprep.subr.mxu0 0.0
    %6882 = vmatpush2.msra.mxu0 0.0
    %6883 = vmatprep.subr.mxu0 0.0
    %6884 = vmatpush2.msra.mxu0 0.0
    %6885 = vmatprep.subr.mxu0 0.0
    %6886 = vmatpush2.msra.mxu0 0.0
    %6887 = vmatprep.mubr.f32.mxu0 0.0
    %6888 = vmatmul.mubr.f32.gmra.mxu0 %v6750
    %v6889 = vpop.f32.mrf.mxu0
    %v6890 = vadd.f32 0.0, %v6889
    %v6891 = vpop.f32.mrf.mxu0
    %6892 = vdwg.mxu0
    %v6893 = vadd.f32 %v6745, %v6819
    %v6894 = vadd.f32 %v6746, %v6821
    %v6895 = vadd.f32 %v6747, %v6890
    %v6896 = vld [vmem:[%s2347] sm:$0xff]
    %v6897 = vld [vmem:[#allocation2 + $0x8] sm:$0xff]
    %v6898 = vld [vmem:[#allocation2 + $0x10] sm:$0xff]
    %v6899 = vld [vmem:[#allocation2 + $0x18] sm:$0xff]
    %v6900 = vld [vmem:[#allocation2 + $0x20] sm:$0xff]
    %6905 = vrot.lane.b32.xlu0 %v6897, 127
    %v6906 = vpop.permute.xlu0 %6905
    %6907 = vrot.lane.b32.xlu0 %v6898, 127
    %v6908 = vpop.permute.xlu0 %6907
    %6909 = vrot.lane.b32.xlu0 %v6899, 127
    %v6910 = vpop.permute.xlu0 %6909
    %6911 = vrot.lane.b32.xlu0 %v6900, 127
    %v6912 = vpop.permute.xlu0 %6911
    %v6913 = vsel %vm856, %v6906, %v6908
    %v6914 = vsel %vm856, %v6908, %v6910
    %v6915 = vsel %vm856, %v6910, %v6912
    %v6920 = vsel %vm57, %v6896, 0
    %6922 = vmatprep.subr.mxu0 0.0
    %6923 = vmatpush1.msra.mxu0 0.0
    %6924 = vmatprep.subr.mxu0 0.0
    %6925 = vmatpush1.msra.mxu0 0.0
    %6926 = vmatprep.subr.mxu0 0.0
    %6927 = vmatpush1.msra.mxu0 0.0
    %6928 = vmatprep.subr.mxu0 0.0
    %6929 = vmatpush1.msra.mxu0 0.0
    %6930 = vmatprep.subr.mxu0 0.0
    %6931 = vmatpush1.msra.mxu0 0.0
    %6932 = vmatprep.subr.mxu0 0.0
    %6933 = vmatpush1.msra.mxu0 0.0
    %6934 = vmatprep.subr.mxu0 0.0
    %6935 = vmatpush1.msra.mxu0 0.0
    %6936 = vmatprep.subr.mxu0 0.0
    %6937 = vmatpush1.msra.mxu0 0.0
    %6938 = vmatprep.subr.mxu0 0.0
    %6939 = vmatpush1.msra.mxu0 0.0
    %6940 = vmatprep.subr.mxu0 0.0
    %6941 = vmatpush1.msra.mxu0 0.0
    %6942 = vmatprep.subr.mxu0 0.0
    %6943 = vmatpush1.msra.mxu0 0.0
    %6944 = vmatprep.subr.mxu0 0.0
    %6945 = vmatpush1.msra.mxu0 0.0
    %6946 = vmatprep.subr.mxu0 0.0
    %6947 = vmatpush1.msra.mxu0 0.0
    %6948 = vmatprep.subr.mxu0 0.0
    %6949 = vmatpush1.msra.mxu0 0.0
    %6950 = vmatprep.subr.mxu0 0.0
    %6951 = vmatpush1.msra.mxu0 0.0
    %6952 = vmatprep.subr.mxu0 %v6914
    %6953 = vmatpush1.msra.mxu0 %v6913
    %6954 = vmatprep.subr.mxu0 0.0
    %6955 = vmatpush2.msra.mxu0 0.0
    %6956 = vmatprep.subr.mxu0 0.0
    %6957 = vmatpush2.msra.mxu0 0.0
    %6958 = vmatprep.subr.mxu0 0.0
    %6959 = vmatpush2.msra.mxu0 0.0
    %6960 = vmatprep.subr.mxu0 0.0
    %6961 = vmatpush2.msra.mxu0 0.0
    %6962 = vmatprep.subr.mxu0 0.0
    %6963 = vmatpush2.msra.mxu0 0.0
    %6964 = vmatprep.subr.mxu0 0.0
    %6965 = vmatpush2.msra.mxu0 0.0
    %6966 = vmatprep.subr.mxu0 0.0
    %6967 = vmatpush2.msra.mxu0 0.0
    %6968 = vmatprep.subr.mxu0 0.0
    %6969 = vmatpush2.msra.mxu0 0.0
    %6970 = vmatprep.subr.mxu0 0.0
    %6971 = vmatpush2.msra.mxu0 0.0
    %6972 = vmatprep.subr.mxu0 0.0
    %6973 = vmatpush2.msra.mxu0 0.0
    %6974 = vmatprep.subr.mxu0 0.0
    %6975 = vmatpush2.msra.mxu0 0.0
    %6976 = vmatprep.subr.mxu0 0.0
    %6977 = vmatpush2.msra.mxu0 0.0
    %6978 = vmatprep.subr.mxu0 0.0
    %6979 = vmatpush2.msra.mxu0 0.0
    %6980 = vmatprep.subr.mxu0 0.0
    %6981 = vmatpush2.msra.mxu0 0.0
    %6982 = vmatprep.subr.mxu0 0.0
    %6983 = vmatpush2.msra.mxu0 0.0
    %6984 = vmatprep.subr.mxu0 0.0
    %6985 = vmatpush2.msra.mxu0 0.0
    %6986 = vmatprep.mubr.f32.mxu0 0.0
    %6987 = vmatmul.mubr.f32.gmra.mxu0 %v6920
    %v6988 = vpop.f32.mrf.mxu0
    %v6989 = vadd.f32 0.0, %v6988
    %v6990 = vpop.f32.mrf.mxu0
    %v6991 = vadd.f32 0.0, %v6990
    %6992 = vdwg.mxu0
    %6993 = vmatprep.subr.mxu0 0.0
    %6994 = vmatpush1.msra.mxu0 0.0
    %6995 = vmatprep.subr.mxu0 0.0
    %6996 = vmatpush1.msra.mxu0 0.0
    %6997 = vmatprep.subr.mxu0 0.0
    %6998 = vmatpush1.msra.mxu0 0.0
    %6999 = vmatprep.subr.mxu0 0.0
    %7000 = vmatpush1.msra.mxu0 0.0
    %7001 = vmatprep.subr.mxu0 0.0
    %7002 = vmatpush1.msra.mxu0 0.0
    %7003 = vmatprep.subr.mxu0 0.0
    %7004 = vmatpush1.msra.mxu0 0.0
    %7005 = vmatprep.subr.mxu0 0.0
    %7006 = vmatpush1.msra.mxu0 0.0
    %7007 = vmatprep.subr.mxu0 0.0
    %7008 = vmatpush1.msra.mxu0 0.0
    %7009 = vmatprep.subr.mxu0 0.0
    %7010 = vmatpush1.msra.mxu0 0.0
    %7011 = vmatprep.subr.mxu0 0.0
    %7012 = vmatpush1.msra.mxu0 0.0
    %7013 = vmatprep.subr.mxu0 0.0
    %7014 = vmatpush1.msra.mxu0 0.0
    %7015 = vmatprep.subr.mxu0 0.0
    %7016 = vmatpush1.msra.mxu0 0.0
    %7017 = vmatprep.subr.mxu0 0.0
    %7018 = vmatpush1.msra.mxu0 0.0
    %7019 = vmatprep.subr.mxu0 0.0
    %7020 = vmatpush1.msra.mxu0 0.0
    %7021 = vmatprep.subr.mxu0 0.0
    %7022 = vmatpush1.msra.mxu0 0.0
    %7023 = vmatprep.subr.mxu0 0.0
    %7024 = vmatpush1.msra.mxu0 %v6915
    %7025 = vmatprep.subr.mxu0 0.0
    %7026 = vmatpush2.msra.mxu0 0.0
    %7027 = vmatprep.subr.mxu0 0.0
    %7028 = vmatpush2.msra.mxu0 0.0
    %7029 = vmatprep.subr.mxu0 0.0
    %7030 = vmatpush2.msra.mxu0 0.0
    %7031 = vmatprep.subr.mxu0 0.0
    %7032 = vmatpush2.msra.mxu0 0.0
    %7033 = vmatprep.subr.mxu0 0.0
    %7034 = vmatpush2.msra.mxu0 0.0
    %7035 = vmatprep.subr.mxu0 0.0
    %7036 = vmatpush2.msra.mxu0 0.0
    %7037 = vmatprep.subr.mxu0 0.0
    %7038 = vmatpush2.msra.mxu0 0.0
    %7039 = vmatprep.subr.mxu0 0.0
    %7040 = vmatpush2.msra.mxu0 0.0
    %7041 = vmatprep.subr.mxu0 0.0
    %7042 = vmatpush2.msra.mxu0 0.0
    %7043 = vmatprep.subr.mxu0 0.0
    %7044 = vmatpush2.msra.mxu0 0.0
    %7045 = vmatprep.subr.mxu0 0.0
    %7046 = vmatpush2.msra.mxu0 0.0
    %7047 = vmatprep.subr.mxu0 0.0
    %7048 = vmatpush2.msra.mxu0 0.0
    %7049 = vmatprep.subr.mxu0 0.0
    %7050 = vmatpush2.msra.mxu0 0.0
    %7051 = vmatprep.subr.mxu0 0.0
    %7052 = vmatpush2.msra.mxu0 0.0
    %7053 = vmatprep.subr.mxu0 0.0
    %7054 = vmatpush2.msra.mxu0 0.0
    %7055 = vmatprep.subr.mxu0 0.0
    %7056 = vmatpush2.msra.mxu0 0.0
    %7057 = vmatprep.mubr.f32.mxu0 0.0
    %7058 = vmatmul.mubr.f32.gmra.mxu0 %v6920
    %v7059 = vpop.f32.mrf.mxu0
    %v7060 = vadd.f32 0.0, %v7059
    %v7061 = vpop.f32.mrf.mxu0
    %7062 = vdwg.mxu0
    %v7063 = vadd.f32 %v6893, %v6989
    %v7064 = vadd.f32 %v6894, %v6991
    %v7065 = vadd.f32 %v6895, %v7060
    %v7066 = vld [vmem:[%s2518] sm:$0xff]
    %7067 = vrot.lane.b32.xlu0 %v6897, 111
    %v7068 = vpop.permute.xlu0 %7067
    %7069 = vrot.lane.b32.xlu0 %v6898, 111
    %v7070 = vpop.permute.xlu0 %7069
    %7071 = vrot.lane.b32.xlu0 %v6899, 111
    %v7072 = vpop.permute.xlu0 %7071
    %7073 = vrot.lane.b32.xlu0 %v6900, 111
    %v7074 = vpop.permute.xlu0 %7073
    %v7075 = vsel %vm1020, %v7068, %v7070
    %v7076 = vsel %vm1020, %v7070, %v7072
    %v7077 = vsel %vm1020, %v7072, %v7074
    %v7082 = vsel %vm57, %v7066, 0
    %7084 = vmatprep.subr.mxu0 0.0
    %7085 = vmatpush1.msra.mxu0 0.0
    %7086 = vmatprep.subr.mxu0 0.0
    %7087 = vmatpush1.msra.mxu0 0.0
    %7088 = vmatprep.subr.mxu0 0.0
    %7089 = vmatpush1.msra.mxu0 0.0
    %7090 = vmatprep.subr.mxu0 0.0
    %7091 = vmatpush1.msra.mxu0 0.0
    %7092 = vmatprep.subr.mxu0 0.0
    %7093 = vmatpush1.msra.mxu0 0.0
    %7094 = vmatprep.subr.mxu0 0.0
    %7095 = vmatpush1.msra.mxu0 0.0
    %7096 = vmatprep.subr.mxu0 0.0
    %7097 = vmatpush1.msra.mxu0 0.0
    %7098 = vmatprep.subr.mxu0 0.0
    %7099 = vmatpush1.msra.mxu0 0.0
    %7100 = vmatprep.subr.mxu0 0.0
    %7101 = vmatpush1.msra.mxu0 0.0
    %7102 = vmatprep.subr.mxu0 0.0
    %7103 = vmatpush1.msra.mxu0 0.0
    %7104 = vmatprep.subr.mxu0 0.0
    %7105 = vmatpush1.msra.mxu0 0.0
    %7106 = vmatprep.subr.mxu0 0.0
    %7107 = vmatpush1.msra.mxu0 0.0
    %7108 = vmatprep.subr.mxu0 0.0
    %7109 = vmatpush1.msra.mxu0 0.0
    %7110 = vmatprep.subr.mxu0 0.0
    %7111 = vmatpush1.msra.mxu0 0.0
    %7112 = vmatprep.subr.mxu0 0.0
    %7113 = vmatpush1.msra.mxu0 0.0
    %7114 = vmatprep.subr.mxu0 %v7076
    %7115 = vmatpush1.msra.mxu0 %v7075
    %7116 = vmatprep.subr.mxu0 0.0
    %7117 = vmatpush2.msra.mxu0 0.0
    %7118 = vmatprep.subr.mxu0 0.0
    %7119 = vmatpush2.msra.mxu0 0.0
    %7120 = vmatprep.subr.mxu0 0.0
    %7121 = vmatpush2.msra.mxu0 0.0
    %7122 = vmatprep.subr.mxu0 0.0
    %7123 = vmatpush2.msra.mxu0 0.0
    %7124 = vmatprep.subr.mxu0 0.0
    %7125 = vmatpush2.msra.mxu0 0.0
    %7126 = vmatprep.subr.mxu0 0.0
    %7127 = vmatpush2.msra.mxu0 0.0
    %7128 = vmatprep.subr.mxu0 0.0
    %7129 = vmatpush2.msra.mxu0 0.0
    %7130 = vmatprep.subr.mxu0 0.0
    %7131 = vmatpush2.msra.mxu0 0.0
    %7132 = vmatprep.subr.mxu0 0.0
    %7133 = vmatpush2.msra.mxu0 0.0
    %7134 = vmatprep.subr.mxu0 0.0
    %7135 = vmatpush2.msra.mxu0 0.0
    %7136 = vmatprep.subr.mxu0 0.0
    %7137 = vmatpush2.msra.mxu0 0.0
    %7138 = vmatprep.subr.mxu0 0.0
    %7139 = vmatpush2.msra.mxu0 0.0
    %7140 = vmatprep.subr.mxu0 0.0
    %7141 = vmatpush2.msra.mxu0 0.0
    %7142 = vmatprep.subr.mxu0 0.0
    %7143 = vmatpush2.msra.mxu0 0.0
    %7144 = vmatprep.subr.mxu0 0.0
    %7145 = vmatpush2.msra.mxu0 0.0
    %7146 = vmatprep.subr.mxu0 0.0
    %7147 = vmatpush2.msra.mxu0 0.0
    %7148 = vmatprep.mubr.f32.mxu0 0.0
    %7149 = vmatmul.mubr.f32.gmra.mxu0 %v7082
    %v7150 = vpop.f32.mrf.mxu0
    %v7151 = vadd.f32 0.0, %v7150
    %v7152 = vpop.f32.mrf.mxu0
    %v7153 = vadd.f32 0.0, %v7152
    %7154 = vdwg.mxu0
    %7155 = vmatprep.subr.mxu0 0.0
    %7156 = vmatpush1.msra.mxu0 0.0
    %7157 = vmatprep.subr.mxu0 0.0
    %7158 = vmatpush1.msra.mxu0 0.0
    %7159 = vmatprep.subr.mxu0 0.0
    %7160 = vmatpush1.msra.mxu0 0.0
    %7161 = vmatprep.subr.mxu0 0.0
    %7162 = vmatpush1.msra.mxu0 0.0
    %7163 = vmatprep.subr.mxu0 0.0
    %7164 = vmatpush1.msra.mxu0 0.0
    %7165 = vmatprep.subr.mxu0 0.0
    %7166 = vmatpush1.msra.mxu0 0.0
    %7167 = vmatprep.subr.mxu0 0.0
    %7168 = vmatpush1.msra.mxu0 0.0
    %7169 = vmatprep.subr.mxu0 0.0
    %7170 = vmatpush1.msra.mxu0 0.0
    %7171 = vmatprep.subr.mxu0 0.0
    %7172 = vmatpush1.msra.mxu0 0.0
    %7173 = vmatprep.subr.mxu0 0.0
    %7174 = vmatpush1.msra.mxu0 0.0
    %7175 = vmatprep.subr.mxu0 0.0
    %7176 = vmatpush1.msra.mxu0 0.0
    %7177 = vmatprep.subr.mxu0 0.0
    %7178 = vmatpush1.msra.mxu0 0.0
    %7179 = vmatprep.subr.mxu0 0.0
    %7180 = vmatpush1.msra.mxu0 0.0
    %7181 = vmatprep.subr.mxu0 0.0
    %7182 = vmatpush1.msra.mxu0 0.0
    %7183 = vmatprep.subr.mxu0 0.0
    %7184 = vmatpush1.msra.mxu0 0.0
    %7185 = vmatprep.subr.mxu0 0.0
    %7186 = vmatpush1.msra.mxu0 %v7077
    %7187 = vmatprep.subr.mxu0 0.0
    %7188 = vmatpush2.msra.mxu0 0.0
    %7189 = vmatprep.subr.mxu0 0.0
    %7190 = vmatpush2.msra.mxu0 0.0
    %7191 = vmatprep.subr.mxu0 0.0
    %7192 = vmatpush2.msra.mxu0 0.0
    %7193 = vmatprep.subr.mxu0 0.0
    %7194 = vmatpush2.msra.mxu0 0.0
    %7195 = vmatprep.subr.mxu0 0.0
    %7196 = vmatpush2.msra.mxu0 0.0
    %7197 = vmatprep.subr.mxu0 0.0
    %7198 = vmatpush2.msra.mxu0 0.0
    %7199 = vmatprep.subr.mxu0 0.0
    %7200 = vmatpush2.msra.mxu0 0.0
    %7201 = vmatprep.subr.mxu0 0.0
    %7202 = vmatpush2.msra.mxu0 0.0
    %7203 = vmatprep.subr.mxu0 0.0
    %7204 = vmatpush2.msra.mxu0 0.0
    %7205 = vmatprep.subr.mxu0 0.0
    %7206 = vmatpush2.msra.mxu0 0.0
    %7207 = vmatprep.subr.mxu0 0.0
    %7208 = vmatpush2.msra.mxu0 0.0
    %7209 = vmatprep.subr.mxu0 0.0
    %7210 = vmatpush2.msra.mxu0 0.0
    %7211 = vmatprep.subr.mxu0 0.0
    %7212 = vmatpush2.msra.mxu0 0.0
    %7213 = vmatprep.subr.mxu0 0.0
    %7214 = vmatpush2.msra.mxu0 0.0
    %7215 = vmatprep.subr.mxu0 0.0
    %7216 = vmatpush2.msra.mxu0 0.0
    %7217 = vmatprep.subr.mxu0 0.0
    %7218 = vmatpush2.msra.mxu0 0.0
    %7219 = vmatprep.mubr.f32.mxu0 0.0
    %7220 = vmatmul.mubr.f32.gmra.mxu0 %v7082
    %v7221 = vpop.f32.mrf.mxu0
    %v7222 = vadd.f32 0.0, %v7221
    %v7223 = vpop.f32.mrf.mxu0
    %7224 = vdwg.mxu0
    %v7225 = vadd.f32 %v7063, %v7151
    %v7226 = vadd.f32 %v7064, %v7153
    %v7227 = vadd.f32 %v7065, %v7222
    %v7228 = vld [vmem:[%s2681] sm:$0xff]
    %7229 = vrot.lane.b32.xlu0 %v6897, 110
    %v7230 = vpop.permute.xlu0 %7229
    %7231 = vrot.lane.b32.xlu0 %v6898, 110
    %v7232 = vpop.permute.xlu0 %7231
    %7233 = vrot.lane.b32.xlu0 %v6899, 110
    %v7234 = vpop.permute.xlu0 %7233
    %7235 = vrot.lane.b32.xlu0 %v6900, 110
    %v7236 = vpop.permute.xlu0 %7235
    %v7237 = vsel %vm1184, %v7230, %v7232
    %v7238 = vsel %vm1184, %v7232, %v7234
    %v7239 = vsel %vm1184, %v7234, %v7236
    %v7244 = vsel %vm57, %v7228, 0
    %7246 = vmatprep.subr.mxu0 0.0
    %7247 = vmatpush1.msra.mxu0 0.0
    %7248 = vmatprep.subr.mxu0 0.0
    %7249 = vmatpush1.msra.mxu0 0.0
    %7250 = vmatprep.subr.mxu0 0.0
    %7251 = vmatpush1.msra.mxu0 0.0
    %7252 = vmatprep.subr.mxu0 0.0
    %7253 = vmatpush1.msra.mxu0 0.0
    %7254 = vmatprep.subr.mxu0 0.0
    %7255 = vmatpush1.msra.mxu0 0.0
    %7256 = vmatprep.subr.mxu0 0.0
    %7257 = vmatpush1.msra.mxu0 0.0
    %7258 = vmatprep.subr.mxu0 0.0
    %7259 = vmatpush1.msra.mxu0 0.0
    %7260 = vmatprep.subr.mxu0 0.0
    %7261 = vmatpush1.msra.mxu0 0.0
    %7262 = vmatprep.subr.mxu0 0.0
    %7263 = vmatpush1.msra.mxu0 0.0
    %7264 = vmatprep.subr.mxu0 0.0
    %7265 = vmatpush1.msra.mxu0 0.0
    %7266 = vmatprep.subr.mxu0 0.0
    %7267 = vmatpush1.msra.mxu0 0.0
    %7268 = vmatprep.subr.mxu0 0.0
    %7269 = vmatpush1.msra.mxu0 0.0
    %7270 = vmatprep.subr.mxu0 0.0
    %7271 = vmatpush1.msra.mxu0 0.0
    %7272 = vmatprep.subr.mxu0 0.0
    %7273 = vmatpush1.msra.mxu0 0.0
    %7274 = vmatprep.subr.mxu0 0.0
    %7275 = vmatpush1.msra.mxu0 0.0
    %7276 = vmatprep.subr.mxu0 %v7238
    %7277 = vmatpush1.msra.mxu0 %v7237
    %7278 = vmatprep.subr.mxu0 0.0
    %7279 = vmatpush2.msra.mxu0 0.0
    %7280 = vmatprep.subr.mxu0 0.0
    %7281 = vmatpush2.msra.mxu0 0.0
    %7282 = vmatprep.subr.mxu0 0.0
    %7283 = vmatpush2.msra.mxu0 0.0
    %7284 = vmatprep.subr.mxu0 0.0
    %7285 = vmatpush2.msra.mxu0 0.0
    %7286 = vmatprep.subr.mxu0 0.0
    %7287 = vmatpush2.msra.mxu0 0.0
    %7288 = vmatprep.subr.mxu0 0.0
    %7289 = vmatpush2.msra.mxu0 0.0
    %7290 = vmatprep.subr.mxu0 0.0
    %7291 = vmatpush2.msra.mxu0 0.0
    %7292 = vmatprep.subr.mxu0 0.0
    %7293 = vmatpush2.msra.mxu0 0.0
    %7294 = vmatprep.subr.mxu0 0.0
    %7295 = vmatpush2.msra.mxu0 0.0
    %7296 = vmatprep.subr.mxu0 0.0
    %7297 = vmatpush2.msra.mxu0 0.0
    %7298 = vmatprep.subr.mxu0 0.0
    %7299 = vmatpush2.msra.mxu0 0.0
    %7300 = vmatprep.subr.mxu0 0.0
    %7301 = vmatpush2.msra.mxu0 0.0
    %7302 = vmatprep.subr.mxu0 0.0
    %7303 = vmatpush2.msra.mxu0 0.0
    %7304 = vmatprep.subr.mxu0 0.0
    %7305 = vmatpush2.msra.mxu0 0.0
    %7306 = vmatprep.subr.mxu0 0.0
    %7307 = vmatpush2.msra.mxu0 0.0
    %7308 = vmatprep.subr.mxu0 0.0
    %7309 = vmatpush2.msra.mxu0 0.0
    %7310 = vmatprep.mubr.f32.mxu0 0.0
    %7311 = vmatmul.mubr.f32.gmra.mxu0 %v7244
    %v7312 = vpop.f32.mrf.mxu0
    %v7313 = vadd.f32 0.0, %v7312
    %v7314 = vpop.f32.mrf.mxu0
    %v7315 = vadd.f32 0.0, %v7314
    %7316 = vdwg.mxu0
    %7317 = vmatprep.subr.mxu0 0.0
    %7318 = vmatpush1.msra.mxu0 0.0
    %7319 = vmatprep.subr.mxu0 0.0
    %7320 = vmatpush1.msra.mxu0 0.0
    %7321 = vmatprep.subr.mxu0 0.0
    %7322 = vmatpush1.msra.mxu0 0.0
    %7323 = vmatprep.subr.mxu0 0.0
    %7324 = vmatpush1.msra.mxu0 0.0
    %7325 = vmatprep.subr.mxu0 0.0
    %7326 = vmatpush1.msra.mxu0 0.0
    %7327 = vmatprep.subr.mxu0 0.0
    %7328 = vmatpush1.msra.mxu0 0.0
    %7329 = vmatprep.subr.mxu0 0.0
    %7330 = vmatpush1.msra.mxu0 0.0
    %7331 = vmatprep.subr.mxu0 0.0
    %7332 = vmatpush1.msra.mxu0 0.0
    %7333 = vmatprep.subr.mxu0 0.0
    %7334 = vmatpush1.msra.mxu0 0.0
    %7335 = vmatprep.subr.mxu0 0.0
    %7336 = vmatpush1.msra.mxu0 0.0
    %7337 = vmatprep.subr.mxu0 0.0
    %7338 = vmatpush1.msra.mxu0 0.0
    %7339 = vmatprep.subr.mxu0 0.0
    %7340 = vmatpush1.msra.mxu0 0.0
    %7341 = vmatprep.subr.mxu0 0.0
    %7342 = vmatpush1.msra.mxu0 0.0
    %7343 = vmatprep.subr.mxu0 0.0
    %7344 = vmatpush1.msra.mxu0 0.0
    %7345 = vmatprep.subr.mxu0 0.0
    %7346 = vmatpush1.msra.mxu0 0.0
    %7347 = vmatprep.subr.mxu0 0.0
    %7348 = vmatpush1.msra.mxu0 %v7239
    %7349 = vmatprep.subr.mxu0 0.0
    %7350 = vmatpush2.msra.mxu0 0.0
    %7351 = vmatprep.subr.mxu0 0.0
    %7352 = vmatpush2.msra.mxu0 0.0
    %7353 = vmatprep.subr.mxu0 0.0
    %7354 = vmatpush2.msra.mxu0 0.0
    %7355 = vmatprep.subr.mxu0 0.0
    %7356 = vmatpush2.msra.mxu0 0.0
    %7357 = vmatprep.subr.mxu0 0.0
    %7358 = vmatpush2.msra.mxu0 0.0
    %7359 = vmatprep.subr.mxu0 0.0
    %7360 = vmatpush2.msra.mxu0 0.0
    %7361 = vmatprep.subr.mxu0 0.0
    %7362 = vmatpush2.msra.mxu0 0.0
    %7363 = vmatprep.subr.mxu0 0.0
    %7364 = vmatpush2.msra.mxu0 0.0
    %7365 = vmatprep.subr.mxu0 0.0
    %7366 = vmatpush2.msra.mxu0 0.0
    %7367 = vmatprep.subr.mxu0 0.0
    %7368 = vmatpush2.msra.mxu0 0.0
    %7369 = vmatprep.subr.mxu0 0.0
    %7370 = vmatpush2.msra.mxu0 0.0
    %7371 = vmatprep.subr.mxu0 0.0
    %7372 = vmatpush2.msra.mxu0 0.0
    %7373 = vmatprep.subr.mxu0 0.0
    %7374 = vmatpush2.msra.mxu0 0.0
    %7375 = vmatprep.subr.mxu0 0.0
    %7376 = vmatpush2.msra.mxu0 0.0
    %7377 = vmatprep.subr.mxu0 0.0
    %7378 = vmatpush2.msra.mxu0 0.0
    %7379 = vmatprep.subr.mxu0 0.0
    %7380 = vmatpush2.msra.mxu0 0.0
    %7381 = vmatprep.mubr.f32.mxu0 0.0
    %7382 = vmatmul.mubr.f32.gmra.mxu0 %v7244
    %v7383 = vpop.f32.mrf.mxu0
    %v7384 = vadd.f32 0.0, %v7383
    %v7385 = vpop.f32.mrf.mxu0
    %7386 = vdwg.mxu0
    %v7387 = vadd.f32 %v7225, %v7313
    %v7388 = vadd.f32 %v7226, %v7315
    %v7389 = vadd.f32 %v7227, %v7384
    %v7390 = vld [vmem:[%s2844] sm:$0xff]
    %7391 = vrot.lane.b32.xlu0 %v6897, 109
    %v7392 = vpop.permute.xlu0 %7391
    %7393 = vrot.lane.b32.xlu0 %v6898, 109
    %v7394 = vpop.permute.xlu0 %7393
    %7395 = vrot.lane.b32.xlu0 %v6899, 109
    %v7396 = vpop.permute.xlu0 %7395
    %7397 = vrot.lane.b32.xlu0 %v6900, 109
    %v7398 = vpop.permute.xlu0 %7397
    %v7399 = vsel %vm1348, %v7392, %v7394
    %v7400 = vsel %vm1348, %v7394, %v7396
    %v7401 = vsel %vm1348, %v7396, %v7398
    %v7406 = vsel %vm57, %v7390, 0
    %7408 = vmatprep.subr.mxu0 0.0
    %7409 = vmatpush1.msra.mxu0 0.0
    %7410 = vmatprep.subr.mxu0 0.0
    %7411 = vmatpush1.msra.mxu0 0.0
    %7412 = vmatprep.subr.mxu0 0.0
    %7413 = vmatpush1.msra.mxu0 0.0
    %7414 = vmatprep.subr.mxu0 0.0
    %7415 = vmatpush1.msra.mxu0 0.0
    %7416 = vmatprep.subr.mxu0 0.0
    %7417 = vmatpush1.msra.mxu0 0.0
    %7418 = vmatprep.subr.mxu0 0.0
    %7419 = vmatpush1.msra.mxu0 0.0
    %7420 = vmatprep.subr.mxu0 0.0
    %7421 = vmatpush1.msra.mxu0 0.0
    %7422 = vmatprep.subr.mxu0 0.0
    %7423 = vmatpush1.msra.mxu0 0.0
    %7424 = vmatprep.subr.mxu0 0.0
    %7425 = vmatpush1.msra.mxu0 0.0
    %7426 = vmatprep.subr.mxu0 0.0
    %7427 = vmatpush1.msra.mxu0 0.0
    %7428 = vmatprep.subr.mxu0 0.0
    %7429 = vmatpush1.msra.mxu0 0.0
    %7430 = vmatprep.subr.mxu0 0.0
    %7431 = vmatpush1.msra.mxu0 0.0
    %7432 = vmatprep.subr.mxu0 0.0
    %7433 = vmatpush1.msra.mxu0 0.0
    %7434 = vmatprep.subr.mxu0 0.0
    %7435 = vmatpush1.msra.mxu0 0.0
    %7436 = vmatprep.subr.mxu0 0.0
    %7437 = vmatpush1.msra.mxu0 0.0
    %7438 = vmatprep.subr.mxu0 %v7400
    %7439 = vmatpush1.msra.mxu0 %v7399
    %7440 = vmatprep.subr.mxu0 0.0
    %7441 = vmatpush2.msra.mxu0 0.0
    %7442 = vmatprep.subr.mxu0 0.0
    %7443 = vmatpush2.msra.mxu0 0.0
    %7444 = vmatprep.subr.mxu0 0.0
    %7445 = vmatpush2.msra.mxu0 0.0
    %7446 = vmatprep.subr.mxu0 0.0
    %7447 = vmatpush2.msra.mxu0 0.0
    %7448 = vmatprep.subr.mxu0 0.0
    %7449 = vmatpush2.msra.mxu0 0.0
    %7450 = vmatprep.subr.mxu0 0.0
    %7451 = vmatpush2.msra.mxu0 0.0
    %7452 = vmatprep.subr.mxu0 0.0
    %7453 = vmatpush2.msra.mxu0 0.0
    %7454 = vmatprep.subr.mxu0 0.0
    %7455 = vmatpush2.msra.mxu0 0.0
    %7456 = vmatprep.subr.mxu0 0.0
    %7457 = vmatpush2.msra.mxu0 0.0
    %7458 = vmatprep.subr.mxu0 0.0
    %7459 = vmatpush2.msra.mxu0 0.0
    %7460 = vmatprep.subr.mxu0 0.0
    %7461 = vmatpush2.msra.mxu0 0.0
    %7462 = vmatprep.subr.mxu0 0.0
    %7463 = vmatpush2.msra.mxu0 0.0
    %7464 = vmatprep.subr.mxu0 0.0
    %7465 = vmatpush2.msra.mxu0 0.0
    %7466 = vmatprep.subr.mxu0 0.0
    %7467 = vmatpush2.msra.mxu0 0.0
    %7468 = vmatprep.subr.mxu0 0.0
    %7469 = vmatpush2.msra.mxu0 0.0
    %7470 = vmatprep.subr.mxu0 0.0
    %7471 = vmatpush2.msra.mxu0 0.0
    %7472 = vmatprep.mubr.f32.mxu0 0.0
    %7473 = vmatmul.mubr.f32.gmra.mxu0 %v7406
    %v7474 = vpop.f32.mrf.mxu0
    %v7475 = vadd.f32 0.0, %v7474
    %v7476 = vpop.f32.mrf.mxu0
    %v7477 = vadd.f32 0.0, %v7476
    %7478 = vdwg.mxu0
    %7479 = vmatprep.subr.mxu0 0.0
    %7480 = vmatpush1.msra.mxu0 0.0
    %7481 = vmatprep.subr.mxu0 0.0
    %7482 = vmatpush1.msra.mxu0 0.0
    %7483 = vmatprep.subr.mxu0 0.0
    %7484 = vmatpush1.msra.mxu0 0.0
    %7485 = vmatprep.subr.mxu0 0.0
    %7486 = vmatpush1.msra.mxu0 0.0
    %7487 = vmatprep.subr.mxu0 0.0
    %7488 = vmatpush1.msra.mxu0 0.0
    %7489 = vmatprep.subr.mxu0 0.0
    %7490 = vmatpush1.msra.mxu0 0.0
    %7491 = vmatprep.subr.mxu0 0.0
    %7492 = vmatpush1.msra.mxu0 0.0
    %7493 = vmatprep.subr.mxu0 0.0
    %7494 = vmatpush1.msra.mxu0 0.0
    %7495 = vmatprep.subr.mxu0 0.0
    %7496 = vmatpush1.msra.mxu0 0.0
    %7497 = vmatprep.subr.mxu0 0.0
    %7498 = vmatpush1.msra.mxu0 0.0
    %7499 = vmatprep.subr.mxu0 0.0
    %7500 = vmatpush1.msra.mxu0 0.0
    %7501 = vmatprep.subr.mxu0 0.0
    %7502 = vmatpush1.msra.mxu0 0.0
    %7503 = vmatprep.subr.mxu0 0.0
    %7504 = vmatpush1.msra.mxu0 0.0
    %7505 = vmatprep.subr.mxu0 0.0
    %7506 = vmatpush1.msra.mxu0 0.0
    %7507 = vmatprep.subr.mxu0 0.0
    %7508 = vmatpush1.msra.mxu0 0.0
    %7509 = vmatprep.subr.mxu0 0.0
    %7510 = vmatpush1.msra.mxu0 %v7401
    %7511 = vmatprep.subr.mxu0 0.0
    %7512 = vmatpush2.msra.mxu0 0.0
    %7513 = vmatprep.subr.mxu0 0.0
    %7514 = vmatpush2.msra.mxu0 0.0
    %7515 = vmatprep.subr.mxu0 0.0
    %7516 = vmatpush2.msra.mxu0 0.0
    %7517 = vmatprep.subr.mxu0 0.0
    %7518 = vmatpush2.msra.mxu0 0.0
    %7519 = vmatprep.subr.mxu0 0.0
    %7520 = vmatpush2.msra.mxu0 0.0
    %7521 = vmatprep.subr.mxu0 0.0
    %7522 = vmatpush2.msra.mxu0 0.0
    %7523 = vmatprep.subr.mxu0 0.0
    %7524 = vmatpush2.msra.mxu0 0.0
    %7525 = vmatprep.subr.mxu0 0.0
    %7526 = vmatpush2.msra.mxu0 0.0
    %7527 = vmatprep.subr.mxu0 0.0
    %7528 = vmatpush2.msra.mxu0 0.0
    %7529 = vmatprep.subr.mxu0 0.0
    %7530 = vmatpush2.msra.mxu0 0.0
    %7531 = vmatprep.subr.mxu0 0.0
    %7532 = vmatpush2.msra.mxu0 0.0
    %7533 = vmatprep.subr.mxu0 0.0
    %7534 = vmatpush2.msra.mxu0 0.0
    %7535 = vmatprep.subr.mxu0 0.0
    %7536 = vmatpush2.msra.mxu0 0.0
    %7537 = vmatprep.subr.mxu0 0.0
    %7538 = vmatpush2.msra.mxu0 0.0
    %7539 = vmatprep.subr.mxu0 0.0
    %7540 = vmatpush2.msra.mxu0 0.0
    %7541 = vmatprep.subr.mxu0 0.0
    %7542 = vmatpush2.msra.mxu0 0.0
    %7543 = vmatprep.mubr.f32.mxu0 0.0
    %7544 = vmatmul.mubr.f32.gmra.mxu0 %v7406
    %v7545 = vpop.f32.mrf.mxu0
    %v7546 = vadd.f32 0.0, %v7545
    %v7547 = vpop.f32.mrf.mxu0
    %7548 = vdwg.mxu0
    %v7549 = vadd.f32 %v7387, %v7475
    %v7550 = vadd.f32 %v7388, %v7477
    %v7551 = vadd.f32 %v7389, %v7546
    %7553 = vset.pattern.permute.xlu0 0
    %7554 = vperm.xlu0 %7553, %v6097
    %v7555 = vpop.permute.xlu0 %7554
    %v7557 = vadd.f32 %v7549, %v7555
    %v7558 = vadd.f32 %v7550, %v7555
    %v7559 = vadd.f32 %v7551, %v7555
    %vm7560 = vcmp.ge.f32.partialorder %v7557, 0.0
    %vm7561 = vcmp.ge.f32.partialorder %v7558, 0.0
    %vm7562 = vcmp.ge.f32.partialorder %v7559, 0.0
    %v7563 = vmul.f32 %v7557, 0.01
    %v7564 = vmul.f32 %v7558, 0.01
    %v7565 = vmul.f32 %v7559, 0.01
    %v7566 = vsel %vm7560, %v7557, %v7563
    %v7567 = vsel %vm7561, %v7558, %v7564
    %v7568 = vsel %vm7562, %v7559, %v7565
    %v7569 = vld [vmem:[%s4 + $0x1] sm:$0x7]
    %v7571 = vlaneseq
    %v7572 = vshrl.u32 %v7571, 7
    %v7573 = vsub.s32 0, %v7572
    %v7574 = vrot.slane %v7569, %v7573
    %v7575 = vlaneseq
    %v7576 = vshrl.u32 %v7575, 7
    %v7577 = vsub.s32 1, %v7576
    %v7578 = vrot.slane %v7569, %v7577
    %v7579 = vlaneseq
    %v7580 = vshrl.u32 %v7579, 7
    %v7581 = vsub.s32 2, %v7580
    %v7582 = vrot.slane %v7569, %v7581
    %v7586 = vmul.f32 %v7566, %v7574
    %v7587 = vmul.f32 %v7567, %v7578
    %v7588 = vmul.f32 %v7568, %v7582
    %7589 = vst [vmem:[#allocation3 + $0x8] sm:$0xff] %v7586
    %7590 = vst [vmem:[#allocation3 + $0x10] sm:$0xff] %v7587
    %7591 = vst [vmem:[#allocation3 + $0x18] sm:$0xff] %v7588
    %v7592 = vld [vmem:[%s3047] sm:$0xff]
    %v7593 = vld [vmem:[%s3049] sm:$0xff]
    %v7594 = vld [vmem:[#allocation3] sm:$0xff]
    %v7595 = vld [vmem:[#allocation3 + $0x8] sm:$0xff]
    %v7596 = vld [vmem:[#allocation3 + $0x10] sm:$0xff]
    %v7597 = vld [vmem:[#allocation3 + $0x18] sm:$0xff]
    %v7598 = vld [vmem:[%s3055] sm:$0xff]
    %7603 = vrot.lane.b32.xlu0 %v7594, 18
    %v7604 = vpop.permute.xlu0 %7603
    %7605 = vrot.lane.b32.xlu0 %v7595, 18
    %v7606 = vpop.permute.xlu0 %7605
    %7607 = vrot.lane.b32.xlu0 %v7596, 18
    %v7608 = vpop.permute.xlu0 %7607
    %7609 = vrot.lane.b32.xlu0 %v7597, 18
    %v7610 = vpop.permute.xlu0 %7609
    %v7611 = vsel %vm50, %v7604, %v7606
    %v7612 = vsel %vm50, %v7606, %v7608
    %v7613 = vsel %vm50, %v7608, %v7610
    %v7618 = vsel %vm57, %v7598, 0
    %7620 = vmatprep.subr.mxu0 0.0
    %7621 = vmatpush1.msra.mxu0 0.0
    %7622 = vmatprep.subr.mxu0 0.0
    %7623 = vmatpush1.msra.mxu0 0.0
    %7624 = vmatprep.subr.mxu0 0.0
    %7625 = vmatpush1.msra.mxu0 0.0
    %7626 = vmatprep.subr.mxu0 0.0
    %7627 = vmatpush1.msra.mxu0 0.0
    %7628 = vmatprep.subr.mxu0 0.0
    %7629 = vmatpush1.msra.mxu0 0.0
    %7630 = vmatprep.subr.mxu0 0.0
    %7631 = vmatpush1.msra.mxu0 0.0
    %7632 = vmatprep.subr.mxu0 0.0
    %7633 = vmatpush1.msra.mxu0 0.0
    %7634 = vmatprep.subr.mxu0 0.0
    %7635 = vmatpush1.msra.mxu0 0.0
    %7636 = vmatprep.subr.mxu0 0.0
    %7637 = vmatpush1.msra.mxu0 0.0
    %7638 = vmatprep.subr.mxu0 0.0
    %7639 = vmatpush1.msra.mxu0 0.0
    %7640 = vmatprep.subr.mxu0 0.0
    %7641 = vmatpush1.msra.mxu0 0.0
    %7642 = vmatprep.subr.mxu0 0.0
    %7643 = vmatpush1.msra.mxu0 0.0
    %7644 = vmatprep.subr.mxu0 0.0
    %7645 = vmatpush1.msra.mxu0 0.0
    %7646 = vmatprep.subr.mxu0 0.0
    %7647 = vmatpush1.msra.mxu0 0.0
    %7648 = vmatprep.subr.mxu0 0.0
    %7649 = vmatpush1.msra.mxu0 0.0
    %7650 = vmatprep.subr.mxu0 %v7612
    %7651 = vmatpush1.msra.mxu0 %v7611
    %7652 = vmatprep.subr.mxu0 0.0
    %7653 = vmatpush2.msra.mxu0 0.0
    %7654 = vmatprep.subr.mxu0 0.0
    %7655 = vmatpush2.msra.mxu0 0.0
    %7656 = vmatprep.subr.mxu0 0.0
    %7657 = vmatpush2.msra.mxu0 0.0
    %7658 = vmatprep.subr.mxu0 0.0
    %7659 = vmatpush2.msra.mxu0 0.0
    %7660 = vmatprep.subr.mxu0 0.0
    %7661 = vmatpush2.msra.mxu0 0.0
    %7662 = vmatprep.subr.mxu0 0.0
    %7663 = vmatpush2.msra.mxu0 0.0
    %7664 = vmatprep.subr.mxu0 0.0
    %7665 = vmatpush2.msra.mxu0 0.0
    %7666 = vmatprep.subr.mxu0 0.0
    %7667 = vmatpush2.msra.mxu0 0.0
    %7668 = vmatprep.subr.mxu0 0.0
    %7669 = vmatpush2.msra.mxu0 0.0
    %7670 = vmatprep.subr.mxu0 0.0
    %7671 = vmatpush2.msra.mxu0 0.0
    %7672 = vmatprep.subr.mxu0 0.0
    %7673 = vmatpush2.msra.mxu0 0.0
    %7674 = vmatprep.subr.mxu0 0.0
    %7675 = vmatpush2.msra.mxu0 0.0
    %7676 = vmatprep.subr.mxu0 0.0
    %7677 = vmatpush2.msra.mxu0 0.0
    %7678 = vmatprep.subr.mxu0 0.0
    %7679 = vmatpush2.msra.mxu0 0.0
    %7680 = vmatprep.subr.mxu0 0.0
    %7681 = vmatpush2.msra.mxu0 0.0
    %7682 = vmatprep.subr.mxu0 0.0
    %7683 = vmatpush2.msra.mxu0 0.0
    %7684 = vmatprep.mubr.f32.mxu0 0.0
    %7685 = vmatmul.mubr.f32.gmra.mxu0 %v7618
    %v7686 = vpop.f32.mrf.mxu0
    %v7687 = vadd.f32 0.0, %v7686
    %v7688 = vpop.f32.mrf.mxu0
    %v7689 = vadd.f32 0.0, %v7688
    %7690 = vdwg.mxu0
    %7691 = vmatprep.subr.mxu0 0.0
    %7692 = vmatpush1.msra.mxu0 0.0
    %7693 = vmatprep.subr.mxu0 0.0
    %7694 = vmatpush1.msra.mxu0 0.0
    %7695 = vmatprep.subr.mxu0 0.0
    %7696 = vmatpush1.msra.mxu0 0.0
    %7697 = vmatprep.subr.mxu0 0.0
    %7698 = vmatpush1.msra.mxu0 0.0
    %7699 = vmatprep.subr.mxu0 0.0
    %7700 = vmatpush1.msra.mxu0 0.0
    %7701 = vmatprep.subr.mxu0 0.0
    %7702 = vmatpush1.msra.mxu0 0.0
    %7703 = vmatprep.subr.mxu0 0.0
    %7704 = vmatpush1.msra.mxu0 0.0
    %7705 = vmatprep.subr.mxu0 0.0
    %7706 = vmatpush1.msra.mxu0 0.0
    %7707 = vmatprep.subr.mxu0 0.0
    %7708 = vmatpush1.msra.mxu0 0.0
    %7709 = vmatprep.subr.mxu0 0.0
    %7710 = vmatpush1.msra.mxu0 0.0
    %7711 = vmatprep.subr.mxu0 0.0
    %7712 = vmatpush1.msra.mxu0 0.0
    %7713 = vmatprep.subr.mxu0 0.0
    %7714 = vmatpush1.msra.mxu0 0.0
    %7715 = vmatprep.subr.mxu0 0.0
    %7716 = vmatpush1.msra.mxu0 0.0
    %7717 = vmatprep.subr.mxu0 0.0
    %7718 = vmatpush1.msra.mxu0 0.0
    %7719 = vmatprep.subr.mxu0 0.0
    %7720 = vmatpush1.msra.mxu0 0.0
    %7721 = vmatprep.subr.mxu0 0.0
    %7722 = vmatpush1.msra.mxu0 %v7613
    %7723 = vmatprep.subr.mxu0 0.0
    %7724 = vmatpush2.msra.mxu0 0.0
    %7725 = vmatprep.subr.mxu0 0.0
    %7726 = vmatpush2.msra.mxu0 0.0
    %7727 = vmatprep.subr.mxu0 0.0
    %7728 = vmatpush2.msra.mxu0 0.0
    %7729 = vmatprep.subr.mxu0 0.0
    %7730 = vmatpush2.msra.mxu0 0.0
    %7731 = vmatprep.subr.mxu0 0.0
    %7732 = vmatpush2.msra.mxu0 0.0
    %7733 = vmatprep.subr.mxu0 0.0
    %7734 = vmatpush2.msra.mxu0 0.0
    %7735 = vmatprep.subr.mxu0 0.0
    %7736 = vmatpush2.msra.mxu0 0.0
    %7737 = vmatprep.subr.mxu0 0.0
    %7738 = vmatpush2.msra.mxu0 0.0
    %7739 = vmatprep.subr.mxu0 0.0
    %7740 = vmatpush2.msra.mxu0 0.0
    %7741 = vmatprep.subr.mxu0 0.0
    %7742 = vmatpush2.msra.mxu0 0.0
    %7743 = vmatprep.subr.mxu0 0.0
    %7744 = vmatpush2.msra.mxu0 0.0
    %7745 = vmatprep.subr.mxu0 0.0
    %7746 = vmatpush2.msra.mxu0 0.0
    %7747 = vmatprep.subr.mxu0 0.0
    %7748 = vmatpush2.msra.mxu0 0.0
    %7749 = vmatprep.subr.mxu0 0.0
    %7750 = vmatpush2.msra.mxu0 0.0
    %7751 = vmatprep.subr.mxu0 0.0
    %7752 = vmatpush2.msra.mxu0 0.0
    %7753 = vmatprep.subr.mxu0 0.0
    %7754 = vmatpush2.msra.mxu0 0.0
    %7755 = vmatprep.mubr.f32.mxu0 0.0
    %7756 = vmatmul.mubr.f32.gmra.mxu0 %v7618
    %v7757 = vpop.f32.mrf.mxu0
    %v7758 = vadd.f32 0.0, %v7757
    %v7759 = vpop.f32.mrf.mxu0
    %7760 = vdwg.mxu0
    %7761 = vrot.lane.b32.xlu0 %v7594, 19
    %v7762 = vpop.permute.xlu0 %7761
    %7763 = vrot.lane.b32.xlu0 %v7595, 19
    %v7764 = vpop.permute.xlu0 %7763
    %7765 = vrot.lane.b32.xlu0 %v7596, 19
    %v7766 = vpop.permute.xlu0 %7765
    %7767 = vrot.lane.b32.xlu0 %v7597, 19
    %v7768 = vpop.permute.xlu0 %7767
    %v7769 = vsel %vm210, %v7762, %v7764
    %v7770 = vsel %vm210, %v7764, %v7766
    %v7771 = vsel %vm210, %v7766, %v7768
    %v7776 = vsel %vm57, %v7593, 0
    %7778 = vmatprep.subr.mxu0 0.0
    %7779 = vmatpush1.msra.mxu0 0.0
    %7780 = vmatprep.subr.mxu0 0.0
    %7781 = vmatpush1.msra.mxu0 0.0
    %7782 = vmatprep.subr.mxu0 0.0
    %7783 = vmatpush1.msra.mxu0 0.0
    %7784 = vmatprep.subr.mxu0 0.0
    %7785 = vmatpush1.msra.mxu0 0.0
    %7786 = vmatprep.subr.mxu0 0.0
    %7787 = vmatpush1.msra.mxu0 0.0
    %7788 = vmatprep.subr.mxu0 0.0
    %7789 = vmatpush1.msra.mxu0 0.0
    %7790 = vmatprep.subr.mxu0 0.0
    %7791 = vmatpush1.msra.mxu0 0.0
    %7792 = vmatprep.subr.mxu0 0.0
    %7793 = vmatpush1.msra.mxu0 0.0
    %7794 = vmatprep.subr.mxu0 0.0
    %7795 = vmatpush1.msra.mxu0 0.0
    %7796 = vmatprep.subr.mxu0 0.0
    %7797 = vmatpush1.msra.mxu0 0.0
    %7798 = vmatprep.subr.mxu0 0.0
    %7799 = vmatpush1.msra.mxu0 0.0
    %7800 = vmatprep.subr.mxu0 0.0
    %7801 = vmatpush1.msra.mxu0 0.0
    %7802 = vmatprep.subr.mxu0 0.0
    %7803 = vmatpush1.msra.mxu0 0.0
    %7804 = vmatprep.subr.mxu0 0.0
    %7805 = vmatpush1.msra.mxu0 0.0
    %7806 = vmatprep.subr.mxu0 0.0
    %7807 = vmatpush1.msra.mxu0 0.0
    %7808 = vmatprep.subr.mxu0 %v7770
    %7809 = vmatpush1.msra.mxu0 %v7769
    %7810 = vmatprep.subr.mxu0 0.0
    %7811 = vmatpush2.msra.mxu0 0.0
    %7812 = vmatprep.subr.mxu0 0.0
    %7813 = vmatpush2.msra.mxu0 0.0
    %7814 = vmatprep.subr.mxu0 0.0
    %7815 = vmatpush2.msra.mxu0 0.0
    %7816 = vmatprep.subr.mxu0 0.0
    %7817 = vmatpush2.msra.mxu0 0.0
    %7818 = vmatprep.subr.mxu0 0.0
    %7819 = vmatpush2.msra.mxu0 0.0
    %7820 = vmatprep.subr.mxu0 0.0
    %7821 = vmatpush2.msra.mxu0 0.0
    %7822 = vmatprep.subr.mxu0 0.0
    %7823 = vmatpush2.msra.mxu0 0.0
    %7824 = vmatprep.subr.mxu0 0.0
    %7825 = vmatpush2.msra.mxu0 0.0
    %7826 = vmatprep.subr.mxu0 0.0
    %7827 = vmatpush2.msra.mxu0 0.0
    %7828 = vmatprep.subr.mxu0 0.0
    %7829 = vmatpush2.msra.mxu0 0.0
    %7830 = vmatprep.subr.mxu0 0.0
    %7831 = vmatpush2.msra.mxu0 0.0
    %7832 = vmatprep.subr.mxu0 0.0
    %7833 = vmatpush2.msra.mxu0 0.0
    %7834 = vmatprep.subr.mxu0 0.0
    %7835 = vmatpush2.msra.mxu0 0.0
    %7836 = vmatprep.subr.mxu0 0.0
    %7837 = vmatpush2.msra.mxu0 0.0
    %7838 = vmatprep.subr.mxu0 0.0
    %7839 = vmatpush2.msra.mxu0 0.0
    %7840 = vmatprep.subr.mxu0 0.0
    %7841 = vmatpush2.msra.mxu0 0.0
    %7842 = vmatprep.mubr.f32.mxu0 0.0
    %7843 = vmatmul.mubr.f32.gmra.mxu0 %v7776
    %v7844 = vpop.f32.mrf.mxu0
    %v7845 = vadd.f32 %v7687, %v7844
    %v7846 = vpop.f32.mrf.mxu0
    %v7847 = vadd.f32 %v7689, %v7846
    %7848 = vdwg.mxu0
    %7849 = vmatprep.subr.mxu0 0.0
    %7850 = vmatpush1.msra.mxu0 0.0
    %7851 = vmatprep.subr.mxu0 0.0
    %7852 = vmatpush1.msra.mxu0 0.0
    %7853 = vmatprep.subr.mxu0 0.0
    %7854 = vmatpush1.msra.mxu0 0.0
    %7855 = vmatprep.subr.mxu0 0.0
    %7856 = vmatpush1.msra.mxu0 0.0
    %7857 = vmatprep.subr.mxu0 0.0
    %7858 = vmatpush1.msra.mxu0 0.0
    %7859 = vmatprep.subr.mxu0 0.0
    %7860 = vmatpush1.msra.mxu0 0.0
    %7861 = vmatprep.subr.mxu0 0.0
    %7862 = vmatpush1.msra.mxu0 0.0
    %7863 = vmatprep.subr.mxu0 0.0
    %7864 = vmatpush1.msra.mxu0 0.0
    %7865 = vmatprep.subr.mxu0 0.0
    %7866 = vmatpush1.msra.mxu0 0.0
    %7867 = vmatprep.subr.mxu0 0.0
    %7868 = vmatpush1.msra.mxu0 0.0
    %7869 = vmatprep.subr.mxu0 0.0
    %7870 = vmatpush1.msra.mxu0 0.0
    %7871 = vmatprep.subr.mxu0 0.0
    %7872 = vmatpush1.msra.mxu0 0.0
    %7873 = vmatprep.subr.mxu0 0.0
    %7874 = vmatpush1.msra.mxu0 0.0
    %7875 = vmatprep.subr.mxu0 0.0
    %7876 = vmatpush1.msra.mxu0 0.0
    %7877 = vmatprep.subr.mxu0 0.0
    %7878 = vmatpush1.msra.mxu0 0.0
    %7879 = vmatprep.subr.mxu0 0.0
    %7880 = vmatpush1.msra.mxu0 %v7771
    %7881 = vmatprep.subr.mxu0 0.0
    %7882 = vmatpush2.msra.mxu0 0.0
    %7883 = vmatprep.subr.mxu0 0.0
    %7884 = vmatpush2.msra.mxu0 0.0
    %7885 = vmatprep.subr.mxu0 0.0
    %7886 = vmatpush2.msra.mxu0 0.0
    %7887 = vmatprep.subr.mxu0 0.0
    %7888 = vmatpush2.msra.mxu0 0.0
    %7889 = vmatprep.subr.mxu0 0.0
    %7890 = vmatpush2.msra.mxu0 0.0
    %7891 = vmatprep.subr.mxu0 0.0
    %7892 = vmatpush2.msra.mxu0 0.0
    %7893 = vmatprep.subr.mxu0 0.0
    %7894 = vmatpush2.msra.mxu0 0.0
    %7895 = vmatprep.subr.mxu0 0.0
    %7896 = vmatpush2.msra.mxu0 0.0
    %7897 = vmatprep.subr.mxu0 0.0
    %7898 = vmatpush2.msra.mxu0 0.0
    %7899 = vmatprep.subr.mxu0 0.0
    %7900 = vmatpush2.msra.mxu0 0.0
    %7901 = vmatprep.subr.mxu0 0.0
    %7902 = vmatpush2.msra.mxu0 0.0
    %7903 = vmatprep.subr.mxu0 0.0
    %7904 = vmatpush2.msra.mxu0 0.0
    %7905 = vmatprep.subr.mxu0 0.0
    %7906 = vmatpush2.msra.mxu0 0.0
    %7907 = vmatprep.subr.mxu0 0.0
    %7908 = vmatpush2.msra.mxu0 0.0
    %7909 = vmatprep.subr.mxu0 0.0
    %7910 = vmatpush2.msra.mxu0 0.0
    %7911 = vmatprep.subr.mxu0 0.0
    %7912 = vmatpush2.msra.mxu0 0.0
    %7913 = vmatprep.mubr.f32.mxu0 0.0
    %7914 = vmatmul.mubr.f32.gmra.mxu0 %v7776
    %v7915 = vpop.f32.mrf.mxu0
    %v7916 = vadd.f32 %v7758, %v7915
    %v7917 = vpop.f32.mrf.mxu0
    %7918 = vdwg.mxu0
    %v7919 = vld [vmem:[%s3377] sm:$0xff]
    %7920 = vrot.lane.b32.xlu0 %v7594, 17
    %v7921 = vpop.permute.xlu0 %7920
    %7922 = vrot.lane.b32.xlu0 %v7595, 17
    %v7923 = vpop.permute.xlu0 %7922
    %7924 = vrot.lane.b32.xlu0 %v7596, 17
    %v7925 = vpop.permute.xlu0 %7924
    %7926 = vrot.lane.b32.xlu0 %v7597, 17
    %v7927 = vpop.permute.xlu0 %7926
    %v7928 = vsel %vm371, %v7921, %v7923
    %v7929 = vsel %vm371, %v7923, %v7925
    %v7930 = vsel %vm371, %v7925, %v7927
    %v7935 = vsel %vm57, %v7919, 0
    %7937 = vmatprep.subr.mxu0 0.0
    %7938 = vmatpush1.msra.mxu0 0.0
    %7939 = vmatprep.subr.mxu0 0.0
    %7940 = vmatpush1.msra.mxu0 0.0
    %7941 = vmatprep.subr.mxu0 0.0
    %7942 = vmatpush1.msra.mxu0 0.0
    %7943 = vmatprep.subr.mxu0 0.0
    %7944 = vmatpush1.msra.mxu0 0.0
    %7945 = vmatprep.subr.mxu0 0.0
    %7946 = vmatpush1.msra.mxu0 0.0
    %7947 = vmatprep.subr.mxu0 0.0
    %7948 = vmatpush1.msra.mxu0 0.0
    %7949 = vmatprep.subr.mxu0 0.0
    %7950 = vmatpush1.msra.mxu0 0.0
    %7951 = vmatprep.subr.mxu0 0.0
    %7952 = vmatpush1.msra.mxu0 0.0
    %7953 = vmatprep.subr.mxu0 0.0
    %7954 = vmatpush1.msra.mxu0 0.0
    %7955 = vmatprep.subr.mxu0 0.0
    %7956 = vmatpush1.msra.mxu0 0.0
    %7957 = vmatprep.subr.mxu0 0.0
    %7958 = vmatpush1.msra.mxu0 0.0
    %7959 = vmatprep.subr.mxu0 0.0
    %7960 = vmatpush1.msra.mxu0 0.0
    %7961 = vmatprep.subr.mxu0 0.0
    %7962 = vmatpush1.msra.mxu0 0.0
    %7963 = vmatprep.subr.mxu0 0.0
    %7964 = vmatpush1.msra.mxu0 0.0
    %7965 = vmatprep.subr.mxu0 0.0
    %7966 = vmatpush1.msra.mxu0 0.0
    %7967 = vmatprep.subr.mxu0 %v7929
    %7968 = vmatpush1.msra.mxu0 %v7928
    %7969 = vmatprep.subr.mxu0 0.0
    %7970 = vmatpush2.msra.mxu0 0.0
    %7971 = vmatprep.subr.mxu0 0.0
    %7972 = vmatpush2.msra.mxu0 0.0
    %7973 = vmatprep.subr.mxu0 0.0
    %7974 = vmatpush2.msra.mxu0 0.0
    %7975 = vmatprep.subr.mxu0 0.0
    %7976 = vmatpush2.msra.mxu0 0.0
    %7977 = vmatprep.subr.mxu0 0.0
    %7978 = vmatpush2.msra.mxu0 0.0
    %7979 = vmatprep.subr.mxu0 0.0
    %7980 = vmatpush2.msra.mxu0 0.0
    %7981 = vmatprep.subr.mxu0 0.0
    %7982 = vmatpush2.msra.mxu0 0.0
    %7983 = vmatprep.subr.mxu0 0.0
    %7984 = vmatpush2.msra.mxu0 0.0
    %7985 = vmatprep.subr.mxu0 0.0
    %7986 = vmatpush2.msra.mxu0 0.0
    %7987 = vmatprep.subr.mxu0 0.0
    %7988 = vmatpush2.msra.mxu0 0.0
    %7989 = vmatprep.subr.mxu0 0.0
    %7990 = vmatpush2.msra.mxu0 0.0
    %7991 = vmatprep.subr.mxu0 0.0
    %7992 = vmatpush2.msra.mxu0 0.0
    %7993 = vmatprep.subr.mxu0 0.0
    %7994 = vmatpush2.msra.mxu0 0.0
    %7995 = vmatprep.subr.mxu0 0.0
    %7996 = vmatpush2.msra.mxu0 0.0
    %7997 = vmatprep.subr.mxu0 0.0
    %7998 = vmatpush2.msra.mxu0 0.0
    %7999 = vmatprep.subr.mxu0 0.0
    %8000 = vmatpush2.msra.mxu0 0.0
    %8001 = vmatprep.mubr.f32.mxu0 0.0
    %8002 = vmatmul.mubr.f32.gmra.mxu0 %v7935
    %v8003 = vpop.f32.mrf.mxu0
    %v8004 = vadd.f32 0.0, %v8003
    %v8005 = vpop.f32.mrf.mxu0
    %v8006 = vadd.f32 0.0, %v8005
    %8007 = vdwg.mxu0
    %8008 = vmatprep.subr.mxu0 0.0
    %8009 = vmatpush1.msra.mxu0 0.0
    %8010 = vmatprep.subr.mxu0 0.0
    %8011 = vmatpush1.msra.mxu0 0.0
    %8012 = vmatprep.subr.mxu0 0.0
    %8013 = vmatpush1.msra.mxu0 0.0
    %8014 = vmatprep.subr.mxu0 0.0
    %8015 = vmatpush1.msra.mxu0 0.0
    %8016 = vmatprep.subr.mxu0 0.0
    %8017 = vmatpush1.msra.mxu0 0.0
    %8018 = vmatprep.subr.mxu0 0.0
    %8019 = vmatpush1.msra.mxu0 0.0
    %8020 = vmatprep.subr.mxu0 0.0
    %8021 = vmatpush1.msra.mxu0 0.0
    %8022 = vmatprep.subr.mxu0 0.0
    %8023 = vmatpush1.msra.mxu0 0.0
    %8024 = vmatprep.subr.mxu0 0.0
    %8025 = vmatpush1.msra.mxu0 0.0
    %8026 = vmatprep.subr.mxu0 0.0
    %8027 = vmatpush1.msra.mxu0 0.0
    %8028 = vmatprep.subr.mxu0 0.0
    %8029 = vmatpush1.msra.mxu0 0.0
    %8030 = vmatprep.subr.mxu0 0.0
    %8031 = vmatpush1.msra.mxu0 0.0
    %8032 = vmatprep.subr.mxu0 0.0
    %8033 = vmatpush1.msra.mxu0 0.0
    %8034 = vmatprep.subr.mxu0 0.0
    %8035 = vmatpush1.msra.mxu0 0.0
    %8036 = vmatprep.subr.mxu0 0.0
    %8037 = vmatpush1.msra.mxu0 0.0
    %8038 = vmatprep.subr.mxu0 0.0
    %8039 = vmatpush1.msra.mxu0 %v7930
    %8040 = vmatprep.subr.mxu0 0.0
    %8041 = vmatpush2.msra.mxu0 0.0
    %8042 = vmatprep.subr.mxu0 0.0
    %8043 = vmatpush2.msra.mxu0 0.0
    %8044 = vmatprep.subr.mxu0 0.0
    %8045 = vmatpush2.msra.mxu0 0.0
    %8046 = vmatprep.subr.mxu0 0.0
    %8047 = vmatpush2.msra.mxu0 0.0
    %8048 = vmatprep.subr.mxu0 0.0
    %8049 = vmatpush2.msra.mxu0 0.0
    %8050 = vmatprep.subr.mxu0 0.0
    %8051 = vmatpush2.msra.mxu0 0.0
    %8052 = vmatprep.subr.mxu0 0.0
    %8053 = vmatpush2.msra.mxu0 0.0
    %8054 = vmatprep.subr.mxu0 0.0
    %8055 = vmatpush2.msra.mxu0 0.0
    %8056 = vmatprep.subr.mxu0 0.0
    %8057 = vmatpush2.msra.mxu0 0.0
    %8058 = vmatprep.subr.mxu0 0.0
    %8059 = vmatpush2.msra.mxu0 0.0
    %8060 = vmatprep.subr.mxu0 0.0
    %8061 = vmatpush2.msra.mxu0 0.0
    %8062 = vmatprep.subr.mxu0 0.0
    %8063 = vmatpush2.msra.mxu0 0.0
    %8064 = vmatprep.subr.mxu0 0.0
    %8065 = vmatpush2.msra.mxu0 0.0
    %8066 = vmatprep.subr.mxu0 0.0
    %8067 = vmatpush2.msra.mxu0 0.0
    %8068 = vmatprep.subr.mxu0 0.0
    %8069 = vmatpush2.msra.mxu0 0.0
    %8070 = vmatprep.subr.mxu0 0.0
    %8071 = vmatpush2.msra.mxu0 0.0
    %8072 = vmatprep.mubr.f32.mxu0 0.0
    %8073 = vmatmul.mubr.f32.gmra.mxu0 %v7935
    %v8074 = vpop.f32.mrf.mxu0
    %v8075 = vadd.f32 0.0, %v8074
    %v8076 = vpop.f32.mrf.mxu0
    %8077 = vdwg.mxu0
    %v8078 = vadd.f32 %v7845, %v8004
    %v8079 = vadd.f32 %v7847, %v8006
    %v8080 = vadd.f32 %v7916, %v8075
    %v8081 = vld [vmem:[%s3540] sm:$0xff]
    %8082 = vrot.lane.b32.xlu0 %v7594, 1
    %v8083 = vpop.permute.xlu0 %8082
    %8084 = vrot.lane.b32.xlu0 %v7595, 1
    %v8085 = vpop.permute.xlu0 %8084
    %8086 = vrot.lane.b32.xlu0 %v7596, 1
    %v8087 = vpop.permute.xlu0 %8086
    %8088 = vrot.lane.b32.xlu0 %v7597, 1
    %v8089 = vpop.permute.xlu0 %8088
    %v8090 = vsel %vm535, %v8083, %v8085
    %v8091 = vsel %vm535, %v8085, %v8087
    %v8092 = vsel %vm535, %v8087, %v8089
    %v8097 = vsel %vm57, %v8081, 0
    %8099 = vmatprep.subr.mxu0 0.0
    %8100 = vmatpush1.msra.mxu0 0.0
    %8101 = vmatprep.subr.mxu0 0.0
    %8102 = vmatpush1.msra.mxu0 0.0
    %8103 = vmatprep.subr.mxu0 0.0
    %8104 = vmatpush1.msra.mxu0 0.0
    %8105 = vmatprep.subr.mxu0 0.0
    %8106 = vmatpush1.msra.mxu0 0.0
    %8107 = vmatprep.subr.mxu0 0.0
    %8108 = vmatpush1.msra.mxu0 0.0
    %8109 = vmatprep.subr.mxu0 0.0
    %8110 = vmatpush1.msra.mxu0 0.0
    %8111 = vmatprep.subr.mxu0 0.0
    %8112 = vmatpush1.msra.mxu0 0.0
    %8113 = vmatprep.subr.mxu0 0.0
    %8114 = vmatpush1.msra.mxu0 0.0
    %8115 = vmatprep.subr.mxu0 0.0
    %8116 = vmatpush1.msra.mxu0 0.0
    %8117 = vmatprep.subr.mxu0 0.0
    %8118 = vmatpush1.msra.mxu0 0.0
    %8119 = vmatprep.subr.mxu0 0.0
    %8120 = vmatpush1.msra.mxu0 0.0
    %8121 = vmatprep.subr.mxu0 0.0
    %8122 = vmatpush1.msra.mxu0 0.0
    %8123 = vmatprep.subr.mxu0 0.0
    %8124 = vmatpush1.msra.mxu0 0.0
    %8125 = vmatprep.subr.mxu0 0.0
    %8126 = vmatpush1.msra.mxu0 0.0
    %8127 = vmatprep.subr.mxu0 0.0
    %8128 = vmatpush1.msra.mxu0 0.0
    %8129 = vmatprep.subr.mxu0 %v8091
    %8130 = vmatpush1.msra.mxu0 %v8090
    %8131 = vmatprep.subr.mxu0 0.0
    %8132 = vmatpush2.msra.mxu0 0.0
    %8133 = vmatprep.subr.mxu0 0.0
    %8134 = vmatpush2.msra.mxu0 0.0
    %8135 = vmatprep.subr.mxu0 0.0
    %8136 = vmatpush2.msra.mxu0 0.0
    %8137 = vmatprep.subr.mxu0 0.0
    %8138 = vmatpush2.msra.mxu0 0.0
    %8139 = vmatprep.subr.mxu0 0.0
    %8140 = vmatpush2.msra.mxu0 0.0
    %8141 = vmatprep.subr.mxu0 0.0
    %8142 = vmatpush2.msra.mxu0 0.0
    %8143 = vmatprep.subr.mxu0 0.0
    %8144 = vmatpush2.msra.mxu0 0.0
    %8145 = vmatprep.subr.mxu0 0.0
    %8146 = vmatpush2.msra.mxu0 0.0
    %8147 = vmatprep.subr.mxu0 0.0
    %8148 = vmatpush2.msra.mxu0 0.0
    %8149 = vmatprep.subr.mxu0 0.0
    %8150 = vmatpush2.msra.mxu0 0.0
    %8151 = vmatprep.subr.mxu0 0.0
    %8152 = vmatpush2.msra.mxu0 0.0
    %8153 = vmatprep.subr.mxu0 0.0
    %8154 = vmatpush2.msra.mxu0 0.0
    %8155 = vmatprep.subr.mxu0 0.0
    %8156 = vmatpush2.msra.mxu0 0.0
    %8157 = vmatprep.subr.mxu0 0.0
    %8158 = vmatpush2.msra.mxu0 0.0
    %8159 = vmatprep.subr.mxu0 0.0
    %8160 = vmatpush2.msra.mxu0 0.0
    %8161 = vmatprep.subr.mxu0 0.0
    %8162 = vmatpush2.msra.mxu0 0.0
    %8163 = vmatprep.mubr.f32.mxu0 0.0
    %8164 = vmatmul.mubr.f32.gmra.mxu0 %v8097
    %v8165 = vpop.f32.mrf.mxu0
    %v8166 = vadd.f32 0.0, %v8165
    %v8167 = vpop.f32.mrf.mxu0
    %v8168 = vadd.f32 0.0, %v8167
    %8169 = vdwg.mxu0
    %8170 = vmatprep.subr.mxu0 0.0
    %8171 = vmatpush1.msra.mxu0 0.0
    %8172 = vmatprep.subr.mxu0 0.0
    %8173 = vmatpush1.msra.mxu0 0.0
    %8174 = vmatprep.subr.mxu0 0.0
    %8175 = vmatpush1.msra.mxu0 0.0
    %8176 = vmatprep.subr.mxu0 0.0
    %8177 = vmatpush1.msra.mxu0 0.0
    %8178 = vmatprep.subr.mxu0 0.0
    %8179 = vmatpush1.msra.mxu0 0.0
    %8180 = vmatprep.subr.mxu0 0.0
    %8181 = vmatpush1.msra.mxu0 0.0
    %8182 = vmatprep.subr.mxu0 0.0
    %8183 = vmatpush1.msra.mxu0 0.0
    %8184 = vmatprep.subr.mxu0 0.0
    %8185 = vmatpush1.msra.mxu0 0.0
    %8186 = vmatprep.subr.mxu0 0.0
    %8187 = vmatpush1.msra.mxu0 0.0
    %8188 = vmatprep.subr.mxu0 0.0
    %8189 = vmatpush1.msra.mxu0 0.0
    %8190 = vmatprep.subr.mxu0 0.0
    %8191 = vmatpush1.msra.mxu0 0.0
    %8192 = vmatprep.subr.mxu0 0.0
    %8193 = vmatpush1.msra.mxu0 0.0
    %8194 = vmatprep.subr.mxu0 0.0
    %8195 = vmatpush1.msra.mxu0 0.0
    %8196 = vmatprep.subr.mxu0 0.0
    %8197 = vmatpush1.msra.mxu0 0.0
    %8198 = vmatprep.subr.mxu0 0.0
    %8199 = vmatpush1.msra.mxu0 0.0
    %8200 = vmatprep.subr.mxu0 0.0
    %8201 = vmatpush1.msra.mxu0 %v8092
    %8202 = vmatprep.subr.mxu0 0.0
    %8203 = vmatpush2.msra.mxu0 0.0
    %8204 = vmatprep.subr.mxu0 0.0
    %8205 = vmatpush2.msra.mxu0 0.0
    %8206 = vmatprep.subr.mxu0 0.0
    %8207 = vmatpush2.msra.mxu0 0.0
    %8208 = vmatprep.subr.mxu0 0.0
    %8209 = vmatpush2.msra.mxu0 0.0
    %8210 = vmatprep.subr.mxu0 0.0
    %8211 = vmatpush2.msra.mxu0 0.0
    %8212 = vmatprep.subr.mxu0 0.0
    %8213 = vmatpush2.msra.mxu0 0.0
    %8214 = vmatprep.subr.mxu0 0.0
    %8215 = vmatpush2.msra.mxu0 0.0
    %8216 = vmatprep.subr.mxu0 0.0
    %8217 = vmatpush2.msra.mxu0 0.0
    %8218 = vmatprep.subr.mxu0 0.0
    %8219 = vmatpush2.msra.mxu0 0.0
    %8220 = vmatprep.subr.mxu0 0.0
    %8221 = vmatpush2.msra.mxu0 0.0
    %8222 = vmatprep.subr.mxu0 0.0
    %8223 = vmatpush2.msra.mxu0 0.0
    %8224 = vmatprep.subr.mxu0 0.0
    %8225 = vmatpush2.msra.mxu0 0.0
    %8226 = vmatprep.subr.mxu0 0.0
    %8227 = vmatpush2.msra.mxu0 0.0
    %8228 = vmatprep.subr.mxu0 0.0
    %8229 = vmatpush2.msra.mxu0 0.0
    %8230 = vmatprep.subr.mxu0 0.0
    %8231 = vmatpush2.msra.mxu0 0.0
    %8232 = vmatprep.subr.mxu0 0.0
    %8233 = vmatpush2.msra.mxu0 0.0
    %8234 = vmatprep.mubr.f32.mxu0 0.0
    %8235 = vmatmul.mubr.f32.gmra.mxu0 %v8097
    %v8236 = vpop.f32.mrf.mxu0
    %v8237 = vadd.f32 0.0, %v8236
    %v8238 = vpop.f32.mrf.mxu0
    %8239 = vdwg.mxu0
    %v8240 = vadd.f32 %v8078, %v8166
    %v8241 = vadd.f32 %v8079, %v8168
    %v8242 = vadd.f32 %v8080, %v8237
    %v8243 = vld [vmem:[%s3703] sm:$0xff]
    %v8245 = vsel %vm57, %v8243, 0
    %8247 = vmatprep.subr.mxu0 0.0
    %8248 = vmatpush1.msra.mxu0 0.0
    %8249 = vmatprep.subr.mxu0 0.0
    %8250 = vmatpush1.msra.mxu0 0.0
    %8251 = vmatprep.subr.mxu0 0.0
    %8252 = vmatpush1.msra.mxu0 0.0
    %8253 = vmatprep.subr.mxu0 0.0
    %8254 = vmatpush1.msra.mxu0 0.0
    %8255 = vmatprep.subr.mxu0 0.0
    %8256 = vmatpush1.msra.mxu0 0.0
    %8257 = vmatprep.subr.mxu0 0.0
    %8258 = vmatpush1.msra.mxu0 0.0
    %8259 = vmatprep.subr.mxu0 0.0
    %8260 = vmatpush1.msra.mxu0 0.0
    %8261 = vmatprep.subr.mxu0 0.0
    %8262 = vmatpush1.msra.mxu0 0.0
    %8263 = vmatprep.subr.mxu0 0.0
    %8264 = vmatpush1.msra.mxu0 0.0
    %8265 = vmatprep.subr.mxu0 0.0
    %8266 = vmatpush1.msra.mxu0 0.0
    %8267 = vmatprep.subr.mxu0 0.0
    %8268 = vmatpush1.msra.mxu0 0.0
    %8269 = vmatprep.subr.mxu0 0.0
    %8270 = vmatpush1.msra.mxu0 0.0
    %8271 = vmatprep.subr.mxu0 0.0
    %8272 = vmatpush1.msra.mxu0 0.0
    %8273 = vmatprep.subr.mxu0 0.0
    %8274 = vmatpush1.msra.mxu0 0.0
    %8275 = vmatprep.subr.mxu0 0.0
    %8276 = vmatpush1.msra.mxu0 0.0
    %8277 = vmatprep.subr.mxu0 %v7596
    %8278 = vmatpush1.msra.mxu0 %v7595
    %8279 = vmatprep.subr.mxu0 0.0
    %8280 = vmatpush2.msra.mxu0 0.0
    %8281 = vmatprep.subr.mxu0 0.0
    %8282 = vmatpush2.msra.mxu0 0.0
    %8283 = vmatprep.subr.mxu0 0.0
    %8284 = vmatpush2.msra.mxu0 0.0
    %8285 = vmatprep.subr.mxu0 0.0
    %8286 = vmatpush2.msra.mxu0 0.0
    %8287 = vmatprep.subr.mxu0 0.0
    %8288 = vmatpush2.msra.mxu0 0.0
    %8289 = vmatprep.subr.mxu0 0.0
    %8290 = vmatpush2.msra.mxu0 0.0
    %8291 = vmatprep.subr.mxu0 0.0
    %8292 = vmatpush2.msra.mxu0 0.0
    %8293 = vmatprep.subr.mxu0 0.0
    %8294 = vmatpush2.msra.mxu0 0.0
    %8295 = vmatprep.subr.mxu0 0.0
    %8296 = vmatpush2.msra.mxu0 0.0
    %8297 = vmatprep.subr.mxu0 0.0
    %8298 = vmatpush2.msra.mxu0 0.0
    %8299 = vmatprep.subr.mxu0 0.0
    %8300 = vmatpush2.msra.mxu0 0.0
    %8301 = vmatprep.subr.mxu0 0.0
    %8302 = vmatpush2.msra.mxu0 0.0
    %8303 = vmatprep.subr.mxu0 0.0
    %8304 = vmatpush2.msra.mxu0 0.0
    %8305 = vmatprep.subr.mxu0 0.0
    %8306 = vmatpush2.msra.mxu0 0.0
    %8307 = vmatprep.subr.mxu0 0.0
    %8308 = vmatpush2.msra.mxu0 0.0
    %8309 = vmatprep.subr.mxu0 0.0
    %8310 = vmatpush2.msra.mxu0 0.0
    %8311 = vmatprep.mubr.f32.mxu0 0.0
    %8312 = vmatmul.mubr.f32.gmra.mxu0 %v8245
    %v8313 = vpop.f32.mrf.mxu0
    %v8314 = vadd.f32 0.0, %v8313
    %v8315 = vpop.f32.mrf.mxu0
    %v8316 = vadd.f32 0.0, %v8315
    %8317 = vdwg.mxu0
    %8318 = vmatprep.subr.mxu0 0.0
    %8319 = vmatpush1.msra.mxu0 0.0
    %8320 = vmatprep.subr.mxu0 0.0
    %8321 = vmatpush1.msra.mxu0 0.0
    %8322 = vmatprep.subr.mxu0 0.0
    %8323 = vmatpush1.msra.mxu0 0.0
    %8324 = vmatprep.subr.mxu0 0.0
    %8325 = vmatpush1.msra.mxu0 0.0
    %8326 = vmatprep.subr.mxu0 0.0
    %8327 = vmatpush1.msra.mxu0 0.0
    %8328 = vmatprep.subr.mxu0 0.0
    %8329 = vmatpush1.msra.mxu0 0.0
    %8330 = vmatprep.subr.mxu0 0.0
    %8331 = vmatpush1.msra.mxu0 0.0
    %8332 = vmatprep.subr.mxu0 0.0
    %8333 = vmatpush1.msra.mxu0 0.0
    %8334 = vmatprep.subr.mxu0 0.0
    %8335 = vmatpush1.msra.mxu0 0.0
    %8336 = vmatprep.subr.mxu0 0.0
    %8337 = vmatpush1.msra.mxu0 0.0
    %8338 = vmatprep.subr.mxu0 0.0
    %8339 = vmatpush1.msra.mxu0 0.0
    %8340 = vmatprep.subr.mxu0 0.0
    %8341 = vmatpush1.msra.mxu0 0.0
    %8342 = vmatprep.subr.mxu0 0.0
    %8343 = vmatpush1.msra.mxu0 0.0
    %8344 = vmatprep.subr.mxu0 0.0
    %8345 = vmatpush1.msra.mxu0 0.0
    %8346 = vmatprep.subr.mxu0 0.0
    %8347 = vmatpush1.msra.mxu0 0.0
    %8348 = vmatprep.subr.mxu0 0.0
    %8349 = vmatpush1.msra.mxu0 %v7597
    %8350 = vmatprep.subr.mxu0 0.0
    %8351 = vmatpush2.msra.mxu0 0.0
    %8352 = vmatprep.subr.mxu0 0.0
    %8353 = vmatpush2.msra.mxu0 0.0
    %8354 = vmatprep.subr.mxu0 0.0
    %8355 = vmatpush2.msra.mxu0 0.0
    %8356 = vmatprep.subr.mxu0 0.0
    %8357 = vmatpush2.msra.mxu0 0.0
    %8358 = vmatprep.subr.mxu0 0.0
    %8359 = vmatpush2.msra.mxu0 0.0
    %8360 = vmatprep.subr.mxu0 0.0
    %8361 = vmatpush2.msra.mxu0 0.0
    %8362 = vmatprep.subr.mxu0 0.0
    %8363 = vmatpush2.msra.mxu0 0.0
    %8364 = vmatprep.subr.mxu0 0.0
    %8365 = vmatpush2.msra.mxu0 0.0
    %8366 = vmatprep.subr.mxu0 0.0
    %8367 = vmatpush2.msra.mxu0 0.0
    %8368 = vmatprep.subr.mxu0 0.0
    %8369 = vmatpush2.msra.mxu0 0.0
    %8370 = vmatprep.subr.mxu0 0.0
    %8371 = vmatpush2.msra.mxu0 0.0
    %8372 = vmatprep.subr.mxu0 0.0
    %8373 = vmatpush2.msra.mxu0 0.0
    %8374 = vmatprep.subr.mxu0 0.0
    %8375 = vmatpush2.msra.mxu0 0.0
    %8376 = vmatprep.subr.mxu0 0.0
    %8377 = vmatpush2.msra.mxu0 0.0
    %8378 = vmatprep.subr.mxu0 0.0
    %8379 = vmatpush2.msra.mxu0 0.0
    %8380 = vmatprep.subr.mxu0 0.0
    %8381 = vmatpush2.msra.mxu0 0.0
    %8382 = vmatprep.mubr.f32.mxu0 0.0
    %8383 = vmatmul.mubr.f32.gmra.mxu0 %v8245
    %v8384 = vpop.f32.mrf.mxu0
    %v8385 = vadd.f32 0.0, %v8384
    %v8386 = vpop.f32.mrf.mxu0
    %8387 = vdwg.mxu0
    %v8388 = vadd.f32 %v8240, %v8314
    %v8389 = vadd.f32 %v8241, %v8316
    %v8390 = vadd.f32 %v8242, %v8385
    %v8391 = vld [vmem:[%s3852] sm:$0xff]
    %v8392 = vld [vmem:[#allocation3 + $0x8] sm:$0xff]
    %v8393 = vld [vmem:[#allocation3 + $0x10] sm:$0xff]
    %v8394 = vld [vmem:[#allocation3 + $0x18] sm:$0xff]
    %v8395 = vld [vmem:[#allocation3 + $0x20] sm:$0xff]
    %8400 = vrot.lane.b32.xlu0 %v8392, 127
    %v8401 = vpop.permute.xlu0 %8400
    %8402 = vrot.lane.b32.xlu0 %v8393, 127
    %v8403 = vpop.permute.xlu0 %8402
    %8404 = vrot.lane.b32.xlu0 %v8394, 127
    %v8405 = vpop.permute.xlu0 %8404
    %8406 = vrot.lane.b32.xlu0 %v8395, 127
    %v8407 = vpop.permute.xlu0 %8406
    %v8408 = vsel %vm856, %v8401, %v8403
    %v8409 = vsel %vm856, %v8403, %v8405
    %v8410 = vsel %vm856, %v8405, %v8407
    %v8415 = vsel %vm57, %v8391, 0
    %8417 = vmatprep.subr.mxu0 0.0
    %8418 = vmatpush1.msra.mxu0 0.0
    %8419 = vmatprep.subr.mxu0 0.0
    %8420 = vmatpush1.msra.mxu0 0.0
    %8421 = vmatprep.subr.mxu0 0.0
    %8422 = vmatpush1.msra.mxu0 0.0
    %8423 = vmatprep.subr.mxu0 0.0
    %8424 = vmatpush1.msra.mxu0 0.0
    %8425 = vmatprep.subr.mxu0 0.0
    %8426 = vmatpush1.msra.mxu0 0.0
    %8427 = vmatprep.subr.mxu0 0.0
    %8428 = vmatpush1.msra.mxu0 0.0
    %8429 = vmatprep.subr.mxu0 0.0
    %8430 = vmatpush1.msra.mxu0 0.0
    %8431 = vmatprep.subr.mxu0 0.0
    %8432 = vmatpush1.msra.mxu0 0.0
    %8433 = vmatprep.subr.mxu0 0.0
    %8434 = vmatpush1.msra.mxu0 0.0
    %8435 = vmatprep.subr.mxu0 0.0
    %8436 = vmatpush1.msra.mxu0 0.0
    %8437 = vmatprep.subr.mxu0 0.0
    %8438 = vmatpush1.msra.mxu0 0.0
    %8439 = vmatprep.subr.mxu0 0.0
    %8440 = vmatpush1.msra.mxu0 0.0
    %8441 = vmatprep.subr.mxu0 0.0
    %8442 = vmatpush1.msra.mxu0 0.0
    %8443 = vmatprep.subr.mxu0 0.0
    %8444 = vmatpush1.msra.mxu0 0.0
    %8445 = vmatprep.subr.mxu0 0.0
    %8446 = vmatpush1.msra.mxu0 0.0
    %8447 = vmatprep.subr.mxu0 %v8409
    %8448 = vmatpush1.msra.mxu0 %v8408
    %8449 = vmatprep.subr.mxu0 0.0
    %8450 = vmatpush2.msra.mxu0 0.0
    %8451 = vmatprep.subr.mxu0 0.0
    %8452 = vmatpush2.msra.mxu0 0.0
    %8453 = vmatprep.subr.mxu0 0.0
    %8454 = vmatpush2.msra.mxu0 0.0
    %8455 = vmatprep.subr.mxu0 0.0
    %8456 = vmatpush2.msra.mxu0 0.0
    %8457 = vmatprep.subr.mxu0 0.0
    %8458 = vmatpush2.msra.mxu0 0.0
    %8459 = vmatprep.subr.mxu0 0.0
    %8460 = vmatpush2.msra.mxu0 0.0
    %8461 = vmatprep.subr.mxu0 0.0
    %8462 = vmatpush2.msra.mxu0 0.0
    %8463 = vmatprep.subr.mxu0 0.0
    %8464 = vmatpush2.msra.mxu0 0.0
    %8465 = vmatprep.subr.mxu0 0.0
    %8466 = vmatpush2.msra.mxu0 0.0
    %8467 = vmatprep.subr.mxu0 0.0
    %8468 = vmatpush2.msra.mxu0 0.0
    %8469 = vmatprep.subr.mxu0 0.0
    %8470 = vmatpush2.msra.mxu0 0.0
    %8471 = vmatprep.subr.mxu0 0.0
    %8472 = vmatpush2.msra.mxu0 0.0
    %8473 = vmatprep.subr.mxu0 0.0
    %8474 = vmatpush2.msra.mxu0 0.0
    %8475 = vmatprep.subr.mxu0 0.0
    %8476 = vmatpush2.msra.mxu0 0.0
    %8477 = vmatprep.subr.mxu0 0.0
    %8478 = vmatpush2.msra.mxu0 0.0
    %8479 = vmatprep.subr.mxu0 0.0
    %8480 = vmatpush2.msra.mxu0 0.0
    %8481 = vmatprep.mubr.f32.mxu0 0.0
    %8482 = vmatmul.mubr.f32.gmra.mxu0 %v8415
    %v8483 = vpop.f32.mrf.mxu0
    %v8484 = vadd.f32 0.0, %v8483
    %v8485 = vpop.f32.mrf.mxu0
    %v8486 = vadd.f32 0.0, %v8485
    %8487 = vdwg.mxu0
    %8488 = vmatprep.subr.mxu0 0.0
    %8489 = vmatpush1.msra.mxu0 0.0
    %8490 = vmatprep.subr.mxu0 0.0
    %8491 = vmatpush1.msra.mxu0 0.0
    %8492 = vmatprep.subr.mxu0 0.0
    %8493 = vmatpush1.msra.mxu0 0.0
    %8494 = vmatprep.subr.mxu0 0.0
    %8495 = vmatpush1.msra.mxu0 0.0
    %8496 = vmatprep.subr.mxu0 0.0
    %8497 = vmatpush1.msra.mxu0 0.0
    %8498 = vmatprep.subr.mxu0 0.0
    %8499 = vmatpush1.msra.mxu0 0.0
    %8500 = vmatprep.subr.mxu0 0.0
    %8501 = vmatpush1.msra.mxu0 0.0
    %8502 = vmatprep.subr.mxu0 0.0
    %8503 = vmatpush1.msra.mxu0 0.0
    %8504 = vmatprep.subr.mxu0 0.0
    %8505 = vmatpush1.msra.mxu0 0.0
    %8506 = vmatprep.subr.mxu0 0.0
    %8507 = vmatpush1.msra.mxu0 0.0
    %8508 = vmatprep.subr.mxu0 0.0
    %8509 = vmatpush1.msra.mxu0 0.0
    %8510 = vmatprep.subr.mxu0 0.0
    %8511 = vmatpush1.msra.mxu0 0.0
    %8512 = vmatprep.subr.mxu0 0.0
    %8513 = vmatpush1.msra.mxu0 0.0
    %8514 = vmatprep.subr.mxu0 0.0
    %8515 = vmatpush1.msra.mxu0 0.0
    %8516 = vmatprep.subr.mxu0 0.0
    %8517 = vmatpush1.msra.mxu0 0.0
    %8518 = vmatprep.subr.mxu0 0.0
    %8519 = vmatpush1.msra.mxu0 %v8410
    %8520 = vmatprep.subr.mxu0 0.0
    %8521 = vmatpush2.msra.mxu0 0.0
    %8522 = vmatprep.subr.mxu0 0.0
    %8523 = vmatpush2.msra.mxu0 0.0
    %8524 = vmatprep.subr.mxu0 0.0
    %8525 = vmatpush2.msra.mxu0 0.0
    %8526 = vmatprep.subr.mxu0 0.0
    %8527 = vmatpush2.msra.mxu0 0.0
    %8528 = vmatprep.subr.mxu0 0.0
    %8529 = vmatpush2.msra.mxu0 0.0
    %8530 = vmatprep.subr.mxu0 0.0
    %8531 = vmatpush2.msra.mxu0 0.0
    %8532 = vmatprep.subr.mxu0 0.0
    %8533 = vmatpush2.msra.mxu0 0.0
    %8534 = vmatprep.subr.mxu0 0.0
    %8535 = vmatpush2.msra.mxu0 0.0
    %8536 = vmatprep.subr.mxu0 0.0
    %8537 = vmatpush2.msra.mxu0 0.0
    %8538 = vmatprep.subr.mxu0 0.0
    %8539 = vmatpush2.msra.mxu0 0.0
    %8540 = vmatprep.subr.mxu0 0.0
    %8541 = vmatpush2.msra.mxu0 0.0
    %8542 = vmatprep.subr.mxu0 0.0
    %8543 = vmatpush2.msra.mxu0 0.0
    %8544 = vmatprep.subr.mxu0 0.0
    %8545 = vmatpush2.msra.mxu0 0.0
    %8546 = vmatprep.subr.mxu0 0.0
    %8547 = vmatpush2.msra.mxu0 0.0
    %8548 = vmatprep.subr.mxu0 0.0
    %8549 = vmatpush2.msra.mxu0 0.0
    %8550 = vmatprep.subr.mxu0 0.0
    %8551 = vmatpush2.msra.mxu0 0.0
    %8552 = vmatprep.mubr.f32.mxu0 0.0
    %8553 = vmatmul.mubr.f32.gmra.mxu0 %v8415
    %v8554 = vpop.f32.mrf.mxu0
    %v8555 = vadd.f32 0.0, %v8554
    %v8556 = vpop.f32.mrf.mxu0
    %8557 = vdwg.mxu0
    %v8558 = vadd.f32 %v8388, %v8484
    %v8559 = vadd.f32 %v8389, %v8486
    %v8560 = vadd.f32 %v8390, %v8555
    %v8561 = vld [vmem:[%s4023] sm:$0xff]
    %8562 = vrot.lane.b32.xlu0 %v8392, 111
    %v8563 = vpop.permute.xlu0 %8562
    %8564 = vrot.lane.b32.xlu0 %v8393, 111
    %v8565 = vpop.permute.xlu0 %8564
    %8566 = vrot.lane.b32.xlu0 %v8394, 111
    %v8567 = vpop.permute.xlu0 %8566
    %8568 = vrot.lane.b32.xlu0 %v8395, 111
    %v8569 = vpop.permute.xlu0 %8568
    %v8570 = vsel %vm1020, %v8563, %v8565
    %v8571 = vsel %vm1020, %v8565, %v8567
    %v8572 = vsel %vm1020, %v8567, %v8569
    %v8577 = vsel %vm57, %v8561, 0
    %8579 = vmatprep.subr.mxu0 0.0
    %8580 = vmatpush1.msra.mxu0 0.0
    %8581 = vmatprep.subr.mxu0 0.0
    %8582 = vmatpush1.msra.mxu0 0.0
    %8583 = vmatprep.subr.mxu0 0.0
    %8584 = vmatpush1.msra.mxu0 0.0
    %8585 = vmatprep.subr.mxu0 0.0
    %8586 = vmatpush1.msra.mxu0 0.0
    %8587 = vmatprep.subr.mxu0 0.0
    %8588 = vmatpush1.msra.mxu0 0.0
    %8589 = vmatprep.subr.mxu0 0.0
    %8590 = vmatpush1.msra.mxu0 0.0
    %8591 = vmatprep.subr.mxu0 0.0
    %8592 = vmatpush1.msra.mxu0 0.0
    %8593 = vmatprep.subr.mxu0 0.0
    %8594 = vmatpush1.msra.mxu0 0.0
    %8595 = vmatprep.subr.mxu0 0.0
    %8596 = vmatpush1.msra.mxu0 0.0
    %8597 = vmatprep.subr.mxu0 0.0
    %8598 = vmatpush1.msra.mxu0 0.0
    %8599 = vmatprep.subr.mxu0 0.0
    %8600 = vmatpush1.msra.mxu0 0.0
    %8601 = vmatprep.subr.mxu0 0.0
    %8602 = vmatpush1.msra.mxu0 0.0
    %8603 = vmatprep.subr.mxu0 0.0
    %8604 = vmatpush1.msra.mxu0 0.0
    %8605 = vmatprep.subr.mxu0 0.0
    %8606 = vmatpush1.msra.mxu0 0.0
    %8607 = vmatprep.subr.mxu0 0.0
    %8608 = vmatpush1.msra.mxu0 0.0
    %8609 = vmatprep.subr.mxu0 %v8571
    %8610 = vmatpush1.msra.mxu0 %v8570
    %8611 = vmatprep.subr.mxu0 0.0
    %8612 = vmatpush2.msra.mxu0 0.0
    %8613 = vmatprep.subr.mxu0 0.0
    %8614 = vmatpush2.msra.mxu0 0.0
    %8615 = vmatprep.subr.mxu0 0.0
    %8616 = vmatpush2.msra.mxu0 0.0
    %8617 = vmatprep.subr.mxu0 0.0
    %8618 = vmatpush2.msra.mxu0 0.0
    %8619 = vmatprep.subr.mxu0 0.0
    %8620 = vmatpush2.msra.mxu0 0.0
    %8621 = vmatprep.subr.mxu0 0.0
    %8622 = vmatpush2.msra.mxu0 0.0
    %8623 = vmatprep.subr.mxu0 0.0
    %8624 = vmatpush2.msra.mxu0 0.0
    %8625 = vmatprep.subr.mxu0 0.0
    %8626 = vmatpush2.msra.mxu0 0.0
    %8627 = vmatprep.subr.mxu0 0.0
    %8628 = vmatpush2.msra.mxu0 0.0
    %8629 = vmatprep.subr.mxu0 0.0
    %8630 = vmatpush2.msra.mxu0 0.0
    %8631 = vmatprep.subr.mxu0 0.0
    %8632 = vmatpush2.msra.mxu0 0.0
    %8633 = vmatprep.subr.mxu0 0.0
    %8634 = vmatpush2.msra.mxu0 0.0
    %8635 = vmatprep.subr.mxu0 0.0
    %8636 = vmatpush2.msra.mxu0 0.0
    %8637 = vmatprep.subr.mxu0 0.0
    %8638 = vmatpush2.msra.mxu0 0.0
    %8639 = vmatprep.subr.mxu0 0.0
    %8640 = vmatpush2.msra.mxu0 0.0
    %8641 = vmatprep.subr.mxu0 0.0
    %8642 = vmatpush2.msra.mxu0 0.0
    %8643 = vmatprep.mubr.f32.mxu0 0.0
    %8644 = vmatmul.mubr.f32.gmra.mxu0 %v8577
    %v8645 = vpop.f32.mrf.mxu0
    %v8646 = vadd.f32 0.0, %v8645
    %v8647 = vpop.f32.mrf.mxu0
    %v8648 = vadd.f32 0.0, %v8647
    %8649 = vdwg.mxu0
    %8650 = vmatprep.subr.mxu0 0.0
    %8651 = vmatpush1.msra.mxu0 0.0
    %8652 = vmatprep.subr.mxu0 0.0
    %8653 = vmatpush1.msra.mxu0 0.0
    %8654 = vmatprep.subr.mxu0 0.0
    %8655 = vmatpush1.msra.mxu0 0.0
    %8656 = vmatprep.subr.mxu0 0.0
    %8657 = vmatpush1.msra.mxu0 0.0
    %8658 = vmatprep.subr.mxu0 0.0
    %8659 = vmatpush1.msra.mxu0 0.0
    %8660 = vmatprep.subr.mxu0 0.0
    %8661 = vmatpush1.msra.mxu0 0.0
    %8662 = vmatprep.subr.mxu0 0.0
    %8663 = vmatpush1.msra.mxu0 0.0
    %8664 = vmatprep.subr.mxu0 0.0
    %8665 = vmatpush1.msra.mxu0 0.0
    %8666 = vmatprep.subr.mxu0 0.0
    %8667 = vmatpush1.msra.mxu0 0.0
    %8668 = vmatprep.subr.mxu0 0.0
    %8669 = vmatpush1.msra.mxu0 0.0
    %8670 = vmatprep.subr.mxu0 0.0
    %8671 = vmatpush1.msra.mxu0 0.0
    %8672 = vmatprep.subr.mxu0 0.0
    %8673 = vmatpush1.msra.mxu0 0.0
    %8674 = vmatprep.subr.mxu0 0.0
    %8675 = vmatpush1.msra.mxu0 0.0
    %8676 = vmatprep.subr.mxu0 0.0
    %8677 = vmatpush1.msra.mxu0 0.0
    %8678 = vmatprep.subr.mxu0 0.0
    %8679 = vmatpush1.msra.mxu0 0.0
    %8680 = vmatprep.subr.mxu0 0.0
    %8681 = vmatpush1.msra.mxu0 %v8572
    %8682 = vmatprep.subr.mxu0 0.0
    %8683 = vmatpush2.msra.mxu0 0.0
    %8684 = vmatprep.subr.mxu0 0.0
    %8685 = vmatpush2.msra.mxu0 0.0
    %8686 = vmatprep.subr.mxu0 0.0
    %8687 = vmatpush2.msra.mxu0 0.0
    %8688 = vmatprep.subr.mxu0 0.0
    %8689 = vmatpush2.msra.mxu0 0.0
    %8690 = vmatprep.subr.mxu0 0.0
    %8691 = vmatpush2.msra.mxu0 0.0
    %8692 = vmatprep.subr.mxu0 0.0
    %8693 = vmatpush2.msra.mxu0 0.0
    %8694 = vmatprep.subr.mxu0 0.0
    %8695 = vmatpush2.msra.mxu0 0.0
    %8696 = vmatprep.subr.mxu0 0.0
    %8697 = vmatpush2.msra.mxu0 0.0
    %8698 = vmatprep.subr.mxu0 0.0
    %8699 = vmatpush2.msra.mxu0 0.0
    %8700 = vmatprep.subr.mxu0 0.0
    %8701 = vmatpush2.msra.mxu0 0.0
    %8702 = vmatprep.subr.mxu0 0.0
    %8703 = vmatpush2.msra.mxu0 0.0
    %8704 = vmatprep.subr.mxu0 0.0
    %8705 = vmatpush2.msra.mxu0 0.0
    %8706 = vmatprep.subr.mxu0 0.0
    %8707 = vmatpush2.msra.mxu0 0.0
    %8708 = vmatprep.subr.mxu0 0.0
    %8709 = vmatpush2.msra.mxu0 0.0
    %8710 = vmatprep.subr.mxu0 0.0
    %8711 = vmatpush2.msra.mxu0 0.0
    %8712 = vmatprep.subr.mxu0 0.0
    %8713 = vmatpush2.msra.mxu0 0.0
    %8714 = vmatprep.mubr.f32.mxu0 0.0
    %8715 = vmatmul.mubr.f32.gmra.mxu0 %v8577
    %v8716 = vpop.f32.mrf.mxu0
    %v8717 = vadd.f32 0.0, %v8716
    %v8718 = vpop.f32.mrf.mxu0
    %8719 = vdwg.mxu0
    %v8720 = vadd.f32 %v8558, %v8646
    %v8721 = vadd.f32 %v8559, %v8648
    %v8722 = vadd.f32 %v8560, %v8717
    %v8723 = vld [vmem:[%s4186] sm:$0xff]
    %8724 = vrot.lane.b32.xlu0 %v8392, 110
    %v8725 = vpop.permute.xlu0 %8724
    %8726 = vrot.lane.b32.xlu0 %v8393, 110
    %v8727 = vpop.permute.xlu0 %8726
    %8728 = vrot.lane.b32.xlu0 %v8394, 110
    %v8729 = vpop.permute.xlu0 %8728
    %8730 = vrot.lane.b32.xlu0 %v8395, 110
    %v8731 = vpop.permute.xlu0 %8730
    %v8732 = vsel %vm1184, %v8725, %v8727
    %v8733 = vsel %vm1184, %v8727, %v8729
    %v8734 = vsel %vm1184, %v8729, %v8731
    %v8739 = vsel %vm57, %v8723, 0
    %8741 = vmatprep.subr.mxu0 0.0
    %8742 = vmatpush1.msra.mxu0 0.0
    %8743 = vmatprep.subr.mxu0 0.0
    %8744 = vmatpush1.msra.mxu0 0.0
    %8745 = vmatprep.subr.mxu0 0.0
    %8746 = vmatpush1.msra.mxu0 0.0
    %8747 = vmatprep.subr.mxu0 0.0
    %8748 = vmatpush1.msra.mxu0 0.0
    %8749 = vmatprep.subr.mxu0 0.0
    %8750 = vmatpush1.msra.mxu0 0.0
    %8751 = vmatprep.subr.mxu0 0.0
    %8752 = vmatpush1.msra.mxu0 0.0
    %8753 = vmatprep.subr.mxu0 0.0
    %8754 = vmatpush1.msra.mxu0 0.0
    %8755 = vmatprep.subr.mxu0 0.0
    %8756 = vmatpush1.msra.mxu0 0.0
    %8757 = vmatprep.subr.mxu0 0.0
    %8758 = vmatpush1.msra.mxu0 0.0
    %8759 = vmatprep.subr.mxu0 0.0
    %8760 = vmatpush1.msra.mxu0 0.0
    %8761 = vmatprep.subr.mxu0 0.0
    %8762 = vmatpush1.msra.mxu0 0.0
    %8763 = vmatprep.subr.mxu0 0.0
    %8764 = vmatpush1.msra.mxu0 0.0
    %8765 = vmatprep.subr.mxu0 0.0
    %8766 = vmatpush1.msra.mxu0 0.0
    %8767 = vmatprep.subr.mxu0 0.0
    %8768 = vmatpush1.msra.mxu0 0.0
    %8769 = vmatprep.subr.mxu0 0.0
    %8770 = vmatpush1.msra.mxu0 0.0
    %8771 = vmatprep.subr.mxu0 %v8733
    %8772 = vmatpush1.msra.mxu0 %v8732
    %8773 = vmatprep.subr.mxu0 0.0
    %8774 = vmatpush2.msra.mxu0 0.0
    %8775 = vmatprep.subr.mxu0 0.0
    %8776 = vmatpush2.msra.mxu0 0.0
    %8777 = vmatprep.subr.mxu0 0.0
    %8778 = vmatpush2.msra.mxu0 0.0
    %8779 = vmatprep.subr.mxu0 0.0
    %8780 = vmatpush2.msra.mxu0 0.0
    %8781 = vmatprep.subr.mxu0 0.0
    %8782 = vmatpush2.msra.mxu0 0.0
    %8783 = vmatprep.subr.mxu0 0.0
    %8784 = vmatpush2.msra.mxu0 0.0
    %8785 = vmatprep.subr.mxu0 0.0
    %8786 = vmatpush2.msra.mxu0 0.0
    %8787 = vmatprep.subr.mxu0 0.0
    %8788 = vmatpush2.msra.mxu0 0.0
    %8789 = vmatprep.subr.mxu0 0.0
    %8790 = vmatpush2.msra.mxu0 0.0
    %8791 = vmatprep.subr.mxu0 0.0
    %8792 = vmatpush2.msra.mxu0 0.0
    %8793 = vmatprep.subr.mxu0 0.0
    %8794 = vmatpush2.msra.mxu0 0.0
    %8795 = vmatprep.subr.mxu0 0.0
    %8796 = vmatpush2.msra.mxu0 0.0
    %8797 = vmatprep.subr.mxu0 0.0
    %8798 = vmatpush2.msra.mxu0 0.0
    %8799 = vmatprep.subr.mxu0 0.0
    %8800 = vmatpush2.msra.mxu0 0.0
    %8801 = vmatprep.subr.mxu0 0.0
    %8802 = vmatpush2.msra.mxu0 0.0
    %8803 = vmatprep.subr.mxu0 0.0
    %8804 = vmatpush2.msra.mxu0 0.0
    %8805 = vmatprep.mubr.f32.mxu0 0.0
    %8806 = vmatmul.mubr.f32.gmra.mxu0 %v8739
    %v8807 = vpop.f32.mrf.mxu0
    %v8808 = vadd.f32 0.0, %v8807
    %v8809 = vpop.f32.mrf.mxu0
    %v8810 = vadd.f32 0.0, %v8809
    %8811 = vdwg.mxu0
    %8812 = vmatprep.subr.mxu0 0.0
    %8813 = vmatpush1.msra.mxu0 0.0
    %8814 = vmatprep.subr.mxu0 0.0
    %8815 = vmatpush1.msra.mxu0 0.0
    %8816 = vmatprep.subr.mxu0 0.0
    %8817 = vmatpush1.msra.mxu0 0.0
    %8818 = vmatprep.subr.mxu0 0.0
    %8819 = vmatpush1.msra.mxu0 0.0
    %8820 = vmatprep.subr.mxu0 0.0
    %8821 = vmatpush1.msra.mxu0 0.0
    %8822 = vmatprep.subr.mxu0 0.0
    %8823 = vmatpush1.msra.mxu0 0.0
    %8824 = vmatprep.subr.mxu0 0.0
    %8825 = vmatpush1.msra.mxu0 0.0
    %8826 = vmatprep.subr.mxu0 0.0
    %8827 = vmatpush1.msra.mxu0 0.0
    %8828 = vmatprep.subr.mxu0 0.0
    %8829 = vmatpush1.msra.mxu0 0.0
    %8830 = vmatprep.subr.mxu0 0.0
    %8831 = vmatpush1.msra.mxu0 0.0
    %8832 = vmatprep.subr.mxu0 0.0
    %8833 = vmatpush1.msra.mxu0 0.0
    %8834 = vmatprep.subr.mxu0 0.0
    %8835 = vmatpush1.msra.mxu0 0.0
    %8836 = vmatprep.subr.mxu0 0.0
    %8837 = vmatpush1.msra.mxu0 0.0
    %8838 = vmatprep.subr.mxu0 0.0
    %8839 = vmatpush1.msra.mxu0 0.0
    %8840 = vmatprep.subr.mxu0 0.0
    %8841 = vmatpush1.msra.mxu0 0.0
    %8842 = vmatprep.subr.mxu0 0.0
    %8843 = vmatpush1.msra.mxu0 %v8734
    %8844 = vmatprep.subr.mxu0 0.0
    %8845 = vmatpush2.msra.mxu0 0.0
    %8846 = vmatprep.subr.mxu0 0.0
    %8847 = vmatpush2.msra.mxu0 0.0
    %8848 = vmatprep.subr.mxu0 0.0
    %8849 = vmatpush2.msra.mxu0 0.0
    %8850 = vmatprep.subr.mxu0 0.0
    %8851 = vmatpush2.msra.mxu0 0.0
    %8852 = vmatprep.subr.mxu0 0.0
    %8853 = vmatpush2.msra.mxu0 0.0
    %8854 = vmatprep.subr.mxu0 0.0
    %8855 = vmatpush2.msra.mxu0 0.0
    %8856 = vmatprep.subr.mxu0 0.0
    %8857 = vmatpush2.msra.mxu0 0.0
    %8858 = vmatprep.subr.mxu0 0.0
    %8859 = vmatpush2.msra.mxu0 0.0
    %8860 = vmatprep.subr.mxu0 0.0
    %8861 = vmatpush2.msra.mxu0 0.0
    %8862 = vmatprep.subr.mxu0 0.0
    %8863 = vmatpush2.msra.mxu0 0.0
    %8864 = vmatprep.subr.mxu0 0.0
    %8865 = vmatpush2.msra.mxu0 0.0
    %8866 = vmatprep.subr.mxu0 0.0
    %8867 = vmatpush2.msra.mxu0 0.0
    %8868 = vmatprep.subr.mxu0 0.0
    %8869 = vmatpush2.msra.mxu0 0.0
    %8870 = vmatprep.subr.mxu0 0.0
    %8871 = vmatpush2.msra.mxu0 0.0
    %8872 = vmatprep.subr.mxu0 0.0
    %8873 = vmatpush2.msra.mxu0 0.0
    %8874 = vmatprep.subr.mxu0 0.0
    %8875 = vmatpush2.msra.mxu0 0.0
    %8876 = vmatprep.mubr.f32.mxu0 0.0
    %8877 = vmatmul.mubr.f32.gmra.mxu0 %v8739
    %v8878 = vpop.f32.mrf.mxu0
    %v8879 = vadd.f32 0.0, %v8878
    %v8880 = vpop.f32.mrf.mxu0
    %8881 = vdwg.mxu0
    %v8882 = vadd.f32 %v8720, %v8808
    %v8883 = vadd.f32 %v8721, %v8810
    %v8884 = vadd.f32 %v8722, %v8879
    %v8885 = vld [vmem:[%s4349] sm:$0xff]
    %8886 = vrot.lane.b32.xlu0 %v8392, 109
    %v8887 = vpop.permute.xlu0 %8886
    %8888 = vrot.lane.b32.xlu0 %v8393, 109
    %v8889 = vpop.permute.xlu0 %8888
    %8890 = vrot.lane.b32.xlu0 %v8394, 109
    %v8891 = vpop.permute.xlu0 %8890
    %8892 = vrot.lane.b32.xlu0 %v8395, 109
    %v8893 = vpop.permute.xlu0 %8892
    %v8894 = vsel %vm1348, %v8887, %v8889
    %v8895 = vsel %vm1348, %v8889, %v8891
    %v8896 = vsel %vm1348, %v8891, %v8893
    %v8901 = vsel %vm57, %v8885, 0
    %8903 = vmatprep.subr.mxu0 0.0
    %8904 = vmatpush1.msra.mxu0 0.0
    %8905 = vmatprep.subr.mxu0 0.0
    %8906 = vmatpush1.msra.mxu0 0.0
    %8907 = vmatprep.subr.mxu0 0.0
    %8908 = vmatpush1.msra.mxu0 0.0
    %8909 = vmatprep.subr.mxu0 0.0
    %8910 = vmatpush1.msra.mxu0 0.0
    %8911 = vmatprep.subr.mxu0 0.0
    %8912 = vmatpush1.msra.mxu0 0.0
    %8913 = vmatprep.subr.mxu0 0.0
    %8914 = vmatpush1.msra.mxu0 0.0
    %8915 = vmatprep.subr.mxu0 0.0
    %8916 = vmatpush1.msra.mxu0 0.0
    %8917 = vmatprep.subr.mxu0 0.0
    %8918 = vmatpush1.msra.mxu0 0.0
    %8919 = vmatprep.subr.mxu0 0.0
    %8920 = vmatpush1.msra.mxu0 0.0
    %8921 = vmatprep.subr.mxu0 0.0
    %8922 = vmatpush1.msra.mxu0 0.0
    %8923 = vmatprep.subr.mxu0 0.0
    %8924 = vmatpush1.msra.mxu0 0.0
    %8925 = vmatprep.subr.mxu0 0.0
    %8926 = vmatpush1.msra.mxu0 0.0
    %8927 = vmatprep.subr.mxu0 0.0
    %8928 = vmatpush1.msra.mxu0 0.0
    %8929 = vmatprep.subr.mxu0 0.0
    %8930 = vmatpush1.msra.mxu0 0.0
    %8931 = vmatprep.subr.mxu0 0.0
    %8932 = vmatpush1.msra.mxu0 0.0
    %8933 = vmatprep.subr.mxu0 %v8895
    %8934 = vmatpush1.msra.mxu0 %v8894
    %8935 = vmatprep.subr.mxu0 0.0
    %8936 = vmatpush2.msra.mxu0 0.0
    %8937 = vmatprep.subr.mxu0 0.0
    %8938 = vmatpush2.msra.mxu0 0.0
    %8939 = vmatprep.subr.mxu0 0.0
    %8940 = vmatpush2.msra.mxu0 0.0
    %8941 = vmatprep.subr.mxu0 0.0
    %8942 = vmatpush2.msra.mxu0 0.0
    %8943 = vmatprep.subr.mxu0 0.0
    %8944 = vmatpush2.msra.mxu0 0.0
    %8945 = vmatprep.subr.mxu0 0.0
    %8946 = vmatpush2.msra.mxu0 0.0
    %8947 = vmatprep.subr.mxu0 0.0
    %8948 = vmatpush2.msra.mxu0 0.0
    %8949 = vmatprep.subr.mxu0 0.0
    %8950 = vmatpush2.msra.mxu0 0.0
    %8951 = vmatprep.subr.mxu0 0.0
    %8952 = vmatpush2.msra.mxu0 0.0
    %8953 = vmatprep.subr.mxu0 0.0
    %8954 = vmatpush2.msra.mxu0 0.0
    %8955 = vmatprep.subr.mxu0 0.0
    %8956 = vmatpush2.msra.mxu0 0.0
    %8957 = vmatprep.subr.mxu0 0.0
    %8958 = vmatpush2.msra.mxu0 0.0
    %8959 = vmatprep.subr.mxu0 0.0
    %8960 = vmatpush2.msra.mxu0 0.0
    %8961 = vmatprep.subr.mxu0 0.0
    %8962 = vmatpush2.msra.mxu0 0.0
    %8963 = vmatprep.subr.mxu0 0.0
    %8964 = vmatpush2.msra.mxu0 0.0
    %8965 = vmatprep.subr.mxu0 0.0
    %8966 = vmatpush2.msra.mxu0 0.0
    %8967 = vmatprep.mubr.f32.mxu0 0.0
    %8968 = vmatmul.mubr.f32.gmra.mxu0 %v8901
    %v8969 = vpop.f32.mrf.mxu0
    %v8970 = vadd.f32 0.0, %v8969
    %v8971 = vpop.f32.mrf.mxu0
    %v8972 = vadd.f32 0.0, %v8971
    %8973 = vdwg.mxu0
    %8974 = vmatprep.subr.mxu0 0.0
    %8975 = vmatpush1.msra.mxu0 0.0
    %8976 = vmatprep.subr.mxu0 0.0
    %8977 = vmatpush1.msra.mxu0 0.0
    %8978 = vmatprep.subr.mxu0 0.0
    %8979 = vmatpush1.msra.mxu0 0.0
    %8980 = vmatprep.subr.mxu0 0.0
    %8981 = vmatpush1.msra.mxu0 0.0
    %8982 = vmatprep.subr.mxu0 0.0
    %8983 = vmatpush1.msra.mxu0 0.0
    %8984 = vmatprep.subr.mxu0 0.0
    %8985 = vmatpush1.msra.mxu0 0.0
    %8986 = vmatprep.subr.mxu0 0.0
    %8987 = vmatpush1.msra.mxu0 0.0
    %8988 = vmatprep.subr.mxu0 0.0
    %8989 = vmatpush1.msra.mxu0 0.0
    %8990 = vmatprep.subr.mxu0 0.0
    %8991 = vmatpush1.msra.mxu0 0.0
    %8992 = vmatprep.subr.mxu0 0.0
    %8993 = vmatpush1.msra.mxu0 0.0
    %8994 = vmatprep.subr.mxu0 0.0
    %8995 = vmatpush1.msra.mxu0 0.0
    %8996 = vmatprep.subr.mxu0 0.0
    %8997 = vmatpush1.msra.mxu0 0.0
    %8998 = vmatprep.subr.mxu0 0.0
    %8999 = vmatpush1.msra.mxu0 0.0
    %9000 = vmatprep.subr.mxu0 0.0
    %9001 = vmatpush1.msra.mxu0 0.0
    %9002 = vmatprep.subr.mxu0 0.0
    %9003 = vmatpush1.msra.mxu0 0.0
    %9004 = vmatprep.subr.mxu0 0.0
    %9005 = vmatpush1.msra.mxu0 %v8896
    %9006 = vmatprep.subr.mxu0 0.0
    %9007 = vmatpush2.msra.mxu0 0.0
    %9008 = vmatprep.subr.mxu0 0.0
    %9009 = vmatpush2.msra.mxu0 0.0
    %9010 = vmatprep.subr.mxu0 0.0
    %9011 = vmatpush2.msra.mxu0 0.0
    %9012 = vmatprep.subr.mxu0 0.0
    %9013 = vmatpush2.msra.mxu0 0.0
    %9014 = vmatprep.subr.mxu0 0.0
    %9015 = vmatpush2.msra.mxu0 0.0
    %9016 = vmatprep.subr.mxu0 0.0
    %9017 = vmatpush2.msra.mxu0 0.0
    %9018 = vmatprep.subr.mxu0 0.0
    %9019 = vmatpush2.msra.mxu0 0.0
    %9020 = vmatprep.subr.mxu0 0.0
    %9021 = vmatpush2.msra.mxu0 0.0
    %9022 = vmatprep.subr.mxu0 0.0
    %9023 = vmatpush2.msra.mxu0 0.0
    %9024 = vmatprep.subr.mxu0 0.0
    %9025 = vmatpush2.msra.mxu0 0.0
    %9026 = vmatprep.subr.mxu0 0.0
    %9027 = vmatpush2.msra.mxu0 0.0
    %9028 = vmatprep.subr.mxu0 0.0
    %9029 = vmatpush2.msra.mxu0 0.0
    %9030 = vmatprep.subr.mxu0 0.0
    %9031 = vmatpush2.msra.mxu0 0.0
    %9032 = vmatprep.subr.mxu0 0.0
    %9033 = vmatpush2.msra.mxu0 0.0
    %9034 = vmatprep.subr.mxu0 0.0
    %9035 = vmatpush2.msra.mxu0 0.0
    %9036 = vmatprep.subr.mxu0 0.0
    %9037 = vmatpush2.msra.mxu0 0.0
    %9038 = vmatprep.mubr.f32.mxu0 0.0
    %9039 = vmatmul.mubr.f32.gmra.mxu0 %v8901
    %v9040 = vpop.f32.mrf.mxu0
    %v9041 = vadd.f32 0.0, %v9040
    %v9042 = vpop.f32.mrf.mxu0
    %9043 = vdwg.mxu0
    %v9044 = vadd.f32 %v8882, %v8970
    %v9045 = vadd.f32 %v8883, %v8972
    %v9046 = vadd.f32 %v8884, %v9041
    %9048 = vset.pattern.permute.xlu0 0
    %9049 = vperm.xlu0 %9048, %v7592
    %v9050 = vpop.permute.xlu0 %9049
    %v9052 = vadd.f32 %v9044, %v9050
    %v9053 = vadd.f32 %v9045, %v9050
    %v9054 = vadd.f32 %v9046, %v9050
    %vm9055 = vcmp.ge.f32.partialorder %v9052, 0.0
    %vm9056 = vcmp.ge.f32.partialorder %v9053, 0.0
    %vm9057 = vcmp.ge.f32.partialorder %v9054, 0.0
    %v9058 = vmul.f32 %v9052, 0.01
    %v9059 = vmul.f32 %v9053, 0.01
    %v9060 = vmul.f32 %v9054, 0.01
    %v9061 = vsel %vm9055, %v9052, %v9058
    %v9062 = vsel %vm9056, %v9053, %v9059
    %v9063 = vsel %vm9057, %v9054, %v9060
    %v9064 = vld [vmem:[%s4 + $0x1] sm:$0x7]
    %v9066 = vlaneseq
    %v9067 = vshrl.u32 %v9066, 7
    %v9068 = vsub.s32 0, %v9067
    %v9069 = vrot.slane %v9064, %v9068
    %v9070 = vlaneseq
    %v9071 = vshrl.u32 %v9070, 7
    %v9072 = vsub.s32 1, %v9071
    %v9073 = vrot.slane %v9064, %v9072
    %v9074 = vlaneseq
    %v9075 = vshrl.u32 %v9074, 7
    %v9076 = vsub.s32 2, %v9075
    %v9077 = vrot.slane %v9064, %v9076
    %v9081 = vmul.f32 %v9061, %v9069
    %v9082 = vmul.f32 %v9062, %v9073
    %v9083 = vmul.f32 %v9063, %v9077
    %9084 = vst [vmem:[#allocation2 + $0x8] sm:$0xff] %v9081
    %9085 = vst [vmem:[#allocation2 + $0x10] sm:$0xff] %v9082
    %9086 = vst [vmem:[#allocation2 + $0x18] sm:$0xff] %v9083
    %v9087 = vld [vmem:[%s4603 + $0x8] sm:$0xff]
    %v9088 = vld [vmem:[%s4603 + $0x10] sm:$0xff]
    %v9089 = vld [vmem:[%s4603 + $0x18] sm:$0xff]
    %v9090 = vld [vmem:[#allocation2 + $0x8] sm:$0xff]
    %v9091 = vld [vmem:[#allocation2 + $0x10] sm:$0xff]
    %v9092 = vld [vmem:[#allocation2 + $0x18] sm:$0xff]
    %v9093 = vmul.f32 %v4558, %v9087
    %v9094 = vmul.f32 %v4558, %v9088
    %v9095 = vmul.f32 %v4558, %v9089
    %v9096 = vmul.f32 %v4563, %v9090
    %v9097 = vmul.f32 %v4563, %v9091
    %v9098 = vmul.f32 %v4563, %v9092
    %v9099 = vadd.f32 %v9093, %v9096
    %v9100 = vadd.f32 %v9094, %v9097
    %v9101 = vadd.f32 %v9095, %v9098
    %s9102 = scalar_lea.vmem [#allocation5], 40
    %9103 = vst [vmem:[%s9102 + $0x8] sm:$0xff] %v9099
    %9104 = vst [vmem:[%s9102 + $0x10] sm:$0xff] %v9100
    %9105 = vst [vmem:[%s9102 + $0x18] sm:$0xff] %v9101
    %v9106 = vmul.f32 %v9087, %v9087
    %v9107 = vmul.f32 %v9088, %v9088
    %v9108 = vmul.f32 %v9089, %v9089
    %v9109 = vadd.f32 %v9106, %v9107
    %v9110 = vadd.f32 %v9109, %v9108
    %9111 = vadd.xlane.f32.xlu0 %v9110
    %v9112 = vpop.xlane.xlu0 %9111
    %v9113 = vrot.slane %v9112, 4
    %v9114 = vadd.f32 %v9112, %v9113
    %v9115 = vrot.slane %v9114, 2
    %v9116 = vadd.f32 %v9114, %v9115
    %v9117 = vrot.slane %v9116, 1
    %v9118 = vadd.f32 %v9116, %v9117
    %v9119 = vadd.f32 %v4586, %v9118
    %v9120 = vmul.f32 %v9099, %v9099
    %v9121 = vmul.f32 %v9100, %v9100
    %v9122 = vmul.f32 %v9101, %v9101
    %v9123 = vadd.f32 %v9120, %v9121
    %v9124 = vadd.f32 %v9123, %v9122
    %9125 = vadd.xlane.f32.xlu0 %v9124
    %v9126 = vpop.xlane.xlu0 %9125
    %v9127 = vrot.slane %v9126, 4
    %v9128 = vadd.f32 %v9126, %v9127
    %v9129 = vrot.slane %v9128, 2
    %v9130 = vadd.f32 %v9128, %v9129
    %v9131 = vrot.slane %v9130, 1
    %v9132 = vadd.f32 %v9130, %v9131
    %v9133 = vadd.f32 %v4600, %v9132
    %v9134 = vlaneseq
    %v9135 = vshrl.u32 %v9134, 7
    %vm9136 = vcmp.eq.s32.totalorder %v9135, 0
    %v9137 = vsel %vm9136, %v9119, %v9133
    %9138 = vst [vmem:[#allocation7] sm:$0x3] %v9137
    // Predicated region
    $region22: #{tpu_custom_call.1} parent=1 // pred_check
      _
    $region23: #{tpu_custom_call.1} parent=1 // pred_check_branch
      %9140 = sbr.rel (0) target = $region25
    $region24: #{tpu_custom_call.1} parent=1 // pred_region
      %s9142 = ssub.s32 1280, 1280
      %9143 = vsyncadd [#allocation6], %s9142
      %s9144 = sshll.u32 [#allocation5], 4
      %s9145 = int_to_ptr.vmem [resolvable:$true] %s9144
      %9150 = dma.vmem_to_hbm [thread:$0]  %s9145, 1280, %s5, [#allocation6], 640, 640, 40
    $region25: #{tpu_custom_call.1} parent=1 // pred_fallthru
      _
    // Predicated region
    $region26: #{tpu_custom_call.1} parent=1 // pred_check
      _
    $region27: #{tpu_custom_call.1} parent=1 // pred_check_branch
      %9152 = sbr.rel (0) target = $region29
    $region28: #{tpu_custom_call.1} parent=1 // pred_region
      %s9154 = ssub.s32 32, 32
      %9155 = vsyncadd [#allocation8], %s9154
      %s9157 = sshll.u32 [#allocation7], 4
      %s9158 = int_to_ptr.vmem [resolvable:$true] %s9157
      %9160 = dma.vmem_to_hbm [thread:$0]  %s9158, 32, %s6, [#allocation8]
    $region29: #{tpu_custom_call.1} parent=1 // pred_fallthru
      _
    // Predicated region
    $region30: #{tpu_custom_call.1} parent=1 // pred_check
      _
    $region31: #{tpu_custom_call.1} parent=1 // pred_check_branch
      %9162 = sbr.rel (0) target = $region33
    $region32: #{tpu_custom_call.1} parent=1 // pred_region
      %9163 = dma.done [#allocation6], 1280
    $region33: #{tpu_custom_call.1} parent=1 // pred_fallthru
      _
    // Predicated region
    $region34: #{tpu_custom_call.1} parent=1 // pred_check
      _
    $region35: #{tpu_custom_call.1} parent=1 // pred_check_branch
      %9165 = sbr.rel (0) target = $region37
    $region36: #{tpu_custom_call.1} parent=1 // pred_region
      %9166 = dma.done [#allocation8], 32
    $region37: #{tpu_custom_call.1} parent=1 // pred_fallthru
      _
    %9167 = vsyncpa [#allocation6], 1
    %9168 = vsyncpa [#allocation8], 1

</llo_original>
